<compile_context>
chip_gen: v7x
topology: tpu7x:2x2x1
jax: 0.10.0
libtpu: 0.0.40
codegen_flags: <defaults>
</compile_context>

<pallas_src>
import functools

import jax
import jax.numpy as jnp
from jax.experimental import pallas as pl
from jax.experimental.pallas import tpu as pltpu

BN_EPS = 1e-5


# ------------------------------ Pallas kernel ------------------------------
def _basic_block_kernel(*refs, stride, h, w, oh, ow, cin, c1, has_down):
    """Fused BasicBlock forward for one batch element.

    refs = (x, w1, s1, b1, w2, s2, b2, [wsc, ssc, bsc], out,
            xh_scratch, hh_scratch, p1_scratch, p2_scratch)

      x        : bf16 [h, w, cin]                      (stride 1), or the free
                 phase view [h/2, 2, w/2, 2*cin]       (stride 2)
      w1       : bf16 [9*cin, c1]   tap-major 3x3 weights
      w2       : bf16 [9*c1,  c1]
      wsc      : bf16 [cin, c1]     1x1 shortcut weights (if present)
      s*/b*    : f32  [1, C]        folded BN scale / shift
      out      : bf16 [oh, ow, c1]
      xh       : bf16 VMEM padded input (1-px halo); phase-packed for stride 2
      hh       : bf16 VMEM [oh+2, ow+2, c1]  padded conv1 output
      p1/p2    : bf16 VMEM [oh*ow, 9*cin] / [oh*ow, 9*c1]   im2col slabs
    """
    s = stride
    x_ref = refs[0]
    w1_ref, s1_ref, b1_ref, w2_ref, s2_ref, b2_ref = refs[1:7]
    idx = 7
    if has_down:
        wsc_ref, ssc_ref, bsc_ref = refs[idx:idx + 3]
        idx += 3
    o_ref = refs[idx]
    xh_ref, hh_ref, p1_ref, p2_ref = refs[idx + 1:idx + 5]

    m = oh * ow
    bf16 = jnp.bfloat16

    # ---- build the zero-padded (1-px halo) input in VMEM (no HBM round trip) ----
    if s == 1:
        # xh_ref: (h+2, w+2, cin).  Zero only the halo ring; interior overwritten.
        xh_ref[0:1, :, :] = jnp.zeros((1, w + 2, cin), bf16)
        xh_ref[h + 1:h + 2, :, :] = jnp.zeros((1, w + 2, cin), bf16)
        xh_ref[:, 0:1, :] = jnp.zeros((h + 2, 1, cin), bf16)
        xh_ref[:, w + 1:w + 2, :] = jnp.zeros((h + 2, 1, cin), bf16)
        xh_ref[1:h + 1, 1:w + 1, :] = x_ref[...]

        def x_tap(di, dj):
            return xh_ref[di:di + oh, dj:dj + ow, :].reshape(m, cin)
    else:
        # Stride-2: phase-packed padded input so every tap is a unit-stride slice.
        #   xh_ref[A, P, B, Q*cin + c] == x_padded[2*A + P, 2*B + Q, c]
        #   x_ref [a, p, b, q*cin + c] == x      [2*a + p, 2*b + q, c]
        h2, w2 = h // 2, w // 2
        # halo ring only (top/bottom padded rows, left/right padded columns)
        xh_ref[0:1, 0:1, :, :] = jnp.zeros((1, 1, w2 + 1, 2 * cin), bf16)
        xh_ref[h2:h2 + 1, 1:2, :, :] = jnp.zeros((1, 1, w2 + 1, 2 * cin), bf16)
        xh_ref[:, :, 0:1, 0:cin] = jnp.zeros((h2 + 1, 2, 1, cin), bf16)
        xh_ref[:, :, w2:w2 + 1, cin:2 * cin] = jnp.zeros((h2 + 1, 2, 1, cin), bf16)
        # interior: the +1 pad flips row/column parity, hence the phase swap.
        xh_ref[0:h2, 1:2, 0:w2, cin:2 * cin] = x_ref[:, 0:1, :, 0:cin]
        xh_ref[0:h2, 1:2, 1:w2 + 1, 0:cin] = x_ref[:, 0:1, :, cin:2 * cin]
        xh_ref[1:h2 + 1, 0:1, 0:w2, cin:2 * cin] = x_ref[:, 1:2, :, 0:cin]
        xh_ref[1:h2 + 1, 0:1, 1:w2 + 1, 0:cin] = x_ref[:, 1:2, :, cin:2 * cin]

        def x_tap(di, dj):
            qi, ri = di // 2, di % 2
            qj, rj = dj // 2, dj % 2
            t = xh_ref[qi:qi + oh, ri:ri + 1, qj:qj + ow,
                       rj * cin:(rj + 1) * cin]
            return t.reshape(m, cin)

    # ---- conv1 (3x3, stride s, pad 1): one K=9*cin MXU dot over an im2col slab ----
    t = 0
    for di in range(3):
        for dj in range(3):
            p1_ref[:, t * cin:(t + 1) * cin] = x_tap(di, dj)
            t += 1
    acc1 = jnp.dot(p1_ref[...], w1_ref[...], preferred_element_type=jnp.float32)
    y1 = jnp.maximum(acc1 * s1_ref[...] + b1_ref[...], 0.0)       # BN1 + ReLU (f32)

    # ---- shortcut branch (tap (1,1) of the slab == x at the strided positions) ----
    x_center = p1_ref[:, 4 * cin:5 * cin]
    if has_down:
        sc = jnp.dot(x_center, wsc_ref[...], preferred_element_type=jnp.float32)
        sc = sc * ssc_ref[...] + bsc_ref[...]                      # 1x1 conv + BN
    else:
        sc = x_center.astype(jnp.float32)                          # identity

    # ---- stage conv1 output in bf16 with a 1-px zero halo (ring-only zeroing) ----
    hh_ref[0:1, :, :] = jnp.zeros((1, ow + 2, c1), bf16)
    hh_ref[oh + 1:oh + 2, :, :] = jnp.zeros((1, ow + 2, c1), bf16)
    hh_ref[:, 0:1, :] = jnp.zeros((oh + 2, 1, c1), bf16)
    hh_ref[:, ow + 1:ow + 2, :] = jnp.zeros((oh + 2, 1, c1), bf16)
    hh_ref[1:oh + 1, 1:ow + 1, :] = y1.reshape(oh, ow, c1).astype(bf16)

    # ---- conv2 (3x3, stride 1, pad 1): one K=9*c1 dot + BN2 + residual + ReLU ----
    t = 0
    for di in range(3):
        for dj in range(3):
            p2_ref[:, t * c1:(t + 1) * c1] = \
                hh_ref[di:di + oh, dj:dj + ow, :].reshape(m, c1)
            t += 1
    acc2 = jnp.dot(p2_ref[...], w2_ref[...], preferred_element_type=jnp.float32)
    y2 = jnp.maximum(acc2 * s2_ref[...] + b2_ref[...] + sc, 0.0)
    o_ref[...] = y2.reshape(oh, ow, c1).astype(o_ref.dtype)


# ------------------------------ wrapper ------------------------------
def basic_block_pallas(x, p):
    """x: [N, H, W, Cin] (any float dtype, NHWC). Returns bf16 [N, oh, ow, C]."""
    n, h, w, cin = x.shape
    s = p["stride"]
    c1 = p["s1"].shape[-1]
    oh = (h - 1) // s + 1
    ow = (w - 1) // s + 1
    has_down = "wsc" in p

    xb = x.astype(jnp.bfloat16)
    if s == 1:
        x_in = xb                                        # (n, h, w, cin)
        xh_shape = (h + 2, w + 2, cin)
    else:
        # TODO(synk): odd spatial sizes with stride 2 need a generic halo path.
        assert s == 2 and h % 2 == 0 and w % 2 == 0
        # Free contiguous view (pure metadata reshape, no HBM traffic): pairs the
        # two W-phases along the lane dim and exposes the two H-phases as a dim.
        x_in = xb.reshape(n, h // 2, 2, w // 2, 2 * cin)
        xh_shape = (h // 2 + 1, 2, w // 2 + 1, 2 * cin)

    def x_spec(a):
        nd = a.ndim
        return pl.BlockSpec((None,) + a.shape[1:],
                            lambda i, _nd=nd: (i,) + (0,) * (_nd - 1))

    def full_spec(a):
        nd = a.ndim
        return pl.BlockSpec(a.shape, lambda i, _nd=nd: (0,) * _nd)

    args = [x_in, p["w1"], p["s1"], p["b1"], p["w2"], p["s2"], p["b2"]]
    in_specs = [x_spec(x_in)] + [full_spec(a) for a in args[1:]]
    if has_down:
        args += [p["wsc"], p["ssc"], p["bsc"]]
        in_specs += [full_spec(p["wsc"]), full_spec(p["ssc"]), full_spec(p["bsc"])]

    kernel = functools.partial(_basic_block_kernel, stride=s, h=h, w=w,
                               oh=oh, ow=ow, cin=cin, c1=c1, has_down=has_down)

    m = oh * ow
    return pl.pallas_call(
        kernel,
        grid=(n,),                                       # batch-parallel grid
        in_specs=in_specs,
        out_specs=pl.BlockSpec((None, oh, ow, c1), lambda i: (i, 0, 0, 0)),
        out_shape=jax.ShapeDtypeStruct((n, oh, ow, c1), jnp.bfloat16),
        scratch_shapes=[
            pltpu.VMEM(xh_shape, jnp.bfloat16),          # padded (halo) input
            pltpu.VMEM((oh + 2, ow + 2, c1), jnp.bfloat16),  # padded conv1 output
            pltpu.VMEM((m, 9 * cin), jnp.bfloat16),      # im2col slab, conv1
            pltpu.VMEM((m, 9 * c1), jnp.bfloat16),       # im2col slab, conv2
        ],
        compiler_params=pltpu.CompilerParams(
            dimension_semantics=("parallel",)),
    )(*args)


def forward(x_nchw, blocks):
    x = jnp.transpose(x_nchw, (0, 2, 3, 1)).astype(jnp.bfloat16)   # NCHW -> NHWC
    for p in blocks:
        x = basic_block_pallas(x, p)
    return jnp.transpose(x.astype(jnp.float32), (0, 3, 1, 2))      # NHWC -> NCHW


# ------------------------------ parameters ------------------------------
def make_block_params(key, in_planes, planes, stride):
    ks = jax.random.split(key, 6)

    def conv_w(k, out_c, in_c, ksize):
        w = 0.1 * jax.random.normal(k, (ksize, ksize, in_c, out_c), jnp.float32)
        return w.astype(jnp.bfloat16)                   # HWIO, bf16 compute dtype

    def bn(k, c):                                       # folded eval-mode BN
        k1, k2, k3, k4 = jax.random.split(k, 4)
        gamma = 1.0 + 0.1 * jax.random.normal(k1, (c,), jnp.float32)
        beta = 0.1 * jax.random.normal(k2, (c,), jnp.float32)
        mean = 0.1 * jax.random.normal(k3, (c,), jnp.float32)
        var = jax.random.uniform(k4, (c,), jnp.float32, minval=0.5, maxval=1.5)
        scale = gamma * jax.lax.rsqrt(var + BN_EPS)
        shift = beta - mean * scale
        return scale.reshape(1, c), shift.reshape(1, c)

    p = {"stride": stride}
    w1 = conv_w(ks[0], planes, in_planes, 3)
    p["w1"] = w1.reshape(9 * in_planes, planes)         # tap-major (9*Cin, C)
    p["w1_hwio"] = w1.astype(jnp.float32)
    p["s1"], p["b1"] = bn(ks[1], planes)
    w2 = conv_w(ks[2], planes, planes, 3)
    p["w2"] = w2.reshape(9 * planes, planes)
    p["w2_hwio"] = w2.astype(jnp.float32)
    p["s2"], p["b2"] = bn(ks[3], planes)
    if stride != 1 or in_planes != planes:              # BasicBlock.expansion == 1
        wsc = conv_w(ks[4], planes, in_planes, 1)
        p["wsc"] = wsc.reshape(in_planes, planes)
        p["wsc_hwio"] = wsc.astype(jnp.float32)
        p["ssc"], p["bsc"] = bn(ks[5], planes)
    return p


# ------------------------------ pure-JAX reference ------------------------------
def _basic_block_ref(x, p):
    hi = jax.lax.Precision.HIGHEST
    s = p["stride"]
    dn = ("NHWC", "HWIO", "NHWC")
    xb = x.astype(jnp.bfloat16).astype(jnp.float32)
    h = jax.lax.conv_general_dilated(xb, p["w1_hwio"], (s, s), [(1, 1), (1, 1)],
                                     dimension_numbers=dn, precision=hi)
    h = jnp.maximum(h * p["s1"].reshape(1, 1, 1, -1) + p["b1"].reshape(1, 1, 1, -1), 0.0)
    h = h.astype(jnp.bfloat16).astype(jnp.float32)      # kernel stages conv1 out as bf16
    y = jax.lax.conv_general_dilated(h, p["w2_hwio"], (1, 1), [(1, 1), (1, 1)],
                                     dimension_numbers=dn, precision=hi)
    y = y * p["s2"].reshape(1, 1, 1, -1) + p["b2"].reshape(1, 1, 1, -1)
    if "wsc" in p:
        sc = jax.lax.conv_general_dilated(xb, p["wsc_hwio"], (s, s), [(0, 0), (0, 0)],
                                          dimension_numbers=dn, precision=hi)
        sc = sc * p["ssc"].reshape(1, 1, 1, -1) + p["bsc"].reshape(1, 1, 1, -1)
    else:
        sc = xb
    return jnp.maximum(y + sc, 0.0)


def forward_ref(x_nchw, blocks):
    x = jnp.transpose(x_nchw, (0, 2, 3, 1)).astype(jnp.float32)
    for p in blocks:
        x = _basic_block_ref(x, p)
        x = x.astype(jnp.bfloat16).astype(jnp.float32)  # kernel emits bf16 activations
    return jnp.transpose(x, (0, 3, 1, 2))


# ------------------------------ demo ------------------------------
if __name__ == "__main__":
    key = jax.random.PRNGKey(0)
    kx, k1, k2 = jax.random.split(key, 3)

    # NCHW input [2, 32, 16, 16]; a downsampling block (stride 2, 32->64, uses the
    # 1x1 conv shortcut) followed by an identity block (stride 1, 64->64).
    x = jax.random.normal(kx, (2, 32, 16, 16), jnp.float32)
    blocks = [
        make_block_params(k1, in_planes=32, planes=64, stride=2),
        make_block_params(k2, in_planes=64, planes=64, stride=1),
    ]

    fwd = jax.jit(lambda inp: forward(inp, blocks))
    out = fwd(x)
    jax.block_until_ready(out)

    ref = forward_ref(x, blocks)

    assert out.shape == (2, 64, 8, 8), out.shape
    assert out.dtype == jnp.float32
    assert bool(jnp.all(jnp.isfinite(out)))
    max_err = float(jnp.max(jnp.abs(out - ref)))
    assert bool(jnp.allclose(out, ref, rtol=5e-2, atol=5e-2)), f"max abs err {max_err}"
    print("KERNEL_OK")
</pallas_src>

<mosaic_0001>
module attributes {stable_mosaic.version = 11 : i64} {
  func.func @_basic_block_kernel(%arg0: i32, %arg1: memref<1x8x2x8x64xbf16, #tpu.memory_space<vmem>>, %arg2: memref<288x64xbf16, #tpu.memory_space<vmem>>, %arg3: memref<1x64xf32, #tpu.memory_space<vmem>>, %arg4: memref<1x64xf32, #tpu.memory_space<vmem>>, %arg5: memref<576x64xbf16, #tpu.memory_space<vmem>>, %arg6: memref<1x64xf32, #tpu.memory_space<vmem>>, %arg7: memref<1x64xf32, #tpu.memory_space<vmem>>, %arg8: memref<32x64xbf16, #tpu.memory_space<vmem>>, %arg9: memref<1x64xf32, #tpu.memory_space<vmem>>, %arg10: memref<1x64xf32, #tpu.memory_space<vmem>>, %arg11: memref<1x8x8x64xbf16, #tpu.memory_space<vmem>>, %arg12: memref<9x2x9x64xbf16, #tpu.memory_space<vmem>>, %arg13: memref<10x10x64xbf16, #tpu.memory_space<vmem>>, %arg14: memref<64x288xbf16, #tpu.memory_space<vmem>>, %arg15: memref<64x576xbf16, #tpu.memory_space<vmem>>) attributes {dimension_semantics = [#tpu.dimension_semantics<parallel>], iteration_bounds = array<i64: 2>, scalar_prefetch = 0 : i64, scratch_operands = 4 : i64, tpu.core_type = #tpu.core_type<tc>, window_params = [{transform_indices = @transform_0, window_bounds = array<i64: 1, 8, 2, 8, 64>}, {pipeline_mode = #tpu.pipeline_mode<synchronous>, transform_indices = @transform_1, window_bounds = array<i64: 288, 64>}, {pipeline_mode = #tpu.pipeline_mode<synchronous>, transform_indices = @transform_2, window_bounds = array<i64: 1, 64>}, {pipeline_mode = #tpu.pipeline_mode<synchronous>, transform_indices = @transform_3, window_bounds = array<i64: 1, 64>}, {pipeline_mode = #tpu.pipeline_mode<synchronous>, transform_indices = @transform_4, window_bounds = array<i64: 576, 64>}, {pipeline_mode = #tpu.pipeline_mode<synchronous>, transform_indices = @transform_5, window_bounds = array<i64: 1, 64>}, {pipeline_mode = #tpu.pipeline_mode<synchronous>, transform_indices = @transform_6, window_bounds = array<i64: 1, 64>}, {pipeline_mode = #tpu.pipeline_mode<synchronous>, transform_indices = @transform_7, window_bounds = array<i64: 32, 64>}, {pipeline_mode = #tpu.pipeline_mode<synchronous>, transform_indices = @transform_8, window_bounds = array<i64: 1, 64>}, {pipeline_mode = #tpu.pipeline_mode<synchronous>, transform_indices = @transform_9, window_bounds = array<i64: 1, 64>}, {transform_indices = @transform_10, window_bounds = array<i64: 1, 8, 8, 64>}]} {
    %cst = arith.constant 0.000000e+00 : bf16
    %0 = vector.broadcast %cst : bf16 to vector<1x1x9x64xbf16>
    %c0 = arith.constant 0 : index
    %c0_0 = arith.constant 0 : index
    %c0_1 = arith.constant 0 : index
    %c0_2 = arith.constant 0 : index
    %1 = vector.load %arg12[%c0, %c0_0, %c0_1, %c0_2] : memref<9x2x9x64xbf16, #tpu.memory_space<vmem>>, vector<1x1x9x64xbf16>
    tpu.vector_store %arg12[%c0, %c0_0, %c0_1, %c0_2], %0 {strides = array<i32>} : memref<9x2x9x64xbf16, #tpu.memory_space<vmem>>, vector<1x1x9x64xbf16>,
    %cst_3 = arith.constant 0.000000e+00 : bf16
    %2 = vector.broadcast %cst_3 : bf16 to vector<1x1x9x64xbf16>
    %c8 = arith.constant 8 : index
    %c1 = arith.constant 1 : index
    %c0_4 = arith.constant 0 : index
    %c0_5 = arith.constant 0 : index
    %3 = vector.load %arg12[%c8, %c1, %c0_4, %c0_5] : memref<9x2x9x64xbf16, #tpu.memory_space<vmem>>, vector<1x1x9x64xbf16>
    tpu.vector_store %arg12[%c8, %c1, %c0_4, %c0_5], %2 {strides = array<i32>} : memref<9x2x9x64xbf16, #tpu.memory_space<vmem>>, vector<1x1x9x64xbf16>,
    %cst_6 = arith.constant 0.000000e+00 : bf16
    %4 = vector.broadcast %cst_6 : bf16 to vector<9x2x1x32xbf16>
    %c0_7 = arith.constant 0 : index
    %c0_8 = arith.constant 0 : index
    %c0_9 = arith.constant 0 : index
    %c0_10 = arith.constant 0 : index
    %5 = vector.load %arg12[%c0_7, %c0_8, %c0_9, %c0_10] : memref<9x2x9x64xbf16, #tpu.memory_space<vmem>>, vector<9x2x1x32xbf16>
    tpu.vector_store %arg12[%c0_7, %c0_8, %c0_9, %c0_10], %4 {strides = array<i32>} : memref<9x2x9x64xbf16, #tpu.memory_space<vmem>>, vector<9x2x1x32xbf16>,
    %cst_11 = arith.constant 0.000000e+00 : bf16
    %6 = vector.broadcast %cst_11 : bf16 to vector<9x2x1x32xbf16>
    %c0_12 = arith.constant 0 : index
    %c0_13 = arith.constant 0 : index
    %c8_14 = arith.constant 8 : index
    %c32 = arith.constant 32 : index
    %7 = vector.load %arg12[%c0_12, %c0_13, %c8_14, %c32] : memref<9x2x9x64xbf16, #tpu.memory_space<vmem>>, vector<9x2x1x32xbf16>
    tpu.vector_store %arg12[%c0_12, %c0_13, %c8_14, %c32], %6 {strides = array<i32>} : memref<9x2x9x64xbf16, #tpu.memory_space<vmem>>, vector<9x2x1x32xbf16>,
    %c0_15 = arith.constant 0 : index
    %c0_16 = arith.constant 0 : index
    %c0_17 = arith.constant 0 : index
    %c0_18 = arith.constant 0 : index
    %c0_19 = arith.constant 0 : index
    %8 = vector.load %arg1[%c0_15, %c0_16, %c0_17, %c0_18, %c0_19] : memref<1x8x2x8x64xbf16, #tpu.memory_space<vmem>>, vector<1x8x1x8x32xbf16>
    %9 = vector.shape_cast %8 : vector<1x8x1x8x32xbf16> to vector<8x1x8x32xbf16>
    %c0_20 = arith.constant 0 : index
    %c1_21 = arith.constant 1 : index
    %c0_22 = arith.constant 0 : index
    %c32_23 = arith.constant 32 : index
    %10 = vector.load %arg12[%c0_20, %c1_21, %c0_22, %c32_23] : memref<9x2x9x64xbf16, #tpu.memory_space<vmem>>, vector<8x1x8x32xbf16>
    tpu.vector_store %arg12[%c0_20, %c1_21, %c0_22, %c32_23], %9 {strides = array<i32>} : memref<9x2x9x64xbf16, #tpu.memory_space<vmem>>, vector<8x1x8x32xbf16>,
    %c0_24 = arith.constant 0 : index
    %c0_25 = arith.constant 0 : index
    %c0_26 = arith.constant 0 : index
    %c0_27 = arith.constant 0 : index
    %c32_28 = arith.constant 32 : index
    %11 = vector.load %arg1[%c0_24, %c0_25, %c0_26, %c0_27, %c32_28] : memref<1x8x2x8x64xbf16, #tpu.memory_space<vmem>>, vector<1x8x1x8x32xbf16>
    %12 = vector.shape_cast %11 : vector<1x8x1x8x32xbf16> to vector<8x1x8x32xbf16>
    %c0_29 = arith.constant 0 : index
    %c1_30 = arith.constant 1 : index
    %c1_31 = arith.constant 1 : index
    %c0_32 = arith.constant 0 : index
    %13 = vector.load %arg12[%c0_29, %c1_30, %c1_31, %c0_32] : memref<9x2x9x64xbf16, #tpu.memory_space<vmem>>, vector<8x1x8x32xbf16>
    tpu.vector_store %arg12[%c0_29, %c1_30, %c1_31, %c0_32], %12 {strides = array<i32>} : memref<9x2x9x64xbf16, #tpu.memory_space<vmem>>, vector<8x1x8x32xbf16>,
    %c0_33 = arith.constant 0 : index
    %c0_34 = arith.constant 0 : index
    %c1_35 = arith.constant 1 : index
    %c0_36 = arith.constant 0 : index
    %c0_37 = arith.constant 0 : index
    %14 = vector.load %arg1[%c0_33, %c0_34, %c1_35, %c0_36, %c0_37] : memref<1x8x2x8x64xbf16, #tpu.memory_space<vmem>>, vector<1x8x1x8x32xbf16>
    %15 = vector.shape_cast %14 : vector<1x8x1x8x32xbf16> to vector<8x1x8x32xbf16>
    %c1_38 = arith.constant 1 : index
    %c0_39 = arith.constant 0 : index
    %c0_40 = arith.constant 0 : index
    %c32_41 = arith.constant 32 : index
    %16 = vector.load %arg12[%c1_38, %c0_39, %c0_40, %c32_41] : memref<9x2x9x64xbf16, #tpu.memory_space<vmem>>, vector<8x1x8x32xbf16>
    tpu.vector_store %arg12[%c1_38, %c0_39, %c0_40, %c32_41], %15 {strides = array<i32>} : memref<9x2x9x64xbf16, #tpu.memory_space<vmem>>, vector<8x1x8x32xbf16>,
    %c0_42 = arith.constant 0 : index
    %c0_43 = arith.constant 0 : index
    %c1_44 = arith.constant 1 : index
    %c0_45 = arith.constant 0 : index
    %c32_46 = arith.constant 32 : index
    %17 = vector.load %arg1[%c0_42, %c0_43, %c1_44, %c0_45, %c32_46] : memref<1x8x2x8x64xbf16, #tpu.memory_space<vmem>>, vector<1x8x1x8x32xbf16>
    %18 = vector.shape_cast %17 : vector<1x8x1x8x32xbf16> to vector<8x1x8x32xbf16>
    %c1_47 = arith.constant 1 : index
    %c0_48 = arith.constant 0 : index
    %c1_49 = arith.constant 1 : index
    %c0_50 = arith.constant 0 : index
    %19 = vector.load %arg12[%c1_47, %c0_48, %c1_49, %c0_50] : memref<9x2x9x64xbf16, #tpu.memory_space<vmem>>, vector<8x1x8x32xbf16>
    tpu.vector_store %arg12[%c1_47, %c0_48, %c1_49, %c0_50], %18 {strides = array<i32>} : memref<9x2x9x64xbf16, #tpu.memory_space<vmem>>, vector<8x1x8x32xbf16>,
    %c0_51 = arith.constant 0 : index
    %c0_52 = arith.constant 0 : index
    %c0_53 = arith.constant 0 : index
    %c0_54 = arith.constant 0 : index
    %20 = vector.load %arg12[%c0_51, %c0_52, %c0_53, %c0_54] : memref<9x2x9x64xbf16, #tpu.memory_space<vmem>>, vector<8x1x8x32xbf16>
    %21 = vector.shape_cast %20 : vector<8x1x8x32xbf16> to vector<64x32xbf16>
    %c0_55 = arith.constant 0 : index
    %c0_56 = arith.constant 0 : index
    %22 = vector.load %arg14[%c0_55, %c0_56] : memref<64x288xbf16, #tpu.memory_space<vmem>>, vector<64x32xbf16>
    tpu.vector_store %arg14[%c0_55, %c0_56], %21 {strides = array<i32>} : memref<64x288xbf16, #tpu.memory_space<vmem>>, vector<64x32xbf16>,
    %c0_57 = arith.constant 0 : index
    %c0_58 = arith.constant 0 : index
    %c0_59 = arith.constant 0 : index
    %c32_60 = arith.constant 32 : index
    %23 = vector.load %arg12[%c0_57, %c0_58, %c0_59, %c32_60] : memref<9x2x9x64xbf16, #tpu.memory_space<vmem>>, vector<8x1x8x32xbf16>
    %24 = vector.shape_cast %23 : vector<8x1x8x32xbf16> to vector<64x32xbf16>
    %c0_61 = arith.constant 0 : index
    %c32_62 = arith.constant 32 : index
    %25 = vector.load %arg14[%c0_61, %c32_62] : memref<64x288xbf16, #tpu.memory_space<vmem>>, vector<64x32xbf16>
    tpu.vector_store %arg14[%c0_61, %c32_62], %24 {strides = array<i32>} : memref<64x288xbf16, #tpu.memory_space<vmem>>, vector<64x32xbf16>,
    %c0_63 = arith.constant 0 : index
    %c0_64 = arith.constant 0 : index
    %c1_65 = arith.constant 1 : index
    %c0_66 = arith.constant 0 : index
    %26 = vector.load %arg12[%c0_63, %c0_64, %c1_65, %c0_66] : memref<9x2x9x64xbf16, #tpu.memory_space<vmem>>, vector<8x1x8x32xbf16>
    %27 = vector.shape_cast %26 : vector<8x1x8x32xbf16> to vector<64x32xbf16>
    %c0_67 = arith.constant 0 : index
    %c64 = arith.constant 64 : index
    %28 = vector.load %arg14[%c0_67, %c64] : memref<64x288xbf16, #tpu.memory_space<vmem>>, vector<64x32xbf16>
    tpu.vector_store %arg14[%c0_67, %c64], %27 {strides = array<i32>} : memref<64x288xbf16, #tpu.memory_space<vmem>>, vector<64x32xbf16>,
    %c0_68 = arith.constant 0 : index
    %c1_69 = arith.constant 1 : index
    %c0_70 = arith.constant 0 : index
    %c0_71 = arith.constant 0 : index
    %29 = vector.load %arg12[%c0_68, %c1_69, %c0_70, %c0_71] : memref<9x2x9x64xbf16, #tpu.memory_space<vmem>>, vector<8x1x8x32xbf16>
    %30 = vector.shape_cast %29 : vector<8x1x8x32xbf16> to vector<64x32xbf16>
    %c0_72 = arith.constant 0 : index
    %c96 = arith.constant 96 : index
    %31 = vector.load %arg14[%c0_72, %c96] : memref<64x288xbf16, #tpu.memory_space<vmem>>, vector<64x32xbf16>
    tpu.vector_store %arg14[%c0_72, %c96], %30 {strides = array<i32>} : memref<64x288xbf16, #tpu.memory_space<vmem>>, vector<64x32xbf16>,
    %c0_73 = arith.constant 0 : index
    %c1_74 = arith.constant 1 : index
    %c0_75 = arith.constant 0 : index
    %c32_76 = arith.constant 32 : index
    %32 = vector.load %arg12[%c0_73, %c1_74, %c0_75, %c32_76] : memref<9x2x9x64xbf16, #tpu.memory_space<vmem>>, vector<8x1x8x32xbf16>
    %33 = vector.shape_cast %32 : vector<8x1x8x32xbf16> to vector<64x32xbf16>
    %c0_77 = arith.constant 0 : index
    %c128 = arith.constant 128 : index
    %34 = vector.load %arg14[%c0_77, %c128] : memref<64x288xbf16, #tpu.memory_space<vmem>>, vector<64x32xbf16>
    tpu.vector_store %arg14[%c0_77, %c128], %33 {strides = array<i32>} : memref<64x288xbf16, #tpu.memory_space<vmem>>, vector<64x32xbf16>,
    %c0_78 = arith.constant 0 : index
    %c1_79 = arith.constant 1 : index
    %c1_80 = arith.constant 1 : index
    %c0_81 = arith.constant 0 : index
    %35 = vector.load %arg12[%c0_78, %c1_79, %c1_80, %c0_81] : memref<9x2x9x64xbf16, #tpu.memory_space<vmem>>, vector<8x1x8x32xbf16>
    %36 = vector.shape_cast %35 : vector<8x1x8x32xbf16> to vector<64x32xbf16>
    %c0_82 = arith.constant 0 : index
    %c160 = arith.constant 160 : index
    %37 = vector.load %arg14[%c0_82, %c160] : memref<64x288xbf16, #tpu.memory_space<vmem>>, vector<64x32xbf16>
    tpu.vector_store %arg14[%c0_82, %c160], %36 {strides = array<i32>} : memref<64x288xbf16, #tpu.memory_space<vmem>>, vector<64x32xbf16>,
    %c1_83 = arith.constant 1 : index
    %c0_84 = arith.constant 0 : index
    %c0_85 = arith.constant 0 : index
    %c0_86 = arith.constant 0 : index
    %38 = vector.load %arg12[%c1_83, %c0_84, %c0_85, %c0_86] : memref<9x2x9x64xbf16, #tpu.memory_space<vmem>>, vector<8x1x8x32xbf16>
    %39 = vector.shape_cast %38 : vector<8x1x8x32xbf16> to vector<64x32xbf16>
    %c0_87 = arith.constant 0 : index
    %c192 = arith.constant 192 : index
    %40 = vector.load %arg14[%c0_87, %c192] : memref<64x288xbf16, #tpu.memory_space<vmem>>, vector<64x32xbf16>
    tpu.vector_store %arg14[%c0_87, %c192], %39 {strides = array<i32>} : memref<64x288xbf16, #tpu.memory_space<vmem>>, vector<64x32xbf16>,
    %c1_88 = arith.constant 1 : index
    %c0_89 = arith.constant 0 : index
    %c0_90 = arith.constant 0 : index
    %c32_91 = arith.constant 32 : index
    %41 = vector.load %arg12[%c1_88, %c0_89, %c0_90, %c32_91] : memref<9x2x9x64xbf16, #tpu.memory_space<vmem>>, vector<8x1x8x32xbf16>
    %42 = vector.shape_cast %41 : vector<8x1x8x32xbf16> to vector<64x32xbf16>
    %c0_92 = arith.constant 0 : index
    %c224 = arith.constant 224 : index
    %43 = vector.load %arg14[%c0_92, %c224] : memref<64x288xbf16, #tpu.memory_space<vmem>>, vector<64x32xbf16>
    tpu.vector_store %arg14[%c0_92, %c224], %42 {strides = array<i32>} : memref<64x288xbf16, #tpu.memory_space<vmem>>, vector<64x32xbf16>,
    %c1_93 = arith.constant 1 : index
    %c0_94 = arith.constant 0 : index
    %c1_95 = arith.constant 1 : index
    %c0_96 = arith.constant 0 : index
    %44 = vector.load %arg12[%c1_93, %c0_94, %c1_95, %c0_96] : memref<9x2x9x64xbf16, #tpu.memory_space<vmem>>, vector<8x1x8x32xbf16>
    %45 = vector.shape_cast %44 : vector<8x1x8x32xbf16> to vector<64x32xbf16>
    %c0_97 = arith.constant 0 : index
    %c256 = arith.constant 256 : index
    %46 = vector.load %arg14[%c0_97, %c256] : memref<64x288xbf16, #tpu.memory_space<vmem>>, vector<64x32xbf16>
    tpu.vector_store %arg14[%c0_97, %c256], %45 {strides = array<i32>} : memref<64x288xbf16, #tpu.memory_space<vmem>>, vector<64x32xbf16>,
    %c0_98 = arith.constant 0 : index
    %c0_99 = arith.constant 0 : index
    %47 = vector.load %arg14[%c0_98, %c0_99] : memref<64x288xbf16, #tpu.memory_space<vmem>>, vector<64x288xbf16>
    %c0_100 = arith.constant 0 : index
    %c0_101 = arith.constant 0 : index
    %48 = vector.load %arg2[%c0_100, %c0_101] : memref<288x64xbf16, #tpu.memory_space<vmem>>, vector<288x64xbf16>
    %cst_102 = arith.constant dense<0.000000e+00> : vector<64x64xf32>
    %49 = tpu.matmul %47, %48, %cst_102 {dimension_numbers = #tpu.dot_dimension_numbers<[1], [0], [0], [1], [0, 0, 1, 1], [], []>} : vector<64x288xbf16>, vector<288x64xbf16>, vector<64x64xf32> -> vector<64x64xf32>
    %c0_103 = arith.constant 0 : index
    %c0_104 = arith.constant 0 : index
    %50 = vector.load %arg3[%c0_103, %c0_104] : memref<1x64xf32, #tpu.memory_space<vmem>>, vector<1x64xf32>
    %51 = vector.broadcast %50 : vector<1x64xf32> to vector<64x64xf32>
    %52 = arith.mulf %49, %51 : vector<64x64xf32>
    %c0_105 = arith.constant 0 : index
    %c0_106 = arith.constant 0 : index
    %53 = vector.load %arg4[%c0_105, %c0_106] : memref<1x64xf32, #tpu.memory_space<vmem>>, vector<1x64xf32>
    %54 = vector.broadcast %53 : vector<1x64xf32> to vector<64x64xf32>
    %55 = arith.addf %52, %54 : vector<64x64xf32>
    %cst_107 = arith.constant 0.000000e+00 : f32
    %56 = vector.broadcast %cst_107 : f32 to vector<64x64xf32>
    %57 = arith.maximumf %55, %56 : vector<64x64xf32>
    %c0_108 = arith.constant 0 : index
    %c128_109 = arith.constant 128 : index
    %58 = vector.load %arg14[%c0_108, %c128_109] : memref<64x288xbf16, #tpu.memory_space<vmem>>, vector<64x32xbf16>
    %c0_110 = arith.constant 0 : index
    %c0_111 = arith.constant 0 : index
    %59 = vector.load %arg8[%c0_110, %c0_111] : memref<32x64xbf16, #tpu.memory_space<vmem>>, vector<32x64xbf16>
    %cst_112 = arith.constant dense<0.000000e+00> : vector<64x64xf32>
    %60 = tpu.matmul %58, %59, %cst_112 {dimension_numbers = #tpu.dot_dimension_numbers<[1], [0], [0], [1], [0, 0, 1, 1], [], []>} : vector<64x32xbf16>, vector<32x64xbf16>, vector<64x64xf32> -> vector<64x64xf32>
    %c0_113 = arith.constant 0 : index
    %c0_114 = arith.constant 0 : index
    %61 = vector.load %arg9[%c0_113, %c0_114] : memref<1x64xf32, #tpu.memory_space<vmem>>, vector<1x64xf32>
    %62 = vector.broadcast %61 : vector<1x64xf32> to vector<64x64xf32>
    %63 = arith.mulf %60, %62 : vector<64x64xf32>
    %c0_115 = arith.constant 0 : index
    %c0_116 = arith.constant 0 : index
    %64 = vector.load %arg10[%c0_115, %c0_116] : memref<1x64xf32, #tpu.memory_space<vmem>>, vector<1x64xf32>
    %65 = vector.broadcast %64 : vector<1x64xf32> to vector<64x64xf32>
    %66 = arith.addf %63, %65 : vector<64x64xf32>
    %cst_117 = arith.constant 0.000000e+00 : bf16
    %67 = vector.broadcast %cst_117 : bf16 to vector<1x10x64xbf16>
    %c0_118 = arith.constant 0 : index
    %c0_119 = arith.constant 0 : index
    %c0_120 = arith.constant 0 : index
    %68 = vector.load %arg13[%c0_118, %c0_119, %c0_120] : memref<10x10x64xbf16, #tpu.memory_space<vmem>>, vector<1x10x64xbf16>
    tpu.vector_store %arg13[%c0_118, %c0_119, %c0_120], %67 {strides = array<i32>} : memref<10x10x64xbf16, #tpu.memory_space<vmem>>, vector<1x10x64xbf16>,
    %cst_121 = arith.constant 0.000000e+00 : bf16
    %69 = vector.broadcast %cst_121 : bf16 to vector<1x10x64xbf16>
    %c9 = arith.constant 9 : index
    %c0_122 = arith.constant 0 : index
    %c0_123 = arith.constant 0 : index
    %70 = vector.load %arg13[%c9, %c0_122, %c0_123] : memref<10x10x64xbf16, #tpu.memory_space<vmem>>, vector<1x10x64xbf16>
    tpu.vector_store %arg13[%c9, %c0_122, %c0_123], %69 {strides = array<i32>} : memref<10x10x64xbf16, #tpu.memory_space<vmem>>, vector<1x10x64xbf16>,
    %cst_124 = arith.constant 0.000000e+00 : bf16
    %71 = vector.broadcast %cst_124 : bf16 to vector<10x1x64xbf16>
    %c0_125 = arith.constant 0 : index
    %c0_126 = arith.constant 0 : index
    %c0_127 = arith.constant 0 : index
    %72 = vector.load %arg13[%c0_125, %c0_126, %c0_127] : memref<10x10x64xbf16, #tpu.memory_space<vmem>>, vector<10x1x64xbf16>
    tpu.vector_store %arg13[%c0_125, %c0_126, %c0_127], %71 {strides = array<i32>} : memref<10x10x64xbf16, #tpu.memory_space<vmem>>, vector<10x1x64xbf16>,
    %cst_128 = arith.constant 0.000000e+00 : bf16
    %73 = vector.broadcast %cst_128 : bf16 to vector<10x1x64xbf16>
    %c0_129 = arith.constant 0 : index
    %c9_130 = arith.constant 9 : index
    %c0_131 = arith.constant 0 : index
    %74 = vector.load %arg13[%c0_129, %c9_130, %c0_131] : memref<10x10x64xbf16, #tpu.memory_space<vmem>>, vector<10x1x64xbf16>
    tpu.vector_store %arg13[%c0_129, %c9_130, %c0_131], %73 {strides = array<i32>} : memref<10x10x64xbf16, #tpu.memory_space<vmem>>, vector<10x1x64xbf16>,
    %75 = vector.shape_cast %57 : vector<64x64xf32> to vector<8x8x64xf32>
    %76 = arith.truncf %75 : vector<8x8x64xf32> to vector<8x8x64xbf16>
    %c1_132 = arith.constant 1 : index
    %c1_133 = arith.constant 1 : index
    %c0_134 = arith.constant 0 : index
    %77 = vector.load %arg13[%c1_132, %c1_133, %c0_134] : memref<10x10x64xbf16, #tpu.memory_space<vmem>>, vector<8x8x64xbf16>
    tpu.vector_store %arg13[%c1_132, %c1_133, %c0_134], %76 {strides = array<i32>} : memref<10x10x64xbf16, #tpu.memory_space<vmem>>, vector<8x8x64xbf16>,
    %c0_135 = arith.constant 0 : index
    %c0_136 = arith.constant 0 : index
    %c0_137 = arith.constant 0 : index
    %78 = vector.load %arg13[%c0_135, %c0_136, %c0_137] : memref<10x10x64xbf16, #tpu.memory_space<vmem>>, vector<8x8x64xbf16>
    %79 = vector.shape_cast %78 : vector<8x8x64xbf16> to vector<64x64xbf16>
    %c0_138 = arith.constant 0 : index
    %c0_139 = arith.constant 0 : index
    %80 = vector.load %arg15[%c0_138, %c0_139] : memref<64x576xbf16, #tpu.memory_space<vmem>>, vector<64x64xbf16>
    tpu.vector_store %arg15[%c0_138, %c0_139], %79 {strides = array<i32>} : memref<64x576xbf16, #tpu.memory_space<vmem>>, vector<64x64xbf16>,
    %c0_140 = arith.constant 0 : index
    %c1_141 = arith.constant 1 : index
    %c0_142 = arith.constant 0 : index
    %81 = vector.load %arg13[%c0_140, %c1_141, %c0_142] : memref<10x10x64xbf16, #tpu.memory_space<vmem>>, vector<8x8x64xbf16>
    %82 = vector.shape_cast %81 : vector<8x8x64xbf16> to vector<64x64xbf16>
    %c0_143 = arith.constant 0 : index
    %c64_144 = arith.constant 64 : index
    %83 = vector.load %arg15[%c0_143, %c64_144] : memref<64x576xbf16, #tpu.memory_space<vmem>>, vector<64x64xbf16>
    tpu.vector_store %arg15[%c0_143, %c64_144], %82 {strides = array<i32>} : memref<64x576xbf16, #tpu.memory_space<vmem>>, vector<64x64xbf16>,
    %c0_145 = arith.constant 0 : index
    %c2 = arith.constant 2 : index
    %c0_146 = arith.constant 0 : index
    %84 = vector.load %arg13[%c0_145, %c2, %c0_146] : memref<10x10x64xbf16, #tpu.memory_space<vmem>>, vector<8x8x64xbf16>
    %85 = vector.shape_cast %84 : vector<8x8x64xbf16> to vector<64x64xbf16>
    %c0_147 = arith.constant 0 : index
    %c128_148 = arith.constant 128 : index
    %86 = vector.load %arg15[%c0_147, %c128_148] : memref<64x576xbf16, #tpu.memory_space<vmem>>, vector<64x64xbf16>
    tpu.vector_store %arg15[%c0_147, %c128_148], %85 {strides = array<i32>} : memref<64x576xbf16, #tpu.memory_space<vmem>>, vector<64x64xbf16>,
    %c1_149 = arith.constant 1 : index
    %c0_150 = arith.constant 0 : index
    %c0_151 = arith.constant 0 : index
    %87 = vector.load %arg13[%c1_149, %c0_150, %c0_151] : memref<10x10x64xbf16, #tpu.memory_space<vmem>>, vector<8x8x64xbf16>
    %88 = vector.shape_cast %87 : vector<8x8x64xbf16> to vector<64x64xbf16>
    %c0_152 = arith.constant 0 : index
    %c192_153 = arith.constant 192 : index
    %89 = vector.load %arg15[%c0_152, %c192_153] : memref<64x576xbf16, #tpu.memory_space<vmem>>, vector<64x64xbf16>
    tpu.vector_store %arg15[%c0_152, %c192_153], %88 {strides = array<i32>} : memref<64x576xbf16, #tpu.memory_space<vmem>>, vector<64x64xbf16>,
    %c1_154 = arith.constant 1 : index
    %c1_155 = arith.constant 1 : index
    %c0_156 = arith.constant 0 : index
    %90 = vector.load %arg13[%c1_154, %c1_155, %c0_156] : memref<10x10x64xbf16, #tpu.memory_space<vmem>>, vector<8x8x64xbf16>
    %91 = vector.shape_cast %90 : vector<8x8x64xbf16> to vector<64x64xbf16>
    %c0_157 = arith.constant 0 : index
    %c256_158 = arith.constant 256 : index
    %92 = vector.load %arg15[%c0_157, %c256_158] : memref<64x576xbf16, #tpu.memory_space<vmem>>, vector<64x64xbf16>
    tpu.vector_store %arg15[%c0_157, %c256_158], %91 {strides = array<i32>} : memref<64x576xbf16, #tpu.memory_space<vmem>>, vector<64x64xbf16>,
    %c1_159 = arith.constant 1 : index
    %c2_160 = arith.constant 2 : index
    %c0_161 = arith.constant 0 : index
    %93 = vector.load %arg13[%c1_159, %c2_160, %c0_161] : memref<10x10x64xbf16, #tpu.memory_space<vmem>>, vector<8x8x64xbf16>
    %94 = vector.shape_cast %93 : vector<8x8x64xbf16> to vector<64x64xbf16>
    %c0_162 = arith.constant 0 : index
    %c320 = arith.constant 320 : index
    %95 = vector.load %arg15[%c0_162, %c320] : memref<64x576xbf16, #tpu.memory_space<vmem>>, vector<64x64xbf16>
    tpu.vector_store %arg15[%c0_162, %c320], %94 {strides = array<i32>} : memref<64x576xbf16, #tpu.memory_space<vmem>>, vector<64x64xbf16>,
    %c2_163 = arith.constant 2 : index
    %c0_164 = arith.constant 0 : index
    %c0_165 = arith.constant 0 : index
    %96 = vector.load %arg13[%c2_163, %c0_164, %c0_165] : memref<10x10x64xbf16, #tpu.memory_space<vmem>>, vector<8x8x64xbf16>
    %97 = vector.shape_cast %96 : vector<8x8x64xbf16> to vector<64x64xbf16>
    %c0_166 = arith.constant 0 : index
    %c384 = arith.constant 384 : index
    %98 = vector.load %arg15[%c0_166, %c384] : memref<64x576xbf16, #tpu.memory_space<vmem>>, vector<64x64xbf16>
    tpu.vector_store %arg15[%c0_166, %c384], %97 {strides = array<i32>} : memref<64x576xbf16, #tpu.memory_space<vmem>>, vector<64x64xbf16>,
    %c2_167 = arith.constant 2 : index
    %c1_168 = arith.constant 1 : index
    %c0_169 = arith.constant 0 : index
    %99 = vector.load %arg13[%c2_167, %c1_168, %c0_169] : memref<10x10x64xbf16, #tpu.memory_space<vmem>>, vector<8x8x64xbf16>
    %100 = vector.shape_cast %99 : vector<8x8x64xbf16> to vector<64x64xbf16>
    %c0_170 = arith.constant 0 : index
    %c448 = arith.constant 448 : index
    %101 = vector.load %arg15[%c0_170, %c448] : memref<64x576xbf16, #tpu.memory_space<vmem>>, vector<64x64xbf16>
    tpu.vector_store %arg15[%c0_170, %c448], %100 {strides = array<i32>} : memref<64x576xbf16, #tpu.memory_space<vmem>>, vector<64x64xbf16>,
    %c2_171 = arith.constant 2 : index
    %c2_172 = arith.constant 2 : index
    %c0_173 = arith.constant 0 : index
    %102 = vector.load %arg13[%c2_171, %c2_172, %c0_173] : memref<10x10x64xbf16, #tpu.memory_space<vmem>>, vector<8x8x64xbf16>
    %103 = vector.shape_cast %102 : vector<8x8x64xbf16> to vector<64x64xbf16>
    %c0_174 = arith.constant 0 : index
    %c512 = arith.constant 512 : index
    %104 = vector.load %arg15[%c0_174, %c512] : memref<64x576xbf16, #tpu.memory_space<vmem>>, vector<64x64xbf16>
    tpu.vector_store %arg15[%c0_174, %c512], %103 {strides = array<i32>} : memref<64x576xbf16, #tpu.memory_space<vmem>>, vector<64x64xbf16>,
    %c0_175 = arith.constant 0 : index
    %c0_176 = arith.constant 0 : index
    %105 = vector.load %arg15[%c0_175, %c0_176] : memref<64x576xbf16, #tpu.memory_space<vmem>>, vector<64x576xbf16>
    %c0_177 = arith.constant 0 : index
    %c0_178 = arith.constant 0 : index
    %106 = vector.load %arg5[%c0_177, %c0_178] : memref<576x64xbf16, #tpu.memory_space<vmem>>, vector<576x64xbf16>
    %cst_179 = arith.constant dense<0.000000e+00> : vector<64x64xf32>
    %107 = tpu.matmul %105, %106, %cst_179 {dimension_numbers = #tpu.dot_dimension_numbers<[1], [0], [0], [1], [0, 0, 1, 1], [], []>} : vector<64x576xbf16>, vector<576x64xbf16>, vector<64x64xf32> -> vector<64x64xf32>
    %c0_180 = arith.constant 0 : index
    %c0_181 = arith.constant 0 : index
    %108 = vector.load %arg6[%c0_180, %c0_181] : memref<1x64xf32, #tpu.memory_space<vmem>>, vector<1x64xf32>
    %109 = vector.broadcast %108 : vector<1x64xf32> to vector<64x64xf32>
    %110 = arith.mulf %107, %109 : vector<64x64xf32>
    %c0_182 = arith.constant 0 : index
    %c0_183 = arith.constant 0 : index
    %111 = vector.load %arg7[%c0_182, %c0_183] : memref<1x64xf32, #tpu.memory_space<vmem>>, vector<1x64xf32>
    %112 = vector.broadcast %111 : vector<1x64xf32> to vector<64x64xf32>
    %113 = arith.addf %110, %112 : vector<64x64xf32>
    %114 = arith.addf %113, %66 : vector<64x64xf32>
    %cst_184 = arith.constant 0.000000e+00 : f32
    %115 = vector.broadcast %cst_184 : f32 to vector<64x64xf32>
    %116 = arith.maximumf %114, %115 : vector<64x64xf32>
    %117 = vector.shape_cast %116 : vector<64x64xf32> to vector<8x8x64xf32>
    %118 = arith.truncf %117 : vector<8x8x64xf32> to vector<8x8x64xbf16>
    %c0_185 = arith.constant 0 : index
    %c0_186 = arith.constant 0 : index
    %c0_187 = arith.constant 0 : index
    %c0_188 = arith.constant 0 : index
    %119 = vector.load %arg11[%c0_185, %c0_186, %c0_187, %c0_188] : memref<1x8x8x64xbf16, #tpu.memory_space<vmem>>, vector<1x8x8x64xbf16>
    %120 = vector.shape_cast %119 : vector<1x8x8x64xbf16> to vector<8x8x64xbf16>
    %121 = vector.shape_cast %118 : vector<8x8x64xbf16> to vector<1x8x8x64xbf16>
    tpu.vector_store %arg11[%c0_185, %c0_186, %c0_187, %c0_188], %121 {strides = array<i32>} : memref<1x8x8x64xbf16, #tpu.memory_space<vmem>>, vector<1x8x8x64xbf16>,
    return
  }
  func.func @transform_0(%arg0: i32) -> (i32, i32, i32, i32, i32) {
    %c0_i32 = arith.constant 0 : i32
    %c0_i32_0 = arith.constant 0 : i32
    %c0_i32_1 = arith.constant 0 : i32
    %c0_i32_2 = arith.constant 0 : i32
    %c0_i32_3 = arith.constant 0 : i32
    return %arg0, %c0_i32, %c0_i32_0, %c0_i32_1, %c0_i32_2 : i32, i32, i32, i32, i32
  }
  func.func @transform_1(%arg0: i32) -> (i32, i32) {
    %c0_i32 = arith.constant 0 : i32
    %c0_i32_0 = arith.constant 0 : i32
    %c0_i32_1 = arith.constant 0 : i32
    return %c0_i32, %c0_i32_0 : i32, i32
  }
  func.func @transform_2(%arg0: i32) -> (i32, i32) {
    %c0_i32 = arith.constant 0 : i32
    %c0_i32_0 = arith.constant 0 : i32
    %c0_i32_1 = arith.constant 0 : i32
    return %c0_i32, %c0_i32_0 : i32, i32
  }
  func.func @transform_3(%arg0: i32) -> (i32, i32) {
    %c0_i32 = arith.constant 0 : i32
    %c0_i32_0 = arith.constant 0 : i32
    %c0_i32_1 = arith.constant 0 : i32
    return %c0_i32, %c0_i32_0 : i32, i32
  }
  func.func @transform_4(%arg0: i32) -> (i32, i32) {
    %c0_i32 = arith.constant 0 : i32
    %c0_i32_0 = arith.constant 0 : i32
    %c0_i32_1 = arith.constant 0 : i32
    return %c0_i32, %c0_i32_0 : i32, i32
  }
  func.func @transform_5(%arg0: i32) -> (i32, i32) {
    %c0_i32 = arith.constant 0 : i32
    %c0_i32_0 = arith.constant 0 : i32
    %c0_i32_1 = arith.constant 0 : i32
    return %c0_i32, %c0_i32_0 : i32, i32
  }
  func.func @transform_6(%arg0: i32) -> (i32, i32) {
    %c0_i32 = arith.constant 0 : i32
    %c0_i32_0 = arith.constant 0 : i32
    %c0_i32_1 = arith.constant 0 : i32
    return %c0_i32, %c0_i32_0 : i32, i32
  }
  func.func @transform_7(%arg0: i32) -> (i32, i32) {
    %c0_i32 = arith.constant 0 : i32
    %c0_i32_0 = arith.constant 0 : i32
    %c0_i32_1 = arith.constant 0 : i32
    return %c0_i32, %c0_i32_0 : i32, i32
  }
  func.func @transform_8(%arg0: i32) -> (i32, i32) {
    %c0_i32 = arith.constant 0 : i32
    %c0_i32_0 = arith.constant 0 : i32
    %c0_i32_1 = arith.constant 0 : i32
    return %c0_i32, %c0_i32_0 : i32, i32
  }
  func.func @transform_9(%arg0: i32) -> (i32, i32) {
    %c0_i32 = arith.constant 0 : i32
    %c0_i32_0 = arith.constant 0 : i32
    %c0_i32_1 = arith.constant 0 : i32
    return %c0_i32, %c0_i32_0 : i32, i32
  }
  func.func @transform_10(%arg0: i32) -> (i32, i32, i32, i32) {
    %c0_i32 = arith.constant 0 : i32
    %c0_i32_0 = arith.constant 0 : i32
    %c0_i32_1 = arith.constant 0 : i32
    %c0_i32_2 = arith.constant 0 : i32
    return %arg0, %c0_i32, %c0_i32_0, %c0_i32_1 : i32, i32, i32, i32
  }
}

module attributes {stable_mosaic.version = 11 : i64} {
  func.func @_basic_block_kernel(%arg0: i32, %arg1: memref<1x8x8x64xbf16, #tpu.memory_space<vmem>>, %arg2: memref<576x64xbf16, #tpu.memory_space<vmem>>, %arg3: memref<1x64xf32, #tpu.memory_space<vmem>>, %arg4: memref<1x64xf32, #tpu.memory_space<vmem>>, %arg5: memref<576x64xbf16, #tpu.memory_space<vmem>>, %arg6: memref<1x64xf32, #tpu.memory_space<vmem>>, %arg7: memref<1x64xf32, #tpu.memory_space<vmem>>, %arg8: memref<1x8x8x64xbf16, #tpu.memory_space<vmem>>, %arg9: memref<10x10x64xbf16, #tpu.memory_space<vmem>>, %arg10: memref<10x10x64xbf16, #tpu.memory_space<vmem>>, %arg11: memref<64x576xbf16, #tpu.memory_space<vmem>>, %arg12: memref<64x576xbf16, #tpu.memory_space<vmem>>) attributes {dimension_semantics = [#tpu.dimension_semantics<parallel>], iteration_bounds = array<i64: 2>, scalar_prefetch = 0 : i64, scratch_operands = 4 : i64, tpu.core_type = #tpu.core_type<tc>, window_params = [{transform_indices = @transform_0, window_bounds = array<i64: 1, 8, 8, 64>}, {pipeline_mode = #tpu.pipeline_mode<synchronous>, transform_indices = @transform_1, window_bounds = array<i64: 576, 64>}, {pipeline_mode = #tpu.pipeline_mode<synchronous>, transform_indices = @transform_2, window_bounds = array<i64: 1, 64>}, {pipeline_mode = #tpu.pipeline_mode<synchronous>, transform_indices = @transform_3, window_bounds = array<i64: 1, 64>}, {pipeline_mode = #tpu.pipeline_mode<synchronous>, transform_indices = @transform_4, window_bounds = array<i64: 576, 64>}, {pipeline_mode = #tpu.pipeline_mode<synchronous>, transform_indices = @transform_5, window_bounds = array<i64: 1, 64>}, {pipeline_mode = #tpu.pipeline_mode<synchronous>, transform_indices = @transform_6, window_bounds = array<i64: 1, 64>}, {transform_indices = @transform_7, window_bounds = array<i64: 1, 8, 8, 64>}]} {
    %cst = arith.constant 0.000000e+00 : bf16
    %0 = vector.broadcast %cst : bf16 to vector<1x10x64xbf16>
    %c0 = arith.constant 0 : index
    %c0_0 = arith.constant 0 : index
    %c0_1 = arith.constant 0 : index
    %1 = vector.load %arg9[%c0, %c0_0, %c0_1] : memref<10x10x64xbf16, #tpu.memory_space<vmem>>, vector<1x10x64xbf16>
    tpu.vector_store %arg9[%c0, %c0_0, %c0_1], %0 {strides = array<i32>} : memref<10x10x64xbf16, #tpu.memory_space<vmem>>, vector<1x10x64xbf16>,
    %cst_2 = arith.constant 0.000000e+00 : bf16
    %2 = vector.broadcast %cst_2 : bf16 to vector<1x10x64xbf16>
    %c9 = arith.constant 9 : index
    %c0_3 = arith.constant 0 : index
    %c0_4 = arith.constant 0 : index
    %3 = vector.load %arg9[%c9, %c0_3, %c0_4] : memref<10x10x64xbf16, #tpu.memory_space<vmem>>, vector<1x10x64xbf16>
    tpu.vector_store %arg9[%c9, %c0_3, %c0_4], %2 {strides = array<i32>} : memref<10x10x64xbf16, #tpu.memory_space<vmem>>, vector<1x10x64xbf16>,
    %cst_5 = arith.constant 0.000000e+00 : bf16
    %4 = vector.broadcast %cst_5 : bf16 to vector<10x1x64xbf16>
    %c0_6 = arith.constant 0 : index
    %c0_7 = arith.constant 0 : index
    %c0_8 = arith.constant 0 : index
    %5 = vector.load %arg9[%c0_6, %c0_7, %c0_8] : memref<10x10x64xbf16, #tpu.memory_space<vmem>>, vector<10x1x64xbf16>
    tpu.vector_store %arg9[%c0_6, %c0_7, %c0_8], %4 {strides = array<i32>} : memref<10x10x64xbf16, #tpu.memory_space<vmem>>, vector<10x1x64xbf16>,
    %cst_9 = arith.constant 0.000000e+00 : bf16
    %6 = vector.broadcast %cst_9 : bf16 to vector<10x1x64xbf16>
    %c0_10 = arith.constant 0 : index
    %c9_11 = arith.constant 9 : index
    %c0_12 = arith.constant 0 : index
    %7 = vector.load %arg9[%c0_10, %c9_11, %c0_12] : memref<10x10x64xbf16, #tpu.memory_space<vmem>>, vector<10x1x64xbf16>
    tpu.vector_store %arg9[%c0_10, %c9_11, %c0_12], %6 {strides = array<i32>} : memref<10x10x64xbf16, #tpu.memory_space<vmem>>, vector<10x1x64xbf16>,
    %c0_13 = arith.constant 0 : index
    %c0_14 = arith.constant 0 : index
    %c0_15 = arith.constant 0 : index
    %c0_16 = arith.constant 0 : index
    %8 = vector.load %arg1[%c0_13, %c0_14, %c0_15, %c0_16] : memref<1x8x8x64xbf16, #tpu.memory_space<vmem>>, vector<1x8x8x64xbf16>
    %9 = vector.shape_cast %8 : vector<1x8x8x64xbf16> to vector<8x8x64xbf16>
    %c1 = arith.constant 1 : index
    %c1_17 = arith.constant 1 : index
    %c0_18 = arith.constant 0 : index
    %10 = vector.load %arg9[%c1, %c1_17, %c0_18] : memref<10x10x64xbf16, #tpu.memory_space<vmem>>, vector<8x8x64xbf16>
    tpu.vector_store %arg9[%c1, %c1_17, %c0_18], %9 {strides = array<i32>} : memref<10x10x64xbf16, #tpu.memory_space<vmem>>, vector<8x8x64xbf16>,
    %c0_19 = arith.constant 0 : index
    %c0_20 = arith.constant 0 : index
    %c0_21 = arith.constant 0 : index
    %11 = vector.load %arg9[%c0_19, %c0_20, %c0_21] : memref<10x10x64xbf16, #tpu.memory_space<vmem>>, vector<8x8x64xbf16>
    %12 = vector.shape_cast %11 : vector<8x8x64xbf16> to vector<64x64xbf16>
    %c0_22 = arith.constant 0 : index
    %c0_23 = arith.constant 0 : index
    %13 = vector.load %arg11[%c0_22, %c0_23] : memref<64x576xbf16, #tpu.memory_space<vmem>>, vector<64x64xbf16>
    tpu.vector_store %arg11[%c0_22, %c0_23], %12 {strides = array<i32>} : memref<64x576xbf16, #tpu.memory_space<vmem>>, vector<64x64xbf16>,
    %c0_24 = arith.constant 0 : index
    %c1_25 = arith.constant 1 : index
    %c0_26 = arith.constant 0 : index
    %14 = vector.load %arg9[%c0_24, %c1_25, %c0_26] : memref<10x10x64xbf16, #tpu.memory_space<vmem>>, vector<8x8x64xbf16>
    %15 = vector.shape_cast %14 : vector<8x8x64xbf16> to vector<64x64xbf16>
    %c0_27 = arith.constant 0 : index
    %c64 = arith.constant 64 : index
    %16 = vector.load %arg11[%c0_27, %c64] : memref<64x576xbf16, #tpu.memory_space<vmem>>, vector<64x64xbf16>
    tpu.vector_store %arg11[%c0_27, %c64], %15 {strides = array<i32>} : memref<64x576xbf16, #tpu.memory_space<vmem>>, vector<64x64xbf16>,
    %c0_28 = arith.constant 0 : index
    %c2 = arith.constant 2 : index
    %c0_29 = arith.constant 0 : index
    %17 = vector.load %arg9[%c0_28, %c2, %c0_29] : memref<10x10x64xbf16, #tpu.memory_space<vmem>>, vector<8x8x64xbf16>
    %18 = vector.shape_cast %17 : vector<8x8x64xbf16> to vector<64x64xbf16>
    %c0_30 = arith.constant 0 : index
    %c128 = arith.constant 128 : index
    %19 = vector.load %arg11[%c0_30, %c128] : memref<64x576xbf16, #tpu.memory_space<vmem>>, vector<64x64xbf16>
    tpu.vector_store %arg11[%c0_30, %c128], %18 {strides = array<i32>} : memref<64x576xbf16, #tpu.memory_space<vmem>>, vector<64x64xbf16>,
    %c1_31 = arith.constant 1 : index
    %c0_32 = arith.constant 0 : index
    %c0_33 = arith.constant 0 : index
    %20 = vector.load %arg9[%c1_31, %c0_32, %c0_33] : memref<10x10x64xbf16, #tpu.memory_space<vmem>>, vector<8x8x64xbf16>
    %21 = vector.shape_cast %20 : vector<8x8x64xbf16> to vector<64x64xbf16>
    %c0_34 = arith.constant 0 : index
    %c192 = arith.constant 192 : index
    %22 = vector.load %arg11[%c0_34, %c192] : memref<64x576xbf16, #tpu.memory_space<vmem>>, vector<64x64xbf16>
    tpu.vector_store %arg11[%c0_34, %c192], %21 {strides = array<i32>} : memref<64x576xbf16, #tpu.memory_space<vmem>>, vector<64x64xbf16>,
    %c1_35 = arith.constant 1 : index
    %c1_36 = arith.constant 1 : index
    %c0_37 = arith.constant 0 : index
    %23 = vector.load %arg9[%c1_35, %c1_36, %c0_37] : memref<10x10x64xbf16, #tpu.memory_space<vmem>>, vector<8x8x64xbf16>
    %24 = vector.shape_cast %23 : vector<8x8x64xbf16> to vector<64x64xbf16>
    %c0_38 = arith.constant 0 : index
    %c256 = arith.constant 256 : index
    %25 = vector.load %arg11[%c0_38, %c256] : memref<64x576xbf16, #tpu.memory_space<vmem>>, vector<64x64xbf16>
    tpu.vector_store %arg11[%c0_38, %c256], %24 {strides = array<i32>} : memref<64x576xbf16, #tpu.memory_space<vmem>>, vector<64x64xbf16>,
    %c1_39 = arith.constant 1 : index
    %c2_40 = arith.constant 2 : index
    %c0_41 = arith.constant 0 : index
    %26 = vector.load %arg9[%c1_39, %c2_40, %c0_41] : memref<10x10x64xbf16, #tpu.memory_space<vmem>>, vector<8x8x64xbf16>
    %27 = vector.shape_cast %26 : vector<8x8x64xbf16> to vector<64x64xbf16>
    %c0_42 = arith.constant 0 : index
    %c320 = arith.constant 320 : index
    %28 = vector.load %arg11[%c0_42, %c320] : memref<64x576xbf16, #tpu.memory_space<vmem>>, vector<64x64xbf16>
    tpu.vector_store %arg11[%c0_42, %c320], %27 {strides = array<i32>} : memref<64x576xbf16, #tpu.memory_space<vmem>>, vector<64x64xbf16>,
    %c2_43 = arith.constant 2 : index
    %c0_44 = arith.constant 0 : index
    %c0_45 = arith.constant 0 : index
    %29 = vector.load %arg9[%c2_43, %c0_44, %c0_45] : memref<10x10x64xbf16, #tpu.memory_space<vmem>>, vector<8x8x64xbf16>
    %30 = vector.shape_cast %29 : vector<8x8x64xbf16> to vector<64x64xbf16>
    %c0_46 = arith.constant 0 : index
    %c384 = arith.constant 384 : index
    %31 = vector.load %arg11[%c0_46, %c384] : memref<64x576xbf16, #tpu.memory_space<vmem>>, vector<64x64xbf16>
    tpu.vector_store %arg11[%c0_46, %c384], %30 {strides = array<i32>} : memref<64x576xbf16, #tpu.memory_space<vmem>>, vector<64x64xbf16>,
    %c2_47 = arith.constant 2 : index
    %c1_48 = arith.constant 1 : index
    %c0_49 = arith.constant 0 : index
    %32 = vector.load %arg9[%c2_47, %c1_48, %c0_49] : memref<10x10x64xbf16, #tpu.memory_space<vmem>>, vector<8x8x64xbf16>
    %33 = vector.shape_cast %32 : vector<8x8x64xbf16> to vector<64x64xbf16>
    %c0_50 = arith.constant 0 : index
    %c448 = arith.constant 448 : index
    %34 = vector.load %arg11[%c0_50, %c448] : memref<64x576xbf16, #tpu.memory_space<vmem>>, vector<64x64xbf16>
    tpu.vector_store %arg11[%c0_50, %c448], %33 {strides = array<i32>} : memref<64x576xbf16, #tpu.memory_space<vmem>>, vector<64x64xbf16>,
    %c2_51 = arith.constant 2 : index
    %c2_52 = arith.constant 2 : index
    %c0_53 = arith.constant 0 : index
    %35 = vector.load %arg9[%c2_51, %c2_52, %c0_53] : memref<10x10x64xbf16, #tpu.memory_space<vmem>>, vector<8x8x64xbf16>
    %36 = vector.shape_cast %35 : vector<8x8x64xbf16> to vector<64x64xbf16>
    %c0_54 = arith.constant 0 : index
    %c512 = arith.constant 512 : index
    %37 = vector.load %arg11[%c0_54, %c512] : memref<64x576xbf16, #tpu.memory_space<vmem>>, vector<64x64xbf16>
    tpu.vector_store %arg11[%c0_54, %c512], %36 {strides = array<i32>} : memref<64x576xbf16, #tpu.memory_space<vmem>>, vector<64x64xbf16>,
    %c0_55 = arith.constant 0 : index
    %c0_56 = arith.constant 0 : index
    %38 = vector.load %arg11[%c0_55, %c0_56] : memref<64x576xbf16, #tpu.memory_space<vmem>>, vector<64x576xbf16>
    %c0_57 = arith.constant 0 : index
    %c0_58 = arith.constant 0 : index
    %39 = vector.load %arg2[%c0_57, %c0_58] : memref<576x64xbf16, #tpu.memory_space<vmem>>, vector<576x64xbf16>
    %cst_59 = arith.constant dense<0.000000e+00> : vector<64x64xf32>
    %40 = tpu.matmul %38, %39, %cst_59 {dimension_numbers = #tpu.dot_dimension_numbers<[1], [0], [0], [1], [0, 0, 1, 1], [], []>} : vector<64x576xbf16>, vector<576x64xbf16>, vector<64x64xf32> -> vector<64x64xf32>
    %c0_60 = arith.constant 0 : index
    %c0_61 = arith.constant 0 : index
    %41 = vector.load %arg3[%c0_60, %c0_61] : memref<1x64xf32, #tpu.memory_space<vmem>>, vector<1x64xf32>
    %42 = vector.broadcast %41 : vector<1x64xf32> to vector<64x64xf32>
    %43 = arith.mulf %40, %42 : vector<64x64xf32>
    %c0_62 = arith.constant 0 : index
    %c0_63 = arith.constant 0 : index
    %44 = vector.load %arg4[%c0_62, %c0_63] : memref<1x64xf32, #tpu.memory_space<vmem>>, vector<1x64xf32>
    %45 = vector.broadcast %44 : vector<1x64xf32> to vector<64x64xf32>
    %46 = arith.addf %43, %45 : vector<64x64xf32>
    %cst_64 = arith.constant 0.000000e+00 : f32
    %47 = vector.broadcast %cst_64 : f32 to vector<64x64xf32>
    %48 = arith.maximumf %46, %47 : vector<64x64xf32>
    %c0_65 = arith.constant 0 : index
    %c256_66 = arith.constant 256 : index
    %49 = vector.load %arg11[%c0_65, %c256_66] : memref<64x576xbf16, #tpu.memory_space<vmem>>, vector<64x64xbf16>
    %50 = arith.extf %49 : vector<64x64xbf16> to vector<64x64xf32>
    %cst_67 = arith.constant 0.000000e+00 : bf16
    %51 = vector.broadcast %cst_67 : bf16 to vector<1x10x64xbf16>
    %c0_68 = arith.constant 0 : index
    %c0_69 = arith.constant 0 : index
    %c0_70 = arith.constant 0 : index
    %52 = vector.load %arg10[%c0_68, %c0_69, %c0_70] : memref<10x10x64xbf16, #tpu.memory_space<vmem>>, vector<1x10x64xbf16>
    tpu.vector_store %arg10[%c0_68, %c0_69, %c0_70], %51 {strides = array<i32>} : memref<10x10x64xbf16, #tpu.memory_space<vmem>>, vector<1x10x64xbf16>,
    %cst_71 = arith.constant 0.000000e+00 : bf16
    %53 = vector.broadcast %cst_71 : bf16 to vector<1x10x64xbf16>
    %c9_72 = arith.constant 9 : index
    %c0_73 = arith.constant 0 : index
    %c0_74 = arith.constant 0 : index
    %54 = vector.load %arg10[%c9_72, %c0_73, %c0_74] : memref<10x10x64xbf16, #tpu.memory_space<vmem>>, vector<1x10x64xbf16>
    tpu.vector_store %arg10[%c9_72, %c0_73, %c0_74], %53 {strides = array<i32>} : memref<10x10x64xbf16, #tpu.memory_space<vmem>>, vector<1x10x64xbf16>,
    %cst_75 = arith.constant 0.000000e+00 : bf16
    %55 = vector.broadcast %cst_75 : bf16 to vector<10x1x64xbf16>
    %c0_76 = arith.constant 0 : index
    %c0_77 = arith.constant 0 : index
    %c0_78 = arith.constant 0 : index
    %56 = vector.load %arg10[%c0_76, %c0_77, %c0_78] : memref<10x10x64xbf16, #tpu.memory_space<vmem>>, vector<10x1x64xbf16>
    tpu.vector_store %arg10[%c0_76, %c0_77, %c0_78], %55 {strides = array<i32>} : memref<10x10x64xbf16, #tpu.memory_space<vmem>>, vector<10x1x64xbf16>,
    %cst_79 = arith.constant 0.000000e+00 : bf16
    %57 = vector.broadcast %cst_79 : bf16 to vector<10x1x64xbf16>
    %c0_80 = arith.constant 0 : index
    %c9_81 = arith.constant 9 : index
    %c0_82 = arith.constant 0 : index
    %58 = vector.load %arg10[%c0_80, %c9_81, %c0_82] : memref<10x10x64xbf16, #tpu.memory_space<vmem>>, vector<10x1x64xbf16>
    tpu.vector_store %arg10[%c0_80, %c9_81, %c0_82], %57 {strides = array<i32>} : memref<10x10x64xbf16, #tpu.memory_space<vmem>>, vector<10x1x64xbf16>,
    %59 = vector.shape_cast %48 : vector<64x64xf32> to vector<8x8x64xf32>
    %60 = arith.truncf %59 : vector<8x8x64xf32> to vector<8x8x64xbf16>
    %c1_83 = arith.constant 1 : index
    %c1_84 = arith.constant 1 : index
    %c0_85 = arith.constant 0 : index
    %61 = vector.load %arg10[%c1_83, %c1_84, %c0_85] : memref<10x10x64xbf16, #tpu.memory_space<vmem>>, vector<8x8x64xbf16>
    tpu.vector_store %arg10[%c1_83, %c1_84, %c0_85], %60 {strides = array<i32>} : memref<10x10x64xbf16, #tpu.memory_space<vmem>>, vector<8x8x64xbf16>,
    %c0_86 = arith.constant 0 : index
    %c0_87 = arith.constant 0 : index
    %c0_88 = arith.constant 0 : index
    %62 = vector.load %arg10[%c0_86, %c0_87, %c0_88] : memref<10x10x64xbf16, #tpu.memory_space<vmem>>, vector<8x8x64xbf16>
    %63 = vector.shape_cast %62 : vector<8x8x64xbf16> to vector<64x64xbf16>
    %c0_89 = arith.constant 0 : index
    %c0_90 = arith.constant 0 : index
    %64 = vector.load %arg12[%c0_89, %c0_90] : memref<64x576xbf16, #tpu.memory_space<vmem>>, vector<64x64xbf16>
    tpu.vector_store %arg12[%c0_89, %c0_90], %63 {strides = array<i32>} : memref<64x576xbf16, #tpu.memory_space<vmem>>, vector<64x64xbf16>,
    %c0_91 = arith.constant 0 : index
    %c1_92 = arith.constant 1 : index
    %c0_93 = arith.constant 0 : index
    %65 = vector.load %arg10[%c0_91, %c1_92, %c0_93] : memref<10x10x64xbf16, #tpu.memory_space<vmem>>, vector<8x8x64xbf16>
    %66 = vector.shape_cast %65 : vector<8x8x64xbf16> to vector<64x64xbf16>
    %c0_94 = arith.constant 0 : index
    %c64_95 = arith.constant 64 : index
    %67 = vector.load %arg12[%c0_94, %c64_95] : memref<64x576xbf16, #tpu.memory_space<vmem>>, vector<64x64xbf16>
    tpu.vector_store %arg12[%c0_94, %c64_95], %66 {strides = array<i32>} : memref<64x576xbf16, #tpu.memory_space<vmem>>, vector<64x64xbf16>,
    %c0_96 = arith.constant 0 : index
    %c2_97 = arith.constant 2 : index
    %c0_98 = arith.constant 0 : index
    %68 = vector.load %arg10[%c0_96, %c2_97, %c0_98] : memref<10x10x64xbf16, #tpu.memory_space<vmem>>, vector<8x8x64xbf16>
    %69 = vector.shape_cast %68 : vector<8x8x64xbf16> to vector<64x64xbf16>
    %c0_99 = arith.constant 0 : index
    %c128_100 = arith.constant 128 : index
    %70 = vector.load %arg12[%c0_99, %c128_100] : memref<64x576xbf16, #tpu.memory_space<vmem>>, vector<64x64xbf16>
    tpu.vector_store %arg12[%c0_99, %c128_100], %69 {strides = array<i32>} : memref<64x576xbf16, #tpu.memory_space<vmem>>, vector<64x64xbf16>,
    %c1_101 = arith.constant 1 : index
    %c0_102 = arith.constant 0 : index
    %c0_103 = arith.constant 0 : index
    %71 = vector.load %arg10[%c1_101, %c0_102, %c0_103] : memref<10x10x64xbf16, #tpu.memory_space<vmem>>, vector<8x8x64xbf16>
    %72 = vector.shape_cast %71 : vector<8x8x64xbf16> to vector<64x64xbf16>
    %c0_104 = arith.constant 0 : index
    %c192_105 = arith.constant 192 : index
    %73 = vector.load %arg12[%c0_104, %c192_105] : memref<64x576xbf16, #tpu.memory_space<vmem>>, vector<64x64xbf16>
    tpu.vector_store %arg12[%c0_104, %c192_105], %72 {strides = array<i32>} : memref<64x576xbf16, #tpu.memory_space<vmem>>, vector<64x64xbf16>,
    %c1_106 = arith.constant 1 : index
    %c1_107 = arith.constant 1 : index
    %c0_108 = arith.constant 0 : index
    %74 = vector.load %arg10[%c1_106, %c1_107, %c0_108] : memref<10x10x64xbf16, #tpu.memory_space<vmem>>, vector<8x8x64xbf16>
    %75 = vector.shape_cast %74 : vector<8x8x64xbf16> to vector<64x64xbf16>
    %c0_109 = arith.constant 0 : index
    %c256_110 = arith.constant 256 : index
    %76 = vector.load %arg12[%c0_109, %c256_110] : memref<64x576xbf16, #tpu.memory_space<vmem>>, vector<64x64xbf16>
    tpu.vector_store %arg12[%c0_109, %c256_110], %75 {strides = array<i32>} : memref<64x576xbf16, #tpu.memory_space<vmem>>, vector<64x64xbf16>,
    %c1_111 = arith.constant 1 : index
    %c2_112 = arith.constant 2 : index
    %c0_113 = arith.constant 0 : index
    %77 = vector.load %arg10[%c1_111, %c2_112, %c0_113] : memref<10x10x64xbf16, #tpu.memory_space<vmem>>, vector<8x8x64xbf16>
    %78 = vector.shape_cast %77 : vector<8x8x64xbf16> to vector<64x64xbf16>
    %c0_114 = arith.constant 0 : index
    %c320_115 = arith.constant 320 : index
    %79 = vector.load %arg12[%c0_114, %c320_115] : memref<64x576xbf16, #tpu.memory_space<vmem>>, vector<64x64xbf16>
    tpu.vector_store %arg12[%c0_114, %c320_115], %78 {strides = array<i32>} : memref<64x576xbf16, #tpu.memory_space<vmem>>, vector<64x64xbf16>,
    %c2_116 = arith.constant 2 : index
    %c0_117 = arith.constant 0 : index
    %c0_118 = arith.constant 0 : index
    %80 = vector.load %arg10[%c2_116, %c0_117, %c0_118] : memref<10x10x64xbf16, #tpu.memory_space<vmem>>, vector<8x8x64xbf16>
    %81 = vector.shape_cast %80 : vector<8x8x64xbf16> to vector<64x64xbf16>
    %c0_119 = arith.constant 0 : index
    %c384_120 = arith.constant 384 : index
    %82 = vector.load %arg12[%c0_119, %c384_120] : memref<64x576xbf16, #tpu.memory_space<vmem>>, vector<64x64xbf16>
    tpu.vector_store %arg12[%c0_119, %c384_120], %81 {strides = array<i32>} : memref<64x576xbf16, #tpu.memory_space<vmem>>, vector<64x64xbf16>,
    %c2_121 = arith.constant 2 : index
    %c1_122 = arith.constant 1 : index
    %c0_123 = arith.constant 0 : index
    %83 = vector.load %arg10[%c2_121, %c1_122, %c0_123] : memref<10x10x64xbf16, #tpu.memory_space<vmem>>, vector<8x8x64xbf16>
    %84 = vector.shape_cast %83 : vector<8x8x64xbf16> to vector<64x64xbf16>
    %c0_124 = arith.constant 0 : index
    %c448_125 = arith.constant 448 : index
    %85 = vector.load %arg12[%c0_124, %c448_125] : memref<64x576xbf16, #tpu.memory_space<vmem>>, vector<64x64xbf16>
    tpu.vector_store %arg12[%c0_124, %c448_125], %84 {strides = array<i32>} : memref<64x576xbf16, #tpu.memory_space<vmem>>, vector<64x64xbf16>,
    %c2_126 = arith.constant 2 : index
    %c2_127 = arith.constant 2 : index
    %c0_128 = arith.constant 0 : index
    %86 = vector.load %arg10[%c2_126, %c2_127, %c0_128] : memref<10x10x64xbf16, #tpu.memory_space<vmem>>, vector<8x8x64xbf16>
    %87 = vector.shape_cast %86 : vector<8x8x64xbf16> to vector<64x64xbf16>
    %c0_129 = arith.constant 0 : index
    %c512_130 = arith.constant 512 : index
    %88 = vector.load %arg12[%c0_129, %c512_130] : memref<64x576xbf16, #tpu.memory_space<vmem>>, vector<64x64xbf16>
    tpu.vector_store %arg12[%c0_129, %c512_130], %87 {strides = array<i32>} : memref<64x576xbf16, #tpu.memory_space<vmem>>, vector<64x64xbf16>,
    %c0_131 = arith.constant 0 : index
    %c0_132 = arith.constant 0 : index
    %89 = vector.load %arg12[%c0_131, %c0_132] : memref<64x576xbf16, #tpu.memory_space<vmem>>, vector<64x576xbf16>
    %c0_133 = arith.constant 0 : index
    %c0_134 = arith.constant 0 : index
    %90 = vector.load %arg5[%c0_133, %c0_134] : memref<576x64xbf16, #tpu.memory_space<vmem>>, vector<576x64xbf16>
    %cst_135 = arith.constant dense<0.000000e+00> : vector<64x64xf32>
    %91 = tpu.matmul %89, %90, %cst_135 {dimension_numbers = #tpu.dot_dimension_numbers<[1], [0], [0], [1], [0, 0, 1, 1], [], []>} : vector<64x576xbf16>, vector<576x64xbf16>, vector<64x64xf32> -> vector<64x64xf32>
    %c0_136 = arith.constant 0 : index
    %c0_137 = arith.constant 0 : index
    %92 = vector.load %arg6[%c0_136, %c0_137] : memref<1x64xf32, #tpu.memory_space<vmem>>, vector<1x64xf32>
    %93 = vector.broadcast %92 : vector<1x64xf32> to vector<64x64xf32>
    %94 = arith.mulf %91, %93 : vector<64x64xf32>
    %c0_138 = arith.constant 0 : index
    %c0_139 = arith.constant 0 : index
    %95 = vector.load %arg7[%c0_138, %c0_139] : memref<1x64xf32, #tpu.memory_space<vmem>>, vector<1x64xf32>
    %96 = vector.broadcast %95 : vector<1x64xf32> to vector<64x64xf32>
    %97 = arith.addf %94, %96 : vector<64x64xf32>
    %98 = arith.addf %97, %50 : vector<64x64xf32>
    %cst_140 = arith.constant 0.000000e+00 : f32
    %99 = vector.broadcast %cst_140 : f32 to vector<64x64xf32>
    %100 = arith.maximumf %98, %99 : vector<64x64xf32>
    %101 = vector.shape_cast %100 : vector<64x64xf32> to vector<8x8x64xf32>
    %102 = arith.truncf %101 : vector<8x8x64xf32> to vector<8x8x64xbf16>
    %c0_141 = arith.constant 0 : index
    %c0_142 = arith.constant 0 : index
    %c0_143 = arith.constant 0 : index
    %c0_144 = arith.constant 0 : index
    %103 = vector.load %arg8[%c0_141, %c0_142, %c0_143, %c0_144] : memref<1x8x8x64xbf16, #tpu.memory_space<vmem>>, vector<1x8x8x64xbf16>
    %104 = vector.shape_cast %103 : vector<1x8x8x64xbf16> to vector<8x8x64xbf16>
    %105 = vector.shape_cast %102 : vector<8x8x64xbf16> to vector<1x8x8x64xbf16>
    tpu.vector_store %arg8[%c0_141, %c0_142, %c0_143, %c0_144], %105 {strides = array<i32>} : memref<1x8x8x64xbf16, #tpu.memory_space<vmem>>, vector<1x8x8x64xbf16>,
    return
  }
  func.func @transform_0(%arg0: i32) -> (i32, i32, i32, i32) {
    %c0_i32 = arith.constant 0 : i32
    %c0_i32_0 = arith.constant 0 : i32
    %c0_i32_1 = arith.constant 0 : i32
    %c0_i32_2 = arith.constant 0 : i32
    return %arg0, %c0_i32, %c0_i32_0, %c0_i32_1 : i32, i32, i32, i32
  }
  func.func @transform_1(%arg0: i32) -> (i32, i32) {
    %c0_i32 = arith.constant 0 : i32
    %c0_i32_0 = arith.constant 0 : i32
    %c0_i32_1 = arith.constant 0 : i32
    return %c0_i32, %c0_i32_0 : i32, i32
  }
  func.func @transform_2(%arg0: i32) -> (i32, i32) {
    %c0_i32 = arith.constant 0 : i32
    %c0_i32_0 = arith.constant 0 : i32
    %c0_i32_1 = arith.constant 0 : i32
    return %c0_i32, %c0_i32_0 : i32, i32
  }
  func.func @transform_3(%arg0: i32) -> (i32, i32) {
    %c0_i32 = arith.constant 0 : i32
    %c0_i32_0 = arith.constant 0 : i32
    %c0_i32_1 = arith.constant 0 : i32
    return %c0_i32, %c0_i32_0 : i32, i32
  }
  func.func @transform_4(%arg0: i32) -> (i32, i32) {
    %c0_i32 = arith.constant 0 : i32
    %c0_i32_0 = arith.constant 0 : i32
    %c0_i32_1 = arith.constant 0 : i32
    return %c0_i32, %c0_i32_0 : i32, i32
  }
  func.func @transform_5(%arg0: i32) -> (i32, i32) {
    %c0_i32 = arith.constant 0 : i32
    %c0_i32_0 = arith.constant 0 : i32
    %c0_i32_1 = arith.constant 0 : i32
    return %c0_i32, %c0_i32_0 : i32, i32
  }
  func.func @transform_6(%arg0: i32) -> (i32, i32) {
    %c0_i32 = arith.constant 0 : i32
    %c0_i32_0 = arith.constant 0 : i32
    %c0_i32_1 = arith.constant 0 : i32
    return %c0_i32, %c0_i32_0 : i32, i32
  }
  func.func @transform_7(%arg0: i32) -> (i32, i32, i32, i32) {
    %c0_i32 = arith.constant 0 : i32
    %c0_i32_0 = arith.constant 0 : i32
    %c0_i32_1 = arith.constant 0 : i32
    %c0_i32_2 = arith.constant 0 : i32
    return %arg0, %c0_i32, %c0_i32_0, %c0_i32_1 : i32, i32, i32, i32
  }
}

</mosaic_0001>

<llo_original>
// kernel: _lambda_.2
$region0: #{_lambda_.2}
  #allocation0 [shape = 'u32[]', space=smem, size = 0x4, offset = 0x4, fixed_abs, tag = 'smem constant byte address 0x4 - core index']
  #allocation1 [shape = 'u32[144,128]{1,0:T(1,128)}', space=vmem, size = 0x12000, scoped, tag = 'internal scratch']
  #allocation2 [shape = 'bf16[9,2,9,64]{3,2,1,0:T(8,128)(2,1)}', space=vmem, size = 0x12000, scoped, tag = 'scratch operand']
  #allocation3 [shape = 'bf16[10,10,64]{2,1,0:T(8,128)(2,1)}', space=vmem, size = 0xa000, scoped, tag = 'scratch operand']
  #allocation4 [shape = 'bf16[64,288]{1,0:T(16,128)(2,1)}', space=vmem, size = 0xc000, scoped, tag = 'scratch operand']
  #allocation5 [shape = 'bf16[64,576]{1,0:T(16,128)(2,1)}', space=vmem, size = 0x14000, scoped, tag = 'scratch operand']
  %s0 = inlined_call_operand.vmem [shape: bf16[2,8,2,8,64], index: 0, kind: input, shape index: {}]
  %s1 = inlined_call_operand.vmem [shape: bf16[288,64], index: 1, kind: input, shape index: {}]
  %s2 = inlined_call_operand.vmem [shape: f32[1,64], index: 2, kind: input, shape index: {}]
  %s3 = inlined_call_operand.vmem [shape: f32[1,64], index: 3, kind: input, shape index: {}]
  %s4 = inlined_call_operand.vmem [shape: bf16[576,64], index: 4, kind: input, shape index: {}]
  %s5 = inlined_call_operand.vmem [shape: f32[1,64], index: 5, kind: input, shape index: {}]
  %s6 = inlined_call_operand.vmem [shape: f32[1,64], index: 6, kind: input, shape index: {}]
  %s7 = inlined_call_operand.vmem [shape: bf16[32,64], index: 7, kind: input, shape index: {}]
  %s8 = inlined_call_operand.vmem [shape: f32[1,64], index: 8, kind: input, shape index: {}]
  %s9 = inlined_call_operand.vmem [shape: f32[1,64], index: 9, kind: input, shape index: {}]
  %s10 = inlined_call_operand.vmem [shape: bf16[2,8,8,64], index: 10, kind: output, shape index: {}]
  %s11 = sld [smem:[#allocation0]]
  $region73: #{_lambda_.2} parent=0
    _
  %s13 = ssub.s32 1, %s11
  %s14 = scalar_select 0, %s13, %s11
  loop: start=0, step=1, limit=4
  $region2: #{_lambda_.2} parent=0 // loop_pre_header
    _
  $region3: #{_lambda_.2} parent=0 // loop_header
    %s16 = sphi 0, %s20
    %p17 = scmp.ge.s32.totalorder %s16, 4
    %s26 = sphi 0, %s28
    %s29 = sphi 0, %s26
    %s30 = sphi 0, %s29
    %s46 = sphi 0, %s30
    %s50 = sphi 0, %s50
    %s52 = sphi 0, %s50
    %s53 = sphi 0, %s52
    %s67 = sphi 0, %s53
    %s71 = sphi 0, %s71
    %s73 = sphi 0, %s71
    %s74 = sphi 0, %s73
    %s88 = sphi 0, %s74
    %s92 = sphi 0, %s92
    %s94 = sphi 0, %s92
    %s95 = sphi 0, %s94
    %s109 = sphi 0, %s95
    %s113 = sphi 0, %s113
    %s115 = sphi 0, %s113
    %s116 = sphi 0, %s115
    %s130 = sphi 0, %s116
    %s134 = sphi 0, %s134
    %s136 = sphi 0, %s134
    %s137 = sphi 0, %s136
    %s151 = sphi 0, %s137
    %s155 = sphi 0, %s155
    %s157 = sphi 0, %s155
    %s158 = sphi 0, %s157
    %s172 = sphi 0, %s158
    %s176 = sphi 0, %s176
    %s178 = sphi 0, %s176
    %s179 = sphi 0, %s178
    %s193 = sphi 0, %s179
    %s197 = sphi 0, %s197
    %s199 = sphi 0, %s197
    %s200 = sphi 0, %s199
    %s214 = sphi 0, %s200
    %s218 = sphi 0, %s218
    %s220 = sphi 0, %s218
    %s221 = sphi 0, %s220
    %s235 = sphi 0, %s221
    %s241 = sphi 0, %s243
    %s244 = sphi 0, %s241
    %s245 = sphi 0, %s244
    %s261 = sphi 0, %s245
  $region4: #{_lambda_.2} parent=0 // loop_header_branch
    %19 = sbr.rel (%p17) target = $region8
  $region5: #{_lambda_.2} parent=0 // loop_body
    %s21 = ssub.s32 %s16, 1
    %s22 = ssub.s32 %s16, 2
    %s23 = sadd.s32 %s16, 1
    %s24 = ssub.s32 %s16, %s23
    %p25 = scmp.eq.s32.totalorder %s24, 0
    %s27 = sadd.s32 %s26, 1
    %s28 = scalar_select %p25, %s26, %s27
    %p31 = pneg %p25
    %p32 = scmp.eq.s32.totalorder %s16, 1
    %p33 = por %p31, %p32
    %p34 = scmp.ne.s32.totalorder %s26, %s29
    %p35 = scmp.eq.s32.totalorder %s16, 0
    %p36 = por %p34, %p35
    %p37 = scmp.ne.s32.totalorder %s26, %s29
    %p38 = scmp.eq.s32.totalorder %s21, 1
    %p39 = por %p37, %p38
    %p40 = scmp.ne.s32.totalorder %s29, %s30
    %p41 = scmp.eq.s32.totalorder %s21, 0
    %p42 = por %p40, %p41
    %p43 = scmp.ne.s32.totalorder %s29, %s30
    %p44 = scmp.eq.s32.totalorder %s22, 1
    %p45 = por %p43, %p44
    %p47 = scmp.ne.s32.totalorder %s30, %s46
    %p48 = scmp.eq.s32.totalorder %s22, 0
    %p49 = por %p47, %p48
    %s51 = sadd.s32 %s50, 1
    %p54 = scmp.eq.s32.totalorder %s16, 1
    %p55 = scmp.ne.s32.totalorder %s50, %s52
    %p56 = scmp.eq.s32.totalorder %s16, 0
    %p57 = por %p55, %p56
    %p58 = scmp.ne.s32.totalorder %s50, %s52
    %p59 = scmp.eq.s32.totalorder %s21, 1
    %p60 = por %p58, %p59
    %p61 = scmp.ne.s32.totalorder %s52, %s53
    %p62 = scmp.eq.s32.totalorder %s21, 0
    %p63 = por %p61, %p62
    %p64 = scmp.ne.s32.totalorder %s52, %s53
    %p65 = scmp.eq.s32.totalorder %s22, 1
    %p66 = por %p64, %p65
    %p68 = scmp.ne.s32.totalorder %s53, %s67
    %p69 = scmp.eq.s32.totalorder %s22, 0
    %p70 = por %p68, %p69
    %s72 = sadd.s32 %s71, 1
    %p75 = scmp.eq.s32.totalorder %s16, 1
    %p76 = scmp.ne.s32.totalorder %s71, %s73
    %p77 = scmp.eq.s32.totalorder %s16, 0
    %p78 = por %p76, %p77
    %p79 = scmp.ne.s32.totalorder %s71, %s73
    %p80 = scmp.eq.s32.totalorder %s21, 1
    %p81 = por %p79, %p80
    %p82 = scmp.ne.s32.totalorder %s73, %s74
    %p83 = scmp.eq.s32.totalorder %s21, 0
    %p84 = por %p82, %p83
    %p85 = scmp.ne.s32.totalorder %s73, %s74
    %p86 = scmp.eq.s32.totalorder %s22, 1
    %p87 = por %p85, %p86
    %p89 = scmp.ne.s32.totalorder %s74, %s88
    %p90 = scmp.eq.s32.totalorder %s22, 0
    %p91 = por %p89, %p90
    %s93 = sadd.s32 %s92, 1
    %p96 = scmp.eq.s32.totalorder %s16, 1
    %p97 = scmp.ne.s32.totalorder %s92, %s94
    %p98 = scmp.eq.s32.totalorder %s16, 0
    %p99 = por %p97, %p98
    %p100 = scmp.ne.s32.totalorder %s92, %s94
    %p101 = scmp.eq.s32.totalorder %s21, 1
    %p102 = por %p100, %p101
    %p103 = scmp.ne.s32.totalorder %s94, %s95
    %p104 = scmp.eq.s32.totalorder %s21, 0
    %p105 = por %p103, %p104
    %p106 = scmp.ne.s32.totalorder %s94, %s95
    %p107 = scmp.eq.s32.totalorder %s22, 1
    %p108 = por %p106, %p107
    %p110 = scmp.ne.s32.totalorder %s95, %s109
    %p111 = scmp.eq.s32.totalorder %s22, 0
    %p112 = por %p110, %p111
    %s114 = sadd.s32 %s113, 1
    %p117 = scmp.eq.s32.totalorder %s16, 1
    %p118 = scmp.ne.s32.totalorder %s113, %s115
    %p119 = scmp.eq.s32.totalorder %s16, 0
    %p120 = por %p118, %p119
    %p121 = scmp.ne.s32.totalorder %s113, %s115
    %p122 = scmp.eq.s32.totalorder %s21, 1
    %p123 = por %p121, %p122
    %p124 = scmp.ne.s32.totalorder %s115, %s116
    %p125 = scmp.eq.s32.totalorder %s21, 0
    %p126 = por %p124, %p125
    %p127 = scmp.ne.s32.totalorder %s115, %s116
    %p128 = scmp.eq.s32.totalorder %s22, 1
    %p129 = por %p127, %p128
    %p131 = scmp.ne.s32.totalorder %s116, %s130
    %p132 = scmp.eq.s32.totalorder %s22, 0
    %p133 = por %p131, %p132
    %s135 = sadd.s32 %s134, 1
    %p138 = scmp.eq.s32.totalorder %s16, 1
    %p139 = scmp.ne.s32.totalorder %s134, %s136
    %p140 = scmp.eq.s32.totalorder %s16, 0
    %p141 = por %p139, %p140
    %p142 = scmp.ne.s32.totalorder %s134, %s136
    %p143 = scmp.eq.s32.totalorder %s21, 1
    %p144 = por %p142, %p143
    %p145 = scmp.ne.s32.totalorder %s136, %s137
    %p146 = scmp.eq.s32.totalorder %s21, 0
    %p147 = por %p145, %p146
    %p148 = scmp.ne.s32.totalorder %s136, %s137
    %p149 = scmp.eq.s32.totalorder %s22, 1
    %p150 = por %p148, %p149
    %p152 = scmp.ne.s32.totalorder %s137, %s151
    %p153 = scmp.eq.s32.totalorder %s22, 0
    %p154 = por %p152, %p153
    %s156 = sadd.s32 %s155, 1
    %p159 = scmp.eq.s32.totalorder %s16, 1
    %p160 = scmp.ne.s32.totalorder %s155, %s157
    %p161 = scmp.eq.s32.totalorder %s16, 0
    %p162 = por %p160, %p161
    %p163 = scmp.ne.s32.totalorder %s155, %s157
    %p164 = scmp.eq.s32.totalorder %s21, 1
    %p165 = por %p163, %p164
    %p166 = scmp.ne.s32.totalorder %s157, %s158
    %p167 = scmp.eq.s32.totalorder %s21, 0
    %p168 = por %p166, %p167
    %p169 = scmp.ne.s32.totalorder %s157, %s158
    %p170 = scmp.eq.s32.totalorder %s22, 1
    %p171 = por %p169, %p170
    %p173 = scmp.ne.s32.totalorder %s158, %s172
    %p174 = scmp.eq.s32.totalorder %s22, 0
    %p175 = por %p173, %p174
    %s177 = sadd.s32 %s176, 1
    %p180 = scmp.eq.s32.totalorder %s16, 1
    %p181 = scmp.ne.s32.totalorder %s176, %s178
    %p182 = scmp.eq.s32.totalorder %s16, 0
    %p183 = por %p181, %p182
    %p184 = scmp.ne.s32.totalorder %s176, %s178
    %p185 = scmp.eq.s32.totalorder %s21, 1
    %p186 = por %p184, %p185
    %p187 = scmp.ne.s32.totalorder %s178, %s179
    %p188 = scmp.eq.s32.totalorder %s21, 0
    %p189 = por %p187, %p188
    %p190 = scmp.ne.s32.totalorder %s178, %s179
    %p191 = scmp.eq.s32.totalorder %s22, 1
    %p192 = por %p190, %p191
    %p194 = scmp.ne.s32.totalorder %s179, %s193
    %p195 = scmp.eq.s32.totalorder %s22, 0
    %p196 = por %p194, %p195
    %s198 = sadd.s32 %s197, 1
    %p201 = scmp.eq.s32.totalorder %s16, 1
    %p202 = scmp.ne.s32.totalorder %s197, %s199
    %p203 = scmp.eq.s32.totalorder %s16, 0
    %p204 = por %p202, %p203
    %p205 = scmp.ne.s32.totalorder %s197, %s199
    %p206 = scmp.eq.s32.totalorder %s21, 1
    %p207 = por %p205, %p206
    %p208 = scmp.ne.s32.totalorder %s199, %s200
    %p209 = scmp.eq.s32.totalorder %s21, 0
    %p210 = por %p208, %p209
    %p211 = scmp.ne.s32.totalorder %s199, %s200
    %p212 = scmp.eq.s32.totalorder %s22, 1
    %p213 = por %p211, %p212
    %p215 = scmp.ne.s32.totalorder %s200, %s214
    %p216 = scmp.eq.s32.totalorder %s22, 0
    %p217 = por %p215, %p216
    %s219 = sadd.s32 %s218, 1
    %p222 = scmp.eq.s32.totalorder %s16, 1
    %p223 = scmp.ne.s32.totalorder %s218, %s220
    %p224 = scmp.eq.s32.totalorder %s16, 0
    %p225 = por %p223, %p224
    %p226 = scmp.ne.s32.totalorder %s218, %s220
    %p227 = scmp.eq.s32.totalorder %s21, 1
    %p228 = por %p226, %p227
    %p229 = scmp.ne.s32.totalorder %s220, %s221
    %p230 = scmp.eq.s32.totalorder %s21, 0
    %p231 = por %p229, %p230
    %p232 = scmp.ne.s32.totalorder %s220, %s221
    %p233 = scmp.eq.s32.totalorder %s22, 1
    %p234 = por %p232, %p233
    %p236 = scmp.ne.s32.totalorder %s221, %s235
    %p237 = scmp.eq.s32.totalorder %s22, 0
    %p238 = por %p236, %p237
    %s239 = ssub.s32 %s16, %s23
    %p240 = scmp.eq.s32.totalorder %s239, 0
    %s242 = sadd.s32 %s241, 1
    %s243 = scalar_select %p240, %s241, %s242
    %p246 = pneg %p240
    %p247 = scmp.eq.s32.totalorder %s16, 1
    %p248 = por %p246, %p247
    %p249 = scmp.ne.s32.totalorder %s241, %s244
    %p250 = scmp.eq.s32.totalorder %s16, 0
    %p251 = por %p249, %p250
    %p252 = scmp.ne.s32.totalorder %s241, %s244
    %p253 = scmp.eq.s32.totalorder %s21, 1
    %p254 = por %p252, %p253
    %p255 = scmp.ne.s32.totalorder %s244, %s245
    %p256 = scmp.eq.s32.totalorder %s21, 0
    %p257 = por %p255, %p256
    %p258 = scmp.ne.s32.totalorder %s244, %s245
    %p259 = scmp.eq.s32.totalorder %s22, 1
    %p260 = por %p258, %p259
    %p262 = scmp.ne.s32.totalorder %s245, %s261
    %p263 = scmp.eq.s32.totalorder %s22, 0
    %p264 = por %p262, %p263
    %p265 = scmp.le.s32.totalorder 1, %s16
    %p266 = scmp.lt.s32.totalorder %s16, 3
    %p267 = pnand %p265, %p266
    %p268 = pneg %p267
    // Predicated region
    $region9: #{_lambda_.2} parent=5 // pred_check
      _
    $region10: #{_lambda_.2} parent=5 // pred_check_branch
      %270 = sbr.rel (%p267) target = $region12
    $region11: #{_lambda_.2} parent=5 // pred_region
      %s271 = ssub.s32 %s16, 1
      // Predicated region
      $region13: #{_lambda_.2} parent=11 // pred_check
        %p272 = pneg %p63
      $region14: #{_lambda_.2} parent=11 // pred_check_branch
        %274 = sbr.rel (%p272) target = $region16
      $region15: #{_lambda_.2} parent=11 // pred_region
        _
      $region16: #{_lambda_.2} parent=11 // pred_fallthru
        _
      // Predicated region
      $region17: #{_lambda_.2} parent=11 // pred_check
        %p275 = pneg %p84
      $region18: #{_lambda_.2} parent=11 // pred_check_branch
        %277 = sbr.rel (%p275) target = $region20
      $region19: #{_lambda_.2} parent=11 // pred_region
        _
      $region20: #{_lambda_.2} parent=11 // pred_fallthru
        _
      // Predicated region
      $region21: #{_lambda_.2} parent=11 // pred_check
        %p278 = pneg %p105
      $region22: #{_lambda_.2} parent=11 // pred_check_branch
        %280 = sbr.rel (%p278) target = $region24
      $region23: #{_lambda_.2} parent=11 // pred_region
        _
      $region24: #{_lambda_.2} parent=11 // pred_fallthru
        _
      // Predicated region
      $region25: #{_lambda_.2} parent=11 // pred_check
        %p281 = pneg %p126
      $region26: #{_lambda_.2} parent=11 // pred_check_branch
        %283 = sbr.rel (%p281) target = $region28
      $region27: #{_lambda_.2} parent=11 // pred_region
        _
      $region28: #{_lambda_.2} parent=11 // pred_fallthru
        _
      // Predicated region
      $region29: #{_lambda_.2} parent=11 // pred_check
        %p284 = pneg %p147
      $region30: #{_lambda_.2} parent=11 // pred_check_branch
        %286 = sbr.rel (%p284) target = $region32
      $region31: #{_lambda_.2} parent=11 // pred_region
        _
      $region32: #{_lambda_.2} parent=11 // pred_fallthru
        _
      // Predicated region
      $region33: #{_lambda_.2} parent=11 // pred_check
        %p287 = pneg %p168
      $region34: #{_lambda_.2} parent=11 // pred_check_branch
        %289 = sbr.rel (%p287) target = $region36
      $region35: #{_lambda_.2} parent=11 // pred_region
        _
      $region36: #{_lambda_.2} parent=11 // pred_fallthru
        _
      // Predicated region
      $region37: #{_lambda_.2} parent=11 // pred_check
        %p290 = pneg %p189
      $region38: #{_lambda_.2} parent=11 // pred_check_branch
        %292 = sbr.rel (%p290) target = $region40
      $region39: #{_lambda_.2} parent=11 // pred_region
        _
      $region40: #{_lambda_.2} parent=11 // pred_fallthru
        _
      // Predicated region
      $region41: #{_lambda_.2} parent=11 // pred_check
        %p293 = pneg %p210
      $region42: #{_lambda_.2} parent=11 // pred_check_branch
        %295 = sbr.rel (%p293) target = $region44
      $region43: #{_lambda_.2} parent=11 // pred_region
        _
      $region44: #{_lambda_.2} parent=11 // pred_fallthru
        _
      // Predicated region
      $region45: #{_lambda_.2} parent=11 // pred_check
        %p296 = pneg %p231
      $region46: #{_lambda_.2} parent=11 // pred_check_branch
        %298 = sbr.rel (%p296) target = $region48
      $region47: #{_lambda_.2} parent=11 // pred_region
        _
      $region48: #{_lambda_.2} parent=11 // pred_fallthru
        _
    $region12: #{_lambda_.2} parent=5 // pred_fallthru
      _
    %p299 = scmp.lt.s32.totalorder %s16, 2
    // Predicated region
    $region49: #{_lambda_.2} parent=5 // pred_check
      %p300 = pneg %p299
    $region50: #{_lambda_.2} parent=5 // pred_check_branch
      %302 = sbr.rel (%p300) target = $region52
    $region51: #{_lambda_.2} parent=5 // pred_region
      // Predicated region
      $region53: #{_lambda_.2} parent=51 // pred_check
        %p303 = pneg %p36
      $region54: #{_lambda_.2} parent=51 // pred_check_branch
        %305 = sbr.rel (%p303) target = $region56
      $region55: #{_lambda_.2} parent=51 // pred_region
        %p306 = scmp.lt.s32.totalorder %s16, 1
        %s307 = scalar_select %p306, %s16, 1
        %s308 = smul.addr %s307, 16
        %s309 = smul.addr %s308, 4
        %s310 = scalar_lea.vmem %s0, %s309
      $region56: #{_lambda_.2} parent=51 // pred_fallthru
        _
    $region52: #{_lambda_.2} parent=5 // pred_fallthru
      _
    %p311 = scmp.le.s32.totalorder 1, %s16
    %p312 = scmp.lt.s32.totalorder %s16, 3
    %p313 = pnand %p311, %p312
    %p314 = pneg %p313
    // Predicated region
    $region57: #{_lambda_.2} parent=5 // pred_check
      _
    $region58: #{_lambda_.2} parent=5 // pred_check_branch
      %316 = sbr.rel (%p313) target = $region60
    $region59: #{_lambda_.2} parent=5 // pred_region
      %s317 = ssub.s32 %s16, 1
      %p318 = scmp.lt.s32.totalorder %s21, 1
      %s319 = scalar_select %p318, %s21, 1
      %s320 = smul.addr %s319, 16
      %s321 = smul.addr %s320, 4
      %s322 = scalar_lea.vmem %s0, %s321
      %p323 = pneg %p42
      %p324 = pneg %p39
      %p325 = pneg %p63
      %p326 = pneg %p60
      %p327 = pneg %p84
      %p328 = pneg %p81
      %p329 = pneg %p105
      %p330 = pneg %p102
      %p331 = pneg %p126
      %p332 = pneg %p123
      %p333 = pneg %p147
      %p334 = pneg %p144
      %p335 = pneg %p168
      %p336 = pneg %p165
      %p337 = pneg %p189
      %p338 = pneg %p186
      %p339 = pneg %p210
      %p340 = pneg %p207
      %p341 = pneg %p231
      %p342 = pneg %p228
      %p343 = pneg %p257
      %p344 = pneg %p254
      %p345 = scmp.lt.s32.totalorder %s21, 1
      %s346 = scalar_select %p345, %s21, 1
      %s347 = smul.addr %s346, 8
      %s348 = smul.addr %s347, 4
      %s349 = scalar_lea.vmem %s10, %s348
      %p350 = scmp.lt.s32.totalorder %s21, 1
      %s351 = scalar_select %p350, %s21, 1
      %s352 = smul.addr %s351, 16
      %s353 = smul.addr %s352, 4
      %s354 = scalar_lea.vmem %s0, %s353
      %p355 = scmp.lt.s32.totalorder %s21, 1
      %s356 = scalar_select %p355, %s21, 1
      %s357 = smul.addr %s356, 8
      %s358 = smul.addr %s357, 4
      %s359 = scalar_lea.vmem %s10, %s358
      %vm361 = vcmask 519168
      %362 = vst.msk [vmem:[#allocation2] sm:$0xf] %vm361, 0
      %vm363 = vcmask 516096
      %vm364 = vsmask.f32 256
      %vm365 = vmand %vm363, %vm364
      %v366 = vld [vmem:[#allocation2 + $0x4] sm:$0x1]
      %v367 = vsel %vm365, 0, %v366
      %368 = vst [vmem:[#allocation2 + $0x4] sm:$0x1] %v367
      %s369 = scalar_lea.vmem [#allocation2], 136
      %370 = vst.msk [vmem:[%s369] sm:$0xf] %vm361, 0
      %v371 = vld [vmem:[%s369 + $0x4] sm:$0x1]
      %v372 = vsel %vm365, 0, %v371
      %373 = vst [vmem:[%s369 + $0x4] sm:$0x1] %v372
      %vm374 = vcmask 253952
      %vm375 = vmand %vm374, %vm364
      %v376 = vld [vmem:[#allocation2] sm:$0x1]
      %v377 = vsel %vm375, 0, %v376
      %378 = vst [vmem:[#allocation2] sm:$0x1] %v377
      %v379 = vld [vmem:[#allocation2 + $0x8] sm:$0x1]
      %v380 = vsel %vm375, 0, %v379
      %381 = vst [vmem:[#allocation2 + $0x8] sm:$0x1] %v380
      %v382 = vld [vmem:[#allocation2 + $0x10] sm:$0x1]
      %v383 = vsel %vm375, 0, %v382
      %384 = vst [vmem:[#allocation2 + $0x10] sm:$0x1] %v383
      %v385 = vld [vmem:[#allocation2 + $0x18] sm:$0x1]
      %v386 = vsel %vm375, 0, %v385
      %387 = vst [vmem:[#allocation2 + $0x18] sm:$0x1] %v386
      %v388 = vld [vmem:[#allocation2 + $0x20] sm:$0x1]
      %v389 = vsel %vm375, 0, %v388
      %390 = vst [vmem:[#allocation2 + $0x20] sm:$0x1] %v389
      %v391 = vld [vmem:[#allocation2 + $0x28] sm:$0x1]
      %v392 = vsel %vm375, 0, %v391
      %393 = vst [vmem:[#allocation2 + $0x28] sm:$0x1] %v392
      %v394 = vld [vmem:[#allocation2 + $0x30] sm:$0x1]
      %v395 = vsel %vm375, 0, %v394
      %396 = vst [vmem:[#allocation2 + $0x30] sm:$0x1] %v395
      %v397 = vld [vmem:[#allocation2 + $0x38] sm:$0x1]
      %v398 = vsel %vm375, 0, %v397
      %399 = vst [vmem:[#allocation2 + $0x38] sm:$0x1] %v398
      %v400 = vld [vmem:[#allocation2 + $0x40] sm:$0x1]
      %v401 = vsel %vm375, 0, %v400
      %402 = vst [vmem:[#allocation2 + $0x40] sm:$0x1] %v401
      %v403 = vld [vmem:[#allocation2 + $0x48] sm:$0x1]
      %v404 = vsel %vm375, 0, %v403
      %405 = vst [vmem:[#allocation2 + $0x48] sm:$0x1] %v404
      %v406 = vld [vmem:[#allocation2 + $0x50] sm:$0x1]
      %v407 = vsel %vm375, 0, %v406
      %408 = vst [vmem:[#allocation2 + $0x50] sm:$0x1] %v407
      %v409 = vld [vmem:[#allocation2 + $0x58] sm:$0x1]
      %v410 = vsel %vm375, 0, %v409
      %411 = vst [vmem:[#allocation2 + $0x58] sm:$0x1] %v410
      %v412 = vld [vmem:[#allocation2 + $0x60] sm:$0x1]
      %v413 = vsel %vm375, 0, %v412
      %414 = vst [vmem:[#allocation2 + $0x60] sm:$0x1] %v413
      %v415 = vld [vmem:[#allocation2 + $0x68] sm:$0x1]
      %v416 = vsel %vm375, 0, %v415
      %417 = vst [vmem:[#allocation2 + $0x68] sm:$0x1] %v416
      %v418 = vld [vmem:[#allocation2 + $0x70] sm:$0x1]
      %v419 = vsel %vm375, 0, %v418
      %420 = vst [vmem:[#allocation2 + $0x70] sm:$0x1] %v419
      %v421 = vld [vmem:[#allocation2 + $0x78] sm:$0x1]
      %v422 = vsel %vm375, 0, %v421
      %423 = vst [vmem:[#allocation2 + $0x78] sm:$0x1] %v422
      %v424 = vld [vmem:[#allocation2 + $0x80] sm:$0x1]
      %v425 = vsel %vm375, 0, %v424
      %426 = vst [vmem:[#allocation2 + $0x80] sm:$0x1] %v425
      %v427 = vld [vmem:[#allocation2 + $0x88] sm:$0x1]
      %v428 = vsel %vm375, 0, %v427
      %429 = vst [vmem:[#allocation2 + $0x88] sm:$0x1] %v428
      %vm430 = vcmask 516352
      %vm431 = vmand %vm430, %vm364
      %v432 = vld [vmem:[#allocation2 + $0x4] sm:$0x1]
      %v433 = vsel %vm431, 0, %v432
      %434 = vst [vmem:[#allocation2 + $0x4] sm:$0x1] %v433
      %v435 = vld [vmem:[#allocation2 + $0xc] sm:$0x1]
      %v436 = vsel %vm431, 0, %v435
      %437 = vst [vmem:[#allocation2 + $0xc] sm:$0x1] %v436
      %v438 = vld [vmem:[#allocation2 + $0x14] sm:$0x1]
      %v439 = vsel %vm431, 0, %v438
      %440 = vst [vmem:[#allocation2 + $0x14] sm:$0x1] %v439
      %v441 = vld [vmem:[#allocation2 + $0x1c] sm:$0x1]
      %v442 = vsel %vm431, 0, %v441
      %443 = vst [vmem:[#allocation2 + $0x1c] sm:$0x1] %v442
      %v444 = vld [vmem:[#allocation2 + $0x24] sm:$0x1]
      %v445 = vsel %vm431, 0, %v444
      %446 = vst [vmem:[#allocation2 + $0x24] sm:$0x1] %v445
      %v447 = vld [vmem:[#allocation2 + $0x2c] sm:$0x1]
      %v448 = vsel %vm431, 0, %v447
      %449 = vst [vmem:[#allocation2 + $0x2c] sm:$0x1] %v448
      %v450 = vld [vmem:[#allocation2 + $0x34] sm:$0x1]
      %v451 = vsel %vm431, 0, %v450
      %452 = vst [vmem:[#allocation2 + $0x34] sm:$0x1] %v451
      %v453 = vld [vmem:[#allocation2 + $0x3c] sm:$0x1]
      %v454 = vsel %vm431, 0, %v453
      %455 = vst [vmem:[#allocation2 + $0x3c] sm:$0x1] %v454
      %v456 = vld [vmem:[#allocation2 + $0x44] sm:$0x1]
      %v457 = vsel %vm431, 0, %v456
      %458 = vst [vmem:[#allocation2 + $0x44] sm:$0x1] %v457
      %v459 = vld [vmem:[#allocation2 + $0x4c] sm:$0x1]
      %v460 = vsel %vm431, 0, %v459
      %461 = vst [vmem:[#allocation2 + $0x4c] sm:$0x1] %v460
      %v462 = vld [vmem:[#allocation2 + $0x54] sm:$0x1]
      %v463 = vsel %vm431, 0, %v462
      %464 = vst [vmem:[#allocation2 + $0x54] sm:$0x1] %v463
      %v465 = vld [vmem:[#allocation2 + $0x5c] sm:$0x1]
      %v466 = vsel %vm431, 0, %v465
      %467 = vst [vmem:[#allocation2 + $0x5c] sm:$0x1] %v466
      %v468 = vld [vmem:[#allocation2 + $0x64] sm:$0x1]
      %v469 = vsel %vm431, 0, %v468
      %470 = vst [vmem:[#allocation2 + $0x64] sm:$0x1] %v469
      %v471 = vld [vmem:[#allocation2 + $0x6c] sm:$0x1]
      %v472 = vsel %vm431, 0, %v471
      %473 = vst [vmem:[#allocation2 + $0x6c] sm:$0x1] %v472
      %v474 = vld [vmem:[#allocation2 + $0x74] sm:$0x1]
      %v475 = vsel %vm431, 0, %v474
      %476 = vst [vmem:[#allocation2 + $0x74] sm:$0x1] %v475
      %v477 = vld [vmem:[#allocation2 + $0x7c] sm:$0x1]
      %v478 = vsel %vm431, 0, %v477
      %479 = vst [vmem:[#allocation2 + $0x7c] sm:$0x1] %v478
      %v480 = vld [vmem:[#allocation2 + $0x84] sm:$0x1]
      %v481 = vsel %vm431, 0, %v480
      %482 = vst [vmem:[#allocation2 + $0x84] sm:$0x1] %v481
      %v483 = vld [vmem:[#allocation2 + $0x8c] sm:$0x1]
      %v484 = vsel %vm431, 0, %v483
      %485 = vst [vmem:[#allocation2 + $0x8c] sm:$0x1] %v484
      %v486 = vld [vmem:[%s354] sm:$0xf]
      %v487 = vld [vmem:[%s354 + $0x8] sm:$0xf]
      %v488 = vld [vmem:[%s354 + $0x10] sm:$0xf]
      %v489 = vld [vmem:[%s354 + $0x18] sm:$0xf]
      %v490 = vld [vmem:[%s354 + $0x20] sm:$0xf]
      %v491 = vld [vmem:[%s354 + $0x28] sm:$0xf]
      %v492 = vld [vmem:[%s354 + $0x30] sm:$0xf]
      %v493 = vld [vmem:[%s354 + $0x38] sm:$0xf]
      %502 = vrot.lane.b32.xlu0 %v486, 32
      %v503 = vpop.permute.xlu0 %502
      %504 = vrot.lane.b32.xlu0 %v487, 32
      %v505 = vpop.permute.xlu0 %504
      %506 = vrot.lane.b32.xlu0 %v488, 32
      %v507 = vpop.permute.xlu0 %506
      %508 = vrot.lane.b32.xlu0 %v489, 32
      %v509 = vpop.permute.xlu0 %508
      %510 = vrot.lane.b32.xlu0 %v490, 32
      %v511 = vpop.permute.xlu0 %510
      %512 = vrot.lane.b32.xlu0 %v491, 32
      %v513 = vpop.permute.xlu0 %512
      %514 = vrot.lane.b32.xlu0 %v492, 32
      %v515 = vpop.permute.xlu0 %514
      %516 = vrot.lane.b32.xlu0 %v493, 32
      %v517 = vpop.permute.xlu0 %516
      %s526 = scalar_lea.vmem [#allocation2], 8
      %vm527 = vcmask 519424
      %528 = vst.msk [vmem:[%s526] sm:$0xf] %vm527, %v503
      %529 = vst.msk [vmem:[%s526 + $0x10] sm:$0xf] %vm527, %v505
      %530 = vst.msk [vmem:[%s526 + $0x20] sm:$0xf] %vm527, %v507
      %531 = vst.msk [vmem:[%s526 + $0x30] sm:$0xf] %vm527, %v509
      %532 = vst.msk [vmem:[%s526 + $0x40] sm:$0xf] %vm527, %v511
      %533 = vst.msk [vmem:[%s526 + $0x50] sm:$0xf] %vm527, %v513
      %534 = vst.msk [vmem:[%s526 + $0x60] sm:$0xf] %vm527, %v515
      %535 = vst.msk [vmem:[%s526 + $0x70] sm:$0xf] %vm527, %v517
      %v536 = vld [vmem:[%s354] sm:$0xf]
      %v537 = vld [vmem:[%s354 + $0x8] sm:$0xf]
      %v538 = vld [vmem:[%s354 + $0x10] sm:$0xf]
      %v539 = vld [vmem:[%s354 + $0x18] sm:$0xf]
      %v540 = vld [vmem:[%s354 + $0x20] sm:$0xf]
      %v541 = vld [vmem:[%s354 + $0x28] sm:$0xf]
      %v542 = vld [vmem:[%s354 + $0x30] sm:$0xf]
      %v543 = vld [vmem:[%s354 + $0x38] sm:$0xf]
      %v545 = vshrl.u32 %v536, 16
      %v547 = vrot.slane %v545, 7
      %v548 = vshll.u32 %v536, 16
      %v550 = vor.u32 %v547, %v548
      %v551 = vrot.slane %v547, 4
      %v553 = vshrl.u32 %v537, 16
      %v555 = vrot.slane %v553, 7
      %v556 = vshll.u32 %v537, 16
      %v558 = vor.u32 %v555, %v556
      %v559 = vrot.slane %v555, 4
      %v561 = vshrl.u32 %v538, 16
      %v563 = vrot.slane %v561, 7
      %v564 = vshll.u32 %v538, 16
      %v566 = vor.u32 %v563, %v564
      %v567 = vrot.slane %v563, 4
      %v569 = vshrl.u32 %v539, 16
      %v571 = vrot.slane %v569, 7
      %v572 = vshll.u32 %v539, 16
      %v574 = vor.u32 %v571, %v572
      %v575 = vrot.slane %v571, 4
      %v577 = vshrl.u32 %v540, 16
      %v579 = vrot.slane %v577, 7
      %v580 = vshll.u32 %v540, 16
      %v582 = vor.u32 %v579, %v580
      %v583 = vrot.slane %v579, 4
      %v585 = vshrl.u32 %v541, 16
      %v587 = vrot.slane %v585, 7
      %v588 = vshll.u32 %v541, 16
      %v590 = vor.u32 %v587, %v588
      %v591 = vrot.slane %v587, 4
      %v593 = vshrl.u32 %v542, 16
      %v595 = vrot.slane %v593, 7
      %v596 = vshll.u32 %v542, 16
      %v598 = vor.u32 %v595, %v596
      %v599 = vrot.slane %v595, 4
      %v601 = vshrl.u32 %v543, 16
      %v603 = vrot.slane %v601, 7
      %v604 = vshll.u32 %v543, 16
      %v606 = vor.u32 %v603, %v604
      %v607 = vrot.slane %v603, 4
      %608 = vrot.lane.b32.xlu0 %v550, 96
      %v609 = vpop.permute.xlu0 %608
      %610 = vrot.lane.b32.xlu0 %v551, 96
      %v611 = vpop.permute.xlu0 %610
      %612 = vrot.lane.b32.xlu0 %v558, 96
      %v613 = vpop.permute.xlu0 %612
      %614 = vrot.lane.b32.xlu0 %v559, 96
      %v615 = vpop.permute.xlu0 %614
      %616 = vrot.lane.b32.xlu0 %v566, 96
      %v617 = vpop.permute.xlu0 %616
      %618 = vrot.lane.b32.xlu0 %v567, 96
      %v619 = vpop.permute.xlu0 %618
      %620 = vrot.lane.b32.xlu0 %v574, 96
      %v621 = vpop.permute.xlu0 %620
      %622 = vrot.lane.b32.xlu0 %v575, 96
      %v623 = vpop.permute.xlu0 %622
      %624 = vrot.lane.b32.xlu0 %v582, 96
      %v625 = vpop.permute.xlu0 %624
      %626 = vrot.lane.b32.xlu0 %v583, 96
      %v627 = vpop.permute.xlu0 %626
      %628 = vrot.lane.b32.xlu0 %v590, 96
      %v629 = vpop.permute.xlu0 %628
      %630 = vrot.lane.b32.xlu0 %v591, 96
      %v631 = vpop.permute.xlu0 %630
      %632 = vrot.lane.b32.xlu0 %v598, 96
      %v633 = vpop.permute.xlu0 %632
      %634 = vrot.lane.b32.xlu0 %v599, 96
      %v635 = vpop.permute.xlu0 %634
      %636 = vrot.lane.b32.xlu0 %v606, 96
      %v637 = vpop.permute.xlu0 %636
      %638 = vrot.lane.b32.xlu0 %v607, 96
      %v639 = vpop.permute.xlu0 %638
      %vm656 = vcmask 257024
      %vm657 = vsmask.f32 7938
      %vm658 = vmand %vm656, %vm657
      %v659 = vld [vmem:[%s526] sm:$0xf]
      %v660 = vsel %vm658, %v609, %v659
      %661 = vst [vmem:[%s526] sm:$0xf] %v660
      %v662 = vld [vmem:[%s526 + $0x4] sm:$0x1]
      %v663 = vsel %vm375, %v611, %v662
      %664 = vst [vmem:[%s526 + $0x4] sm:$0x1] %v663
      %v665 = vld [vmem:[%s526 + $0x10] sm:$0xf]
      %v666 = vsel %vm658, %v613, %v665
      %667 = vst [vmem:[%s526 + $0x10] sm:$0xf] %v666
      %v668 = vld [vmem:[%s526 + $0x14] sm:$0x1]
      %v669 = vsel %vm375, %v615, %v668
      %670 = vst [vmem:[%s526 + $0x14] sm:$0x1] %v669
      %v671 = vld [vmem:[%s526 + $0x20] sm:$0xf]
      %v672 = vsel %vm658, %v617, %v671
      %673 = vst [vmem:[%s526 + $0x20] sm:$0xf] %v672
      %v674 = vld [vmem:[%s526 + $0x24] sm:$0x1]
      %v675 = vsel %vm375, %v619, %v674
      %676 = vst [vmem:[%s526 + $0x24] sm:$0x1] %v675
      %v677 = vld [vmem:[%s526 + $0x30] sm:$0xf]
      %v678 = vsel %vm658, %v621, %v677
      %679 = vst [vmem:[%s526 + $0x30] sm:$0xf] %v678
      %v680 = vld [vmem:[%s526 + $0x34] sm:$0x1]
      %v681 = vsel %vm375, %v623, %v680
      %682 = vst [vmem:[%s526 + $0x34] sm:$0x1] %v681
      %v683 = vld [vmem:[%s526 + $0x40] sm:$0xf]
      %v684 = vsel %vm658, %v625, %v683
      %685 = vst [vmem:[%s526 + $0x40] sm:$0xf] %v684
      %v686 = vld [vmem:[%s526 + $0x44] sm:$0x1]
      %v687 = vsel %vm375, %v627, %v686
      %688 = vst [vmem:[%s526 + $0x44] sm:$0x1] %v687
      %v689 = vld [vmem:[%s526 + $0x50] sm:$0xf]
      %v690 = vsel %vm658, %v629, %v689
      %691 = vst [vmem:[%s526 + $0x50] sm:$0xf] %v690
      %v692 = vld [vmem:[%s526 + $0x54] sm:$0x1]
      %v693 = vsel %vm375, %v631, %v692
      %694 = vst [vmem:[%s526 + $0x54] sm:$0x1] %v693
      %v695 = vld [vmem:[%s526 + $0x60] sm:$0xf]
      %v696 = vsel %vm658, %v633, %v695
      %697 = vst [vmem:[%s526 + $0x60] sm:$0xf] %v696
      %v698 = vld [vmem:[%s526 + $0x64] sm:$0x1]
      %v699 = vsel %vm375, %v635, %v698
      %700 = vst [vmem:[%s526 + $0x64] sm:$0x1] %v699
      %v701 = vld [vmem:[%s526 + $0x70] sm:$0xf]
      %v702 = vsel %vm658, %v637, %v701
      %703 = vst [vmem:[%s526 + $0x70] sm:$0xf] %v702
      %v704 = vld [vmem:[%s526 + $0x74] sm:$0x1]
      %v705 = vsel %vm375, %v639, %v704
      %706 = vst [vmem:[%s526 + $0x74] sm:$0x1] %v705
      %s707 = scalar_lea.vmem %s354, 4
      %v708 = vld [vmem:[%s707] sm:$0xf]
      %v709 = vld [vmem:[%s707 + $0x8] sm:$0xf]
      %v710 = vld [vmem:[%s707 + $0x10] sm:$0xf]
      %v711 = vld [vmem:[%s707 + $0x18] sm:$0xf]
      %v712 = vld [vmem:[%s707 + $0x20] sm:$0xf]
      %v713 = vld [vmem:[%s707 + $0x28] sm:$0xf]
      %v714 = vld [vmem:[%s707 + $0x30] sm:$0xf]
      %v715 = vld [vmem:[%s707 + $0x38] sm:$0xf]
      %724 = vrot.lane.b32.xlu0 %v708, 32
      %v725 = vpop.permute.xlu0 %724
      %726 = vrot.lane.b32.xlu0 %v709, 32
      %v727 = vpop.permute.xlu0 %726
      %728 = vrot.lane.b32.xlu0 %v710, 32
      %v729 = vpop.permute.xlu0 %728
      %730 = vrot.lane.b32.xlu0 %v711, 32
      %v731 = vpop.permute.xlu0 %730
      %732 = vrot.lane.b32.xlu0 %v712, 32
      %v733 = vpop.permute.xlu0 %732
      %734 = vrot.lane.b32.xlu0 %v713, 32
      %v735 = vpop.permute.xlu0 %734
      %736 = vrot.lane.b32.xlu0 %v714, 32
      %v737 = vpop.permute.xlu0 %736
      %738 = vrot.lane.b32.xlu0 %v715, 32
      %v739 = vpop.permute.xlu0 %738
      %s748 = scalar_lea.vmem [#allocation2], 16
      %749 = vst.msk [vmem:[%s748] sm:$0xf] %vm527, %v725
      %750 = vst.msk [vmem:[%s748 + $0x10] sm:$0xf] %vm527, %v727
      %751 = vst.msk [vmem:[%s748 + $0x20] sm:$0xf] %vm527, %v729
      %752 = vst.msk [vmem:[%s748 + $0x30] sm:$0xf] %vm527, %v731
      %753 = vst.msk [vmem:[%s748 + $0x40] sm:$0xf] %vm527, %v733
      %754 = vst.msk [vmem:[%s748 + $0x50] sm:$0xf] %vm527, %v735
      %755 = vst.msk [vmem:[%s748 + $0x60] sm:$0xf] %vm527, %v737
      %756 = vst.msk [vmem:[%s748 + $0x70] sm:$0xf] %vm527, %v739
      %v757 = vld [vmem:[%s707] sm:$0xf]
      %v758 = vld [vmem:[%s707 + $0x8] sm:$0xf]
      %v759 = vld [vmem:[%s707 + $0x10] sm:$0xf]
      %v760 = vld [vmem:[%s707 + $0x18] sm:$0xf]
      %v761 = vld [vmem:[%s707 + $0x20] sm:$0xf]
      %v762 = vld [vmem:[%s707 + $0x28] sm:$0xf]
      %v763 = vld [vmem:[%s707 + $0x30] sm:$0xf]
      %v764 = vld [vmem:[%s707 + $0x38] sm:$0xf]
      %v766 = vshrl.u32 %v757, 16
      %v768 = vrot.slane %v766, 7
      %v769 = vshll.u32 %v757, 16
      %v771 = vor.u32 %v768, %v769
      %v772 = vrot.slane %v768, 4
      %v774 = vshrl.u32 %v758, 16
      %v776 = vrot.slane %v774, 7
      %v777 = vshll.u32 %v758, 16
      %v779 = vor.u32 %v776, %v777
      %v780 = vrot.slane %v776, 4
      %v782 = vshrl.u32 %v759, 16
      %v784 = vrot.slane %v782, 7
      %v785 = vshll.u32 %v759, 16
      %v787 = vor.u32 %v784, %v785
      %v788 = vrot.slane %v784, 4
      %v790 = vshrl.u32 %v760, 16
      %v792 = vrot.slane %v790, 7
      %v793 = vshll.u32 %v760, 16
      %v795 = vor.u32 %v792, %v793
      %v796 = vrot.slane %v792, 4
      %v798 = vshrl.u32 %v761, 16
      %v800 = vrot.slane %v798, 7
      %v801 = vshll.u32 %v761, 16
      %v803 = vor.u32 %v800, %v801
      %v804 = vrot.slane %v800, 4
      %v806 = vshrl.u32 %v762, 16
      %v808 = vrot.slane %v806, 7
      %v809 = vshll.u32 %v762, 16
      %v811 = vor.u32 %v808, %v809
      %v812 = vrot.slane %v808, 4
      %v814 = vshrl.u32 %v763, 16
      %v816 = vrot.slane %v814, 7
      %v817 = vshll.u32 %v763, 16
      %v819 = vor.u32 %v816, %v817
      %v820 = vrot.slane %v816, 4
      %v822 = vshrl.u32 %v764, 16
      %v824 = vrot.slane %v822, 7
      %v825 = vshll.u32 %v764, 16
      %v827 = vor.u32 %v824, %v825
      %v828 = vrot.slane %v824, 4
      %829 = vrot.lane.b32.xlu0 %v771, 96
      %v830 = vpop.permute.xlu0 %829
      %831 = vrot.lane.b32.xlu0 %v772, 96
      %v832 = vpop.permute.xlu0 %831
      %833 = vrot.lane.b32.xlu0 %v779, 96
      %v834 = vpop.permute.xlu0 %833
      %835 = vrot.lane.b32.xlu0 %v780, 96
      %v836 = vpop.permute.xlu0 %835
      %837 = vrot.lane.b32.xlu0 %v787, 96
      %v838 = vpop.permute.xlu0 %837
      %839 = vrot.lane.b32.xlu0 %v788, 96
      %v840 = vpop.permute.xlu0 %839
      %841 = vrot.lane.b32.xlu0 %v795, 96
      %v842 = vpop.permute.xlu0 %841
      %843 = vrot.lane.b32.xlu0 %v796, 96
      %v844 = vpop.permute.xlu0 %843
      %845 = vrot.lane.b32.xlu0 %v803, 96
      %v846 = vpop.permute.xlu0 %845
      %847 = vrot.lane.b32.xlu0 %v804, 96
      %v848 = vpop.permute.xlu0 %847
      %849 = vrot.lane.b32.xlu0 %v811, 96
      %v850 = vpop.permute.xlu0 %849
      %851 = vrot.lane.b32.xlu0 %v812, 96
      %v852 = vpop.permute.xlu0 %851
      %853 = vrot.lane.b32.xlu0 %v819, 96
      %v854 = vpop.permute.xlu0 %853
      %855 = vrot.lane.b32.xlu0 %v820, 96
      %v856 = vpop.permute.xlu0 %855
      %857 = vrot.lane.b32.xlu0 %v827, 96
      %v858 = vpop.permute.xlu0 %857
      %859 = vrot.lane.b32.xlu0 %v828, 96
      %v860 = vpop.permute.xlu0 %859
      %v877 = vld [vmem:[%s748] sm:$0xf]
      %v878 = vsel %vm658, %v830, %v877
      %879 = vst [vmem:[%s748] sm:$0xf] %v878
      %v880 = vld [vmem:[%s748 + $0x4] sm:$0x1]
      %v881 = vsel %vm375, %v832, %v880
      %882 = vst [vmem:[%s748 + $0x4] sm:$0x1] %v881
      %v883 = vld [vmem:[%s748 + $0x10] sm:$0xf]
      %v884 = vsel %vm658, %v834, %v883
      %885 = vst [vmem:[%s748 + $0x10] sm:$0xf] %v884
      %v886 = vld [vmem:[%s748 + $0x14] sm:$0x1]
      %v887 = vsel %vm375, %v836, %v886
      %888 = vst [vmem:[%s748 + $0x14] sm:$0x1] %v887
      %v889 = vld [vmem:[%s748 + $0x20] sm:$0xf]
      %v890 = vsel %vm658, %v838, %v889
      %891 = vst [vmem:[%s748 + $0x20] sm:$0xf] %v890
      %v892 = vld [vmem:[%s748 + $0x24] sm:$0x1]
      %v893 = vsel %vm375, %v840, %v892
      %894 = vst [vmem:[%s748 + $0x24] sm:$0x1] %v893
      %v895 = vld [vmem:[%s748 + $0x30] sm:$0xf]
      %v896 = vsel %vm658, %v842, %v895
      %897 = vst [vmem:[%s748 + $0x30] sm:$0xf] %v896
      %v898 = vld [vmem:[%s748 + $0x34] sm:$0x1]
      %v899 = vsel %vm375, %v844, %v898
      %900 = vst [vmem:[%s748 + $0x34] sm:$0x1] %v899
      %v901 = vld [vmem:[%s748 + $0x40] sm:$0xf]
      %v902 = vsel %vm658, %v846, %v901
      %903 = vst [vmem:[%s748 + $0x40] sm:$0xf] %v902
      %v904 = vld [vmem:[%s748 + $0x44] sm:$0x1]
      %v905 = vsel %vm375, %v848, %v904
      %906 = vst [vmem:[%s748 + $0x44] sm:$0x1] %v905
      %v907 = vld [vmem:[%s748 + $0x50] sm:$0xf]
      %v908 = vsel %vm658, %v850, %v907
      %909 = vst [vmem:[%s748 + $0x50] sm:$0xf] %v908
      %v910 = vld [vmem:[%s748 + $0x54] sm:$0x1]
      %v911 = vsel %vm375, %v852, %v910
      %912 = vst [vmem:[%s748 + $0x54] sm:$0x1] %v911
      %v913 = vld [vmem:[%s748 + $0x60] sm:$0xf]
      %v914 = vsel %vm658, %v854, %v913
      %915 = vst [vmem:[%s748 + $0x60] sm:$0xf] %v914
      %v916 = vld [vmem:[%s748 + $0x64] sm:$0x1]
      %v917 = vsel %vm375, %v856, %v916
      %918 = vst [vmem:[%s748 + $0x64] sm:$0x1] %v917
      %v919 = vld [vmem:[%s748 + $0x70] sm:$0xf]
      %v920 = vsel %vm658, %v858, %v919
      %921 = vst [vmem:[%s748 + $0x70] sm:$0xf] %v920
      %v922 = vld [vmem:[%s748 + $0x74] sm:$0x1]
      %v923 = vsel %vm375, %v860, %v922
      %924 = vst [vmem:[%s748 + $0x74] sm:$0x1] %v923
      %v925 = vld [vmem:[#allocation2] sm:$0xf]
      %v926 = vld [vmem:[#allocation2 + $0x10] sm:$0xf]
      %v927 = vld [vmem:[#allocation2 + $0x20] sm:$0xf]
      %v928 = vld [vmem:[#allocation2 + $0x30] sm:$0xf]
      %v929 = vld [vmem:[#allocation2 + $0x40] sm:$0xf]
      %v930 = vld [vmem:[#allocation2 + $0x50] sm:$0xf]
      %v931 = vld [vmem:[#allocation2 + $0x60] sm:$0xf]
      %v932 = vld [vmem:[#allocation2 + $0x70] sm:$0xf]
      %v941 = vunpack.c.l.b16 %v925
      %v942 = vunpack.c.l.b16 %v926
      %v943 = vunpack.c.l.b16 %v927
      %v944 = vunpack.c.l.b16 %v928
      %v945 = vunpack.c.l.b16 %v929
      %v946 = vunpack.c.l.b16 %v930
      %v947 = vunpack.c.l.b16 %v931
      %v948 = vunpack.c.l.b16 %v932
      %v949 = vpack.c.b16 %v942, %v941
      %v950 = vpack.c.b16 %v944, %v943
      %v951 = vpack.c.b16 %v946, %v945
      %v952 = vpack.c.b16 %v948, %v947
      %vm957 = vcmask 261120
      %958 = vst.msk [vmem:[#allocation4] sm:$0xff] %vm957, %v949
      %959 = vst.msk [vmem:[#allocation4 + $0x18] sm:$0xff] %vm957, %v950
      %960 = vst.msk [vmem:[#allocation4 + $0x30] sm:$0xff] %vm957, %v951
      %961 = vst.msk [vmem:[#allocation4 + $0x48] sm:$0xff] %vm957, %v952
      %v962 = vld [vmem:[#allocation2] sm:$0xf]
      %v963 = vld [vmem:[#allocation2 + $0x10] sm:$0xf]
      %v964 = vld [vmem:[#allocation2 + $0x20] sm:$0xf]
      %v965 = vld [vmem:[#allocation2 + $0x30] sm:$0xf]
      %v966 = vld [vmem:[#allocation2 + $0x40] sm:$0xf]
      %v967 = vld [vmem:[#allocation2 + $0x50] sm:$0xf]
      %v968 = vld [vmem:[#allocation2 + $0x60] sm:$0xf]
      %v969 = vld [vmem:[#allocation2 + $0x70] sm:$0xf]
      %v978 = vunpack.c.l.b16 %v962
      %v979 = vunpack.c.l.b16 %v963
      %v980 = vunpack.c.l.b16 %v964
      %v981 = vunpack.c.l.b16 %v965
      %v982 = vunpack.c.l.b16 %v966
      %v983 = vunpack.c.l.b16 %v967
      %v984 = vunpack.c.l.b16 %v968
      %v985 = vunpack.c.l.b16 %v969
      %v986 = vpack.c.b16 %v979, %v978
      %v987 = vpack.c.b16 %v981, %v980
      %v988 = vpack.c.b16 %v983, %v982
      %v989 = vpack.c.b16 %v985, %v984
      %vm994 = vcmask 523520
      %995 = vst.msk [vmem:[#allocation4] sm:$0xff] %vm994, %v986
      %996 = vst.msk [vmem:[#allocation4 + $0x18] sm:$0xff] %vm994, %v987
      %997 = vst.msk [vmem:[#allocation4 + $0x30] sm:$0xff] %vm994, %v988
      %998 = vst.msk [vmem:[#allocation4 + $0x48] sm:$0xff] %vm994, %v989
      %v999 = vld [vmem:[#allocation2] sm:$0xf]
      %v1000 = vld [vmem:[#allocation2 + $0x4] sm:$0x1]
      %v1001 = vld [vmem:[#allocation2 + $0x10] sm:$0xf]
      %v1002 = vld [vmem:[#allocation2 + $0x14] sm:$0x1]
      %v1003 = vld [vmem:[#allocation2 + $0x20] sm:$0xf]
      %v1004 = vld [vmem:[#allocation2 + $0x24] sm:$0x1]
      %v1005 = vld [vmem:[#allocation2 + $0x30] sm:$0xf]
      %v1006 = vld [vmem:[#allocation2 + $0x34] sm:$0x1]
      %v1007 = vld [vmem:[#allocation2 + $0x40] sm:$0xf]
      %v1008 = vld [vmem:[#allocation2 + $0x44] sm:$0x1]
      %v1009 = vld [vmem:[#allocation2 + $0x50] sm:$0xf]
      %v1010 = vld [vmem:[#allocation2 + $0x54] sm:$0x1]
      %v1011 = vld [vmem:[#allocation2 + $0x60] sm:$0xf]
      %v1012 = vld [vmem:[#allocation2 + $0x64] sm:$0x1]
      %v1013 = vld [vmem:[#allocation2 + $0x70] sm:$0xf]
      %v1014 = vld [vmem:[#allocation2 + $0x74] sm:$0x1]
      %vm1015 = vsmask.f32 3328
      %vm1016 = vsmask.f32 7440
      %vm1017 = vmor %vm1015, %vm1016
      %v1019 = vshrl.u32 %v999, 16
      %v1021 = vrot.slane %v1019, 4
      %v1022 = vshll.u32 %v999, 16
      %v1024 = vrot.slane %v1022, 5
      %v1025 = vor.u32 %v1021, %v1024
      %v1026 = vrot.slane %v1025, 4
      %v1028 = vshll.u32 %v1000, 16
      %v1030 = vrot.slane %v1028, 5
      %v1031 = vsel %vm1017, %v1026, %v1030
      %v1033 = vshrl.u32 %v1001, 16
      %v1035 = vrot.slane %v1033, 4
      %v1036 = vshll.u32 %v1001, 16
      %v1038 = vrot.slane %v1036, 5
      %v1039 = vor.u32 %v1035, %v1038
      %v1040 = vrot.slane %v1039, 4
      %v1042 = vshll.u32 %v1002, 16
      %v1044 = vrot.slane %v1042, 5
      %v1045 = vsel %vm1017, %v1040, %v1044
      %v1047 = vshrl.u32 %v1003, 16
      %v1049 = vrot.slane %v1047, 4
      %v1050 = vshll.u32 %v1003, 16
      %v1052 = vrot.slane %v1050, 5
      %v1053 = vor.u32 %v1049, %v1052
      %v1054 = vrot.slane %v1053, 4
      %v1056 = vshll.u32 %v1004, 16
      %v1058 = vrot.slane %v1056, 5
      %v1059 = vsel %vm1017, %v1054, %v1058
      %v1061 = vshrl.u32 %v1005, 16
      %v1063 = vrot.slane %v1061, 4
      %v1064 = vshll.u32 %v1005, 16
      %v1066 = vrot.slane %v1064, 5
      %v1067 = vor.u32 %v1063, %v1066
      %v1068 = vrot.slane %v1067, 4
      %v1070 = vshll.u32 %v1006, 16
      %v1072 = vrot.slane %v1070, 5
      %v1073 = vsel %vm1017, %v1068, %v1072
      %v1075 = vshrl.u32 %v1007, 16
      %v1077 = vrot.slane %v1075, 4
      %v1078 = vshll.u32 %v1007, 16
      %v1080 = vrot.slane %v1078, 5
      %v1081 = vor.u32 %v1077, %v1080
      %v1082 = vrot.slane %v1081, 4
      %v1084 = vshll.u32 %v1008, 16
      %v1086 = vrot.slane %v1084, 5
      %v1087 = vsel %vm1017, %v1082, %v1086
      %v1089 = vshrl.u32 %v1009, 16
      %v1091 = vrot.slane %v1089, 4
      %v1092 = vshll.u32 %v1009, 16
      %v1094 = vrot.slane %v1092, 5
      %v1095 = vor.u32 %v1091, %v1094
      %v1096 = vrot.slane %v1095, 4
      %v1098 = vshll.u32 %v1010, 16
      %v1100 = vrot.slane %v1098, 5
      %v1101 = vsel %vm1017, %v1096, %v1100
      %v1103 = vshrl.u32 %v1011, 16
      %v1105 = vrot.slane %v1103, 4
      %v1106 = vshll.u32 %v1011, 16
      %v1108 = vrot.slane %v1106, 5
      %v1109 = vor.u32 %v1105, %v1108
      %v1110 = vrot.slane %v1109, 4
      %v1112 = vshll.u32 %v1012, 16
      %v1114 = vrot.slane %v1112, 5
      %v1115 = vsel %vm1017, %v1110, %v1114
      %v1117 = vshrl.u32 %v1013, 16
      %v1119 = vrot.slane %v1117, 4
      %v1120 = vshll.u32 %v1013, 16
      %v1122 = vrot.slane %v1120, 5
      %v1123 = vor.u32 %v1119, %v1122
      %v1124 = vrot.slane %v1123, 4
      %v1126 = vshll.u32 %v1014, 16
      %v1128 = vrot.slane %v1126, 5
      %v1129 = vsel %vm1017, %v1124, %v1128
      %v1130 = vunpack.c.l.b16 %v1031
      %v1131 = vunpack.c.l.b16 %v1045
      %v1132 = vunpack.c.l.b16 %v1059
      %v1133 = vunpack.c.l.b16 %v1073
      %v1134 = vunpack.c.l.b16 %v1087
      %v1135 = vunpack.c.l.b16 %v1101
      %v1136 = vunpack.c.l.b16 %v1115
      %v1137 = vunpack.c.l.b16 %v1129
      %v1138 = vpack.c.b16 %v1131, %v1130
      %v1139 = vpack.c.b16 %v1133, %v1132
      %v1140 = vpack.c.b16 %v1135, %v1134
      %v1141 = vpack.c.b16 %v1137, %v1136
      %1142 = vrot.lane.b32.xlu0 %v1138, 64
      %v1143 = vpop.permute.xlu0 %1142
      %1144 = vrot.lane.b32.xlu0 %v1139, 64
      %v1145 = vpop.permute.xlu0 %1144
      %1146 = vrot.lane.b32.xlu0 %v1140, 64
      %v1147 = vpop.permute.xlu0 %1146
      %1148 = vrot.lane.b32.xlu0 %v1141, 64
      %v1149 = vpop.permute.xlu0 %1148
      %vm1154 = vcmask 785920
      %1155 = vst.msk [vmem:[#allocation4] sm:$0xff] %vm1154, %v1143
      %1156 = vst.msk [vmem:[#allocation4 + $0x18] sm:$0xff] %vm1154, %v1145
      %1157 = vst.msk [vmem:[#allocation4 + $0x30] sm:$0xff] %vm1154, %v1147
      %1158 = vst.msk [vmem:[#allocation4 + $0x48] sm:$0xff] %vm1154, %v1149
      %v1159 = vld [vmem:[%s526] sm:$0xf]
      %v1160 = vld [vmem:[%s526 + $0x10] sm:$0xf]
      %v1161 = vld [vmem:[%s526 + $0x20] sm:$0xf]
      %v1162 = vld [vmem:[%s526 + $0x30] sm:$0xf]
      %v1163 = vld [vmem:[%s526 + $0x40] sm:$0xf]
      %v1164 = vld [vmem:[%s526 + $0x50] sm:$0xf]
      %v1165 = vld [vmem:[%s526 + $0x60] sm:$0xf]
      %v1166 = vld [vmem:[%s526 + $0x70] sm:$0xf]
      %v1175 = vunpack.c.l.b16 %v1159
      %v1176 = vunpack.c.l.b16 %v1160
      %v1177 = vunpack.c.l.b16 %v1161
      %v1178 = vunpack.c.l.b16 %v1162
      %v1179 = vunpack.c.l.b16 %v1163
      %v1180 = vunpack.c.l.b16 %v1164
      %v1181 = vunpack.c.l.b16 %v1165
      %v1182 = vunpack.c.l.b16 %v1166
      %v1183 = vpack.c.b16 %v1176, %v1175
      %v1184 = vpack.c.b16 %v1178, %v1177
      %v1185 = vpack.c.b16 %v1180, %v1179
      %v1186 = vpack.c.b16 %v1182, %v1181
      %1187 = vrot.lane.b32.xlu0 %v1183, 96
      %v1188 = vpop.permute.xlu0 %1187
      %1189 = vrot.lane.b32.xlu0 %v1184, 96
      %v1190 = vpop.permute.xlu0 %1189
      %1191 = vrot.lane.b32.xlu0 %v1185, 96
      %v1192 = vpop.permute.xlu0 %1191
      %1193 = vrot.lane.b32.xlu0 %v1186, 96
      %v1194 = vpop.permute.xlu0 %1193
      %vm1199 = vcmask 1048320
      %1200 = vst.msk [vmem:[#allocation4] sm:$0xff] %vm1199, %v1188
      %1201 = vst.msk [vmem:[#allocation4 + $0x18] sm:$0xff] %vm1199, %v1190
      %1202 = vst.msk [vmem:[#allocation4 + $0x30] sm:$0xff] %vm1199, %v1192
      %1203 = vst.msk [vmem:[#allocation4 + $0x48] sm:$0xff] %vm1199, %v1194
      %v1204 = vld [vmem:[%s526] sm:$0xf]
      %v1205 = vld [vmem:[%s526 + $0x10] sm:$0xf]
      %v1206 = vld [vmem:[%s526 + $0x20] sm:$0xf]
      %v1207 = vld [vmem:[%s526 + $0x30] sm:$0xf]
      %v1208 = vld [vmem:[%s526 + $0x40] sm:$0xf]
      %v1209 = vld [vmem:[%s526 + $0x50] sm:$0xf]
      %v1210 = vld [vmem:[%s526 + $0x60] sm:$0xf]
      %v1211 = vld [vmem:[%s526 + $0x70] sm:$0xf]
      %v1220 = vunpack.c.l.b16 %v1204
      %v1221 = vunpack.c.l.b16 %v1205
      %v1222 = vunpack.c.l.b16 %v1206
      %v1223 = vunpack.c.l.b16 %v1207
      %v1224 = vunpack.c.l.b16 %v1208
      %v1225 = vunpack.c.l.b16 %v1209
      %v1226 = vunpack.c.l.b16 %v1210
      %v1227 = vunpack.c.l.b16 %v1211
      %v1228 = vpack.c.b16 %v1221, %v1220
      %v1229 = vpack.c.b16 %v1223, %v1222
      %v1230 = vpack.c.b16 %v1225, %v1224
      %v1231 = vpack.c.b16 %v1227, %v1226
      %1232 = vrot.lane.b32.xlu0 %v1228, 96
      %v1233 = vpop.permute.xlu0 %1232
      %1234 = vrot.lane.b32.xlu0 %v1229, 96
      %v1235 = vpop.permute.xlu0 %1234
      %1236 = vrot.lane.b32.xlu0 %v1230, 96
      %v1237 = vpop.permute.xlu0 %1236
      %1238 = vrot.lane.b32.xlu0 %v1231, 96
      %v1239 = vpop.permute.xlu0 %1238
      %1244 = vst.msk [vmem:[#allocation4 + $0x8] sm:$0xff] %vm957, %v1233
      %1245 = vst.msk [vmem:[#allocation4 + $0x20] sm:$0xff] %vm957, %v1235
      %1246 = vst.msk [vmem:[#allocation4 + $0x38] sm:$0xff] %vm957, %v1237
      %1247 = vst.msk [vmem:[#allocation4 + $0x50] sm:$0xff] %vm957, %v1239
      %v1248 = vld [vmem:[%s526] sm:$0xf]
      %v1249 = vld [vmem:[%s526 + $0x4] sm:$0x1]
      %v1250 = vld [vmem:[%s526 + $0x10] sm:$0xf]
      %v1251 = vld [vmem:[%s526 + $0x14] sm:$0x1]
      %v1252 = vld [vmem:[%s526 + $0x20] sm:$0xf]
      %v1253 = vld [vmem:[%s526 + $0x24] sm:$0x1]
      %v1254 = vld [vmem:[%s526 + $0x30] sm:$0xf]
      %v1255 = vld [vmem:[%s526 + $0x34] sm:$0x1]
      %v1256 = vld [vmem:[%s526 + $0x40] sm:$0xf]
      %v1257 = vld [vmem:[%s526 + $0x44] sm:$0x1]
      %v1258 = vld [vmem:[%s526 + $0x50] sm:$0xf]
      %v1259 = vld [vmem:[%s526 + $0x54] sm:$0x1]
      %v1260 = vld [vmem:[%s526 + $0x60] sm:$0xf]
      %v1261 = vld [vmem:[%s526 + $0x64] sm:$0x1]
      %v1262 = vld [vmem:[%s526 + $0x70] sm:$0xf]
      %v1263 = vld [vmem:[%s526 + $0x74] sm:$0x1]
      %v1265 = vshrl.u32 %v1248, 16
      %v1267 = vrot.slane %v1265, 4
      %v1268 = vshll.u32 %v1248, 16
      %v1270 = vrot.slane %v1268, 5
      %v1271 = vor.u32 %v1267, %v1270
      %v1272 = vrot.slane %v1271, 4
      %v1274 = vshll.u32 %v1249, 16
      %v1276 = vrot.slane %v1274, 5
      %v1277 = vsel %vm1017, %v1272, %v1276
      %v1279 = vshrl.u32 %v1250, 16
      %v1281 = vrot.slane %v1279, 4
      %v1282 = vshll.u32 %v1250, 16
      %v1284 = vrot.slane %v1282, 5
      %v1285 = vor.u32 %v1281, %v1284
      %v1286 = vrot.slane %v1285, 4
      %v1288 = vshll.u32 %v1251, 16
      %v1290 = vrot.slane %v1288, 5
      %v1291 = vsel %vm1017, %v1286, %v1290
      %v1293 = vshrl.u32 %v1252, 16
      %v1295 = vrot.slane %v1293, 4
      %v1296 = vshll.u32 %v1252, 16
      %v1298 = vrot.slane %v1296, 5
      %v1299 = vor.u32 %v1295, %v1298
      %v1300 = vrot.slane %v1299, 4
      %v1302 = vshll.u32 %v1253, 16
      %v1304 = vrot.slane %v1302, 5
      %v1305 = vsel %vm1017, %v1300, %v1304
      %v1307 = vshrl.u32 %v1254, 16
      %v1309 = vrot.slane %v1307, 4
      %v1310 = vshll.u32 %v1254, 16
      %v1312 = vrot.slane %v1310, 5
      %v1313 = vor.u32 %v1309, %v1312
      %v1314 = vrot.slane %v1313, 4
      %v1316 = vshll.u32 %v1255, 16
      %v1318 = vrot.slane %v1316, 5
      %v1319 = vsel %vm1017, %v1314, %v1318
      %v1321 = vshrl.u32 %v1256, 16
      %v1323 = vrot.slane %v1321, 4
      %v1324 = vshll.u32 %v1256, 16
      %v1326 = vrot.slane %v1324, 5
      %v1327 = vor.u32 %v1323, %v1326
      %v1328 = vrot.slane %v1327, 4
      %v1330 = vshll.u32 %v1257, 16
      %v1332 = vrot.slane %v1330, 5
      %v1333 = vsel %vm1017, %v1328, %v1332
      %v1335 = vshrl.u32 %v1258, 16
      %v1337 = vrot.slane %v1335, 4
      %v1338 = vshll.u32 %v1258, 16
      %v1340 = vrot.slane %v1338, 5
      %v1341 = vor.u32 %v1337, %v1340
      %v1342 = vrot.slane %v1341, 4
      %v1344 = vshll.u32 %v1259, 16
      %v1346 = vrot.slane %v1344, 5
      %v1347 = vsel %vm1017, %v1342, %v1346
      %v1349 = vshrl.u32 %v1260, 16
      %v1351 = vrot.slane %v1349, 4
      %v1352 = vshll.u32 %v1260, 16
      %v1354 = vrot.slane %v1352, 5
      %v1355 = vor.u32 %v1351, %v1354
      %v1356 = vrot.slane %v1355, 4
      %v1358 = vshll.u32 %v1261, 16
      %v1360 = vrot.slane %v1358, 5
      %v1361 = vsel %vm1017, %v1356, %v1360
      %v1363 = vshrl.u32 %v1262, 16
      %v1365 = vrot.slane %v1363, 4
      %v1366 = vshll.u32 %v1262, 16
      %v1368 = vrot.slane %v1366, 5
      %v1369 = vor.u32 %v1365, %v1368
      %v1370 = vrot.slane %v1369, 4
      %v1372 = vshll.u32 %v1263, 16
      %v1374 = vrot.slane %v1372, 5
      %v1375 = vsel %vm1017, %v1370, %v1374
      %v1376 = vunpack.c.l.b16 %v1277
      %v1377 = vunpack.c.l.b16 %v1291
      %v1378 = vunpack.c.l.b16 %v1305
      %v1379 = vunpack.c.l.b16 %v1319
      %v1380 = vunpack.c.l.b16 %v1333
      %v1381 = vunpack.c.l.b16 %v1347
      %v1382 = vunpack.c.l.b16 %v1361
      %v1383 = vunpack.c.l.b16 %v1375
      %v1384 = vpack.c.b16 %v1377, %v1376
      %v1385 = vpack.c.b16 %v1379, %v1378
      %v1386 = vpack.c.b16 %v1381, %v1380
      %v1387 = vpack.c.b16 %v1383, %v1382
      %1388 = vrot.lane.b32.xlu0 %v1384, 32
      %v1389 = vpop.permute.xlu0 %1388
      %1390 = vrot.lane.b32.xlu0 %v1385, 32
      %v1391 = vpop.permute.xlu0 %1390
      %1392 = vrot.lane.b32.xlu0 %v1386, 32
      %v1393 = vpop.permute.xlu0 %1392
      %1394 = vrot.lane.b32.xlu0 %v1387, 32
      %v1395 = vpop.permute.xlu0 %1394
      %1400 = vst.msk [vmem:[#allocation4 + $0x8] sm:$0xff] %vm994, %v1389
      %1401 = vst.msk [vmem:[#allocation4 + $0x20] sm:$0xff] %vm994, %v1391
      %1402 = vst.msk [vmem:[#allocation4 + $0x38] sm:$0xff] %vm994, %v1393
      %1403 = vst.msk [vmem:[#allocation4 + $0x50] sm:$0xff] %vm994, %v1395
      %v1404 = vld [vmem:[%s748] sm:$0xf]
      %v1405 = vld [vmem:[%s748 + $0x10] sm:$0xf]
      %v1406 = vld [vmem:[%s748 + $0x20] sm:$0xf]
      %v1407 = vld [vmem:[%s748 + $0x30] sm:$0xf]
      %v1408 = vld [vmem:[%s748 + $0x40] sm:$0xf]
      %v1409 = vld [vmem:[%s748 + $0x50] sm:$0xf]
      %v1410 = vld [vmem:[%s748 + $0x60] sm:$0xf]
      %v1411 = vld [vmem:[%s748 + $0x70] sm:$0xf]
      %v1420 = vunpack.c.l.b16 %v1404
      %v1421 = vunpack.c.l.b16 %v1405
      %v1422 = vunpack.c.l.b16 %v1406
      %v1423 = vunpack.c.l.b16 %v1407
      %v1424 = vunpack.c.l.b16 %v1408
      %v1425 = vunpack.c.l.b16 %v1409
      %v1426 = vunpack.c.l.b16 %v1410
      %v1427 = vunpack.c.l.b16 %v1411
      %v1428 = vpack.c.b16 %v1421, %v1420
      %v1429 = vpack.c.b16 %v1423, %v1422
      %v1430 = vpack.c.b16 %v1425, %v1424
      %v1431 = vpack.c.b16 %v1427, %v1426
      %1432 = vrot.lane.b32.xlu0 %v1428, 64
      %v1433 = vpop.permute.xlu0 %1432
      %1434 = vrot.lane.b32.xlu0 %v1429, 64
      %v1435 = vpop.permute.xlu0 %1434
      %1436 = vrot.lane.b32.xlu0 %v1430, 64
      %v1437 = vpop.permute.xlu0 %1436
      %1438 = vrot.lane.b32.xlu0 %v1431, 64
      %v1439 = vpop.permute.xlu0 %1438
      %1444 = vst.msk [vmem:[#allocation4 + $0x8] sm:$0xff] %vm1154, %v1433
      %1445 = vst.msk [vmem:[#allocation4 + $0x20] sm:$0xff] %vm1154, %v1435
      %1446 = vst.msk [vmem:[#allocation4 + $0x38] sm:$0xff] %vm1154, %v1437
      %1447 = vst.msk [vmem:[#allocation4 + $0x50] sm:$0xff] %vm1154, %v1439
      %v1448 = vld [vmem:[%s748] sm:$0xf]
      %v1449 = vld [vmem:[%s748 + $0x10] sm:$0xf]
      %v1450 = vld [vmem:[%s748 + $0x20] sm:$0xf]
      %v1451 = vld [vmem:[%s748 + $0x30] sm:$0xf]
      %v1452 = vld [vmem:[%s748 + $0x40] sm:$0xf]
      %v1453 = vld [vmem:[%s748 + $0x50] sm:$0xf]
      %v1454 = vld [vmem:[%s748 + $0x60] sm:$0xf]
      %v1455 = vld [vmem:[%s748 + $0x70] sm:$0xf]
      %v1464 = vunpack.c.l.b16 %v1448
      %v1465 = vunpack.c.l.b16 %v1449
      %v1466 = vunpack.c.l.b16 %v1450
      %v1467 = vunpack.c.l.b16 %v1451
      %v1468 = vunpack.c.l.b16 %v1452
      %v1469 = vunpack.c.l.b16 %v1453
      %v1470 = vunpack.c.l.b16 %v1454
      %v1471 = vunpack.c.l.b16 %v1455
      %v1472 = vpack.c.b16 %v1465, %v1464
      %v1473 = vpack.c.b16 %v1467, %v1466
      %v1474 = vpack.c.b16 %v1469, %v1468
      %v1475 = vpack.c.b16 %v1471, %v1470
      %1476 = vrot.lane.b32.xlu0 %v1472, 64
      %v1477 = vpop.permute.xlu0 %1476
      %1478 = vrot.lane.b32.xlu0 %v1473, 64
      %v1479 = vpop.permute.xlu0 %1478
      %1480 = vrot.lane.b32.xlu0 %v1474, 64
      %v1481 = vpop.permute.xlu0 %1480
      %1482 = vrot.lane.b32.xlu0 %v1475, 64
      %v1483 = vpop.permute.xlu0 %1482
      %1488 = vst.msk [vmem:[#allocation4 + $0x8] sm:$0xff] %vm1199, %v1477
      %1489 = vst.msk [vmem:[#allocation4 + $0x20] sm:$0xff] %vm1199, %v1479
      %1490 = vst.msk [vmem:[#allocation4 + $0x38] sm:$0xff] %vm1199, %v1481
      %1491 = vst.msk [vmem:[#allocation4 + $0x50] sm:$0xff] %vm1199, %v1483
      %v1492 = vld [vmem:[%s748] sm:$0xf]
      %v1493 = vld [vmem:[%s748 + $0x4] sm:$0x1]
      %v1494 = vld [vmem:[%s748 + $0x10] sm:$0xf]
      %v1495 = vld [vmem:[%s748 + $0x14] sm:$0x1]
      %v1496 = vld [vmem:[%s748 + $0x20] sm:$0xf]
      %v1497 = vld [vmem:[%s748 + $0x24] sm:$0x1]
      %v1498 = vld [vmem:[%s748 + $0x30] sm:$0xf]
      %v1499 = vld [vmem:[%s748 + $0x34] sm:$0x1]
      %v1500 = vld [vmem:[%s748 + $0x40] sm:$0xf]
      %v1501 = vld [vmem:[%s748 + $0x44] sm:$0x1]
      %v1502 = vld [vmem:[%s748 + $0x50] sm:$0xf]
      %v1503 = vld [vmem:[%s748 + $0x54] sm:$0x1]
      %v1504 = vld [vmem:[%s748 + $0x60] sm:$0xf]
      %v1505 = vld [vmem:[%s748 + $0x64] sm:$0x1]
      %v1506 = vld [vmem:[%s748 + $0x70] sm:$0xf]
      %v1507 = vld [vmem:[%s748 + $0x74] sm:$0x1]
      %v1509 = vshrl.u32 %v1492, 16
      %v1511 = vrot.slane %v1509, 4
      %v1512 = vshll.u32 %v1492, 16
      %v1514 = vrot.slane %v1512, 5
      %v1515 = vor.u32 %v1511, %v1514
      %v1516 = vrot.slane %v1515, 4
      %v1518 = vshll.u32 %v1493, 16
      %v1520 = vrot.slane %v1518, 5
      %v1521 = vsel %vm1017, %v1516, %v1520
      %v1523 = vshrl.u32 %v1494, 16
      %v1525 = vrot.slane %v1523, 4
      %v1526 = vshll.u32 %v1494, 16
      %v1528 = vrot.slane %v1526, 5
      %v1529 = vor.u32 %v1525, %v1528
      %v1530 = vrot.slane %v1529, 4
      %v1532 = vshll.u32 %v1495, 16
      %v1534 = vrot.slane %v1532, 5
      %v1535 = vsel %vm1017, %v1530, %v1534
      %v1537 = vshrl.u32 %v1496, 16
      %v1539 = vrot.slane %v1537, 4
      %v1540 = vshll.u32 %v1496, 16
      %v1542 = vrot.slane %v1540, 5
      %v1543 = vor.u32 %v1539, %v1542
      %v1544 = vrot.slane %v1543, 4
      %v1546 = vshll.u32 %v1497, 16
      %v1548 = vrot.slane %v1546, 5
      %v1549 = vsel %vm1017, %v1544, %v1548
      %v1551 = vshrl.u32 %v1498, 16
      %v1553 = vrot.slane %v1551, 4
      %v1554 = vshll.u32 %v1498, 16
      %v1556 = vrot.slane %v1554, 5
      %v1557 = vor.u32 %v1553, %v1556
      %v1558 = vrot.slane %v1557, 4
      %v1560 = vshll.u32 %v1499, 16
      %v1562 = vrot.slane %v1560, 5
      %v1563 = vsel %vm1017, %v1558, %v1562
      %v1565 = vshrl.u32 %v1500, 16
      %v1567 = vrot.slane %v1565, 4
      %v1568 = vshll.u32 %v1500, 16
      %v1570 = vrot.slane %v1568, 5
      %v1571 = vor.u32 %v1567, %v1570
      %v1572 = vrot.slane %v1571, 4
      %v1574 = vshll.u32 %v1501, 16
      %v1576 = vrot.slane %v1574, 5
      %v1577 = vsel %vm1017, %v1572, %v1576
      %v1579 = vshrl.u32 %v1502, 16
      %v1581 = vrot.slane %v1579, 4
      %v1582 = vshll.u32 %v1502, 16
      %v1584 = vrot.slane %v1582, 5
      %v1585 = vor.u32 %v1581, %v1584
      %v1586 = vrot.slane %v1585, 4
      %v1588 = vshll.u32 %v1503, 16
      %v1590 = vrot.slane %v1588, 5
      %v1591 = vsel %vm1017, %v1586, %v1590
      %v1593 = vshrl.u32 %v1504, 16
      %v1595 = vrot.slane %v1593, 4
      %v1596 = vshll.u32 %v1504, 16
      %v1598 = vrot.slane %v1596, 5
      %v1599 = vor.u32 %v1595, %v1598
      %v1600 = vrot.slane %v1599, 4
      %v1602 = vshll.u32 %v1505, 16
      %v1604 = vrot.slane %v1602, 5
      %v1605 = vsel %vm1017, %v1600, %v1604
      %v1607 = vshrl.u32 %v1506, 16
      %v1609 = vrot.slane %v1607, 4
      %v1610 = vshll.u32 %v1506, 16
      %v1612 = vrot.slane %v1610, 5
      %v1613 = vor.u32 %v1609, %v1612
      %v1614 = vrot.slane %v1613, 4
      %v1616 = vshll.u32 %v1507, 16
      %v1618 = vrot.slane %v1616, 5
      %v1619 = vsel %vm1017, %v1614, %v1618
      %v1620 = vunpack.c.l.b16 %v1521
      %v1621 = vunpack.c.l.b16 %v1535
      %v1622 = vunpack.c.l.b16 %v1549
      %v1623 = vunpack.c.l.b16 %v1563
      %v1624 = vunpack.c.l.b16 %v1577
      %v1625 = vunpack.c.l.b16 %v1591
      %v1626 = vunpack.c.l.b16 %v1605
      %v1627 = vunpack.c.l.b16 %v1619
      %v1628 = vpack.c.b16 %v1621, %v1620
      %v1629 = vpack.c.b16 %v1623, %v1622
      %v1630 = vpack.c.b16 %v1625, %v1624
      %v1631 = vpack.c.b16 %v1627, %v1626
      %1636 = vst.msk [vmem:[#allocation4 + $0x10] sm:$0xff] %vm957, %v1628
      %1637 = vst.msk [vmem:[#allocation4 + $0x28] sm:$0xff] %vm957, %v1629
      %1638 = vst.msk [vmem:[#allocation4 + $0x40] sm:$0xff] %vm957, %v1630
      %1639 = vst.msk [vmem:[#allocation4 + $0x58] sm:$0xff] %vm957, %v1631
      %v1640 = vld [vmem:[#allocation4] sm:$0xff]
      %v1641 = vld [vmem:[#allocation4 + $0x8] sm:$0xff]
      %v1642 = vld [vmem:[#allocation4 + $0x10] sm:$0xff]
      %v1643 = vld [vmem:[#allocation4 + $0x18] sm:$0xff]
      %v1644 = vld [vmem:[#allocation4 + $0x20] sm:$0xff]
      %v1645 = vld [vmem:[#allocation4 + $0x28] sm:$0xff]
      %v1646 = vld [vmem:[#allocation4 + $0x30] sm:$0xff]
      %v1647 = vld [vmem:[#allocation4 + $0x38] sm:$0xff]
      %v1648 = vld [vmem:[#allocation4 + $0x40] sm:$0xff]
      %v1649 = vld [vmem:[#allocation4 + $0x48] sm:$0xff]
      %v1650 = vld [vmem:[#allocation4 + $0x50] sm:$0xff]
      %v1651 = vld [vmem:[#allocation4 + $0x58] sm:$0xff]
      %v1652 = vld [vmem:[%s1] sm:$0xf]
      %v1653 = vld [vmem:[%s1 + $0x4] sm:$0xf]
      %v1654 = vld [vmem:[%s1 + $0x8] sm:$0xf]
      %v1655 = vld [vmem:[%s1 + $0xc] sm:$0xf]
      %v1656 = vld [vmem:[%s1 + $0x10] sm:$0xf]
      %v1657 = vld [vmem:[%s1 + $0x14] sm:$0xf]
      %v1658 = vld [vmem:[%s1 + $0x18] sm:$0xf]
      %v1659 = vld [vmem:[%s1 + $0x1c] sm:$0xf]
      %v1660 = vld [vmem:[%s1 + $0x20] sm:$0xf]
      %v1661 = vld [vmem:[%s1 + $0x24] sm:$0xf]
      %v1662 = vld [vmem:[%s1 + $0x28] sm:$0xf]
      %v1663 = vld [vmem:[%s1 + $0x2c] sm:$0xf]
      %v1664 = vld [vmem:[%s1 + $0x30] sm:$0xf]
      %v1665 = vld [vmem:[%s1 + $0x34] sm:$0xf]
      %v1666 = vld [vmem:[%s1 + $0x38] sm:$0xf]
      %v1667 = vld [vmem:[%s1 + $0x3c] sm:$0xf]
      %v1668 = vld [vmem:[%s1 + $0x40] sm:$0xf]
      %v1669 = vld [vmem:[%s1 + $0x44] sm:$0xf]
      %v1670 = vld [vmem:[%s1 + $0x48] sm:$0xf]
      %v1671 = vld [vmem:[%s1 + $0x4c] sm:$0xf]
      %v1672 = vld [vmem:[%s1 + $0x50] sm:$0xf]
      %v1673 = vld [vmem:[%s1 + $0x54] sm:$0xf]
      %v1674 = vld [vmem:[%s1 + $0x58] sm:$0xf]
      %v1675 = vld [vmem:[%s1 + $0x5c] sm:$0xf]
      %v1676 = vld [vmem:[%s1 + $0x60] sm:$0xf]
      %v1677 = vld [vmem:[%s1 + $0x64] sm:$0xf]
      %v1678 = vld [vmem:[%s1 + $0x68] sm:$0xf]
      %v1679 = vld [vmem:[%s1 + $0x6c] sm:$0xf]
      %v1680 = vld [vmem:[%s1 + $0x70] sm:$0xf]
      %v1681 = vld [vmem:[%s1 + $0x74] sm:$0xf]
      %v1682 = vld [vmem:[%s1 + $0x78] sm:$0xf]
      %v1683 = vld [vmem:[%s1 + $0x7c] sm:$0xf]
      %v1684 = vld [vmem:[%s1 + $0x80] sm:$0xf]
      %v1685 = vld [vmem:[%s1 + $0x84] sm:$0xf]
      %v1686 = vld [vmem:[%s1 + $0x88] sm:$0xf]
      %v1687 = vld [vmem:[%s1 + $0x8c] sm:$0xf]
      %v1724 = vunpack.c.l.b16 %v1652
      %v1725 = vunpack.c.l.b16 %v1653
      %v1726 = vunpack.c.l.b16 %v1654
      %v1727 = vunpack.c.l.b16 %v1655
      %v1728 = vunpack.c.l.b16 %v1656
      %v1729 = vunpack.c.l.b16 %v1657
      %v1730 = vunpack.c.l.b16 %v1658
      %v1731 = vunpack.c.l.b16 %v1659
      %v1732 = vunpack.c.l.b16 %v1660
      %v1733 = vunpack.c.l.b16 %v1661
      %v1734 = vunpack.c.l.b16 %v1662
      %v1735 = vunpack.c.l.b16 %v1663
      %v1736 = vunpack.c.l.b16 %v1664
      %v1737 = vunpack.c.l.b16 %v1665
      %v1738 = vunpack.c.l.b16 %v1666
      %v1739 = vunpack.c.l.b16 %v1667
      %v1740 = vunpack.c.l.b16 %v1668
      %v1741 = vunpack.c.l.b16 %v1669
      %v1742 = vunpack.c.l.b16 %v1670
      %v1743 = vunpack.c.l.b16 %v1671
      %v1744 = vunpack.c.l.b16 %v1672
      %v1745 = vunpack.c.l.b16 %v1673
      %v1746 = vunpack.c.l.b16 %v1674
      %v1747 = vunpack.c.l.b16 %v1675
      %v1748 = vunpack.c.l.b16 %v1676
      %v1749 = vunpack.c.l.b16 %v1677
      %v1750 = vunpack.c.l.b16 %v1678
      %v1751 = vunpack.c.l.b16 %v1679
      %v1752 = vunpack.c.l.b16 %v1680
      %v1753 = vunpack.c.l.b16 %v1681
      %v1754 = vunpack.c.l.b16 %v1682
      %v1755 = vunpack.c.l.b16 %v1683
      %v1756 = vunpack.c.l.b16 %v1684
      %v1757 = vunpack.c.l.b16 %v1685
      %v1758 = vunpack.c.l.b16 %v1686
      %v1759 = vunpack.c.l.b16 %v1687
      %v1760 = vpack.c.b16 %v1725, %v1724
      %v1761 = vpack.c.b16 %v1727, %v1726
      %v1762 = vpack.c.b16 %v1729, %v1728
      %v1763 = vpack.c.b16 %v1731, %v1730
      %v1764 = vpack.c.b16 %v1733, %v1732
      %v1765 = vpack.c.b16 %v1735, %v1734
      %v1766 = vpack.c.b16 %v1737, %v1736
      %v1767 = vpack.c.b16 %v1739, %v1738
      %v1768 = vpack.c.b16 %v1741, %v1740
      %v1769 = vpack.c.b16 %v1743, %v1742
      %v1770 = vpack.c.b16 %v1745, %v1744
      %v1771 = vpack.c.b16 %v1747, %v1746
      %v1772 = vpack.c.b16 %v1749, %v1748
      %v1773 = vpack.c.b16 %v1751, %v1750
      %v1774 = vpack.c.b16 %v1753, %v1752
      %v1775 = vpack.c.b16 %v1755, %v1754
      %v1776 = vpack.c.b16 %v1757, %v1756
      %v1777 = vpack.c.b16 %v1759, %v1758
      %v1797 = vsel %vm957, %v1642, 0
      %v1800 = vsel %vm957, %v1645, 0
      %v1803 = vsel %vm957, %v1648, 0
      %v1806 = vsel %vm957, %v1651, 0
      %1808 = vmatprep.subr.bf16.mxu0 0
      %1809 = vmatpush1.bf16.msra.mxu0 %v1760
      %1810 = vmatprep.subr.bf16.mxu0 0
      %1811 = vmatpush1.bf16.msra.mxu0 %v1761
      %1812 = vmatprep.subr.bf16.mxu0 0
      %1813 = vmatpush1.bf16.msra.mxu0 %v1762
      %1814 = vmatprep.subr.bf16.mxu0 0
      %1815 = vmatpush1.bf16.msra.mxu0 %v1763
      %1816 = vmatprep.subr.bf16.mxu0 0
      %1817 = vmatpush1.bf16.msra.mxu0 %v1764
      %1818 = vmatprep.subr.bf16.mxu0 0
      %1819 = vmatpush1.bf16.msra.mxu0 %v1765
      %1820 = vmatprep.subr.bf16.mxu0 0
      %1821 = vmatpush1.bf16.msra.mxu0 %v1766
      %1822 = vmatprep.subr.bf16.mxu0 0
      %1823 = vmatpush1.bf16.msra.mxu0 %v1767
      %1824 = vmatprep.subr.bf16.mxu0 0
      %1825 = vmatpush1.bf16.msra.mxu0 %v1768
      %1826 = vmatprep.subr.bf16.mxu0 0
      %1827 = vmatpush1.bf16.msra.mxu0 %v1769
      %1828 = vmatprep.subr.bf16.mxu0 0
      %1829 = vmatpush1.bf16.msra.mxu0 %v1770
      %1830 = vmatprep.subr.bf16.mxu0 0
      %1831 = vmatpush1.bf16.msra.mxu0 %v1771
      %1832 = vmatprep.subr.bf16.mxu0 0
      %1833 = vmatpush1.bf16.msra.mxu0 %v1772
      %1834 = vmatprep.subr.bf16.mxu0 0
      %1835 = vmatpush1.bf16.msra.mxu0 %v1773
      %1836 = vmatprep.subr.bf16.mxu0 0
      %1837 = vmatpush1.bf16.msra.mxu0 %v1774
      %1838 = vmatprep.subr.bf16.mxu0 0
      %1839 = vmatpush1.bf16.msra.mxu0 %v1775
      %1840 = vmatprep.mubr.bf16.mxu0 %v1641
      %1841 = vmatmul.mubr.bf16.gmra.mrb[0].mxu0 %v1640
      %v1842 = vpop.f32.mrb[0].mxu0
      %v1843 = vadd.f32 0.0, %v1842
      %v1844 = vpop.f32.mrb[0].mxu0
      %v1845 = vpop.f32.mrb[0].mxu0
      %v1846 = vadd.f32 0.0, %v1845
      %v1847 = vpop.f32.mrb[0].mxu0
      %1848 = vmatprep.mubr.bf16.mxu0 %v1644
      %1849 = vmatmul.mubr.bf16.gmra.mrb[0].mxu0 %v1643
      %v1850 = vpop.f32.mrb[0].mxu0
      %v1851 = vadd.f32 0.0, %v1850
      %v1852 = vpop.f32.mrb[0].mxu0
      %v1853 = vpop.f32.mrb[0].mxu0
      %v1854 = vadd.f32 0.0, %v1853
      %v1855 = vpop.f32.mrb[0].mxu0
      %1856 = vmatprep.mubr.bf16.mxu0 %v1647
      %1857 = vmatmul.mubr.bf16.gmra.mrb[0].mxu0 %v1646
      %v1858 = vpop.f32.mrb[0].mxu0
      %v1859 = vadd.f32 0.0, %v1858
      %v1860 = vpop.f32.mrb[0].mxu0
      %v1861 = vpop.f32.mrb[0].mxu0
      %v1862 = vadd.f32 0.0, %v1861
      %v1863 = vpop.f32.mrb[0].mxu0
      %1864 = vmatprep.mubr.bf16.mxu0 %v1650
      %1865 = vmatmul.mubr.bf16.gmra.mrb[0].mxu0 %v1649
      %v1866 = vpop.f32.mrb[0].mxu0
      %v1867 = vadd.f32 0.0, %v1866
      %v1868 = vpop.f32.mrb[0].mxu0
      %v1869 = vpop.f32.mrb[0].mxu0
      %v1870 = vadd.f32 0.0, %v1869
      %v1871 = vpop.f32.mrb[0].mxu0
      %1872 = vdwg.mxu0
      %1873 = vmatprep.subr.bf16.mxu0 0
      %1874 = vmatpush1.bf16.msra.mxu0 %v1776
      %1875 = vmatprep.subr.bf16.mxu0 0
      %1876 = vmatpush1.bf16.msra.mxu0 %v1777
      %1877 = vmatprep.subr.bf16.mxu0 0
      %1878 = vmatpush1.bf16.msra.mxu0 0
      %1879 = vmatprep.subr.bf16.mxu0 0
      %1880 = vmatpush1.bf16.msra.mxu0 0
      %1881 = vmatprep.subr.bf16.mxu0 0
      %1882 = vmatpush1.bf16.msra.mxu0 0
      %1883 = vmatprep.subr.bf16.mxu0 0
      %1884 = vmatpush1.bf16.msra.mxu0 0
      %1885 = vmatprep.subr.bf16.mxu0 0
      %1886 = vmatpush1.bf16.msra.mxu0 0
      %1887 = vmatprep.subr.bf16.mxu0 0
      %1888 = vmatpush1.bf16.msra.mxu0 0
      %1889 = vmatprep.subr.bf16.mxu0 0
      %1890 = vmatpush1.bf16.msra.mxu0 0
      %1891 = vmatprep.subr.bf16.mxu0 0
      %1892 = vmatpush1.bf16.msra.mxu0 0
      %1893 = vmatprep.subr.bf16.mxu0 0
      %1894 = vmatpush1.bf16.msra.mxu0 0
      %1895 = vmatprep.subr.bf16.mxu0 0
      %1896 = vmatpush1.bf16.msra.mxu0 0
      %1897 = vmatprep.subr.bf16.mxu0 0
      %1898 = vmatpush1.bf16.msra.mxu0 0
      %1899 = vmatprep.subr.bf16.mxu0 0
      %1900 = vmatpush1.bf16.msra.mxu0 0
      %1901 = vmatprep.subr.bf16.mxu0 0
      %1902 = vmatpush1.bf16.msra.mxu0 0
      %1903 = vmatprep.subr.bf16.mxu0 0
      %1904 = vmatpush1.bf16.msra.mxu0 0
      %1905 = vmatprep.mubr.bf16.mxu0 0
      %1906 = vmatmul.mubr.bf16.gmra.mrb[0].mxu0 %v1797
      %v1907 = vpop.f32.mrb[0].mxu0
      %v1908 = vadd.f32 %v1843, %v1907
      %v1909 = vpop.f32.mrb[0].mxu0
      %v1910 = vpop.f32.mrb[0].mxu0
      %v1911 = vadd.f32 %v1846, %v1910
      %v1912 = vpop.f32.mrb[0].mxu0
      %1913 = vmatprep.mubr.bf16.mxu0 0
      %1914 = vmatmul.mubr.bf16.gmra.mrb[0].mxu0 %v1800
      %v1915 = vpop.f32.mrb[0].mxu0
      %v1916 = vadd.f32 %v1851, %v1915
      %v1917 = vpop.f32.mrb[0].mxu0
      %v1918 = vpop.f32.mrb[0].mxu0
      %v1919 = vadd.f32 %v1854, %v1918
      %v1920 = vpop.f32.mrb[0].mxu0
      %1921 = vmatprep.mubr.bf16.mxu0 0
      %1922 = vmatmul.mubr.bf16.gmra.mrb[0].mxu0 %v1803
      %v1923 = vpop.f32.mrb[0].mxu0
      %v1924 = vadd.f32 %v1859, %v1923
      %v1925 = vpop.f32.mrb[0].mxu0
      %v1926 = vpop.f32.mrb[0].mxu0
      %v1927 = vadd.f32 %v1862, %v1926
      %v1928 = vpop.f32.mrb[0].mxu0
      %1929 = vmatprep.mubr.bf16.mxu0 0
      %1930 = vmatmul.mubr.bf16.gmra.mrb[0].mxu0 %v1806
      %v1931 = vpop.f32.mrb[0].mxu0
      %v1932 = vadd.f32 %v1867, %v1931
      %v1933 = vpop.f32.mrb[0].mxu0
      %v1934 = vpop.f32.mrb[0].mxu0
      %v1935 = vadd.f32 %v1870, %v1934
      %v1936 = vpop.f32.mrb[0].mxu0
      %1937 = vdwg.mxu0
      %v1938 = vld [vmem:[%s2] sm:$0x1]
      %v1940 = vlaneseq
      %v1941 = vshrl.u32 %v1940, 7
      %v1942 = vsub.s32 0, %v1941
      %v1943 = vrot.slane %v1938, %v1942
      %v1945 = vmul.f32 %v1908, %v1943
      %v1946 = vmul.f32 %v1911, %v1943
      %v1947 = vmul.f32 %v1916, %v1943
      %v1948 = vmul.f32 %v1919, %v1943
      %v1949 = vmul.f32 %v1924, %v1943
      %v1950 = vmul.f32 %v1927, %v1943
      %v1951 = vmul.f32 %v1932, %v1943
      %v1952 = vmul.f32 %v1935, %v1943
      %v1953 = vld [vmem:[%s3] sm:$0x1]
      %v1955 = vlaneseq
      %v1956 = vshrl.u32 %v1955, 7
      %v1957 = vsub.s32 0, %v1956
      %v1958 = vrot.slane %v1953, %v1957
      %v1960 = vadd.f32 %v1945, %v1958
      %v1961 = vadd.f32 %v1946, %v1958
      %v1962 = vadd.f32 %v1947, %v1958
      %v1963 = vadd.f32 %v1948, %v1958
      %v1964 = vadd.f32 %v1949, %v1958
      %v1965 = vadd.f32 %v1950, %v1958
      %v1966 = vadd.f32 %v1951, %v1958
      %v1967 = vadd.f32 %v1952, %v1958
      %v1968 = vmax.f32 %v1960, 0.0
      %v1969 = vmax.f32 %v1961, 0.0
      %v1970 = vmax.f32 %v1962, 0.0
      %v1971 = vmax.f32 %v1963, 0.0
      %v1972 = vmax.f32 %v1964, 0.0
      %v1973 = vmax.f32 %v1965, 0.0
      %v1974 = vmax.f32 %v1966, 0.0
      %v1975 = vmax.f32 %v1967, 0.0
      %v1976 = vld [vmem:[#allocation4 + $0x8] sm:$0xff]
      %v1977 = vld [vmem:[#allocation4 + $0x20] sm:$0xff]
      %v1978 = vld [vmem:[#allocation4 + $0x38] sm:$0xff]
      %v1979 = vld [vmem:[#allocation4 + $0x50] sm:$0xff]
      %v1980 = vld [vmem:[%s7] sm:$0xf]
      %v1981 = vld [vmem:[%s7 + $0x4] sm:$0xf]
      %v1982 = vld [vmem:[%s7 + $0x8] sm:$0xf]
      %v1983 = vld [vmem:[%s7 + $0xc] sm:$0xf]
      %v1988 = vunpack.c.l.b16 %v1980
      %v1989 = vunpack.c.l.b16 %v1981
      %v1990 = vunpack.c.l.b16 %v1982
      %v1991 = vunpack.c.l.b16 %v1983
      %v1992 = vpack.c.b16 %v1989, %v1988
      %v1993 = vpack.c.b16 %v1991, %v1990
      %v1997 = vsel %vm957, %v1976, 0
      %v2000 = vsel %vm957, %v1977, 0
      %v2003 = vsel %vm957, %v1978, 0
      %v2006 = vsel %vm957, %v1979, 0
      %2008 = vmatprep.subr.bf16.mxu0 0
      %2009 = vmatpush1.bf16.msra.mxu0 %v1992
      %2010 = vmatprep.subr.bf16.mxu0 0
      %2011 = vmatpush1.bf16.msra.mxu0 %v1993
      %2012 = vmatprep.subr.bf16.mxu0 0
      %2013 = vmatpush1.bf16.msra.mxu0 0
      %2014 = vmatprep.subr.bf16.mxu0 0
      %2015 = vmatpush1.bf16.msra.mxu0 0
      %2016 = vmatprep.subr.bf16.mxu0 0
      %2017 = vmatpush1.bf16.msra.mxu0 0
      %2018 = vmatprep.subr.bf16.mxu0 0
      %2019 = vmatpush1.bf16.msra.mxu0 0
      %2020 = vmatprep.subr.bf16.mxu0 0
      %2021 = vmatpush1.bf16.msra.mxu0 0
      %2022 = vmatprep.subr.bf16.mxu0 0
      %2023 = vmatpush1.bf16.msra.mxu0 0
      %2024 = vmatprep.subr.bf16.mxu0 0
      %2025 = vmatpush1.bf16.msra.mxu0 0
      %2026 = vmatprep.subr.bf16.mxu0 0
      %2027 = vmatpush1.bf16.msra.mxu0 0
      %2028 = vmatprep.subr.bf16.mxu0 0
      %2029 = vmatpush1.bf16.msra.mxu0 0
      %2030 = vmatprep.subr.bf16.mxu0 0
      %2031 = vmatpush1.bf16.msra.mxu0 0
      %2032 = vmatprep.subr.bf16.mxu0 0
      %2033 = vmatpush1.bf16.msra.mxu0 0
      %2034 = vmatprep.subr.bf16.mxu0 0
      %2035 = vmatpush1.bf16.msra.mxu0 0
      %2036 = vmatprep.subr.bf16.mxu0 0
      %2037 = vmatpush1.bf16.msra.mxu0 0
      %2038 = vmatprep.subr.bf16.mxu0 0
      %2039 = vmatpush1.bf16.msra.mxu0 0
      %2040 = vmatprep.mubr.bf16.mxu0 0
      %2041 = vmatmul.mubr.bf16.gmra.mrb[0].mxu0 %v1997
      %v2042 = vpop.f32.mrb[0].mxu0
      %v2043 = vadd.f32 0.0, %v2042
      %v2044 = vpop.f32.mrb[0].mxu0
      %v2045 = vpop.f32.mrb[0].mxu0
      %v2046 = vadd.f32 0.0, %v2045
      %v2047 = vpop.f32.mrb[0].mxu0
      %2048 = vmatprep.mubr.bf16.mxu0 0
      %2049 = vmatmul.mubr.bf16.gmra.mrb[0].mxu0 %v2000
      %v2050 = vpop.f32.mrb[0].mxu0
      %v2051 = vadd.f32 0.0, %v2050
      %v2052 = vpop.f32.mrb[0].mxu0
      %v2053 = vpop.f32.mrb[0].mxu0
      %v2054 = vadd.f32 0.0, %v2053
      %v2055 = vpop.f32.mrb[0].mxu0
      %2056 = vmatprep.mubr.bf16.mxu0 0
      %2057 = vmatmul.mubr.bf16.gmra.mrb[0].mxu0 %v2003
      %v2058 = vpop.f32.mrb[0].mxu0
      %v2059 = vadd.f32 0.0, %v2058
      %v2060 = vpop.f32.mrb[0].mxu0
      %v2061 = vpop.f32.mrb[0].mxu0
      %v2062 = vadd.f32 0.0, %v2061
      %v2063 = vpop.f32.mrb[0].mxu0
      %2064 = vmatprep.mubr.bf16.mxu0 0
      %2065 = vmatmul.mubr.bf16.gmra.mrb[0].mxu0 %v2006
      %v2066 = vpop.f32.mrb[0].mxu0
      %v2067 = vadd.f32 0.0, %v2066
      %v2068 = vpop.f32.mrb[0].mxu0
      %v2069 = vpop.f32.mrb[0].mxu0
      %v2070 = vadd.f32 0.0, %v2069
      %v2071 = vpop.f32.mrb[0].mxu0
      %2072 = vdwg.mxu0
      %v2073 = vld [vmem:[%s8] sm:$0x1]
      %v2075 = vlaneseq
      %v2076 = vshrl.u32 %v2075, 7
      %v2077 = vsub.s32 0, %v2076
      %v2078 = vrot.slane %v2073, %v2077
      %v2080 = vmul.f32 %v2043, %v2078
      %v2081 = vmul.f32 %v2046, %v2078
      %v2082 = vmul.f32 %v2051, %v2078
      %v2083 = vmul.f32 %v2054, %v2078
      %v2084 = vmul.f32 %v2059, %v2078
      %v2085 = vmul.f32 %v2062, %v2078
      %v2086 = vmul.f32 %v2067, %v2078
      %v2087 = vmul.f32 %v2070, %v2078
      %v2088 = vld [vmem:[%s9] sm:$0x1]
      %v2090 = vlaneseq
      %v2091 = vshrl.u32 %v2090, 7
      %v2092 = vsub.s32 0, %v2091
      %v2093 = vrot.slane %v2088, %v2092
      %v2095 = vadd.f32 %v2080, %v2093
      %v2096 = vadd.f32 %v2081, %v2093
      %v2097 = vadd.f32 %v2082, %v2093
      %v2098 = vadd.f32 %v2083, %v2093
      %v2099 = vadd.f32 %v2084, %v2093
      %v2100 = vadd.f32 %v2085, %v2093
      %v2101 = vadd.f32 %v2086, %v2093
      %v2102 = vadd.f32 %v2087, %v2093
      %2103 = vst.msk [vmem:[#allocation3] sm:$0xf] %vm361, 0
      %vm2104 = vcmask 516096
      %2105 = vst.msk [vmem:[#allocation3 + $0x4] sm:$0x1] %vm2104, 0
      %s2106 = scalar_lea.vmem [#allocation3], 72
      %2107 = vst.msk [vmem:[%s2106] sm:$0xf] %vm361, 0
      %2108 = vst.msk [vmem:[%s2106 + $0x4] sm:$0x1] %vm2104, 0
      %v2109 = vld [vmem:[#allocation3] sm:$0x1]
      %v2110 = vsel %vm365, 0, %v2109
      %2111 = vst [vmem:[#allocation3] sm:$0x1] %v2110
      %v2112 = vld [vmem:[#allocation3 + $0x8] sm:$0x1]
      %v2113 = vsel %vm365, 0, %v2112
      %2114 = vst [vmem:[#allocation3 + $0x8] sm:$0x1] %v2113
      %v2115 = vld [vmem:[#allocation3 + $0x10] sm:$0x1]
      %v2116 = vsel %vm365, 0, %v2115
      %2117 = vst [vmem:[#allocation3 + $0x10] sm:$0x1] %v2116
      %v2118 = vld [vmem:[#allocation3 + $0x18] sm:$0x1]
      %v2119 = vsel %vm365, 0, %v2118
      %2120 = vst [vmem:[#allocation3 + $0x18] sm:$0x1] %v2119
      %v2121 = vld [vmem:[#allocation3 + $0x20] sm:$0x1]
      %v2122 = vsel %vm365, 0, %v2121
      %2123 = vst [vmem:[#allocation3 + $0x20] sm:$0x1] %v2122
      %v2124 = vld [vmem:[#allocation3 + $0x28] sm:$0x1]
      %v2125 = vsel %vm365, 0, %v2124
      %2126 = vst [vmem:[#allocation3 + $0x28] sm:$0x1] %v2125
      %v2127 = vld [vmem:[#allocation3 + $0x30] sm:$0x1]
      %v2128 = vsel %vm365, 0, %v2127
      %2129 = vst [vmem:[#allocation3 + $0x30] sm:$0x1] %v2128
      %v2130 = vld [vmem:[#allocation3 + $0x38] sm:$0x1]
      %v2131 = vsel %vm365, 0, %v2130
      %2132 = vst [vmem:[#allocation3 + $0x38] sm:$0x1] %v2131
      %v2133 = vld [vmem:[#allocation3 + $0x40] sm:$0x1]
      %v2134 = vsel %vm365, 0, %v2133
      %2135 = vst [vmem:[#allocation3 + $0x40] sm:$0x1] %v2134
      %v2136 = vld [vmem:[#allocation3 + $0x48] sm:$0x1]
      %v2137 = vsel %vm365, 0, %v2136
      %2138 = vst [vmem:[#allocation3 + $0x48] sm:$0x1] %v2137
      %vm2139 = vmand %vm363, %vm657
      %v2140 = vld [vmem:[#allocation3 + $0x4] sm:$0x1]
      %v2141 = vsel %vm2139, 0, %v2140
      %2142 = vst [vmem:[#allocation3 + $0x4] sm:$0x1] %v2141
      %v2143 = vld [vmem:[#allocation3 + $0xc] sm:$0x1]
      %v2144 = vsel %vm2139, 0, %v2143
      %2145 = vst [vmem:[#allocation3 + $0xc] sm:$0x1] %v2144
      %v2146 = vld [vmem:[#allocation3 + $0x14] sm:$0x1]
      %v2147 = vsel %vm2139, 0, %v2146
      %2148 = vst [vmem:[#allocation3 + $0x14] sm:$0x1] %v2147
      %v2149 = vld [vmem:[#allocation3 + $0x1c] sm:$0x1]
      %v2150 = vsel %vm2139, 0, %v2149
      %2151 = vst [vmem:[#allocation3 + $0x1c] sm:$0x1] %v2150
      %v2152 = vld [vmem:[#allocation3 + $0x24] sm:$0x1]
      %v2153 = vsel %vm2139, 0, %v2152
      %2154 = vst [vmem:[#allocation3 + $0x24] sm:$0x1] %v2153
      %v2155 = vld [vmem:[#allocation3 + $0x2c] sm:$0x1]
      %v2156 = vsel %vm2139, 0, %v2155
      %2157 = vst [vmem:[#allocation3 + $0x2c] sm:$0x1] %v2156
      %v2158 = vld [vmem:[#allocation3 + $0x34] sm:$0x1]
      %v2159 = vsel %vm2139, 0, %v2158
      %2160 = vst [vmem:[#allocation3 + $0x34] sm:$0x1] %v2159
      %v2161 = vld [vmem:[#allocation3 + $0x3c] sm:$0x1]
      %v2162 = vsel %vm2139, 0, %v2161
      %2163 = vst [vmem:[#allocation3 + $0x3c] sm:$0x1] %v2162
      %v2164 = vld [vmem:[#allocation3 + $0x44] sm:$0x1]
      %v2165 = vsel %vm2139, 0, %v2164
      %2166 = vst [vmem:[#allocation3 + $0x44] sm:$0x1] %v2165
      %v2167 = vld [vmem:[#allocation3 + $0x4c] sm:$0x1]
      %v2168 = vsel %vm2139, 0, %v2167
      %2169 = vst [vmem:[#allocation3 + $0x4c] sm:$0x1] %v2168
      %v2170 = vpack.c.bf16 %v1968, %v1968
      %v2171 = vpack.c.bf16 %v1969, %v1969
      %v2172 = vpack.c.bf16 %v1970, %v1970
      %v2173 = vpack.c.bf16 %v1971, %v1971
      %v2174 = vpack.c.bf16 %v1972, %v1972
      %v2175 = vpack.c.bf16 %v1973, %v1973
      %v2176 = vpack.c.bf16 %v1974, %v1974
      %v2177 = vpack.c.bf16 %v1975, %v1975
      %v2186 = vunpack.c.l.b16 %v2170
      %v2187 = vunpack.c.l.b16 %v2171
      %v2188 = vunpack.c.l.b16 %v2172
      %v2189 = vunpack.c.l.b16 %v2173
      %v2190 = vunpack.c.l.b16 %v2174
      %v2191 = vunpack.c.l.b16 %v2175
      %v2192 = vunpack.c.l.b16 %v2176
      %v2193 = vunpack.c.l.b16 %v2177
      %v2194 = vpack.c.b16 %v2186, %v2186
      %v2195 = vpack.c.b16 %v2187, %v2187
      %v2196 = vpack.c.b16 %v2188, %v2188
      %v2197 = vpack.c.b16 %v2189, %v2189
      %v2198 = vpack.c.b16 %v2190, %v2190
      %v2199 = vpack.c.b16 %v2191, %v2191
      %v2200 = vpack.c.b16 %v2192, %v2192
      %v2201 = vpack.c.b16 %v2193, %v2193
      %v2203 = vshrl.u32 %v2194, 16
      %v2205 = vrot.slane %v2203, 7
      %v2206 = vshll.u32 %v2194, 16
      %v2208 = vor.u32 %v2205, %v2206
      %v2209 = vrot.slane %v2205, 4
      %v2211 = vshrl.u32 %v2195, 16
      %v2213 = vrot.slane %v2211, 7
      %v2214 = vshll.u32 %v2195, 16
      %v2216 = vor.u32 %v2213, %v2214
      %v2217 = vrot.slane %v2213, 4
      %v2219 = vshrl.u32 %v2196, 16
      %v2221 = vrot.slane %v2219, 7
      %v2222 = vshll.u32 %v2196, 16
      %v2224 = vor.u32 %v2221, %v2222
      %v2225 = vrot.slane %v2221, 4
      %v2227 = vshrl.u32 %v2197, 16
      %v2229 = vrot.slane %v2227, 7
      %v2230 = vshll.u32 %v2197, 16
      %v2232 = vor.u32 %v2229, %v2230
      %v2233 = vrot.slane %v2229, 4
      %v2235 = vshrl.u32 %v2198, 16
      %v2237 = vrot.slane %v2235, 7
      %v2238 = vshll.u32 %v2198, 16
      %v2240 = vor.u32 %v2237, %v2238
      %v2241 = vrot.slane %v2237, 4
      %v2243 = vshrl.u32 %v2199, 16
      %v2245 = vrot.slane %v2243, 7
      %v2246 = vshll.u32 %v2199, 16
      %v2248 = vor.u32 %v2245, %v2246
      %v2249 = vrot.slane %v2245, 4
      %v2251 = vshrl.u32 %v2200, 16
      %v2253 = vrot.slane %v2251, 7
      %v2254 = vshll.u32 %v2200, 16
      %v2256 = vor.u32 %v2253, %v2254
      %v2257 = vrot.slane %v2253, 4
      %v2259 = vshrl.u32 %v2201, 16
      %v2261 = vrot.slane %v2259, 7
      %v2262 = vshll.u32 %v2201, 16
      %v2264 = vor.u32 %v2261, %v2262
      %v2265 = vrot.slane %v2261, 4
      %s2282 = scalar_lea.vmem [#allocation3], 8
      %vm2283 = vcmask 519168
      %vm2284 = vmand %vm2283, %vm657
      %v2285 = vld [vmem:[%s2282] sm:$0xf]
      %v2286 = vsel %vm2284, %v2208, %v2285
      %2287 = vst [vmem:[%s2282] sm:$0xf] %v2286
      %v2288 = vld [vmem:[%s2282 + $0x4] sm:$0x1]
      %v2289 = vsel %vm365, %v2209, %v2288
      %2290 = vst [vmem:[%s2282 + $0x4] sm:$0x1] %v2289
      %v2291 = vld [vmem:[%s2282 + $0x8] sm:$0xf]
      %v2292 = vsel %vm2284, %v2216, %v2291
      %2293 = vst [vmem:[%s2282 + $0x8] sm:$0xf] %v2292
      %v2294 = vld [vmem:[%s2282 + $0xc] sm:$0x1]
      %v2295 = vsel %vm365, %v2217, %v2294
      %2296 = vst [vmem:[%s2282 + $0xc] sm:$0x1] %v2295
      %v2297 = vld [vmem:[%s2282 + $0x10] sm:$0xf]
      %v2298 = vsel %vm2284, %v2224, %v2297
      %2299 = vst [vmem:[%s2282 + $0x10] sm:$0xf] %v2298
      %v2300 = vld [vmem:[%s2282 + $0x14] sm:$0x1]
      %v2301 = vsel %vm365, %v2225, %v2300
      %2302 = vst [vmem:[%s2282 + $0x14] sm:$0x1] %v2301
      %v2303 = vld [vmem:[%s2282 + $0x18] sm:$0xf]
      %v2304 = vsel %vm2284, %v2232, %v2303
      %2305 = vst [vmem:[%s2282 + $0x18] sm:$0xf] %v2304
      %v2306 = vld [vmem:[%s2282 + $0x1c] sm:$0x1]
      %v2307 = vsel %vm365, %v2233, %v2306
      %2308 = vst [vmem:[%s2282 + $0x1c] sm:$0x1] %v2307
      %v2309 = vld [vmem:[%s2282 + $0x20] sm:$0xf]
      %v2310 = vsel %vm2284, %v2240, %v2309
      %2311 = vst [vmem:[%s2282 + $0x20] sm:$0xf] %v2310
      %v2312 = vld [vmem:[%s2282 + $0x24] sm:$0x1]
      %v2313 = vsel %vm365, %v2241, %v2312
      %2314 = vst [vmem:[%s2282 + $0x24] sm:$0x1] %v2313
      %v2315 = vld [vmem:[%s2282 + $0x28] sm:$0xf]
      %v2316 = vsel %vm2284, %v2248, %v2315
      %2317 = vst [vmem:[%s2282 + $0x28] sm:$0xf] %v2316
      %v2318 = vld [vmem:[%s2282 + $0x2c] sm:$0x1]
      %v2319 = vsel %vm365, %v2249, %v2318
      %2320 = vst [vmem:[%s2282 + $0x2c] sm:$0x1] %v2319
      %v2321 = vld [vmem:[%s2282 + $0x30] sm:$0xf]
      %v2322 = vsel %vm2284, %v2256, %v2321
      %2323 = vst [vmem:[%s2282 + $0x30] sm:$0xf] %v2322
      %v2324 = vld [vmem:[%s2282 + $0x34] sm:$0x1]
      %v2325 = vsel %vm365, %v2257, %v2324
      %2326 = vst [vmem:[%s2282 + $0x34] sm:$0x1] %v2325
      %v2327 = vld [vmem:[%s2282 + $0x38] sm:$0xf]
      %v2328 = vsel %vm2284, %v2264, %v2327
      %2329 = vst [vmem:[%s2282 + $0x38] sm:$0xf] %v2328
      %v2330 = vld [vmem:[%s2282 + $0x3c] sm:$0x1]
      %v2331 = vsel %vm365, %v2265, %v2330
      %2332 = vst [vmem:[%s2282 + $0x3c] sm:$0x1] %v2331
      %v2333 = vld [vmem:[#allocation3] sm:$0xf]
      %v2334 = vld [vmem:[#allocation3 + $0x8] sm:$0xf]
      %v2335 = vld [vmem:[#allocation3 + $0x10] sm:$0xf]
      %v2336 = vld [vmem:[#allocation3 + $0x18] sm:$0xf]
      %v2337 = vld [vmem:[#allocation3 + $0x20] sm:$0xf]
      %v2338 = vld [vmem:[#allocation3 + $0x28] sm:$0xf]
      %v2339 = vld [vmem:[#allocation3 + $0x30] sm:$0xf]
      %v2340 = vld [vmem:[#allocation3 + $0x38] sm:$0xf]
      %v2349 = vunpack.c.l.b16 %v2333
      %v2350 = vunpack.c.l.b16 %v2334
      %v2351 = vunpack.c.l.b16 %v2335
      %v2352 = vunpack.c.l.b16 %v2336
      %v2353 = vunpack.c.l.b16 %v2337
      %v2354 = vunpack.c.l.b16 %v2338
      %v2355 = vunpack.c.l.b16 %v2339
      %v2356 = vunpack.c.l.b16 %v2340
      %v2357 = vpack.c.b16 %v2350, %v2349
      %v2358 = vpack.c.b16 %v2352, %v2351
      %v2359 = vpack.c.b16 %v2354, %v2353
      %v2360 = vpack.c.b16 %v2356, %v2355
      %vm2365 = vcmask 523264
      %2366 = vst.msk [vmem:[#allocation5] sm:$0xff] %vm2365, %v2357
      %2367 = vst.msk [vmem:[#allocation5 + $0x28] sm:$0xff] %vm2365, %v2358
      %2368 = vst.msk [vmem:[#allocation5 + $0x50] sm:$0xff] %vm2365, %v2359
      %2369 = vst.msk [vmem:[#allocation5 + $0x78] sm:$0xff] %vm2365, %v2360
      %v2370 = vld [vmem:[#allocation3] sm:$0xf]
      %v2371 = vld [vmem:[#allocation3 + $0x4] sm:$0x1]
      %v2372 = vld [vmem:[#allocation3 + $0x8] sm:$0xf]
      %v2373 = vld [vmem:[#allocation3 + $0xc] sm:$0x1]
      %v2374 = vld [vmem:[#allocation3 + $0x10] sm:$0xf]
      %v2375 = vld [vmem:[#allocation3 + $0x14] sm:$0x1]
      %v2376 = vld [vmem:[#allocation3 + $0x18] sm:$0xf]
      %v2377 = vld [vmem:[#allocation3 + $0x1c] sm:$0x1]
      %v2378 = vld [vmem:[#allocation3 + $0x20] sm:$0xf]
      %v2379 = vld [vmem:[#allocation3 + $0x24] sm:$0x1]
      %v2380 = vld [vmem:[#allocation3 + $0x28] sm:$0xf]
      %v2381 = vld [vmem:[#allocation3 + $0x2c] sm:$0x1]
      %v2382 = vld [vmem:[#allocation3 + $0x30] sm:$0xf]
      %v2383 = vld [vmem:[#allocation3 + $0x34] sm:$0x1]
      %v2384 = vld [vmem:[#allocation3 + $0x38] sm:$0xf]
      %v2385 = vld [vmem:[#allocation3 + $0x3c] sm:$0x1]
      %v2387 = vshrl.u32 %v2370, 16
      %v2389 = vrot.slane %v2387, 4
      %v2390 = vshll.u32 %v2370, 16
      %v2392 = vrot.slane %v2390, 5
      %v2393 = vor.u32 %v2389, %v2392
      %v2394 = vrot.slane %v2393, 4
      %v2396 = vshll.u32 %v2371, 16
      %v2398 = vrot.slane %v2396, 5
      %v2399 = vsel %vm1017, %v2394, %v2398
      %v2401 = vshrl.u32 %v2372, 16
      %v2403 = vrot.slane %v2401, 4
      %v2404 = vshll.u32 %v2372, 16
      %v2406 = vrot.slane %v2404, 5
      %v2407 = vor.u32 %v2403, %v2406
      %v2408 = vrot.slane %v2407, 4
      %v2410 = vshll.u32 %v2373, 16
      %v2412 = vrot.slane %v2410, 5
      %v2413 = vsel %vm1017, %v2408, %v2412
      %v2415 = vshrl.u32 %v2374, 16
      %v2417 = vrot.slane %v2415, 4
      %v2418 = vshll.u32 %v2374, 16
      %v2420 = vrot.slane %v2418, 5
      %v2421 = vor.u32 %v2417, %v2420
      %v2422 = vrot.slane %v2421, 4
      %v2424 = vshll.u32 %v2375, 16
      %v2426 = vrot.slane %v2424, 5
      %v2427 = vsel %vm1017, %v2422, %v2426
      %v2429 = vshrl.u32 %v2376, 16
      %v2431 = vrot.slane %v2429, 4
      %v2432 = vshll.u32 %v2376, 16
      %v2434 = vrot.slane %v2432, 5
      %v2435 = vor.u32 %v2431, %v2434
      %v2436 = vrot.slane %v2435, 4
      %v2438 = vshll.u32 %v2377, 16
      %v2440 = vrot.slane %v2438, 5
      %v2441 = vsel %vm1017, %v2436, %v2440
      %v2443 = vshrl.u32 %v2378, 16
      %v2445 = vrot.slane %v2443, 4
      %v2446 = vshll.u32 %v2378, 16
      %v2448 = vrot.slane %v2446, 5
      %v2449 = vor.u32 %v2445, %v2448
      %v2450 = vrot.slane %v2449, 4
      %v2452 = vshll.u32 %v2379, 16
      %v2454 = vrot.slane %v2452, 5
      %v2455 = vsel %vm1017, %v2450, %v2454
      %v2457 = vshrl.u32 %v2380, 16
      %v2459 = vrot.slane %v2457, 4
      %v2460 = vshll.u32 %v2380, 16
      %v2462 = vrot.slane %v2460, 5
      %v2463 = vor.u32 %v2459, %v2462
      %v2464 = vrot.slane %v2463, 4
      %v2466 = vshll.u32 %v2381, 16
      %v2468 = vrot.slane %v2466, 5
      %v2469 = vsel %vm1017, %v2464, %v2468
      %v2471 = vshrl.u32 %v2382, 16
      %v2473 = vrot.slane %v2471, 4
      %v2474 = vshll.u32 %v2382, 16
      %v2476 = vrot.slane %v2474, 5
      %v2477 = vor.u32 %v2473, %v2476
      %v2478 = vrot.slane %v2477, 4
      %v2480 = vshll.u32 %v2383, 16
      %v2482 = vrot.slane %v2480, 5
      %v2483 = vsel %vm1017, %v2478, %v2482
      %v2485 = vshrl.u32 %v2384, 16
      %v2487 = vrot.slane %v2485, 4
      %v2488 = vshll.u32 %v2384, 16
      %v2490 = vrot.slane %v2488, 5
      %v2491 = vor.u32 %v2487, %v2490
      %v2492 = vrot.slane %v2491, 4
      %v2494 = vshll.u32 %v2385, 16
      %v2496 = vrot.slane %v2494, 5
      %v2497 = vsel %vm1017, %v2492, %v2496
      %v2498 = vunpack.c.l.b16 %v2399
      %v2499 = vunpack.c.l.b16 %v2413
      %v2500 = vunpack.c.l.b16 %v2427
      %v2501 = vunpack.c.l.b16 %v2441
      %v2502 = vunpack.c.l.b16 %v2455
      %v2503 = vunpack.c.l.b16 %v2469
      %v2504 = vunpack.c.l.b16 %v2483
      %v2505 = vunpack.c.l.b16 %v2497
      %v2506 = vpack.c.b16 %v2499, %v2498
      %v2507 = vpack.c.b16 %v2501, %v2500
      %v2508 = vpack.c.b16 %v2503, %v2502
      %v2509 = vpack.c.b16 %v2505, %v2504
      %2510 = vrot.lane.b32.xlu0 %v2506, 64
      %v2511 = vpop.permute.xlu0 %2510
      %2512 = vrot.lane.b32.xlu0 %v2507, 64
      %v2513 = vpop.permute.xlu0 %2512
      %2514 = vrot.lane.b32.xlu0 %v2508, 64
      %v2515 = vpop.permute.xlu0 %2514
      %2516 = vrot.lane.b32.xlu0 %v2509, 64
      %v2517 = vpop.permute.xlu0 %2516
      %vm2522 = vcmask 1048064
      %2523 = vst.msk [vmem:[#allocation5] sm:$0xff] %vm2522, %v2511
      %2524 = vst.msk [vmem:[#allocation5 + $0x28] sm:$0xff] %vm2522, %v2513
      %2525 = vst.msk [vmem:[#allocation5 + $0x50] sm:$0xff] %vm2522, %v2515
      %2526 = vst.msk [vmem:[#allocation5 + $0x78] sm:$0xff] %vm2522, %v2517
      %v2527 = vld [vmem:[#allocation3] sm:$0xe]
      %v2528 = vld [vmem:[#allocation3 + $0x4] sm:$0x1]
      %v2529 = vld [vmem:[#allocation3 + $0x8] sm:$0xe]
      %v2530 = vld [vmem:[#allocation3 + $0xc] sm:$0x1]
      %v2531 = vld [vmem:[#allocation3 + $0x10] sm:$0xe]
      %v2532 = vld [vmem:[#allocation3 + $0x14] sm:$0x1]
      %v2533 = vld [vmem:[#allocation3 + $0x18] sm:$0xe]
      %v2534 = vld [vmem:[#allocation3 + $0x1c] sm:$0x1]
      %v2535 = vld [vmem:[#allocation3 + $0x20] sm:$0xe]
      %v2536 = vld [vmem:[#allocation3 + $0x24] sm:$0x1]
      %v2537 = vld [vmem:[#allocation3 + $0x28] sm:$0xe]
      %v2538 = vld [vmem:[#allocation3 + $0x2c] sm:$0x1]
      %v2539 = vld [vmem:[#allocation3 + $0x30] sm:$0xe]
      %v2540 = vld [vmem:[#allocation3 + $0x34] sm:$0x1]
      %v2541 = vld [vmem:[#allocation3 + $0x38] sm:$0xe]
      %v2542 = vld [vmem:[#allocation3 + $0x3c] sm:$0x1]
      %vm2559 = vcmask 1042432
      %vm2560 = vcmask 1046532
      %vm2561 = vmor %vm2559, %vm2560
      %v2562 = vrot.slane %v2527, 5
      %v2563 = vrot.slane %v2562, 4
      %v2564 = vrot.slane %v2528, 5
      %v2565 = vsel %vm2561, %v2563, %v2564
      %v2566 = vrot.slane %v2529, 5
      %v2567 = vrot.slane %v2566, 4
      %v2568 = vrot.slane %v2530, 5
      %v2569 = vsel %vm2561, %v2567, %v2568
      %v2570 = vrot.slane %v2531, 5
      %v2571 = vrot.slane %v2570, 4
      %v2572 = vrot.slane %v2532, 5
      %v2573 = vsel %vm2561, %v2571, %v2572
      %v2574 = vrot.slane %v2533, 5
      %v2575 = vrot.slane %v2574, 4
      %v2576 = vrot.slane %v2534, 5
      %v2577 = vsel %vm2561, %v2575, %v2576
      %v2578 = vrot.slane %v2535, 5
      %v2579 = vrot.slane %v2578, 4
      %v2580 = vrot.slane %v2536, 5
      %v2581 = vsel %vm2561, %v2579, %v2580
      %v2582 = vrot.slane %v2537, 5
      %v2583 = vrot.slane %v2582, 4
      %v2584 = vrot.slane %v2538, 5
      %v2585 = vsel %vm2561, %v2583, %v2584
      %v2586 = vrot.slane %v2539, 5
      %v2587 = vrot.slane %v2586, 4
      %v2588 = vrot.slane %v2540, 5
      %v2589 = vsel %vm2561, %v2587, %v2588
      %v2590 = vrot.slane %v2541, 5
      %v2591 = vrot.slane %v2590, 4
      %v2592 = vrot.slane %v2542, 5
      %v2593 = vsel %vm2561, %v2591, %v2592
      %v2594 = vunpack.c.l.b16 %v2565
      %v2595 = vunpack.c.l.b16 %v2569
      %v2596 = vunpack.c.l.b16 %v2573
      %v2597 = vunpack.c.l.b16 %v2577
      %v2598 = vunpack.c.l.b16 %v2581
      %v2599 = vunpack.c.l.b16 %v2585
      %v2600 = vunpack.c.l.b16 %v2589
      %v2601 = vunpack.c.l.b16 %v2593
      %v2602 = vpack.c.b16 %v2595, %v2594
      %v2603 = vpack.c.b16 %v2597, %v2596
      %v2604 = vpack.c.b16 %v2599, %v2598
      %v2605 = vpack.c.b16 %v2601, %v2600
      %2610 = vst.msk [vmem:[#allocation5 + $0x8] sm:$0xff] %vm2365, %v2602
      %2611 = vst.msk [vmem:[#allocation5 + $0x30] sm:$0xff] %vm2365, %v2603
      %2612 = vst.msk [vmem:[#allocation5 + $0x58] sm:$0xff] %vm2365, %v2604
      %2613 = vst.msk [vmem:[#allocation5 + $0x80] sm:$0xff] %vm2365, %v2605
      %v2614 = vld [vmem:[%s2282] sm:$0xf]
      %v2615 = vld [vmem:[%s2282 + $0x8] sm:$0xf]
      %v2616 = vld [vmem:[%s2282 + $0x10] sm:$0xf]
      %v2617 = vld [vmem:[%s2282 + $0x18] sm:$0xf]
      %v2618 = vld [vmem:[%s2282 + $0x20] sm:$0xf]
      %v2619 = vld [vmem:[%s2282 + $0x28] sm:$0xf]
      %v2620 = vld [vmem:[%s2282 + $0x30] sm:$0xf]
      %v2621 = vld [vmem:[%s2282 + $0x38] sm:$0xf]
      %v2630 = vunpack.c.l.b16 %v2614
      %v2631 = vunpack.c.l.b16 %v2615
      %v2632 = vunpack.c.l.b16 %v2616
      %v2633 = vunpack.c.l.b16 %v2617
      %v2634 = vunpack.c.l.b16 %v2618
      %v2635 = vunpack.c.l.b16 %v2619
      %v2636 = vunpack.c.l.b16 %v2620
      %v2637 = vunpack.c.l.b16 %v2621
      %v2638 = vpack.c.b16 %v2631, %v2630
      %v2639 = vpack.c.b16 %v2633, %v2632
      %v2640 = vpack.c.b16 %v2635, %v2634
      %v2641 = vpack.c.b16 %v2637, %v2636
      %2642 = vrot.lane.b32.xlu0 %v2638, 64
      %v2643 = vpop.permute.xlu0 %2642
      %2644 = vrot.lane.b32.xlu0 %v2639, 64
      %v2645 = vpop.permute.xlu0 %2644
      %2646 = vrot.lane.b32.xlu0 %v2640, 64
      %v2647 = vpop.permute.xlu0 %2646
      %2648 = vrot.lane.b32.xlu0 %v2641, 64
      %v2649 = vpop.permute.xlu0 %2648
      %2654 = vst.msk [vmem:[#allocation5 + $0x8] sm:$0xff] %vm2522, %v2643
      %2655 = vst.msk [vmem:[#allocation5 + $0x30] sm:$0xff] %vm2522, %v2645
      %2656 = vst.msk [vmem:[#allocation5 + $0x58] sm:$0xff] %vm2522, %v2647
      %2657 = vst.msk [vmem:[#allocation5 + $0x80] sm:$0xff] %vm2522, %v2649
      %v2658 = vld [vmem:[%s2282] sm:$0xf]
      %v2659 = vld [vmem:[%s2282 + $0x4] sm:$0x1]
      %v2660 = vld [vmem:[%s2282 + $0x8] sm:$0xf]
      %v2661 = vld [vmem:[%s2282 + $0xc] sm:$0x1]
      %v2662 = vld [vmem:[%s2282 + $0x10] sm:$0xf]
      %v2663 = vld [vmem:[%s2282 + $0x14] sm:$0x1]
      %v2664 = vld [vmem:[%s2282 + $0x18] sm:$0xf]
      %v2665 = vld [vmem:[%s2282 + $0x1c] sm:$0x1]
      %v2666 = vld [vmem:[%s2282 + $0x20] sm:$0xf]
      %v2667 = vld [vmem:[%s2282 + $0x24] sm:$0x1]
      %v2668 = vld [vmem:[%s2282 + $0x28] sm:$0xf]
      %v2669 = vld [vmem:[%s2282 + $0x2c] sm:$0x1]
      %v2670 = vld [vmem:[%s2282 + $0x30] sm:$0xf]
      %v2671 = vld [vmem:[%s2282 + $0x34] sm:$0x1]
      %v2672 = vld [vmem:[%s2282 + $0x38] sm:$0xf]
      %v2673 = vld [vmem:[%s2282 + $0x3c] sm:$0x1]
      %v2675 = vshrl.u32 %v2658, 16
      %v2677 = vrot.slane %v2675, 4
      %v2678 = vshll.u32 %v2658, 16
      %v2680 = vrot.slane %v2678, 5
      %v2681 = vor.u32 %v2677, %v2680
      %v2682 = vrot.slane %v2681, 4
      %v2684 = vshll.u32 %v2659, 16
      %v2686 = vrot.slane %v2684, 5
      %v2687 = vsel %vm1017, %v2682, %v2686
      %v2689 = vshrl.u32 %v2660, 16
      %v2691 = vrot.slane %v2689, 4
      %v2692 = vshll.u32 %v2660, 16
      %v2694 = vrot.slane %v2692, 5
      %v2695 = vor.u32 %v2691, %v2694
      %v2696 = vrot.slane %v2695, 4
      %v2698 = vshll.u32 %v2661, 16
      %v2700 = vrot.slane %v2698, 5
      %v2701 = vsel %vm1017, %v2696, %v2700
      %v2703 = vshrl.u32 %v2662, 16
      %v2705 = vrot.slane %v2703, 4
      %v2706 = vshll.u32 %v2662, 16
      %v2708 = vrot.slane %v2706, 5
      %v2709 = vor.u32 %v2705, %v2708
      %v2710 = vrot.slane %v2709, 4
      %v2712 = vshll.u32 %v2663, 16
      %v2714 = vrot.slane %v2712, 5
      %v2715 = vsel %vm1017, %v2710, %v2714
      %v2717 = vshrl.u32 %v2664, 16
      %v2719 = vrot.slane %v2717, 4
      %v2720 = vshll.u32 %v2664, 16
      %v2722 = vrot.slane %v2720, 5
      %v2723 = vor.u32 %v2719, %v2722
      %v2724 = vrot.slane %v2723, 4
      %v2726 = vshll.u32 %v2665, 16
      %v2728 = vrot.slane %v2726, 5
      %v2729 = vsel %vm1017, %v2724, %v2728
      %v2731 = vshrl.u32 %v2666, 16
      %v2733 = vrot.slane %v2731, 4
      %v2734 = vshll.u32 %v2666, 16
      %v2736 = vrot.slane %v2734, 5
      %v2737 = vor.u32 %v2733, %v2736
      %v2738 = vrot.slane %v2737, 4
      %v2740 = vshll.u32 %v2667, 16
      %v2742 = vrot.slane %v2740, 5
      %v2743 = vsel %vm1017, %v2738, %v2742
      %v2745 = vshrl.u32 %v2668, 16
      %v2747 = vrot.slane %v2745, 4
      %v2748 = vshll.u32 %v2668, 16
      %v2750 = vrot.slane %v2748, 5
      %v2751 = vor.u32 %v2747, %v2750
      %v2752 = vrot.slane %v2751, 4
      %v2754 = vshll.u32 %v2669, 16
      %v2756 = vrot.slane %v2754, 5
      %v2757 = vsel %vm1017, %v2752, %v2756
      %v2759 = vshrl.u32 %v2670, 16
      %v2761 = vrot.slane %v2759, 4
      %v2762 = vshll.u32 %v2670, 16
      %v2764 = vrot.slane %v2762, 5
      %v2765 = vor.u32 %v2761, %v2764
      %v2766 = vrot.slane %v2765, 4
      %v2768 = vshll.u32 %v2671, 16
      %v2770 = vrot.slane %v2768, 5
      %v2771 = vsel %vm1017, %v2766, %v2770
      %v2773 = vshrl.u32 %v2672, 16
      %v2775 = vrot.slane %v2773, 4
      %v2776 = vshll.u32 %v2672, 16
      %v2778 = vrot.slane %v2776, 5
      %v2779 = vor.u32 %v2775, %v2778
      %v2780 = vrot.slane %v2779, 4
      %v2782 = vshll.u32 %v2673, 16
      %v2784 = vrot.slane %v2782, 5
      %v2785 = vsel %vm1017, %v2780, %v2784
      %v2786 = vunpack.c.l.b16 %v2687
      %v2787 = vunpack.c.l.b16 %v2701
      %v2788 = vunpack.c.l.b16 %v2715
      %v2789 = vunpack.c.l.b16 %v2729
      %v2790 = vunpack.c.l.b16 %v2743
      %v2791 = vunpack.c.l.b16 %v2757
      %v2792 = vunpack.c.l.b16 %v2771
      %v2793 = vunpack.c.l.b16 %v2785
      %v2794 = vpack.c.b16 %v2787, %v2786
      %v2795 = vpack.c.b16 %v2789, %v2788
      %v2796 = vpack.c.b16 %v2791, %v2790
      %v2797 = vpack.c.b16 %v2793, %v2792
      %2802 = vst.msk [vmem:[#allocation5 + $0x10] sm:$0xff] %vm2365, %v2794
      %2803 = vst.msk [vmem:[#allocation5 + $0x38] sm:$0xff] %vm2365, %v2795
      %2804 = vst.msk [vmem:[#allocation5 + $0x60] sm:$0xff] %vm2365, %v2796
      %2805 = vst.msk [vmem:[#allocation5 + $0x88] sm:$0xff] %vm2365, %v2797
      %v2806 = vld [vmem:[%s2282] sm:$0xe]
      %v2807 = vld [vmem:[%s2282 + $0x4] sm:$0x1]
      %v2808 = vld [vmem:[%s2282 + $0x8] sm:$0xe]
      %v2809 = vld [vmem:[%s2282 + $0xc] sm:$0x1]
      %v2810 = vld [vmem:[%s2282 + $0x10] sm:$0xe]
      %v2811 = vld [vmem:[%s2282 + $0x14] sm:$0x1]
      %v2812 = vld [vmem:[%s2282 + $0x18] sm:$0xe]
      %v2813 = vld [vmem:[%s2282 + $0x1c] sm:$0x1]
      %v2814 = vld [vmem:[%s2282 + $0x20] sm:$0xe]
      %v2815 = vld [vmem:[%s2282 + $0x24] sm:$0x1]
      %v2816 = vld [vmem:[%s2282 + $0x28] sm:$0xe]
      %v2817 = vld [vmem:[%s2282 + $0x2c] sm:$0x1]
      %v2818 = vld [vmem:[%s2282 + $0x30] sm:$0xe]
      %v2819 = vld [vmem:[%s2282 + $0x34] sm:$0x1]
      %v2820 = vld [vmem:[%s2282 + $0x38] sm:$0xe]
      %v2821 = vld [vmem:[%s2282 + $0x3c] sm:$0x1]
      %v2838 = vrot.slane %v2806, 5
      %v2839 = vrot.slane %v2838, 4
      %v2840 = vrot.slane %v2807, 5
      %v2841 = vsel %vm2561, %v2839, %v2840
      %v2842 = vrot.slane %v2808, 5
      %v2843 = vrot.slane %v2842, 4
      %v2844 = vrot.slane %v2809, 5
      %v2845 = vsel %vm2561, %v2843, %v2844
      %v2846 = vrot.slane %v2810, 5
      %v2847 = vrot.slane %v2846, 4
      %v2848 = vrot.slane %v2811, 5
      %v2849 = vsel %vm2561, %v2847, %v2848
      %v2850 = vrot.slane %v2812, 5
      %v2851 = vrot.slane %v2850, 4
      %v2852 = vrot.slane %v2813, 5
      %v2853 = vsel %vm2561, %v2851, %v2852
      %v2854 = vrot.slane %v2814, 5
      %v2855 = vrot.slane %v2854, 4
      %v2856 = vrot.slane %v2815, 5
      %v2857 = vsel %vm2561, %v2855, %v2856
      %v2858 = vrot.slane %v2816, 5
      %v2859 = vrot.slane %v2858, 4
      %v2860 = vrot.slane %v2817, 5
      %v2861 = vsel %vm2561, %v2859, %v2860
      %v2862 = vrot.slane %v2818, 5
      %v2863 = vrot.slane %v2862, 4
      %v2864 = vrot.slane %v2819, 5
      %v2865 = vsel %vm2561, %v2863, %v2864
      %v2866 = vrot.slane %v2820, 5
      %v2867 = vrot.slane %v2866, 4
      %v2868 = vrot.slane %v2821, 5
      %v2869 = vsel %vm2561, %v2867, %v2868
      %v2870 = vunpack.c.l.b16 %v2841
      %v2871 = vunpack.c.l.b16 %v2845
      %v2872 = vunpack.c.l.b16 %v2849
      %v2873 = vunpack.c.l.b16 %v2853
      %v2874 = vunpack.c.l.b16 %v2857
      %v2875 = vunpack.c.l.b16 %v2861
      %v2876 = vunpack.c.l.b16 %v2865
      %v2877 = vunpack.c.l.b16 %v2869
      %v2878 = vpack.c.b16 %v2871, %v2870
      %v2879 = vpack.c.b16 %v2873, %v2872
      %v2880 = vpack.c.b16 %v2875, %v2874
      %v2881 = vpack.c.b16 %v2877, %v2876
      %2882 = vrot.lane.b32.xlu0 %v2878, 64
      %v2883 = vpop.permute.xlu0 %2882
      %2884 = vrot.lane.b32.xlu0 %v2879, 64
      %v2885 = vpop.permute.xlu0 %2884
      %2886 = vrot.lane.b32.xlu0 %v2880, 64
      %v2887 = vpop.permute.xlu0 %2886
      %2888 = vrot.lane.b32.xlu0 %v2881, 64
      %v2889 = vpop.permute.xlu0 %2888
      %2894 = vst.msk [vmem:[#allocation5 + $0x10] sm:$0xff] %vm2522, %v2883
      %2895 = vst.msk [vmem:[#allocation5 + $0x38] sm:$0xff] %vm2522, %v2885
      %2896 = vst.msk [vmem:[#allocation5 + $0x60] sm:$0xff] %vm2522, %v2887
      %2897 = vst.msk [vmem:[#allocation5 + $0x88] sm:$0xff] %vm2522, %v2889
      %s2898 = scalar_lea.vmem [#allocation3], 16
      %v2899 = vld [vmem:[%s2898] sm:$0xf]
      %v2900 = vld [vmem:[%s2898 + $0x8] sm:$0xf]
      %v2901 = vld [vmem:[%s2898 + $0x10] sm:$0xf]
      %v2902 = vld [vmem:[%s2898 + $0x18] sm:$0xf]
      %v2903 = vld [vmem:[%s2898 + $0x20] sm:$0xf]
      %v2904 = vld [vmem:[%s2898 + $0x28] sm:$0xf]
      %v2905 = vld [vmem:[%s2898 + $0x30] sm:$0xf]
      %v2906 = vld [vmem:[%s2898 + $0x38] sm:$0xf]
      %v2915 = vunpack.c.l.b16 %v2899
      %v2916 = vunpack.c.l.b16 %v2900
      %v2917 = vunpack.c.l.b16 %v2901
      %v2918 = vunpack.c.l.b16 %v2902
      %v2919 = vunpack.c.l.b16 %v2903
      %v2920 = vunpack.c.l.b16 %v2904
      %v2921 = vunpack.c.l.b16 %v2905
      %v2922 = vunpack.c.l.b16 %v2906
      %v2923 = vpack.c.b16 %v2916, %v2915
      %v2924 = vpack.c.b16 %v2918, %v2917
      %v2925 = vpack.c.b16 %v2920, %v2919
      %v2926 = vpack.c.b16 %v2922, %v2921
      %2931 = vst.msk [vmem:[#allocation5 + $0x18] sm:$0xff] %vm2365, %v2923
      %2932 = vst.msk [vmem:[#allocation5 + $0x40] sm:$0xff] %vm2365, %v2924
      %2933 = vst.msk [vmem:[#allocation5 + $0x68] sm:$0xff] %vm2365, %v2925
      %2934 = vst.msk [vmem:[#allocation5 + $0x90] sm:$0xff] %vm2365, %v2926
      %v2935 = vld [vmem:[%s2898] sm:$0xf]
      %v2936 = vld [vmem:[%s2898 + $0x4] sm:$0x1]
      %v2937 = vld [vmem:[%s2898 + $0x8] sm:$0xf]
      %v2938 = vld [vmem:[%s2898 + $0xc] sm:$0x1]
      %v2939 = vld [vmem:[%s2898 + $0x10] sm:$0xf]
      %v2940 = vld [vmem:[%s2898 + $0x14] sm:$0x1]
      %v2941 = vld [vmem:[%s2898 + $0x18] sm:$0xf]
      %v2942 = vld [vmem:[%s2898 + $0x1c] sm:$0x1]
      %v2943 = vld [vmem:[%s2898 + $0x20] sm:$0xf]
      %v2944 = vld [vmem:[%s2898 + $0x24] sm:$0x1]
      %v2945 = vld [vmem:[%s2898 + $0x28] sm:$0xf]
      %v2946 = vld [vmem:[%s2898 + $0x2c] sm:$0x1]
      %v2947 = vld [vmem:[%s2898 + $0x30] sm:$0xf]
      %v2948 = vld [vmem:[%s2898 + $0x34] sm:$0x1]
      %v2949 = vld [vmem:[%s2898 + $0x38] sm:$0xf]
      %v2950 = vld [vmem:[%s2898 + $0x3c] sm:$0x1]
      %v2952 = vshrl.u32 %v2935, 16
      %v2954 = vrot.slane %v2952, 4
      %v2955 = vshll.u32 %v2935, 16
      %v2957 = vrot.slane %v2955, 5
      %v2958 = vor.u32 %v2954, %v2957
      %v2959 = vrot.slane %v2958, 4
      %v2961 = vshll.u32 %v2936, 16
      %v2963 = vrot.slane %v2961, 5
      %v2964 = vsel %vm1017, %v2959, %v2963
      %v2966 = vshrl.u32 %v2937, 16
      %v2968 = vrot.slane %v2966, 4
      %v2969 = vshll.u32 %v2937, 16
      %v2971 = vrot.slane %v2969, 5
      %v2972 = vor.u32 %v2968, %v2971
      %v2973 = vrot.slane %v2972, 4
      %v2975 = vshll.u32 %v2938, 16
      %v2977 = vrot.slane %v2975, 5
      %v2978 = vsel %vm1017, %v2973, %v2977
      %v2980 = vshrl.u32 %v2939, 16
      %v2982 = vrot.slane %v2980, 4
      %v2983 = vshll.u32 %v2939, 16
      %v2985 = vrot.slane %v2983, 5
      %v2986 = vor.u32 %v2982, %v2985
      %v2987 = vrot.slane %v2986, 4
      %v2989 = vshll.u32 %v2940, 16
      %v2991 = vrot.slane %v2989, 5
      %v2992 = vsel %vm1017, %v2987, %v2991
      %v2994 = vshrl.u32 %v2941, 16
      %v2996 = vrot.slane %v2994, 4
      %v2997 = vshll.u32 %v2941, 16
      %v2999 = vrot.slane %v2997, 5
      %v3000 = vor.u32 %v2996, %v2999
      %v3001 = vrot.slane %v3000, 4
      %v3003 = vshll.u32 %v2942, 16
      %v3005 = vrot.slane %v3003, 5
      %v3006 = vsel %vm1017, %v3001, %v3005
      %v3008 = vshrl.u32 %v2943, 16
      %v3010 = vrot.slane %v3008, 4
      %v3011 = vshll.u32 %v2943, 16
      %v3013 = vrot.slane %v3011, 5
      %v3014 = vor.u32 %v3010, %v3013
      %v3015 = vrot.slane %v3014, 4
      %v3017 = vshll.u32 %v2944, 16
      %v3019 = vrot.slane %v3017, 5
      %v3020 = vsel %vm1017, %v3015, %v3019
      %v3022 = vshrl.u32 %v2945, 16
      %v3024 = vrot.slane %v3022, 4
      %v3025 = vshll.u32 %v2945, 16
      %v3027 = vrot.slane %v3025, 5
      %v3028 = vor.u32 %v3024, %v3027
      %v3029 = vrot.slane %v3028, 4
      %v3031 = vshll.u32 %v2946, 16
      %v3033 = vrot.slane %v3031, 5
      %v3034 = vsel %vm1017, %v3029, %v3033
      %v3036 = vshrl.u32 %v2947, 16
      %v3038 = vrot.slane %v3036, 4
      %v3039 = vshll.u32 %v2947, 16
      %v3041 = vrot.slane %v3039, 5
      %v3042 = vor.u32 %v3038, %v3041
      %v3043 = vrot.slane %v3042, 4
      %v3045 = vshll.u32 %v2948, 16
      %v3047 = vrot.slane %v3045, 5
      %v3048 = vsel %vm1017, %v3043, %v3047
      %v3050 = vshrl.u32 %v2949, 16
      %v3052 = vrot.slane %v3050, 4
      %v3053 = vshll.u32 %v2949, 16
      %v3055 = vrot.slane %v3053, 5
      %v3056 = vor.u32 %v3052, %v3055
      %v3057 = vrot.slane %v3056, 4
      %v3059 = vshll.u32 %v2950, 16
      %v3061 = vrot.slane %v3059, 5
      %v3062 = vsel %vm1017, %v3057, %v3061
      %v3063 = vunpack.c.l.b16 %v2964
      %v3064 = vunpack.c.l.b16 %v2978
      %v3065 = vunpack.c.l.b16 %v2992
      %v3066 = vunpack.c.l.b16 %v3006
      %v3067 = vunpack.c.l.b16 %v3020
      %v3068 = vunpack.c.l.b16 %v3034
      %v3069 = vunpack.c.l.b16 %v3048
      %v3070 = vunpack.c.l.b16 %v3062
      %v3071 = vpack.c.b16 %v3064, %v3063
      %v3072 = vpack.c.b16 %v3066, %v3065
      %v3073 = vpack.c.b16 %v3068, %v3067
      %v3074 = vpack.c.b16 %v3070, %v3069
      %3075 = vrot.lane.b32.xlu0 %v3071, 64
      %v3076 = vpop.permute.xlu0 %3075
      %3077 = vrot.lane.b32.xlu0 %v3072, 64
      %v3078 = vpop.permute.xlu0 %3077
      %3079 = vrot.lane.b32.xlu0 %v3073, 64
      %v3080 = vpop.permute.xlu0 %3079
      %3081 = vrot.lane.b32.xlu0 %v3074, 64
      %v3082 = vpop.permute.xlu0 %3081
      %3087 = vst.msk [vmem:[#allocation5 + $0x18] sm:$0xff] %vm2522, %v3076
      %3088 = vst.msk [vmem:[#allocation5 + $0x40] sm:$0xff] %vm2522, %v3078
      %3089 = vst.msk [vmem:[#allocation5 + $0x68] sm:$0xff] %vm2522, %v3080
      %3090 = vst.msk [vmem:[#allocation5 + $0x90] sm:$0xff] %vm2522, %v3082
      %v3091 = vld [vmem:[%s2898] sm:$0xe]
      %v3092 = vld [vmem:[%s2898 + $0x4] sm:$0x1]
      %v3093 = vld [vmem:[%s2898 + $0x8] sm:$0xe]
      %v3094 = vld [vmem:[%s2898 + $0xc] sm:$0x1]
      %v3095 = vld [vmem:[%s2898 + $0x10] sm:$0xe]
      %v3096 = vld [vmem:[%s2898 + $0x14] sm:$0x1]
      %v3097 = vld [vmem:[%s2898 + $0x18] sm:$0xe]
      %v3098 = vld [vmem:[%s2898 + $0x1c] sm:$0x1]
      %v3099 = vld [vmem:[%s2898 + $0x20] sm:$0xe]
      %v3100 = vld [vmem:[%s2898 + $0x24] sm:$0x1]
      %v3101 = vld [vmem:[%s2898 + $0x28] sm:$0xe]
      %v3102 = vld [vmem:[%s2898 + $0x2c] sm:$0x1]
      %v3103 = vld [vmem:[%s2898 + $0x30] sm:$0xe]
      %v3104 = vld [vmem:[%s2898 + $0x34] sm:$0x1]
      %v3105 = vld [vmem:[%s2898 + $0x38] sm:$0xe]
      %v3106 = vld [vmem:[%s2898 + $0x3c] sm:$0x1]
      %v3123 = vrot.slane %v3091, 5
      %v3124 = vrot.slane %v3123, 4
      %v3125 = vrot.slane %v3092, 5
      %v3126 = vsel %vm2561, %v3124, %v3125
      %v3127 = vrot.slane %v3093, 5
      %v3128 = vrot.slane %v3127, 4
      %v3129 = vrot.slane %v3094, 5
      %v3130 = vsel %vm2561, %v3128, %v3129
      %v3131 = vrot.slane %v3095, 5
      %v3132 = vrot.slane %v3131, 4
      %v3133 = vrot.slane %v3096, 5
      %v3134 = vsel %vm2561, %v3132, %v3133
      %v3135 = vrot.slane %v3097, 5
      %v3136 = vrot.slane %v3135, 4
      %v3137 = vrot.slane %v3098, 5
      %v3138 = vsel %vm2561, %v3136, %v3137
      %v3139 = vrot.slane %v3099, 5
      %v3140 = vrot.slane %v3139, 4
      %v3141 = vrot.slane %v3100, 5
      %v3142 = vsel %vm2561, %v3140, %v3141
      %v3143 = vrot.slane %v3101, 5
      %v3144 = vrot.slane %v3143, 4
      %v3145 = vrot.slane %v3102, 5
      %v3146 = vsel %vm2561, %v3144, %v3145
      %v3147 = vrot.slane %v3103, 5
      %v3148 = vrot.slane %v3147, 4
      %v3149 = vrot.slane %v3104, 5
      %v3150 = vsel %vm2561, %v3148, %v3149
      %v3151 = vrot.slane %v3105, 5
      %v3152 = vrot.slane %v3151, 4
      %v3153 = vrot.slane %v3106, 5
      %v3154 = vsel %vm2561, %v3152, %v3153
      %v3155 = vunpack.c.l.b16 %v3126
      %v3156 = vunpack.c.l.b16 %v3130
      %v3157 = vunpack.c.l.b16 %v3134
      %v3158 = vunpack.c.l.b16 %v3138
      %v3159 = vunpack.c.l.b16 %v3142
      %v3160 = vunpack.c.l.b16 %v3146
      %v3161 = vunpack.c.l.b16 %v3150
      %v3162 = vunpack.c.l.b16 %v3154
      %v3163 = vpack.c.b16 %v3156, %v3155
      %v3164 = vpack.c.b16 %v3158, %v3157
      %v3165 = vpack.c.b16 %v3160, %v3159
      %v3166 = vpack.c.b16 %v3162, %v3161
      %3171 = vst.msk [vmem:[#allocation5 + $0x20] sm:$0xff] %vm2365, %v3163
      %3172 = vst.msk [vmem:[#allocation5 + $0x48] sm:$0xff] %vm2365, %v3164
      %3173 = vst.msk [vmem:[#allocation5 + $0x70] sm:$0xff] %vm2365, %v3165
      %3174 = vst.msk [vmem:[#allocation5 + $0x98] sm:$0xff] %vm2365, %v3166
      %v3175 = vld [vmem:[#allocation5] sm:$0xff]
      %v3176 = vld [vmem:[#allocation5 + $0x8] sm:$0xff]
      %v3177 = vld [vmem:[#allocation5 + $0x10] sm:$0xff]
      %v3178 = vld [vmem:[#allocation5 + $0x18] sm:$0xff]
      %v3179 = vld [vmem:[#allocation5 + $0x20] sm:$0xff]
      %v3180 = vld [vmem:[#allocation5 + $0x28] sm:$0xff]
      %v3181 = vld [vmem:[#allocation5 + $0x30] sm:$0xff]
      %v3182 = vld [vmem:[#allocation5 + $0x38] sm:$0xff]
      %v3183 = vld [vmem:[#allocation5 + $0x40] sm:$0xff]
      %v3184 = vld [vmem:[#allocation5 + $0x48] sm:$0xff]
      %v3185 = vld [vmem:[#allocation5 + $0x50] sm:$0xff]
      %v3186 = vld [vmem:[#allocation5 + $0x58] sm:$0xff]
      %v3187 = vld [vmem:[#allocation5 + $0x60] sm:$0xff]
      %v3188 = vld [vmem:[#allocation5 + $0x68] sm:$0xff]
      %v3189 = vld [vmem:[#allocation5 + $0x70] sm:$0xff]
      %v3190 = vld [vmem:[#allocation5 + $0x78] sm:$0xff]
      %v3191 = vld [vmem:[#allocation5 + $0x80] sm:$0xff]
      %v3192 = vld [vmem:[#allocation5 + $0x88] sm:$0xff]
      %v3193 = vld [vmem:[#allocation5 + $0x90] sm:$0xff]
      %v3194 = vld [vmem:[#allocation5 + $0x98] sm:$0xff]
      %v3195 = vld [vmem:[%s4] sm:$0xf]
      %v3196 = vld [vmem:[%s4 + $0x4] sm:$0xf]
      %v3197 = vld [vmem:[%s4 + $0x8] sm:$0xf]
      %v3198 = vld [vmem:[%s4 + $0xc] sm:$0xf]
      %v3199 = vld [vmem:[%s4 + $0x10] sm:$0xf]
      %v3200 = vld [vmem:[%s4 + $0x14] sm:$0xf]
      %v3201 = vld [vmem:[%s4 + $0x18] sm:$0xf]
      %v3202 = vld [vmem:[%s4 + $0x1c] sm:$0xf]
      %v3203 = vld [vmem:[%s4 + $0x20] sm:$0xf]
      %v3204 = vld [vmem:[%s4 + $0x24] sm:$0xf]
      %v3205 = vld [vmem:[%s4 + $0x28] sm:$0xf]
      %v3206 = vld [vmem:[%s4 + $0x2c] sm:$0xf]
      %v3207 = vld [vmem:[%s4 + $0x30] sm:$0xf]
      %v3208 = vld [vmem:[%s4 + $0x34] sm:$0xf]
      %v3209 = vld [vmem:[%s4 + $0x38] sm:$0xf]
      %v3210 = vld [vmem:[%s4 + $0x3c] sm:$0xf]
      %v3211 = vld [vmem:[%s4 + $0x40] sm:$0xf]
      %v3212 = vld [vmem:[%s4 + $0x44] sm:$0xf]
      %v3213 = vld [vmem:[%s4 + $0x48] sm:$0xf]
      %v3214 = vld [vmem:[%s4 + $0x4c] sm:$0xf]
      %v3215 = vld [vmem:[%s4 + $0x50] sm:$0xf]
      %v3216 = vld [vmem:[%s4 + $0x54] sm:$0xf]
      %v3217 = vld [vmem:[%s4 + $0x58] sm:$0xf]
      %v3218 = vld [vmem:[%s4 + $0x5c] sm:$0xf]
      %v3219 = vld [vmem:[%s4 + $0x60] sm:$0xf]
      %v3220 = vld [vmem:[%s4 + $0x64] sm:$0xf]
      %v3221 = vld [vmem:[%s4 + $0x68] sm:$0xf]
      %v3222 = vld [vmem:[%s4 + $0x6c] sm:$0xf]
      %v3223 = vld [vmem:[%s4 + $0x70] sm:$0xf]
      %v3224 = vld [vmem:[%s4 + $0x74] sm:$0xf]
      %v3225 = vld [vmem:[%s4 + $0x78] sm:$0xf]
      %v3226 = vld [vmem:[%s4 + $0x7c] sm:$0xf]
      %v3227 = vld [vmem:[%s4 + $0x80] sm:$0xf]
      %v3228 = vld [vmem:[%s4 + $0x84] sm:$0xf]
      %v3229 = vld [vmem:[%s4 + $0x88] sm:$0xf]
      %v3230 = vld [vmem:[%s4 + $0x8c] sm:$0xf]
      %v3231 = vld [vmem:[%s4 + $0x90] sm:$0xf]
      %v3232 = vld [vmem:[%s4 + $0x94] sm:$0xf]
      %v3233 = vld [vmem:[%s4 + $0x98] sm:$0xf]
      %v3234 = vld [vmem:[%s4 + $0x9c] sm:$0xf]
      %v3235 = vld [vmem:[%s4 + $0xa0] sm:$0xf]
      %v3236 = vld [vmem:[%s4 + $0xa4] sm:$0xf]
      %v3237 = vld [vmem:[%s4 + $0xa8] sm:$0xf]
      %v3238 = vld [vmem:[%s4 + $0xac] sm:$0xf]
      %v3239 = vld [vmem:[%s4 + $0xb0] sm:$0xf]
      %v3240 = vld [vmem:[%s4 + $0xb4] sm:$0xf]
      %v3241 = vld [vmem:[%s4 + $0xb8] sm:$0xf]
      %v3242 = vld [vmem:[%s4 + $0xbc] sm:$0xf]
      %v3243 = vld [vmem:[%s4 + $0xc0] sm:$0xf]
      %v3244 = vld [vmem:[%s4 + $0xc4] sm:$0xf]
      %v3245 = vld [vmem:[%s4 + $0xc8] sm:$0xf]
      %v3246 = vld [vmem:[%s4 + $0xcc] sm:$0xf]
      %v3247 = vld [vmem:[%s4 + $0xd0] sm:$0xf]
      %v3248 = vld [vmem:[%s4 + $0xd4] sm:$0xf]
      %v3249 = vld [vmem:[%s4 + $0xd8] sm:$0xf]
      %v3250 = vld [vmem:[%s4 + $0xdc] sm:$0xf]
      %v3251 = vld [vmem:[%s4 + $0xe0] sm:$0xf]
      %v3252 = vld [vmem:[%s4 + $0xe4] sm:$0xf]
      %v3253 = vld [vmem:[%s4 + $0xe8] sm:$0xf]
      %v3254 = vld [vmem:[%s4 + $0xec] sm:$0xf]
      %v3255 = vld [vmem:[%s4 + $0xf0] sm:$0xf]
      %v3256 = vld [vmem:[%s4 + $0xf4] sm:$0xf]
      %v3257 = vld [vmem:[%s4 + $0xf8] sm:$0xf]
      %v3258 = vld [vmem:[%s4 + $0xfc] sm:$0xf]
      %v3259 = vld [vmem:[%s4 + $0x100] sm:$0xf]
      %v3260 = vld [vmem:[%s4 + $0x104] sm:$0xf]
      %v3261 = vld [vmem:[%s4 + $0x108] sm:$0xf]
      %v3262 = vld [vmem:[%s4 + $0x10c] sm:$0xf]
      %v3263 = vld [vmem:[%s4 + $0x110] sm:$0xf]
      %v3264 = vld [vmem:[%s4 + $0x114] sm:$0xf]
      %v3265 = vld [vmem:[%s4 + $0x118] sm:$0xf]
      %v3266 = vld [vmem:[%s4 + $0x11c] sm:$0xf]
      %v3339 = vunpack.c.l.b16 %v3195
      %v3340 = vunpack.c.l.b16 %v3196
      %v3341 = vunpack.c.l.b16 %v3197
      %v3342 = vunpack.c.l.b16 %v3198
      %v3343 = vunpack.c.l.b16 %v3199
      %v3344 = vunpack.c.l.b16 %v3200
      %v3345 = vunpack.c.l.b16 %v3201
      %v3346 = vunpack.c.l.b16 %v3202
      %v3347 = vunpack.c.l.b16 %v3203
      %v3348 = vunpack.c.l.b16 %v3204
      %v3349 = vunpack.c.l.b16 %v3205
      %v3350 = vunpack.c.l.b16 %v3206
      %v3351 = vunpack.c.l.b16 %v3207
      %v3352 = vunpack.c.l.b16 %v3208
      %v3353 = vunpack.c.l.b16 %v3209
      %v3354 = vunpack.c.l.b16 %v3210
      %v3355 = vunpack.c.l.b16 %v3211
      %v3356 = vunpack.c.l.b16 %v3212
      %v3357 = vunpack.c.l.b16 %v3213
      %v3358 = vunpack.c.l.b16 %v3214
      %v3359 = vunpack.c.l.b16 %v3215
      %v3360 = vunpack.c.l.b16 %v3216
      %v3361 = vunpack.c.l.b16 %v3217
      %v3362 = vunpack.c.l.b16 %v3218
      %v3363 = vunpack.c.l.b16 %v3219
      %v3364 = vunpack.c.l.b16 %v3220
      %v3365 = vunpack.c.l.b16 %v3221
      %v3366 = vunpack.c.l.b16 %v3222
      %v3367 = vunpack.c.l.b16 %v3223
      %v3368 = vunpack.c.l.b16 %v3224
      %v3369 = vunpack.c.l.b16 %v3225
      %v3370 = vunpack.c.l.b16 %v3226
      %v3371 = vunpack.c.l.b16 %v3227
      %v3372 = vunpack.c.l.b16 %v3228
      %v3373 = vunpack.c.l.b16 %v3229
      %v3374 = vunpack.c.l.b16 %v3230
      %v3375 = vunpack.c.l.b16 %v3231
      %v3376 = vunpack.c.l.b16 %v3232
      %v3377 = vunpack.c.l.b16 %v3233
      %v3378 = vunpack.c.l.b16 %v3234
      %v3379 = vunpack.c.l.b16 %v3235
      %v3380 = vunpack.c.l.b16 %v3236
      %v3381 = vunpack.c.l.b16 %v3237
      %v3382 = vunpack.c.l.b16 %v3238
      %v3383 = vunpack.c.l.b16 %v3239
      %v3384 = vunpack.c.l.b16 %v3240
      %v3385 = vunpack.c.l.b16 %v3241
      %v3386 = vunpack.c.l.b16 %v3242
      %v3387 = vunpack.c.l.b16 %v3243
      %v3388 = vunpack.c.l.b16 %v3244
      %v3389 = vunpack.c.l.b16 %v3245
      %v3390 = vunpack.c.l.b16 %v3246
      %v3391 = vunpack.c.l.b16 %v3247
      %v3392 = vunpack.c.l.b16 %v3248
      %v3393 = vunpack.c.l.b16 %v3249
      %v3394 = vunpack.c.l.b16 %v3250
      %v3395 = vunpack.c.l.b16 %v3251
      %v3396 = vunpack.c.l.b16 %v3252
      %v3397 = vunpack.c.l.b16 %v3253
      %v3398 = vunpack.c.l.b16 %v3254
      %v3399 = vunpack.c.l.b16 %v3255
      %v3400 = vunpack.c.l.b16 %v3256
      %v3401 = vunpack.c.l.b16 %v3257
      %v3402 = vunpack.c.l.b16 %v3258
      %v3403 = vunpack.c.l.b16 %v3259
      %v3404 = vunpack.c.l.b16 %v3260
      %v3405 = vunpack.c.l.b16 %v3261
      %v3406 = vunpack.c.l.b16 %v3262
      %v3407 = vunpack.c.l.b16 %v3263
      %v3408 = vunpack.c.l.b16 %v3264
      %v3409 = vunpack.c.l.b16 %v3265
      %v3410 = vunpack.c.l.b16 %v3266
      %v3411 = vpack.c.b16 %v3340, %v3339
      %v3412 = vpack.c.b16 %v3342, %v3341
      %v3413 = vpack.c.b16 %v3344, %v3343
      %v3414 = vpack.c.b16 %v3346, %v3345
      %v3415 = vpack.c.b16 %v3348, %v3347
      %v3416 = vpack.c.b16 %v3350, %v3349
      %v3417 = vpack.c.b16 %v3352, %v3351
      %v3418 = vpack.c.b16 %v3354, %v3353
      %v3419 = vpack.c.b16 %v3356, %v3355
      %v3420 = vpack.c.b16 %v3358, %v3357
      %v3421 = vpack.c.b16 %v3360, %v3359
      %v3422 = vpack.c.b16 %v3362, %v3361
      %v3423 = vpack.c.b16 %v3364, %v3363
      %v3424 = vpack.c.b16 %v3366, %v3365
      %v3425 = vpack.c.b16 %v3368, %v3367
      %v3426 = vpack.c.b16 %v3370, %v3369
      %v3427 = vpack.c.b16 %v3372, %v3371
      %v3428 = vpack.c.b16 %v3374, %v3373
      %v3429 = vpack.c.b16 %v3376, %v3375
      %v3430 = vpack.c.b16 %v3378, %v3377
      %v3431 = vpack.c.b16 %v3380, %v3379
      %v3432 = vpack.c.b16 %v3382, %v3381
      %v3433 = vpack.c.b16 %v3384, %v3383
      %v3434 = vpack.c.b16 %v3386, %v3385
      %v3435 = vpack.c.b16 %v3388, %v3387
      %v3436 = vpack.c.b16 %v3390, %v3389
      %v3437 = vpack.c.b16 %v3392, %v3391
      %v3438 = vpack.c.b16 %v3394, %v3393
      %v3439 = vpack.c.b16 %v3396, %v3395
      %v3440 = vpack.c.b16 %v3398, %v3397
      %v3441 = vpack.c.b16 %v3400, %v3399
      %v3442 = vpack.c.b16 %v3402, %v3401
      %v3443 = vpack.c.b16 %v3404, %v3403
      %v3444 = vpack.c.b16 %v3406, %v3405
      %v3445 = vpack.c.b16 %v3408, %v3407
      %v3446 = vpack.c.b16 %v3410, %v3409
      %v3484 = vsel %vm2365, %v3179, 0
      %v3487 = vsel %vm2365, %v3184, 0
      %v3490 = vsel %vm2365, %v3189, 0
      %v3493 = vsel %vm2365, %v3194, 0
      %3495 = vmatprep.subr.bf16.mxu0 0
      %3496 = vmatpush1.bf16.msra.mxu0 %v3411
      %3497 = vmatprep.subr.bf16.mxu0 0
      %3498 = vmatpush1.bf16.msra.mxu0 %v3412
      %3499 = vmatprep.subr.bf16.mxu0 0
      %3500 = vmatpush1.bf16.msra.mxu0 %v3413
      %3501 = vmatprep.subr.bf16.mxu0 0
      %3502 = vmatpush1.bf16.msra.mxu0 %v3414
      %3503 = vmatprep.subr.bf16.mxu0 0
      %3504 = vmatpush1.bf16.msra.mxu0 %v3415
      %3505 = vmatprep.subr.bf16.mxu0 0
      %3506 = vmatpush1.bf16.msra.mxu0 %v3416
      %3507 = vmatprep.subr.bf16.mxu0 0
      %3508 = vmatpush1.bf16.msra.mxu0 %v3417
      %3509 = vmatprep.subr.bf16.mxu0 0
      %3510 = vmatpush1.bf16.msra.mxu0 %v3418
      %3511 = vmatprep.subr.bf16.mxu0 0
      %3512 = vmatpush1.bf16.msra.mxu0 %v3419
      %3513 = vmatprep.subr.bf16.mxu0 0
      %3514 = vmatpush1.bf16.msra.mxu0 %v3420
      %3515 = vmatprep.subr.bf16.mxu0 0
      %3516 = vmatpush1.bf16.msra.mxu0 %v3421
      %3517 = vmatprep.subr.bf16.mxu0 0
      %3518 = vmatpush1.bf16.msra.mxu0 %v3422
      %3519 = vmatprep.subr.bf16.mxu0 0
      %3520 = vmatpush1.bf16.msra.mxu0 %v3423
      %3521 = vmatprep.subr.bf16.mxu0 0
      %3522 = vmatpush1.bf16.msra.mxu0 %v3424
      %3523 = vmatprep.subr.bf16.mxu0 0
      %3524 = vmatpush1.bf16.msra.mxu0 %v3425
      %3525 = vmatprep.subr.bf16.mxu0 0
      %3526 = vmatpush1.bf16.msra.mxu0 %v3426
      %3527 = vmatprep.mubr.bf16.mxu0 %v3176
      %3528 = vmatmul.mubr.bf16.gmra.mrb[0].mxu0 %v3175
      %v3529 = vpop.f32.mrb[0].mxu0
      %v3530 = vadd.f32 0.0, %v3529
      %v3531 = vpop.f32.mrb[0].mxu0
      %v3532 = vpop.f32.mrb[0].mxu0
      %v3533 = vadd.f32 0.0, %v3532
      %v3534 = vpop.f32.mrb[0].mxu0
      %3535 = vmatprep.mubr.bf16.mxu0 %v3181
      %3536 = vmatmul.mubr.bf16.gmra.mrb[0].mxu0 %v3180
      %v3537 = vpop.f32.mrb[0].mxu0
      %v3538 = vadd.f32 0.0, %v3537
      %v3539 = vpop.f32.mrb[0].mxu0
      %v3540 = vpop.f32.mrb[0].mxu0
      %v3541 = vadd.f32 0.0, %v3540
      %v3542 = vpop.f32.mrb[0].mxu0
      %3543 = vmatprep.mubr.bf16.mxu0 %v3186
      %3544 = vmatmul.mubr.bf16.gmra.mrb[0].mxu0 %v3185
      %v3545 = vpop.f32.mrb[0].mxu0
      %v3546 = vadd.f32 0.0, %v3545
      %v3547 = vpop.f32.mrb[0].mxu0
      %v3548 = vpop.f32.mrb[0].mxu0
      %v3549 = vadd.f32 0.0, %v3548
      %v3550 = vpop.f32.mrb[0].mxu0
      %3551 = vmatprep.mubr.bf16.mxu0 %v3191
      %3552 = vmatmul.mubr.bf16.gmra.mrb[0].mxu0 %v3190
      %v3553 = vpop.f32.mrb[0].mxu0
      %v3554 = vadd.f32 0.0, %v3553
      %v3555 = vpop.f32.mrb[0].mxu0
      %v3556 = vpop.f32.mrb[0].mxu0
      %v3557 = vadd.f32 0.0, %v3556
      %v3558 = vpop.f32.mrb[0].mxu0
      %3559 = vdwg.mxu0
      %3560 = vmatprep.subr.bf16.mxu0 0
      %3561 = vmatpush1.bf16.msra.mxu0 %v3427
      %3562 = vmatprep.subr.bf16.mxu0 0
      %3563 = vmatpush1.bf16.msra.mxu0 %v3428
      %3564 = vmatprep.subr.bf16.mxu0 0
      %3565 = vmatpush1.bf16.msra.mxu0 %v3429
      %3566 = vmatprep.subr.bf16.mxu0 0
      %3567 = vmatpush1.bf16.msra.mxu0 %v3430
      %3568 = vmatprep.subr.bf16.mxu0 0
      %3569 = vmatpush1.bf16.msra.mxu0 %v3431
      %3570 = vmatprep.subr.bf16.mxu0 0
      %3571 = vmatpush1.bf16.msra.mxu0 %v3432
      %3572 = vmatprep.subr.bf16.mxu0 0
      %3573 = vmatpush1.bf16.msra.mxu0 %v3433
      %3574 = vmatprep.subr.bf16.mxu0 0
      %3575 = vmatpush1.bf16.msra.mxu0 %v3434
      %3576 = vmatprep.subr.bf16.mxu0 0
      %3577 = vmatpush1.bf16.msra.mxu0 %v3435
      %3578 = vmatprep.subr.bf16.mxu0 0
      %3579 = vmatpush1.bf16.msra.mxu0 %v3436
      %3580 = vmatprep.subr.bf16.mxu0 0
      %3581 = vmatpush1.bf16.msra.mxu0 %v3437
      %3582 = vmatprep.subr.bf16.mxu0 0
      %3583 = vmatpush1.bf16.msra.mxu0 %v3438
      %3584 = vmatprep.subr.bf16.mxu0 0
      %3585 = vmatpush1.bf16.msra.mxu0 %v3439
      %3586 = vmatprep.subr.bf16.mxu0 0
      %3587 = vmatpush1.bf16.msra.mxu0 %v3440
      %3588 = vmatprep.subr.bf16.mxu0 0
      %3589 = vmatpush1.bf16.msra.mxu0 %v3441
      %3590 = vmatprep.subr.bf16.mxu0 0
      %3591 = vmatpush1.bf16.msra.mxu0 %v3442
      %3592 = vmatprep.mubr.bf16.mxu0 %v3178
      %3593 = vmatmul.mubr.bf16.gmra.mrb[0].mxu0 %v3177
      %v3594 = vpop.f32.mrb[0].mxu0
      %v3595 = vadd.f32 %v3530, %v3594
      %v3596 = vpop.f32.mrb[0].mxu0
      %v3597 = vpop.f32.mrb[0].mxu0
      %v3598 = vadd.f32 %v3533, %v3597
      %v3599 = vpop.f32.mrb[0].mxu0
      %3600 = vmatprep.mubr.bf16.mxu0 %v3183
      %3601 = vmatmul.mubr.bf16.gmra.mrb[0].mxu0 %v3182
      %v3602 = vpop.f32.mrb[0].mxu0
      %v3603 = vadd.f32 %v3538, %v3602
      %v3604 = vpop.f32.mrb[0].mxu0
      %v3605 = vpop.f32.mrb[0].mxu0
      %v3606 = vadd.f32 %v3541, %v3605
      %v3607 = vpop.f32.mrb[0].mxu0
      %3608 = vmatprep.mubr.bf16.mxu0 %v3188
      %3609 = vmatmul.mubr.bf16.gmra.mrb[0].mxu0 %v3187
      %v3610 = vpop.f32.mrb[0].mxu0
      %v3611 = vadd.f32 %v3546, %v3610
      %v3612 = vpop.f32.mrb[0].mxu0
      %v3613 = vpop.f32.mrb[0].mxu0
      %v3614 = vadd.f32 %v3549, %v3613
      %v3615 = vpop.f32.mrb[0].mxu0
      %3616 = vmatprep.mubr.bf16.mxu0 %v3193
      %3617 = vmatmul.mubr.bf16.gmra.mrb[0].mxu0 %v3192
      %v3618 = vpop.f32.mrb[0].mxu0
      %v3619 = vadd.f32 %v3554, %v3618
      %v3620 = vpop.f32.mrb[0].mxu0
      %v3621 = vpop.f32.mrb[0].mxu0
      %v3622 = vadd.f32 %v3557, %v3621
      %v3623 = vpop.f32.mrb[0].mxu0
      %3624 = vdwg.mxu0
      %3625 = vmatprep.subr.bf16.mxu0 0
      %3626 = vmatpush1.bf16.msra.mxu0 %v3443
      %3627 = vmatprep.subr.bf16.mxu0 0
      %3628 = vmatpush1.bf16.msra.mxu0 %v3444
      %3629 = vmatprep.subr.bf16.mxu0 0
      %3630 = vmatpush1.bf16.msra.mxu0 %v3445
      %3631 = vmatprep.subr.bf16.mxu0 0
      %3632 = vmatpush1.bf16.msra.mxu0 %v3446
      %3633 = vmatprep.subr.bf16.mxu0 0
      %3634 = vmatpush1.bf16.msra.mxu0 0
      %3635 = vmatprep.subr.bf16.mxu0 0
      %3636 = vmatpush1.bf16.msra.mxu0 0
      %3637 = vmatprep.subr.bf16.mxu0 0
      %3638 = vmatpush1.bf16.msra.mxu0 0
      %3639 = vmatprep.subr.bf16.mxu0 0
      %3640 = vmatpush1.bf16.msra.mxu0 0
      %3641 = vmatprep.subr.bf16.mxu0 0
      %3642 = vmatpush1.bf16.msra.mxu0 0
      %3643 = vmatprep.subr.bf16.mxu0 0
      %3644 = vmatpush1.bf16.msra.mxu0 0
      %3645 = vmatprep.subr.bf16.mxu0 0
      %3646 = vmatpush1.bf16.msra.mxu0 0
      %3647 = vmatprep.subr.bf16.mxu0 0
      %3648 = vmatpush1.bf16.msra.mxu0 0
      %3649 = vmatprep.subr.bf16.mxu0 0
      %3650 = vmatpush1.bf16.msra.mxu0 0
      %3651 = vmatprep.subr.bf16.mxu0 0
      %3652 = vmatpush1.bf16.msra.mxu0 0
      %3653 = vmatprep.subr.bf16.mxu0 0
      %3654 = vmatpush1.bf16.msra.mxu0 0
      %3655 = vmatprep.subr.bf16.mxu0 0
      %3656 = vmatpush1.bf16.msra.mxu0 0
      %3657 = vmatprep.mubr.bf16.mxu0 0
      %3658 = vmatmul.mubr.bf16.gmra.mrb[0].mxu0 %v3484
      %v3659 = vpop.f32.mrb[0].mxu0
      %v3660 = vadd.f32 %v3595, %v3659
      %v3661 = vpop.f32.mrb[0].mxu0
      %v3662 = vpop.f32.mrb[0].mxu0
      %v3663 = vadd.f32 %v3598, %v3662
      %v3664 = vpop.f32.mrb[0].mxu0
      %3665 = vmatprep.mubr.bf16.mxu0 0
      %3666 = vmatmul.mubr.bf16.gmra.mrb[0].mxu0 %v3487
      %v3667 = vpop.f32.mrb[0].mxu0
      %v3668 = vadd.f32 %v3603, %v3667
      %v3669 = vpop.f32.mrb[0].mxu0
      %v3670 = vpop.f32.mrb[0].mxu0
      %v3671 = vadd.f32 %v3606, %v3670
      %v3672 = vpop.f32.mrb[0].mxu0
      %3673 = vmatprep.mubr.bf16.mxu0 0
      %3674 = vmatmul.mubr.bf16.gmra.mrb[0].mxu0 %v3490
      %v3675 = vpop.f32.mrb[0].mxu0
      %v3676 = vadd.f32 %v3611, %v3675
      %v3677 = vpop.f32.mrb[0].mxu0
      %v3678 = vpop.f32.mrb[0].mxu0
      %v3679 = vadd.f32 %v3614, %v3678
      %v3680 = vpop.f32.mrb[0].mxu0
      %3681 = vmatprep.mubr.bf16.mxu0 0
      %3682 = vmatmul.mubr.bf16.gmra.mrb[0].mxu0 %v3493
      %v3683 = vpop.f32.mrb[0].mxu0
      %v3684 = vadd.f32 %v3619, %v3683
      %v3685 = vpop.f32.mrb[0].mxu0
      %v3686 = vpop.f32.mrb[0].mxu0
      %v3687 = vadd.f32 %v3622, %v3686
      %v3688 = vpop.f32.mrb[0].mxu0
      %3689 = vdwg.mxu0
      %v3690 = vld [vmem:[%s5] sm:$0x1]
      %v3692 = vlaneseq
      %v3693 = vshrl.u32 %v3692, 7
      %v3694 = vsub.s32 0, %v3693
      %v3695 = vrot.slane %v3690, %v3694
      %v3697 = vmul.f32 %v3660, %v3695
      %v3698 = vmul.f32 %v3663, %v3695
      %v3699 = vmul.f32 %v3668, %v3695
      %v3700 = vmul.f32 %v3671, %v3695
      %v3701 = vmul.f32 %v3676, %v3695
      %v3702 = vmul.f32 %v3679, %v3695
      %v3703 = vmul.f32 %v3684, %v3695
      %v3704 = vmul.f32 %v3687, %v3695
      %v3705 = vld [vmem:[%s6] sm:$0x1]
      %v3707 = vlaneseq
      %v3708 = vshrl.u32 %v3707, 7
      %v3709 = vsub.s32 0, %v3708
      %v3710 = vrot.slane %v3705, %v3709
      %v3712 = vadd.f32 %v3697, %v3710
      %v3713 = vadd.f32 %v3698, %v3710
      %v3714 = vadd.f32 %v3699, %v3710
      %v3715 = vadd.f32 %v3700, %v3710
      %v3716 = vadd.f32 %v3701, %v3710
      %v3717 = vadd.f32 %v3702, %v3710
      %v3718 = vadd.f32 %v3703, %v3710
      %v3719 = vadd.f32 %v3704, %v3710
      %v3720 = vadd.f32 %v3712, %v2095
      %v3721 = vadd.f32 %v3713, %v2096
      %v3722 = vadd.f32 %v3714, %v2097
      %v3723 = vadd.f32 %v3715, %v2098
      %v3724 = vadd.f32 %v3716, %v2099
      %v3725 = vadd.f32 %v3717, %v2100
      %v3726 = vadd.f32 %v3718, %v2101
      %v3727 = vadd.f32 %v3719, %v2102
      %v3728 = vmax.f32 %v3720, 0.0
      %v3729 = vmax.f32 %v3721, 0.0
      %v3730 = vmax.f32 %v3722, 0.0
      %v3731 = vmax.f32 %v3723, 0.0
      %v3732 = vmax.f32 %v3724, 0.0
      %v3733 = vmax.f32 %v3725, 0.0
      %v3734 = vmax.f32 %v3726, 0.0
      %v3735 = vmax.f32 %v3727, 0.0
      %v3736 = vpack.c.bf16 %v3728, %v3728
      %v3737 = vpack.c.bf16 %v3729, %v3729
      %v3738 = vpack.c.bf16 %v3730, %v3730
      %v3739 = vpack.c.bf16 %v3731, %v3731
      %v3740 = vpack.c.bf16 %v3732, %v3732
      %v3741 = vpack.c.bf16 %v3733, %v3733
      %v3742 = vpack.c.bf16 %v3734, %v3734
      %v3743 = vpack.c.bf16 %v3735, %v3735
      %3744 = vst.msk [vmem:[%s359] sm:$0xf] %vm361, %v3736
      %3745 = vst.msk [vmem:[%s359 + $0x4] sm:$0xf] %vm361, %v3737
      %3746 = vst.msk [vmem:[%s359 + $0x8] sm:$0xf] %vm361, %v3738
      %3747 = vst.msk [vmem:[%s359 + $0xc] sm:$0xf] %vm361, %v3739
      %3748 = vst.msk [vmem:[%s359 + $0x10] sm:$0xf] %vm361, %v3740
      %3749 = vst.msk [vmem:[%s359 + $0x14] sm:$0xf] %vm361, %v3741
      %3750 = vst.msk [vmem:[%s359 + $0x18] sm:$0xf] %vm361, %v3742
      %3751 = vst.msk [vmem:[%s359 + $0x1c] sm:$0xf] %vm361, %v3743
      %p3752 = scmp.lt.s32.totalorder %s21, 1
      %s3753 = scalar_select %p3752, %s21, 1
      %s3754 = smul.addr %s3753, 8
      %s3755 = smul.addr %s3754, 4
      %s3756 = scalar_lea.vmem %s10, %s3755
      // Predicated region
      $region61: #{_lambda_.2} parent=59 // pred_check
        %p3757 = pneg %p254
      $region62: #{_lambda_.2} parent=59 // pred_check_branch
        %3759 = sbr.rel (%p3757) target = $region64
      $region63: #{_lambda_.2} parent=59 // pred_region
        _
      $region64: #{_lambda_.2} parent=59 // pred_fallthru
        _
    $region60: #{_lambda_.2} parent=5 // pred_fallthru
      _
    %p3760 = scmp.le.s32.totalorder 2, %s16
    // Predicated region
    $region65: #{_lambda_.2} parent=5 // pred_check
      %p3761 = pneg %p3760
    $region66: #{_lambda_.2} parent=5 // pred_check_branch
      %3763 = sbr.rel (%p3761) target = $region68
    $region67: #{_lambda_.2} parent=5 // pred_region
      %s3764 = ssub.s32 %s16, 2
      // Predicated region
      $region69: #{_lambda_.2} parent=67 // pred_check
        %p3765 = pneg %p260
      $region70: #{_lambda_.2} parent=67 // pred_check_branch
        %3767 = sbr.rel (%p3765) target = $region72
      $region71: #{_lambda_.2} parent=67 // pred_region
        %p3768 = scmp.lt.s32.totalorder %s22, 1
        %s3769 = scalar_select %p3768, %s22, 1
        %s3770 = smul.addr %s3769, 8
        %s3771 = smul.addr %s3770, 4
        %s3772 = scalar_lea.vmem %s10, %s3771
      $region72: #{_lambda_.2} parent=67 // pred_fallthru
        _
    $region68: #{_lambda_.2} parent=5 // pred_fallthru
      _
  $region6: #{_lambda_.2} parent=0 // loop_footer
    %s20 = sadd.s32 1, %s16
  $region7: #{_lambda_.2} parent=0 // loop_footer_branch
    %15 = sbr.rel target = $region3
  $region8: #{_lambda_.2} parent=0 // loop_exit
    _

// kernel: _lambda_.3
$region0: #{_lambda_.3}
  #allocation0 [shape = 'u32[]', space=smem, size = 0x4, offset = 0x4, fixed_abs, tag = 'smem constant byte address 0x4 - core index']
  #allocation1 [shape = 'u32[144,128]{1,0:T(1,128)}', space=vmem, size = 0x12000, scoped, tag = 'internal scratch']
  #allocation2 [shape = 'bf16[10,10,64]{2,1,0:T(8,128)(2,1)}', space=vmem, size = 0xa000, scoped, tag = 'scratch operand']
  #allocation3 [shape = 'bf16[10,10,64]{2,1,0:T(8,128)(2,1)}', space=vmem, size = 0xa000, scoped, tag = 'scratch operand']
  #allocation4 [shape = 'bf16[64,576]{1,0:T(16,128)(2,1)}', space=vmem, size = 0x14000, scoped, tag = 'scratch operand']
  #allocation5 [shape = 'bf16[64,576]{1,0:T(16,128)(2,1)}', space=vmem, size = 0x14000, scoped, tag = 'scratch operand']
  %s0 = inlined_call_operand.vmem [shape: bf16[2,8,8,64], index: 0, kind: input, shape index: {}]
  %s1 = inlined_call_operand.vmem [shape: bf16[576,64], index: 1, kind: input, shape index: {}]
  %s2 = inlined_call_operand.vmem [shape: f32[1,64], index: 2, kind: input, shape index: {}]
  %s3 = inlined_call_operand.vmem [shape: f32[1,64], index: 3, kind: input, shape index: {}]
  %s4 = inlined_call_operand.vmem [shape: bf16[576,64], index: 4, kind: input, shape index: {}]
  %s5 = inlined_call_operand.vmem [shape: f32[1,64], index: 5, kind: input, shape index: {}]
  %s6 = inlined_call_operand.vmem [shape: f32[1,64], index: 6, kind: input, shape index: {}]
  %s7 = inlined_call_operand.vmem [shape: bf16[2,8,8,64], index: 7, kind: output, shape index: {}]
  %s8 = sld [smem:[#allocation0]]
  $region61: #{_lambda_.3} parent=0
    _
  %s10 = ssub.s32 1, %s8
  %s11 = scalar_select 0, %s10, %s8
  loop: start=0, step=1, limit=4
  $region2: #{_lambda_.3} parent=0 // loop_pre_header
    _
  $region3: #{_lambda_.3} parent=0 // loop_header
    %s13 = sphi 0, %s17
    %p14 = scmp.ge.s32.totalorder %s13, 4
    %s23 = sphi 0, %s25
    %s26 = sphi 0, %s23
    %s27 = sphi 0, %s26
    %s43 = sphi 0, %s27
    %s47 = sphi 0, %s47
    %s49 = sphi 0, %s47
    %s50 = sphi 0, %s49
    %s64 = sphi 0, %s50
    %s68 = sphi 0, %s68
    %s70 = sphi 0, %s68
    %s71 = sphi 0, %s70
    %s85 = sphi 0, %s71
    %s89 = sphi 0, %s89
    %s91 = sphi 0, %s89
    %s92 = sphi 0, %s91
    %s106 = sphi 0, %s92
    %s110 = sphi 0, %s110
    %s112 = sphi 0, %s110
    %s113 = sphi 0, %s112
    %s127 = sphi 0, %s113
    %s131 = sphi 0, %s131
    %s133 = sphi 0, %s131
    %s134 = sphi 0, %s133
    %s148 = sphi 0, %s134
    %s152 = sphi 0, %s152
    %s154 = sphi 0, %s152
    %s155 = sphi 0, %s154
    %s169 = sphi 0, %s155
    %s175 = sphi 0, %s177
    %s178 = sphi 0, %s175
    %s179 = sphi 0, %s178
    %s195 = sphi 0, %s179
  $region4: #{_lambda_.3} parent=0 // loop_header_branch
    %16 = sbr.rel (%p14) target = $region8
  $region5: #{_lambda_.3} parent=0 // loop_body
    %s18 = ssub.s32 %s13, 1
    %s19 = ssub.s32 %s13, 2
    %s20 = sadd.s32 %s13, 1
    %s21 = ssub.s32 %s13, %s20
    %p22 = scmp.eq.s32.totalorder %s21, 0
    %s24 = sadd.s32 %s23, 1
    %s25 = scalar_select %p22, %s23, %s24
    %p28 = pneg %p22
    %p29 = scmp.eq.s32.totalorder %s13, 1
    %p30 = por %p28, %p29
    %p31 = scmp.ne.s32.totalorder %s23, %s26
    %p32 = scmp.eq.s32.totalorder %s13, 0
    %p33 = por %p31, %p32
    %p34 = scmp.ne.s32.totalorder %s23, %s26
    %p35 = scmp.eq.s32.totalorder %s18, 1
    %p36 = por %p34, %p35
    %p37 = scmp.ne.s32.totalorder %s26, %s27
    %p38 = scmp.eq.s32.totalorder %s18, 0
    %p39 = por %p37, %p38
    %p40 = scmp.ne.s32.totalorder %s26, %s27
    %p41 = scmp.eq.s32.totalorder %s19, 1
    %p42 = por %p40, %p41
    %p44 = scmp.ne.s32.totalorder %s27, %s43
    %p45 = scmp.eq.s32.totalorder %s19, 0
    %p46 = por %p44, %p45
    %s48 = sadd.s32 %s47, 1
    %p51 = scmp.eq.s32.totalorder %s13, 1
    %p52 = scmp.ne.s32.totalorder %s47, %s49
    %p53 = scmp.eq.s32.totalorder %s13, 0
    %p54 = por %p52, %p53
    %p55 = scmp.ne.s32.totalorder %s47, %s49
    %p56 = scmp.eq.s32.totalorder %s18, 1
    %p57 = por %p55, %p56
    %p58 = scmp.ne.s32.totalorder %s49, %s50
    %p59 = scmp.eq.s32.totalorder %s18, 0
    %p60 = por %p58, %p59
    %p61 = scmp.ne.s32.totalorder %s49, %s50
    %p62 = scmp.eq.s32.totalorder %s19, 1
    %p63 = por %p61, %p62
    %p65 = scmp.ne.s32.totalorder %s50, %s64
    %p66 = scmp.eq.s32.totalorder %s19, 0
    %p67 = por %p65, %p66
    %s69 = sadd.s32 %s68, 1
    %p72 = scmp.eq.s32.totalorder %s13, 1
    %p73 = scmp.ne.s32.totalorder %s68, %s70
    %p74 = scmp.eq.s32.totalorder %s13, 0
    %p75 = por %p73, %p74
    %p76 = scmp.ne.s32.totalorder %s68, %s70
    %p77 = scmp.eq.s32.totalorder %s18, 1
    %p78 = por %p76, %p77
    %p79 = scmp.ne.s32.totalorder %s70, %s71
    %p80 = scmp.eq.s32.totalorder %s18, 0
    %p81 = por %p79, %p80
    %p82 = scmp.ne.s32.totalorder %s70, %s71
    %p83 = scmp.eq.s32.totalorder %s19, 1
    %p84 = por %p82, %p83
    %p86 = scmp.ne.s32.totalorder %s71, %s85
    %p87 = scmp.eq.s32.totalorder %s19, 0
    %p88 = por %p86, %p87
    %s90 = sadd.s32 %s89, 1
    %p93 = scmp.eq.s32.totalorder %s13, 1
    %p94 = scmp.ne.s32.totalorder %s89, %s91
    %p95 = scmp.eq.s32.totalorder %s13, 0
    %p96 = por %p94, %p95
    %p97 = scmp.ne.s32.totalorder %s89, %s91
    %p98 = scmp.eq.s32.totalorder %s18, 1
    %p99 = por %p97, %p98
    %p100 = scmp.ne.s32.totalorder %s91, %s92
    %p101 = scmp.eq.s32.totalorder %s18, 0
    %p102 = por %p100, %p101
    %p103 = scmp.ne.s32.totalorder %s91, %s92
    %p104 = scmp.eq.s32.totalorder %s19, 1
    %p105 = por %p103, %p104
    %p107 = scmp.ne.s32.totalorder %s92, %s106
    %p108 = scmp.eq.s32.totalorder %s19, 0
    %p109 = por %p107, %p108
    %s111 = sadd.s32 %s110, 1
    %p114 = scmp.eq.s32.totalorder %s13, 1
    %p115 = scmp.ne.s32.totalorder %s110, %s112
    %p116 = scmp.eq.s32.totalorder %s13, 0
    %p117 = por %p115, %p116
    %p118 = scmp.ne.s32.totalorder %s110, %s112
    %p119 = scmp.eq.s32.totalorder %s18, 1
    %p120 = por %p118, %p119
    %p121 = scmp.ne.s32.totalorder %s112, %s113
    %p122 = scmp.eq.s32.totalorder %s18, 0
    %p123 = por %p121, %p122
    %p124 = scmp.ne.s32.totalorder %s112, %s113
    %p125 = scmp.eq.s32.totalorder %s19, 1
    %p126 = por %p124, %p125
    %p128 = scmp.ne.s32.totalorder %s113, %s127
    %p129 = scmp.eq.s32.totalorder %s19, 0
    %p130 = por %p128, %p129
    %s132 = sadd.s32 %s131, 1
    %p135 = scmp.eq.s32.totalorder %s13, 1
    %p136 = scmp.ne.s32.totalorder %s131, %s133
    %p137 = scmp.eq.s32.totalorder %s13, 0
    %p138 = por %p136, %p137
    %p139 = scmp.ne.s32.totalorder %s131, %s133
    %p140 = scmp.eq.s32.totalorder %s18, 1
    %p141 = por %p139, %p140
    %p142 = scmp.ne.s32.totalorder %s133, %s134
    %p143 = scmp.eq.s32.totalorder %s18, 0
    %p144 = por %p142, %p143
    %p145 = scmp.ne.s32.totalorder %s133, %s134
    %p146 = scmp.eq.s32.totalorder %s19, 1
    %p147 = por %p145, %p146
    %p149 = scmp.ne.s32.totalorder %s134, %s148
    %p150 = scmp.eq.s32.totalorder %s19, 0
    %p151 = por %p149, %p150
    %s153 = sadd.s32 %s152, 1
    %p156 = scmp.eq.s32.totalorder %s13, 1
    %p157 = scmp.ne.s32.totalorder %s152, %s154
    %p158 = scmp.eq.s32.totalorder %s13, 0
    %p159 = por %p157, %p158
    %p160 = scmp.ne.s32.totalorder %s152, %s154
    %p161 = scmp.eq.s32.totalorder %s18, 1
    %p162 = por %p160, %p161
    %p163 = scmp.ne.s32.totalorder %s154, %s155
    %p164 = scmp.eq.s32.totalorder %s18, 0
    %p165 = por %p163, %p164
    %p166 = scmp.ne.s32.totalorder %s154, %s155
    %p167 = scmp.eq.s32.totalorder %s19, 1
    %p168 = por %p166, %p167
    %p170 = scmp.ne.s32.totalorder %s155, %s169
    %p171 = scmp.eq.s32.totalorder %s19, 0
    %p172 = por %p170, %p171
    %s173 = ssub.s32 %s13, %s20
    %p174 = scmp.eq.s32.totalorder %s173, 0
    %s176 = sadd.s32 %s175, 1
    %s177 = scalar_select %p174, %s175, %s176
    %p180 = pneg %p174
    %p181 = scmp.eq.s32.totalorder %s13, 1
    %p182 = por %p180, %p181
    %p183 = scmp.ne.s32.totalorder %s175, %s178
    %p184 = scmp.eq.s32.totalorder %s13, 0
    %p185 = por %p183, %p184
    %p186 = scmp.ne.s32.totalorder %s175, %s178
    %p187 = scmp.eq.s32.totalorder %s18, 1
    %p188 = por %p186, %p187
    %p189 = scmp.ne.s32.totalorder %s178, %s179
    %p190 = scmp.eq.s32.totalorder %s18, 0
    %p191 = por %p189, %p190
    %p192 = scmp.ne.s32.totalorder %s178, %s179
    %p193 = scmp.eq.s32.totalorder %s19, 1
    %p194 = por %p192, %p193
    %p196 = scmp.ne.s32.totalorder %s179, %s195
    %p197 = scmp.eq.s32.totalorder %s19, 0
    %p198 = por %p196, %p197
    %p199 = scmp.le.s32.totalorder 1, %s13
    %p200 = scmp.lt.s32.totalorder %s13, 3
    %p201 = pnand %p199, %p200
    %p202 = pneg %p201
    // Predicated region
    $region9: #{_lambda_.3} parent=5 // pred_check
      _
    $region10: #{_lambda_.3} parent=5 // pred_check_branch
      %204 = sbr.rel (%p201) target = $region12
    $region11: #{_lambda_.3} parent=5 // pred_region
      %s205 = ssub.s32 %s13, 1
      // Predicated region
      $region13: #{_lambda_.3} parent=11 // pred_check
        %p206 = pneg %p60
      $region14: #{_lambda_.3} parent=11 // pred_check_branch
        %208 = sbr.rel (%p206) target = $region16
      $region15: #{_lambda_.3} parent=11 // pred_region
        _
      $region16: #{_lambda_.3} parent=11 // pred_fallthru
        _
      // Predicated region
      $region17: #{_lambda_.3} parent=11 // pred_check
        %p209 = pneg %p81
      $region18: #{_lambda_.3} parent=11 // pred_check_branch
        %211 = sbr.rel (%p209) target = $region20
      $region19: #{_lambda_.3} parent=11 // pred_region
        _
      $region20: #{_lambda_.3} parent=11 // pred_fallthru
        _
      // Predicated region
      $region21: #{_lambda_.3} parent=11 // pred_check
        %p212 = pneg %p102
      $region22: #{_lambda_.3} parent=11 // pred_check_branch
        %214 = sbr.rel (%p212) target = $region24
      $region23: #{_lambda_.3} parent=11 // pred_region
        _
      $region24: #{_lambda_.3} parent=11 // pred_fallthru
        _
      // Predicated region
      $region25: #{_lambda_.3} parent=11 // pred_check
        %p215 = pneg %p123
      $region26: #{_lambda_.3} parent=11 // pred_check_branch
        %217 = sbr.rel (%p215) target = $region28
      $region27: #{_lambda_.3} parent=11 // pred_region
        _
      $region28: #{_lambda_.3} parent=11 // pred_fallthru
        _
      // Predicated region
      $region29: #{_lambda_.3} parent=11 // pred_check
        %p218 = pneg %p144
      $region30: #{_lambda_.3} parent=11 // pred_check_branch
        %220 = sbr.rel (%p218) target = $region32
      $region31: #{_lambda_.3} parent=11 // pred_region
        _
      $region32: #{_lambda_.3} parent=11 // pred_fallthru
        _
      // Predicated region
      $region33: #{_lambda_.3} parent=11 // pred_check
        %p221 = pneg %p165
      $region34: #{_lambda_.3} parent=11 // pred_check_branch
        %223 = sbr.rel (%p221) target = $region36
      $region35: #{_lambda_.3} parent=11 // pred_region
        _
      $region36: #{_lambda_.3} parent=11 // pred_fallthru
        _
    $region12: #{_lambda_.3} parent=5 // pred_fallthru
      _
    %p224 = scmp.lt.s32.totalorder %s13, 2
    // Predicated region
    $region37: #{_lambda_.3} parent=5 // pred_check
      %p225 = pneg %p224
    $region38: #{_lambda_.3} parent=5 // pred_check_branch
      %227 = sbr.rel (%p225) target = $region40
    $region39: #{_lambda_.3} parent=5 // pred_region
      // Predicated region
      $region41: #{_lambda_.3} parent=39 // pred_check
        %p228 = pneg %p33
      $region42: #{_lambda_.3} parent=39 // pred_check_branch
        %230 = sbr.rel (%p228) target = $region44
      $region43: #{_lambda_.3} parent=39 // pred_region
        %p231 = scmp.lt.s32.totalorder %s13, 1
        %s232 = scalar_select %p231, %s13, 1
        %s233 = smul.addr %s232, 8
        %s234 = smul.addr %s233, 4
        %s235 = scalar_lea.vmem %s0, %s234
      $region44: #{_lambda_.3} parent=39 // pred_fallthru
        _
    $region40: #{_lambda_.3} parent=5 // pred_fallthru
      _
    %p236 = scmp.le.s32.totalorder 1, %s13
    %p237 = scmp.lt.s32.totalorder %s13, 3
    %p238 = pnand %p236, %p237
    %p239 = pneg %p238
    // Predicated region
    $region45: #{_lambda_.3} parent=5 // pred_check
      _
    $region46: #{_lambda_.3} parent=5 // pred_check_branch
      %241 = sbr.rel (%p238) target = $region48
    $region47: #{_lambda_.3} parent=5 // pred_region
      %s242 = ssub.s32 %s13, 1
      %p243 = scmp.lt.s32.totalorder %s18, 1
      %s244 = scalar_select %p243, %s18, 1
      %s245 = smul.addr %s244, 8
      %s246 = smul.addr %s245, 4
      %s247 = scalar_lea.vmem %s0, %s246
      %p248 = pneg %p39
      %p249 = pneg %p36
      %p250 = pneg %p60
      %p251 = pneg %p57
      %p252 = pneg %p81
      %p253 = pneg %p78
      %p254 = pneg %p102
      %p255 = pneg %p99
      %p256 = pneg %p123
      %p257 = pneg %p120
      %p258 = pneg %p144
      %p259 = pneg %p141
      %p260 = pneg %p165
      %p261 = pneg %p162
      %p262 = pneg %p191
      %p263 = pneg %p188
      %p264 = scmp.lt.s32.totalorder %s18, 1
      %s265 = scalar_select %p264, %s18, 1
      %s266 = smul.addr %s265, 8
      %s267 = smul.addr %s266, 4
      %s268 = scalar_lea.vmem %s7, %s267
      %p269 = scmp.lt.s32.totalorder %s18, 1
      %s270 = scalar_select %p269, %s18, 1
      %s271 = smul.addr %s270, 8
      %s272 = smul.addr %s271, 4
      %s273 = scalar_lea.vmem %s0, %s272
      %p274 = scmp.lt.s32.totalorder %s18, 1
      %s275 = scalar_select %p274, %s18, 1
      %s276 = smul.addr %s275, 8
      %s277 = smul.addr %s276, 4
      %s278 = scalar_lea.vmem %s7, %s277
      %vm280 = vcmask 519168
      %281 = vst.msk [vmem:[#allocation2] sm:$0xf] %vm280, 0
      %vm282 = vcmask 516096
      %283 = vst.msk [vmem:[#allocation2 + $0x4] sm:$0x1] %vm282, 0
      %s284 = scalar_lea.vmem [#allocation2], 72
      %285 = vst.msk [vmem:[%s284] sm:$0xf] %vm280, 0
      %286 = vst.msk [vmem:[%s284 + $0x4] sm:$0x1] %vm282, 0
      %vm287 = vcmask 516096
      %vm288 = vsmask.f32 256
      %vm289 = vmand %vm287, %vm288
      %v290 = vld [vmem:[#allocation2] sm:$0x1]
      %v291 = vsel %vm289, 0, %v290
      %292 = vst [vmem:[#allocation2] sm:$0x1] %v291
      %v293 = vld [vmem:[#allocation2 + $0x8] sm:$0x1]
      %v294 = vsel %vm289, 0, %v293
      %295 = vst [vmem:[#allocation2 + $0x8] sm:$0x1] %v294
      %v296 = vld [vmem:[#allocation2 + $0x10] sm:$0x1]
      %v297 = vsel %vm289, 0, %v296
      %298 = vst [vmem:[#allocation2 + $0x10] sm:$0x1] %v297
      %v299 = vld [vmem:[#allocation2 + $0x18] sm:$0x1]
      %v300 = vsel %vm289, 0, %v299
      %301 = vst [vmem:[#allocation2 + $0x18] sm:$0x1] %v300
      %v302 = vld [vmem:[#allocation2 + $0x20] sm:$0x1]
      %v303 = vsel %vm289, 0, %v302
      %304 = vst [vmem:[#allocation2 + $0x20] sm:$0x1] %v303
      %v305 = vld [vmem:[#allocation2 + $0x28] sm:$0x1]
      %v306 = vsel %vm289, 0, %v305
      %307 = vst [vmem:[#allocation2 + $0x28] sm:$0x1] %v306
      %v308 = vld [vmem:[#allocation2 + $0x30] sm:$0x1]
      %v309 = vsel %vm289, 0, %v308
      %310 = vst [vmem:[#allocation2 + $0x30] sm:$0x1] %v309
      %v311 = vld [vmem:[#allocation2 + $0x38] sm:$0x1]
      %v312 = vsel %vm289, 0, %v311
      %313 = vst [vmem:[#allocation2 + $0x38] sm:$0x1] %v312
      %v314 = vld [vmem:[#allocation2 + $0x40] sm:$0x1]
      %v315 = vsel %vm289, 0, %v314
      %316 = vst [vmem:[#allocation2 + $0x40] sm:$0x1] %v315
      %v317 = vld [vmem:[#allocation2 + $0x48] sm:$0x1]
      %v318 = vsel %vm289, 0, %v317
      %319 = vst [vmem:[#allocation2 + $0x48] sm:$0x1] %v318
      %vm320 = vsmask.f32 7938
      %vm321 = vmand %vm287, %vm320
      %v322 = vld [vmem:[#allocation2 + $0x4] sm:$0x1]
      %v323 = vsel %vm321, 0, %v322
      %324 = vst [vmem:[#allocation2 + $0x4] sm:$0x1] %v323
      %v325 = vld [vmem:[#allocation2 + $0xc] sm:$0x1]
      %v326 = vsel %vm321, 0, %v325
      %327 = vst [vmem:[#allocation2 + $0xc] sm:$0x1] %v326
      %v328 = vld [vmem:[#allocation2 + $0x14] sm:$0x1]
      %v329 = vsel %vm321, 0, %v328
      %330 = vst [vmem:[#allocation2 + $0x14] sm:$0x1] %v329
      %v331 = vld [vmem:[#allocation2 + $0x1c] sm:$0x1]
      %v332 = vsel %vm321, 0, %v331
      %333 = vst [vmem:[#allocation2 + $0x1c] sm:$0x1] %v332
      %v334 = vld [vmem:[#allocation2 + $0x24] sm:$0x1]
      %v335 = vsel %vm321, 0, %v334
      %336 = vst [vmem:[#allocation2 + $0x24] sm:$0x1] %v335
      %v337 = vld [vmem:[#allocation2 + $0x2c] sm:$0x1]
      %v338 = vsel %vm321, 0, %v337
      %339 = vst [vmem:[#allocation2 + $0x2c] sm:$0x1] %v338
      %v340 = vld [vmem:[#allocation2 + $0x34] sm:$0x1]
      %v341 = vsel %vm321, 0, %v340
      %342 = vst [vmem:[#allocation2 + $0x34] sm:$0x1] %v341
      %v343 = vld [vmem:[#allocation2 + $0x3c] sm:$0x1]
      %v344 = vsel %vm321, 0, %v343
      %345 = vst [vmem:[#allocation2 + $0x3c] sm:$0x1] %v344
      %v346 = vld [vmem:[#allocation2 + $0x44] sm:$0x1]
      %v347 = vsel %vm321, 0, %v346
      %348 = vst [vmem:[#allocation2 + $0x44] sm:$0x1] %v347
      %v349 = vld [vmem:[#allocation2 + $0x4c] sm:$0x1]
      %v350 = vsel %vm321, 0, %v349
      %351 = vst [vmem:[#allocation2 + $0x4c] sm:$0x1] %v350
      %v352 = vld [vmem:[%s273] sm:$0xf]
      %v353 = vld [vmem:[%s273 + $0x4] sm:$0xf]
      %v354 = vld [vmem:[%s273 + $0x8] sm:$0xf]
      %v355 = vld [vmem:[%s273 + $0xc] sm:$0xf]
      %v356 = vld [vmem:[%s273 + $0x10] sm:$0xf]
      %v357 = vld [vmem:[%s273 + $0x14] sm:$0xf]
      %v358 = vld [vmem:[%s273 + $0x18] sm:$0xf]
      %v359 = vld [vmem:[%s273 + $0x1c] sm:$0xf]
      %v361 = vshrl.u32 %v352, 16
      %v363 = vrot.slane %v361, 7
      %v364 = vshll.u32 %v352, 16
      %v366 = vor.u32 %v363, %v364
      %v367 = vrot.slane %v363, 4
      %v369 = vshrl.u32 %v353, 16
      %v371 = vrot.slane %v369, 7
      %v372 = vshll.u32 %v353, 16
      %v374 = vor.u32 %v371, %v372
      %v375 = vrot.slane %v371, 4
      %v377 = vshrl.u32 %v354, 16
      %v379 = vrot.slane %v377, 7
      %v380 = vshll.u32 %v354, 16
      %v382 = vor.u32 %v379, %v380
      %v383 = vrot.slane %v379, 4
      %v385 = vshrl.u32 %v355, 16
      %v387 = vrot.slane %v385, 7
      %v388 = vshll.u32 %v355, 16
      %v390 = vor.u32 %v387, %v388
      %v391 = vrot.slane %v387, 4
      %v393 = vshrl.u32 %v356, 16
      %v395 = vrot.slane %v393, 7
      %v396 = vshll.u32 %v356, 16
      %v398 = vor.u32 %v395, %v396
      %v399 = vrot.slane %v395, 4
      %v401 = vshrl.u32 %v357, 16
      %v403 = vrot.slane %v401, 7
      %v404 = vshll.u32 %v357, 16
      %v406 = vor.u32 %v403, %v404
      %v407 = vrot.slane %v403, 4
      %v409 = vshrl.u32 %v358, 16
      %v411 = vrot.slane %v409, 7
      %v412 = vshll.u32 %v358, 16
      %v414 = vor.u32 %v411, %v412
      %v415 = vrot.slane %v411, 4
      %v417 = vshrl.u32 %v359, 16
      %v419 = vrot.slane %v417, 7
      %v420 = vshll.u32 %v359, 16
      %v422 = vor.u32 %v419, %v420
      %v423 = vrot.slane %v419, 4
      %s440 = scalar_lea.vmem [#allocation2], 8
      %vm441 = vcmask 519168
      %vm442 = vmand %vm441, %vm320
      %v443 = vld [vmem:[%s440] sm:$0xf]
      %v444 = vsel %vm442, %v366, %v443
      %445 = vst [vmem:[%s440] sm:$0xf] %v444
      %v446 = vld [vmem:[%s440 + $0x4] sm:$0x1]
      %v447 = vsel %vm289, %v367, %v446
      %448 = vst [vmem:[%s440 + $0x4] sm:$0x1] %v447
      %v449 = vld [vmem:[%s440 + $0x8] sm:$0xf]
      %v450 = vsel %vm442, %v374, %v449
      %451 = vst [vmem:[%s440 + $0x8] sm:$0xf] %v450
      %v452 = vld [vmem:[%s440 + $0xc] sm:$0x1]
      %v453 = vsel %vm289, %v375, %v452
      %454 = vst [vmem:[%s440 + $0xc] sm:$0x1] %v453
      %v455 = vld [vmem:[%s440 + $0x10] sm:$0xf]
      %v456 = vsel %vm442, %v382, %v455
      %457 = vst [vmem:[%s440 + $0x10] sm:$0xf] %v456
      %v458 = vld [vmem:[%s440 + $0x14] sm:$0x1]
      %v459 = vsel %vm289, %v383, %v458
      %460 = vst [vmem:[%s440 + $0x14] sm:$0x1] %v459
      %v461 = vld [vmem:[%s440 + $0x18] sm:$0xf]
      %v462 = vsel %vm442, %v390, %v461
      %463 = vst [vmem:[%s440 + $0x18] sm:$0xf] %v462
      %v464 = vld [vmem:[%s440 + $0x1c] sm:$0x1]
      %v465 = vsel %vm289, %v391, %v464
      %466 = vst [vmem:[%s440 + $0x1c] sm:$0x1] %v465
      %v467 = vld [vmem:[%s440 + $0x20] sm:$0xf]
      %v468 = vsel %vm442, %v398, %v467
      %469 = vst [vmem:[%s440 + $0x20] sm:$0xf] %v468
      %v470 = vld [vmem:[%s440 + $0x24] sm:$0x1]
      %v471 = vsel %vm289, %v399, %v470
      %472 = vst [vmem:[%s440 + $0x24] sm:$0x1] %v471
      %v473 = vld [vmem:[%s440 + $0x28] sm:$0xf]
      %v474 = vsel %vm442, %v406, %v473
      %475 = vst [vmem:[%s440 + $0x28] sm:$0xf] %v474
      %v476 = vld [vmem:[%s440 + $0x2c] sm:$0x1]
      %v477 = vsel %vm289, %v407, %v476
      %478 = vst [vmem:[%s440 + $0x2c] sm:$0x1] %v477
      %v479 = vld [vmem:[%s440 + $0x30] sm:$0xf]
      %v480 = vsel %vm442, %v414, %v479
      %481 = vst [vmem:[%s440 + $0x30] sm:$0xf] %v480
      %v482 = vld [vmem:[%s440 + $0x34] sm:$0x1]
      %v483 = vsel %vm289, %v415, %v482
      %484 = vst [vmem:[%s440 + $0x34] sm:$0x1] %v483
      %v485 = vld [vmem:[%s440 + $0x38] sm:$0xf]
      %v486 = vsel %vm442, %v422, %v485
      %487 = vst [vmem:[%s440 + $0x38] sm:$0xf] %v486
      %v488 = vld [vmem:[%s440 + $0x3c] sm:$0x1]
      %v489 = vsel %vm289, %v423, %v488
      %490 = vst [vmem:[%s440 + $0x3c] sm:$0x1] %v489
      %v491 = vld [vmem:[#allocation2] sm:$0xf]
      %v492 = vld [vmem:[#allocation2 + $0x8] sm:$0xf]
      %v493 = vld [vmem:[#allocation2 + $0x10] sm:$0xf]
      %v494 = vld [vmem:[#allocation2 + $0x18] sm:$0xf]
      %v495 = vld [vmem:[#allocation2 + $0x20] sm:$0xf]
      %v496 = vld [vmem:[#allocation2 + $0x28] sm:$0xf]
      %v497 = vld [vmem:[#allocation2 + $0x30] sm:$0xf]
      %v498 = vld [vmem:[#allocation2 + $0x38] sm:$0xf]
      %v507 = vunpack.c.l.b16 %v491
      %v508 = vunpack.c.l.b16 %v492
      %v509 = vunpack.c.l.b16 %v493
      %v510 = vunpack.c.l.b16 %v494
      %v511 = vunpack.c.l.b16 %v495
      %v512 = vunpack.c.l.b16 %v496
      %v513 = vunpack.c.l.b16 %v497
      %v514 = vunpack.c.l.b16 %v498
      %v515 = vpack.c.b16 %v508, %v507
      %v516 = vpack.c.b16 %v510, %v509
      %v517 = vpack.c.b16 %v512, %v511
      %v518 = vpack.c.b16 %v514, %v513
      %vm523 = vcmask 523264
      %524 = vst.msk [vmem:[#allocation4] sm:$0xff] %vm523, %v515
      %525 = vst.msk [vmem:[#allocation4 + $0x28] sm:$0xff] %vm523, %v516
      %526 = vst.msk [vmem:[#allocation4 + $0x50] sm:$0xff] %vm523, %v517
      %527 = vst.msk [vmem:[#allocation4 + $0x78] sm:$0xff] %vm523, %v518
      %v528 = vld [vmem:[#allocation2] sm:$0xf]
      %v529 = vld [vmem:[#allocation2 + $0x4] sm:$0x1]
      %v530 = vld [vmem:[#allocation2 + $0x8] sm:$0xf]
      %v531 = vld [vmem:[#allocation2 + $0xc] sm:$0x1]
      %v532 = vld [vmem:[#allocation2 + $0x10] sm:$0xf]
      %v533 = vld [vmem:[#allocation2 + $0x14] sm:$0x1]
      %v534 = vld [vmem:[#allocation2 + $0x18] sm:$0xf]
      %v535 = vld [vmem:[#allocation2 + $0x1c] sm:$0x1]
      %v536 = vld [vmem:[#allocation2 + $0x20] sm:$0xf]
      %v537 = vld [vmem:[#allocation2 + $0x24] sm:$0x1]
      %v538 = vld [vmem:[#allocation2 + $0x28] sm:$0xf]
      %v539 = vld [vmem:[#allocation2 + $0x2c] sm:$0x1]
      %v540 = vld [vmem:[#allocation2 + $0x30] sm:$0xf]
      %v541 = vld [vmem:[#allocation2 + $0x34] sm:$0x1]
      %v542 = vld [vmem:[#allocation2 + $0x38] sm:$0xf]
      %v543 = vld [vmem:[#allocation2 + $0x3c] sm:$0x1]
      %vm544 = vsmask.f32 3328
      %vm545 = vsmask.f32 7440
      %vm546 = vmor %vm544, %vm545
      %v548 = vshrl.u32 %v528, 16
      %v550 = vrot.slane %v548, 4
      %v551 = vshll.u32 %v528, 16
      %v553 = vrot.slane %v551, 5
      %v554 = vor.u32 %v550, %v553
      %v555 = vrot.slane %v554, 4
      %v557 = vshll.u32 %v529, 16
      %v559 = vrot.slane %v557, 5
      %v560 = vsel %vm546, %v555, %v559
      %v562 = vshrl.u32 %v530, 16
      %v564 = vrot.slane %v562, 4
      %v565 = vshll.u32 %v530, 16
      %v567 = vrot.slane %v565, 5
      %v568 = vor.u32 %v564, %v567
      %v569 = vrot.slane %v568, 4
      %v571 = vshll.u32 %v531, 16
      %v573 = vrot.slane %v571, 5
      %v574 = vsel %vm546, %v569, %v573
      %v576 = vshrl.u32 %v532, 16
      %v578 = vrot.slane %v576, 4
      %v579 = vshll.u32 %v532, 16
      %v581 = vrot.slane %v579, 5
      %v582 = vor.u32 %v578, %v581
      %v583 = vrot.slane %v582, 4
      %v585 = vshll.u32 %v533, 16
      %v587 = vrot.slane %v585, 5
      %v588 = vsel %vm546, %v583, %v587
      %v590 = vshrl.u32 %v534, 16
      %v592 = vrot.slane %v590, 4
      %v593 = vshll.u32 %v534, 16
      %v595 = vrot.slane %v593, 5
      %v596 = vor.u32 %v592, %v595
      %v597 = vrot.slane %v596, 4
      %v599 = vshll.u32 %v535, 16
      %v601 = vrot.slane %v599, 5
      %v602 = vsel %vm546, %v597, %v601
      %v604 = vshrl.u32 %v536, 16
      %v606 = vrot.slane %v604, 4
      %v607 = vshll.u32 %v536, 16
      %v609 = vrot.slane %v607, 5
      %v610 = vor.u32 %v606, %v609
      %v611 = vrot.slane %v610, 4
      %v613 = vshll.u32 %v537, 16
      %v615 = vrot.slane %v613, 5
      %v616 = vsel %vm546, %v611, %v615
      %v618 = vshrl.u32 %v538, 16
      %v620 = vrot.slane %v618, 4
      %v621 = vshll.u32 %v538, 16
      %v623 = vrot.slane %v621, 5
      %v624 = vor.u32 %v620, %v623
      %v625 = vrot.slane %v624, 4
      %v627 = vshll.u32 %v539, 16
      %v629 = vrot.slane %v627, 5
      %v630 = vsel %vm546, %v625, %v629
      %v632 = vshrl.u32 %v540, 16
      %v634 = vrot.slane %v632, 4
      %v635 = vshll.u32 %v540, 16
      %v637 = vrot.slane %v635, 5
      %v638 = vor.u32 %v634, %v637
      %v639 = vrot.slane %v638, 4
      %v641 = vshll.u32 %v541, 16
      %v643 = vrot.slane %v641, 5
      %v644 = vsel %vm546, %v639, %v643
      %v646 = vshrl.u32 %v542, 16
      %v648 = vrot.slane %v646, 4
      %v649 = vshll.u32 %v542, 16
      %v651 = vrot.slane %v649, 5
      %v652 = vor.u32 %v648, %v651
      %v653 = vrot.slane %v652, 4
      %v655 = vshll.u32 %v543, 16
      %v657 = vrot.slane %v655, 5
      %v658 = vsel %vm546, %v653, %v657
      %v659 = vunpack.c.l.b16 %v560
      %v660 = vunpack.c.l.b16 %v574
      %v661 = vunpack.c.l.b16 %v588
      %v662 = vunpack.c.l.b16 %v602
      %v663 = vunpack.c.l.b16 %v616
      %v664 = vunpack.c.l.b16 %v630
      %v665 = vunpack.c.l.b16 %v644
      %v666 = vunpack.c.l.b16 %v658
      %v667 = vpack.c.b16 %v660, %v659
      %v668 = vpack.c.b16 %v662, %v661
      %v669 = vpack.c.b16 %v664, %v663
      %v670 = vpack.c.b16 %v666, %v665
      %671 = vrot.lane.b32.xlu0 %v667, 64
      %v672 = vpop.permute.xlu0 %671
      %673 = vrot.lane.b32.xlu0 %v668, 64
      %v674 = vpop.permute.xlu0 %673
      %675 = vrot.lane.b32.xlu0 %v669, 64
      %v676 = vpop.permute.xlu0 %675
      %677 = vrot.lane.b32.xlu0 %v670, 64
      %v678 = vpop.permute.xlu0 %677
      %vm683 = vcmask 1048064
      %684 = vst.msk [vmem:[#allocation4] sm:$0xff] %vm683, %v672
      %685 = vst.msk [vmem:[#allocation4 + $0x28] sm:$0xff] %vm683, %v674
      %686 = vst.msk [vmem:[#allocation4 + $0x50] sm:$0xff] %vm683, %v676
      %687 = vst.msk [vmem:[#allocation4 + $0x78] sm:$0xff] %vm683, %v678
      %v688 = vld [vmem:[#allocation2] sm:$0xe]
      %v689 = vld [vmem:[#allocation2 + $0x4] sm:$0x1]
      %v690 = vld [vmem:[#allocation2 + $0x8] sm:$0xe]
      %v691 = vld [vmem:[#allocation2 + $0xc] sm:$0x1]
      %v692 = vld [vmem:[#allocation2 + $0x10] sm:$0xe]
      %v693 = vld [vmem:[#allocation2 + $0x14] sm:$0x1]
      %v694 = vld [vmem:[#allocation2 + $0x18] sm:$0xe]
      %v695 = vld [vmem:[#allocation2 + $0x1c] sm:$0x1]
      %v696 = vld [vmem:[#allocation2 + $0x20] sm:$0xe]
      %v697 = vld [vmem:[#allocation2 + $0x24] sm:$0x1]
      %v698 = vld [vmem:[#allocation2 + $0x28] sm:$0xe]
      %v699 = vld [vmem:[#allocation2 + $0x2c] sm:$0x1]
      %v700 = vld [vmem:[#allocation2 + $0x30] sm:$0xe]
      %v701 = vld [vmem:[#allocation2 + $0x34] sm:$0x1]
      %v702 = vld [vmem:[#allocation2 + $0x38] sm:$0xe]
      %v703 = vld [vmem:[#allocation2 + $0x3c] sm:$0x1]
      %vm720 = vcmask 1042432
      %vm721 = vcmask 1046532
      %vm722 = vmor %vm720, %vm721
      %v723 = vrot.slane %v688, 5
      %v724 = vrot.slane %v723, 4
      %v725 = vrot.slane %v689, 5
      %v726 = vsel %vm722, %v724, %v725
      %v727 = vrot.slane %v690, 5
      %v728 = vrot.slane %v727, 4
      %v729 = vrot.slane %v691, 5
      %v730 = vsel %vm722, %v728, %v729
      %v731 = vrot.slane %v692, 5
      %v732 = vrot.slane %v731, 4
      %v733 = vrot.slane %v693, 5
      %v734 = vsel %vm722, %v732, %v733
      %v735 = vrot.slane %v694, 5
      %v736 = vrot.slane %v735, 4
      %v737 = vrot.slane %v695, 5
      %v738 = vsel %vm722, %v736, %v737
      %v739 = vrot.slane %v696, 5
      %v740 = vrot.slane %v739, 4
      %v741 = vrot.slane %v697, 5
      %v742 = vsel %vm722, %v740, %v741
      %v743 = vrot.slane %v698, 5
      %v744 = vrot.slane %v743, 4
      %v745 = vrot.slane %v699, 5
      %v746 = vsel %vm722, %v744, %v745
      %v747 = vrot.slane %v700, 5
      %v748 = vrot.slane %v747, 4
      %v749 = vrot.slane %v701, 5
      %v750 = vsel %vm722, %v748, %v749
      %v751 = vrot.slane %v702, 5
      %v752 = vrot.slane %v751, 4
      %v753 = vrot.slane %v703, 5
      %v754 = vsel %vm722, %v752, %v753
      %v755 = vunpack.c.l.b16 %v726
      %v756 = vunpack.c.l.b16 %v730
      %v757 = vunpack.c.l.b16 %v734
      %v758 = vunpack.c.l.b16 %v738
      %v759 = vunpack.c.l.b16 %v742
      %v760 = vunpack.c.l.b16 %v746
      %v761 = vunpack.c.l.b16 %v750
      %v762 = vunpack.c.l.b16 %v754
      %v763 = vpack.c.b16 %v756, %v755
      %v764 = vpack.c.b16 %v758, %v757
      %v765 = vpack.c.b16 %v760, %v759
      %v766 = vpack.c.b16 %v762, %v761
      %771 = vst.msk [vmem:[#allocation4 + $0x8] sm:$0xff] %vm523, %v763
      %772 = vst.msk [vmem:[#allocation4 + $0x30] sm:$0xff] %vm523, %v764
      %773 = vst.msk [vmem:[#allocation4 + $0x58] sm:$0xff] %vm523, %v765
      %774 = vst.msk [vmem:[#allocation4 + $0x80] sm:$0xff] %vm523, %v766
      %v775 = vld [vmem:[%s440] sm:$0xf]
      %v776 = vld [vmem:[%s440 + $0x8] sm:$0xf]
      %v777 = vld [vmem:[%s440 + $0x10] sm:$0xf]
      %v778 = vld [vmem:[%s440 + $0x18] sm:$0xf]
      %v779 = vld [vmem:[%s440 + $0x20] sm:$0xf]
      %v780 = vld [vmem:[%s440 + $0x28] sm:$0xf]
      %v781 = vld [vmem:[%s440 + $0x30] sm:$0xf]
      %v782 = vld [vmem:[%s440 + $0x38] sm:$0xf]
      %v791 = vunpack.c.l.b16 %v775
      %v792 = vunpack.c.l.b16 %v776
      %v793 = vunpack.c.l.b16 %v777
      %v794 = vunpack.c.l.b16 %v778
      %v795 = vunpack.c.l.b16 %v779
      %v796 = vunpack.c.l.b16 %v780
      %v797 = vunpack.c.l.b16 %v781
      %v798 = vunpack.c.l.b16 %v782
      %v799 = vpack.c.b16 %v792, %v791
      %v800 = vpack.c.b16 %v794, %v793
      %v801 = vpack.c.b16 %v796, %v795
      %v802 = vpack.c.b16 %v798, %v797
      %803 = vrot.lane.b32.xlu0 %v799, 64
      %v804 = vpop.permute.xlu0 %803
      %805 = vrot.lane.b32.xlu0 %v800, 64
      %v806 = vpop.permute.xlu0 %805
      %807 = vrot.lane.b32.xlu0 %v801, 64
      %v808 = vpop.permute.xlu0 %807
      %809 = vrot.lane.b32.xlu0 %v802, 64
      %v810 = vpop.permute.xlu0 %809
      %815 = vst.msk [vmem:[#allocation4 + $0x8] sm:$0xff] %vm683, %v804
      %816 = vst.msk [vmem:[#allocation4 + $0x30] sm:$0xff] %vm683, %v806
      %817 = vst.msk [vmem:[#allocation4 + $0x58] sm:$0xff] %vm683, %v808
      %818 = vst.msk [vmem:[#allocation4 + $0x80] sm:$0xff] %vm683, %v810
      %v819 = vld [vmem:[%s440] sm:$0xf]
      %v820 = vld [vmem:[%s440 + $0x4] sm:$0x1]
      %v821 = vld [vmem:[%s440 + $0x8] sm:$0xf]
      %v822 = vld [vmem:[%s440 + $0xc] sm:$0x1]
      %v823 = vld [vmem:[%s440 + $0x10] sm:$0xf]
      %v824 = vld [vmem:[%s440 + $0x14] sm:$0x1]
      %v825 = vld [vmem:[%s440 + $0x18] sm:$0xf]
      %v826 = vld [vmem:[%s440 + $0x1c] sm:$0x1]
      %v827 = vld [vmem:[%s440 + $0x20] sm:$0xf]
      %v828 = vld [vmem:[%s440 + $0x24] sm:$0x1]
      %v829 = vld [vmem:[%s440 + $0x28] sm:$0xf]
      %v830 = vld [vmem:[%s440 + $0x2c] sm:$0x1]
      %v831 = vld [vmem:[%s440 + $0x30] sm:$0xf]
      %v832 = vld [vmem:[%s440 + $0x34] sm:$0x1]
      %v833 = vld [vmem:[%s440 + $0x38] sm:$0xf]
      %v834 = vld [vmem:[%s440 + $0x3c] sm:$0x1]
      %v836 = vshrl.u32 %v819, 16
      %v838 = vrot.slane %v836, 4
      %v839 = vshll.u32 %v819, 16
      %v841 = vrot.slane %v839, 5
      %v842 = vor.u32 %v838, %v841
      %v843 = vrot.slane %v842, 4
      %v845 = vshll.u32 %v820, 16
      %v847 = vrot.slane %v845, 5
      %v848 = vsel %vm546, %v843, %v847
      %v850 = vshrl.u32 %v821, 16
      %v852 = vrot.slane %v850, 4
      %v853 = vshll.u32 %v821, 16
      %v855 = vrot.slane %v853, 5
      %v856 = vor.u32 %v852, %v855
      %v857 = vrot.slane %v856, 4
      %v859 = vshll.u32 %v822, 16
      %v861 = vrot.slane %v859, 5
      %v862 = vsel %vm546, %v857, %v861
      %v864 = vshrl.u32 %v823, 16
      %v866 = vrot.slane %v864, 4
      %v867 = vshll.u32 %v823, 16
      %v869 = vrot.slane %v867, 5
      %v870 = vor.u32 %v866, %v869
      %v871 = vrot.slane %v870, 4
      %v873 = vshll.u32 %v824, 16
      %v875 = vrot.slane %v873, 5
      %v876 = vsel %vm546, %v871, %v875
      %v878 = vshrl.u32 %v825, 16
      %v880 = vrot.slane %v878, 4
      %v881 = vshll.u32 %v825, 16
      %v883 = vrot.slane %v881, 5
      %v884 = vor.u32 %v880, %v883
      %v885 = vrot.slane %v884, 4
      %v887 = vshll.u32 %v826, 16
      %v889 = vrot.slane %v887, 5
      %v890 = vsel %vm546, %v885, %v889
      %v892 = vshrl.u32 %v827, 16
      %v894 = vrot.slane %v892, 4
      %v895 = vshll.u32 %v827, 16
      %v897 = vrot.slane %v895, 5
      %v898 = vor.u32 %v894, %v897
      %v899 = vrot.slane %v898, 4
      %v901 = vshll.u32 %v828, 16
      %v903 = vrot.slane %v901, 5
      %v904 = vsel %vm546, %v899, %v903
      %v906 = vshrl.u32 %v829, 16
      %v908 = vrot.slane %v906, 4
      %v909 = vshll.u32 %v829, 16
      %v911 = vrot.slane %v909, 5
      %v912 = vor.u32 %v908, %v911
      %v913 = vrot.slane %v912, 4
      %v915 = vshll.u32 %v830, 16
      %v917 = vrot.slane %v915, 5
      %v918 = vsel %vm546, %v913, %v917
      %v920 = vshrl.u32 %v831, 16
      %v922 = vrot.slane %v920, 4
      %v923 = vshll.u32 %v831, 16
      %v925 = vrot.slane %v923, 5
      %v926 = vor.u32 %v922, %v925
      %v927 = vrot.slane %v926, 4
      %v929 = vshll.u32 %v832, 16
      %v931 = vrot.slane %v929, 5
      %v932 = vsel %vm546, %v927, %v931
      %v934 = vshrl.u32 %v833, 16
      %v936 = vrot.slane %v934, 4
      %v937 = vshll.u32 %v833, 16
      %v939 = vrot.slane %v937, 5
      %v940 = vor.u32 %v936, %v939
      %v941 = vrot.slane %v940, 4
      %v943 = vshll.u32 %v834, 16
      %v945 = vrot.slane %v943, 5
      %v946 = vsel %vm546, %v941, %v945
      %v947 = vunpack.c.l.b16 %v848
      %v948 = vunpack.c.l.b16 %v862
      %v949 = vunpack.c.l.b16 %v876
      %v950 = vunpack.c.l.b16 %v890
      %v951 = vunpack.c.l.b16 %v904
      %v952 = vunpack.c.l.b16 %v918
      %v953 = vunpack.c.l.b16 %v932
      %v954 = vunpack.c.l.b16 %v946
      %v955 = vpack.c.b16 %v948, %v947
      %v956 = vpack.c.b16 %v950, %v949
      %v957 = vpack.c.b16 %v952, %v951
      %v958 = vpack.c.b16 %v954, %v953
      %963 = vst.msk [vmem:[#allocation4 + $0x10] sm:$0xff] %vm523, %v955
      %964 = vst.msk [vmem:[#allocation4 + $0x38] sm:$0xff] %vm523, %v956
      %965 = vst.msk [vmem:[#allocation4 + $0x60] sm:$0xff] %vm523, %v957
      %966 = vst.msk [vmem:[#allocation4 + $0x88] sm:$0xff] %vm523, %v958
      %v967 = vld [vmem:[%s440] sm:$0xe]
      %v968 = vld [vmem:[%s440 + $0x4] sm:$0x1]
      %v969 = vld [vmem:[%s440 + $0x8] sm:$0xe]
      %v970 = vld [vmem:[%s440 + $0xc] sm:$0x1]
      %v971 = vld [vmem:[%s440 + $0x10] sm:$0xe]
      %v972 = vld [vmem:[%s440 + $0x14] sm:$0x1]
      %v973 = vld [vmem:[%s440 + $0x18] sm:$0xe]
      %v974 = vld [vmem:[%s440 + $0x1c] sm:$0x1]
      %v975 = vld [vmem:[%s440 + $0x20] sm:$0xe]
      %v976 = vld [vmem:[%s440 + $0x24] sm:$0x1]
      %v977 = vld [vmem:[%s440 + $0x28] sm:$0xe]
      %v978 = vld [vmem:[%s440 + $0x2c] sm:$0x1]
      %v979 = vld [vmem:[%s440 + $0x30] sm:$0xe]
      %v980 = vld [vmem:[%s440 + $0x34] sm:$0x1]
      %v981 = vld [vmem:[%s440 + $0x38] sm:$0xe]
      %v982 = vld [vmem:[%s440 + $0x3c] sm:$0x1]
      %v999 = vrot.slane %v967, 5
      %v1000 = vrot.slane %v999, 4
      %v1001 = vrot.slane %v968, 5
      %v1002 = vsel %vm722, %v1000, %v1001
      %v1003 = vrot.slane %v969, 5
      %v1004 = vrot.slane %v1003, 4
      %v1005 = vrot.slane %v970, 5
      %v1006 = vsel %vm722, %v1004, %v1005
      %v1007 = vrot.slane %v971, 5
      %v1008 = vrot.slane %v1007, 4
      %v1009 = vrot.slane %v972, 5
      %v1010 = vsel %vm722, %v1008, %v1009
      %v1011 = vrot.slane %v973, 5
      %v1012 = vrot.slane %v1011, 4
      %v1013 = vrot.slane %v974, 5
      %v1014 = vsel %vm722, %v1012, %v1013
      %v1015 = vrot.slane %v975, 5
      %v1016 = vrot.slane %v1015, 4
      %v1017 = vrot.slane %v976, 5
      %v1018 = vsel %vm722, %v1016, %v1017
      %v1019 = vrot.slane %v977, 5
      %v1020 = vrot.slane %v1019, 4
      %v1021 = vrot.slane %v978, 5
      %v1022 = vsel %vm722, %v1020, %v1021
      %v1023 = vrot.slane %v979, 5
      %v1024 = vrot.slane %v1023, 4
      %v1025 = vrot.slane %v980, 5
      %v1026 = vsel %vm722, %v1024, %v1025
      %v1027 = vrot.slane %v981, 5
      %v1028 = vrot.slane %v1027, 4
      %v1029 = vrot.slane %v982, 5
      %v1030 = vsel %vm722, %v1028, %v1029
      %v1031 = vunpack.c.l.b16 %v1002
      %v1032 = vunpack.c.l.b16 %v1006
      %v1033 = vunpack.c.l.b16 %v1010
      %v1034 = vunpack.c.l.b16 %v1014
      %v1035 = vunpack.c.l.b16 %v1018
      %v1036 = vunpack.c.l.b16 %v1022
      %v1037 = vunpack.c.l.b16 %v1026
      %v1038 = vunpack.c.l.b16 %v1030
      %v1039 = vpack.c.b16 %v1032, %v1031
      %v1040 = vpack.c.b16 %v1034, %v1033
      %v1041 = vpack.c.b16 %v1036, %v1035
      %v1042 = vpack.c.b16 %v1038, %v1037
      %1043 = vrot.lane.b32.xlu0 %v1039, 64
      %v1044 = vpop.permute.xlu0 %1043
      %1045 = vrot.lane.b32.xlu0 %v1040, 64
      %v1046 = vpop.permute.xlu0 %1045
      %1047 = vrot.lane.b32.xlu0 %v1041, 64
      %v1048 = vpop.permute.xlu0 %1047
      %1049 = vrot.lane.b32.xlu0 %v1042, 64
      %v1050 = vpop.permute.xlu0 %1049
      %1055 = vst.msk [vmem:[#allocation4 + $0x10] sm:$0xff] %vm683, %v1044
      %1056 = vst.msk [vmem:[#allocation4 + $0x38] sm:$0xff] %vm683, %v1046
      %1057 = vst.msk [vmem:[#allocation4 + $0x60] sm:$0xff] %vm683, %v1048
      %1058 = vst.msk [vmem:[#allocation4 + $0x88] sm:$0xff] %vm683, %v1050
      %s1059 = scalar_lea.vmem [#allocation2], 16
      %v1060 = vld [vmem:[%s1059] sm:$0xf]
      %v1061 = vld [vmem:[%s1059 + $0x8] sm:$0xf]
      %v1062 = vld [vmem:[%s1059 + $0x10] sm:$0xf]
      %v1063 = vld [vmem:[%s1059 + $0x18] sm:$0xf]
      %v1064 = vld [vmem:[%s1059 + $0x20] sm:$0xf]
      %v1065 = vld [vmem:[%s1059 + $0x28] sm:$0xf]
      %v1066 = vld [vmem:[%s1059 + $0x30] sm:$0xf]
      %v1067 = vld [vmem:[%s1059 + $0x38] sm:$0xf]
      %v1076 = vunpack.c.l.b16 %v1060
      %v1077 = vunpack.c.l.b16 %v1061
      %v1078 = vunpack.c.l.b16 %v1062
      %v1079 = vunpack.c.l.b16 %v1063
      %v1080 = vunpack.c.l.b16 %v1064
      %v1081 = vunpack.c.l.b16 %v1065
      %v1082 = vunpack.c.l.b16 %v1066
      %v1083 = vunpack.c.l.b16 %v1067
      %v1084 = vpack.c.b16 %v1077, %v1076
      %v1085 = vpack.c.b16 %v1079, %v1078
      %v1086 = vpack.c.b16 %v1081, %v1080
      %v1087 = vpack.c.b16 %v1083, %v1082
      %1092 = vst.msk [vmem:[#allocation4 + $0x18] sm:$0xff] %vm523, %v1084
      %1093 = vst.msk [vmem:[#allocation4 + $0x40] sm:$0xff] %vm523, %v1085
      %1094 = vst.msk [vmem:[#allocation4 + $0x68] sm:$0xff] %vm523, %v1086
      %1095 = vst.msk [vmem:[#allocation4 + $0x90] sm:$0xff] %vm523, %v1087
      %v1096 = vld [vmem:[%s1059] sm:$0xf]
      %v1097 = vld [vmem:[%s1059 + $0x4] sm:$0x1]
      %v1098 = vld [vmem:[%s1059 + $0x8] sm:$0xf]
      %v1099 = vld [vmem:[%s1059 + $0xc] sm:$0x1]
      %v1100 = vld [vmem:[%s1059 + $0x10] sm:$0xf]
      %v1101 = vld [vmem:[%s1059 + $0x14] sm:$0x1]
      %v1102 = vld [vmem:[%s1059 + $0x18] sm:$0xf]
      %v1103 = vld [vmem:[%s1059 + $0x1c] sm:$0x1]
      %v1104 = vld [vmem:[%s1059 + $0x20] sm:$0xf]
      %v1105 = vld [vmem:[%s1059 + $0x24] sm:$0x1]
      %v1106 = vld [vmem:[%s1059 + $0x28] sm:$0xf]
      %v1107 = vld [vmem:[%s1059 + $0x2c] sm:$0x1]
      %v1108 = vld [vmem:[%s1059 + $0x30] sm:$0xf]
      %v1109 = vld [vmem:[%s1059 + $0x34] sm:$0x1]
      %v1110 = vld [vmem:[%s1059 + $0x38] sm:$0xf]
      %v1111 = vld [vmem:[%s1059 + $0x3c] sm:$0x1]
      %v1113 = vshrl.u32 %v1096, 16
      %v1115 = vrot.slane %v1113, 4
      %v1116 = vshll.u32 %v1096, 16
      %v1118 = vrot.slane %v1116, 5
      %v1119 = vor.u32 %v1115, %v1118
      %v1120 = vrot.slane %v1119, 4
      %v1122 = vshll.u32 %v1097, 16
      %v1124 = vrot.slane %v1122, 5
      %v1125 = vsel %vm546, %v1120, %v1124
      %v1127 = vshrl.u32 %v1098, 16
      %v1129 = vrot.slane %v1127, 4
      %v1130 = vshll.u32 %v1098, 16
      %v1132 = vrot.slane %v1130, 5
      %v1133 = vor.u32 %v1129, %v1132
      %v1134 = vrot.slane %v1133, 4
      %v1136 = vshll.u32 %v1099, 16
      %v1138 = vrot.slane %v1136, 5
      %v1139 = vsel %vm546, %v1134, %v1138
      %v1141 = vshrl.u32 %v1100, 16
      %v1143 = vrot.slane %v1141, 4
      %v1144 = vshll.u32 %v1100, 16
      %v1146 = vrot.slane %v1144, 5
      %v1147 = vor.u32 %v1143, %v1146
      %v1148 = vrot.slane %v1147, 4
      %v1150 = vshll.u32 %v1101, 16
      %v1152 = vrot.slane %v1150, 5
      %v1153 = vsel %vm546, %v1148, %v1152
      %v1155 = vshrl.u32 %v1102, 16
      %v1157 = vrot.slane %v1155, 4
      %v1158 = vshll.u32 %v1102, 16
      %v1160 = vrot.slane %v1158, 5
      %v1161 = vor.u32 %v1157, %v1160
      %v1162 = vrot.slane %v1161, 4
      %v1164 = vshll.u32 %v1103, 16
      %v1166 = vrot.slane %v1164, 5
      %v1167 = vsel %vm546, %v1162, %v1166
      %v1169 = vshrl.u32 %v1104, 16
      %v1171 = vrot.slane %v1169, 4
      %v1172 = vshll.u32 %v1104, 16
      %v1174 = vrot.slane %v1172, 5
      %v1175 = vor.u32 %v1171, %v1174
      %v1176 = vrot.slane %v1175, 4
      %v1178 = vshll.u32 %v1105, 16
      %v1180 = vrot.slane %v1178, 5
      %v1181 = vsel %vm546, %v1176, %v1180
      %v1183 = vshrl.u32 %v1106, 16
      %v1185 = vrot.slane %v1183, 4
      %v1186 = vshll.u32 %v1106, 16
      %v1188 = vrot.slane %v1186, 5
      %v1189 = vor.u32 %v1185, %v1188
      %v1190 = vrot.slane %v1189, 4
      %v1192 = vshll.u32 %v1107, 16
      %v1194 = vrot.slane %v1192, 5
      %v1195 = vsel %vm546, %v1190, %v1194
      %v1197 = vshrl.u32 %v1108, 16
      %v1199 = vrot.slane %v1197, 4
      %v1200 = vshll.u32 %v1108, 16
      %v1202 = vrot.slane %v1200, 5
      %v1203 = vor.u32 %v1199, %v1202
      %v1204 = vrot.slane %v1203, 4
      %v1206 = vshll.u32 %v1109, 16
      %v1208 = vrot.slane %v1206, 5
      %v1209 = vsel %vm546, %v1204, %v1208
      %v1211 = vshrl.u32 %v1110, 16
      %v1213 = vrot.slane %v1211, 4
      %v1214 = vshll.u32 %v1110, 16
      %v1216 = vrot.slane %v1214, 5
      %v1217 = vor.u32 %v1213, %v1216
      %v1218 = vrot.slane %v1217, 4
      %v1220 = vshll.u32 %v1111, 16
      %v1222 = vrot.slane %v1220, 5
      %v1223 = vsel %vm546, %v1218, %v1222
      %v1224 = vunpack.c.l.b16 %v1125
      %v1225 = vunpack.c.l.b16 %v1139
      %v1226 = vunpack.c.l.b16 %v1153
      %v1227 = vunpack.c.l.b16 %v1167
      %v1228 = vunpack.c.l.b16 %v1181
      %v1229 = vunpack.c.l.b16 %v1195
      %v1230 = vunpack.c.l.b16 %v1209
      %v1231 = vunpack.c.l.b16 %v1223
      %v1232 = vpack.c.b16 %v1225, %v1224
      %v1233 = vpack.c.b16 %v1227, %v1226
      %v1234 = vpack.c.b16 %v1229, %v1228
      %v1235 = vpack.c.b16 %v1231, %v1230
      %1236 = vrot.lane.b32.xlu0 %v1232, 64
      %v1237 = vpop.permute.xlu0 %1236
      %1238 = vrot.lane.b32.xlu0 %v1233, 64
      %v1239 = vpop.permute.xlu0 %1238
      %1240 = vrot.lane.b32.xlu0 %v1234, 64
      %v1241 = vpop.permute.xlu0 %1240
      %1242 = vrot.lane.b32.xlu0 %v1235, 64
      %v1243 = vpop.permute.xlu0 %1242
      %1248 = vst.msk [vmem:[#allocation4 + $0x18] sm:$0xff] %vm683, %v1237
      %1249 = vst.msk [vmem:[#allocation4 + $0x40] sm:$0xff] %vm683, %v1239
      %1250 = vst.msk [vmem:[#allocation4 + $0x68] sm:$0xff] %vm683, %v1241
      %1251 = vst.msk [vmem:[#allocation4 + $0x90] sm:$0xff] %vm683, %v1243
      %v1252 = vld [vmem:[%s1059] sm:$0xe]
      %v1253 = vld [vmem:[%s1059 + $0x4] sm:$0x1]
      %v1254 = vld [vmem:[%s1059 + $0x8] sm:$0xe]
      %v1255 = vld [vmem:[%s1059 + $0xc] sm:$0x1]
      %v1256 = vld [vmem:[%s1059 + $0x10] sm:$0xe]
      %v1257 = vld [vmem:[%s1059 + $0x14] sm:$0x1]
      %v1258 = vld [vmem:[%s1059 + $0x18] sm:$0xe]
      %v1259 = vld [vmem:[%s1059 + $0x1c] sm:$0x1]
      %v1260 = vld [vmem:[%s1059 + $0x20] sm:$0xe]
      %v1261 = vld [vmem:[%s1059 + $0x24] sm:$0x1]
      %v1262 = vld [vmem:[%s1059 + $0x28] sm:$0xe]
      %v1263 = vld [vmem:[%s1059 + $0x2c] sm:$0x1]
      %v1264 = vld [vmem:[%s1059 + $0x30] sm:$0xe]
      %v1265 = vld [vmem:[%s1059 + $0x34] sm:$0x1]
      %v1266 = vld [vmem:[%s1059 + $0x38] sm:$0xe]
      %v1267 = vld [vmem:[%s1059 + $0x3c] sm:$0x1]
      %v1284 = vrot.slane %v1252, 5
      %v1285 = vrot.slane %v1284, 4
      %v1286 = vrot.slane %v1253, 5
      %v1287 = vsel %vm722, %v1285, %v1286
      %v1288 = vrot.slane %v1254, 5
      %v1289 = vrot.slane %v1288, 4
      %v1290 = vrot.slane %v1255, 5
      %v1291 = vsel %vm722, %v1289, %v1290
      %v1292 = vrot.slane %v1256, 5
      %v1293 = vrot.slane %v1292, 4
      %v1294 = vrot.slane %v1257, 5
      %v1295 = vsel %vm722, %v1293, %v1294
      %v1296 = vrot.slane %v1258, 5
      %v1297 = vrot.slane %v1296, 4
      %v1298 = vrot.slane %v1259, 5
      %v1299 = vsel %vm722, %v1297, %v1298
      %v1300 = vrot.slane %v1260, 5
      %v1301 = vrot.slane %v1300, 4
      %v1302 = vrot.slane %v1261, 5
      %v1303 = vsel %vm722, %v1301, %v1302
      %v1304 = vrot.slane %v1262, 5
      %v1305 = vrot.slane %v1304, 4
      %v1306 = vrot.slane %v1263, 5
      %v1307 = vsel %vm722, %v1305, %v1306
      %v1308 = vrot.slane %v1264, 5
      %v1309 = vrot.slane %v1308, 4
      %v1310 = vrot.slane %v1265, 5
      %v1311 = vsel %vm722, %v1309, %v1310
      %v1312 = vrot.slane %v1266, 5
      %v1313 = vrot.slane %v1312, 4
      %v1314 = vrot.slane %v1267, 5
      %v1315 = vsel %vm722, %v1313, %v1314
      %v1316 = vunpack.c.l.b16 %v1287
      %v1317 = vunpack.c.l.b16 %v1291
      %v1318 = vunpack.c.l.b16 %v1295
      %v1319 = vunpack.c.l.b16 %v1299
      %v1320 = vunpack.c.l.b16 %v1303
      %v1321 = vunpack.c.l.b16 %v1307
      %v1322 = vunpack.c.l.b16 %v1311
      %v1323 = vunpack.c.l.b16 %v1315
      %v1324 = vpack.c.b16 %v1317, %v1316
      %v1325 = vpack.c.b16 %v1319, %v1318
      %v1326 = vpack.c.b16 %v1321, %v1320
      %v1327 = vpack.c.b16 %v1323, %v1322
      %1332 = vst.msk [vmem:[#allocation4 + $0x20] sm:$0xff] %vm523, %v1324
      %1333 = vst.msk [vmem:[#allocation4 + $0x48] sm:$0xff] %vm523, %v1325
      %1334 = vst.msk [vmem:[#allocation4 + $0x70] sm:$0xff] %vm523, %v1326
      %1335 = vst.msk [vmem:[#allocation4 + $0x98] sm:$0xff] %vm523, %v1327
      %v1336 = vld [vmem:[#allocation4] sm:$0xff]
      %v1337 = vld [vmem:[#allocation4 + $0x8] sm:$0xff]
      %v1338 = vld [vmem:[#allocation4 + $0x10] sm:$0xff]
      %v1339 = vld [vmem:[#allocation4 + $0x18] sm:$0xff]
      %v1340 = vld [vmem:[#allocation4 + $0x20] sm:$0xff]
      %v1341 = vld [vmem:[#allocation4 + $0x28] sm:$0xff]
      %v1342 = vld [vmem:[#allocation4 + $0x30] sm:$0xff]
      %v1343 = vld [vmem:[#allocation4 + $0x38] sm:$0xff]
      %v1344 = vld [vmem:[#allocation4 + $0x40] sm:$0xff]
      %v1345 = vld [vmem:[#allocation4 + $0x48] sm:$0xff]
      %v1346 = vld [vmem:[#allocation4 + $0x50] sm:$0xff]
      %v1347 = vld [vmem:[#allocation4 + $0x58] sm:$0xff]
      %v1348 = vld [vmem:[#allocation4 + $0x60] sm:$0xff]
      %v1349 = vld [vmem:[#allocation4 + $0x68] sm:$0xff]
      %v1350 = vld [vmem:[#allocation4 + $0x70] sm:$0xff]
      %v1351 = vld [vmem:[#allocation4 + $0x78] sm:$0xff]
      %v1352 = vld [vmem:[#allocation4 + $0x80] sm:$0xff]
      %v1353 = vld [vmem:[#allocation4 + $0x88] sm:$0xff]
      %v1354 = vld [vmem:[#allocation4 + $0x90] sm:$0xff]
      %v1355 = vld [vmem:[#allocation4 + $0x98] sm:$0xff]
      %v1356 = vld [vmem:[%s1] sm:$0xf]
      %v1357 = vld [vmem:[%s1 + $0x4] sm:$0xf]
      %v1358 = vld [vmem:[%s1 + $0x8] sm:$0xf]
      %v1359 = vld [vmem:[%s1 + $0xc] sm:$0xf]
      %v1360 = vld [vmem:[%s1 + $0x10] sm:$0xf]
      %v1361 = vld [vmem:[%s1 + $0x14] sm:$0xf]
      %v1362 = vld [vmem:[%s1 + $0x18] sm:$0xf]
      %v1363 = vld [vmem:[%s1 + $0x1c] sm:$0xf]
      %v1364 = vld [vmem:[%s1 + $0x20] sm:$0xf]
      %v1365 = vld [vmem:[%s1 + $0x24] sm:$0xf]
      %v1366 = vld [vmem:[%s1 + $0x28] sm:$0xf]
      %v1367 = vld [vmem:[%s1 + $0x2c] sm:$0xf]
      %v1368 = vld [vmem:[%s1 + $0x30] sm:$0xf]
      %v1369 = vld [vmem:[%s1 + $0x34] sm:$0xf]
      %v1370 = vld [vmem:[%s1 + $0x38] sm:$0xf]
      %v1371 = vld [vmem:[%s1 + $0x3c] sm:$0xf]
      %v1372 = vld [vmem:[%s1 + $0x40] sm:$0xf]
      %v1373 = vld [vmem:[%s1 + $0x44] sm:$0xf]
      %v1374 = vld [vmem:[%s1 + $0x48] sm:$0xf]
      %v1375 = vld [vmem:[%s1 + $0x4c] sm:$0xf]
      %v1376 = vld [vmem:[%s1 + $0x50] sm:$0xf]
      %v1377 = vld [vmem:[%s1 + $0x54] sm:$0xf]
      %v1378 = vld [vmem:[%s1 + $0x58] sm:$0xf]
      %v1379 = vld [vmem:[%s1 + $0x5c] sm:$0xf]
      %v1380 = vld [vmem:[%s1 + $0x60] sm:$0xf]
      %v1381 = vld [vmem:[%s1 + $0x64] sm:$0xf]
      %v1382 = vld [vmem:[%s1 + $0x68] sm:$0xf]
      %v1383 = vld [vmem:[%s1 + $0x6c] sm:$0xf]
      %v1384 = vld [vmem:[%s1 + $0x70] sm:$0xf]
      %v1385 = vld [vmem:[%s1 + $0x74] sm:$0xf]
      %v1386 = vld [vmem:[%s1 + $0x78] sm:$0xf]
      %v1387 = vld [vmem:[%s1 + $0x7c] sm:$0xf]
      %v1388 = vld [vmem:[%s1 + $0x80] sm:$0xf]
      %v1389 = vld [vmem:[%s1 + $0x84] sm:$0xf]
      %v1390 = vld [vmem:[%s1 + $0x88] sm:$0xf]
      %v1391 = vld [vmem:[%s1 + $0x8c] sm:$0xf]
      %v1392 = vld [vmem:[%s1 + $0x90] sm:$0xf]
      %v1393 = vld [vmem:[%s1 + $0x94] sm:$0xf]
      %v1394 = vld [vmem:[%s1 + $0x98] sm:$0xf]
      %v1395 = vld [vmem:[%s1 + $0x9c] sm:$0xf]
      %v1396 = vld [vmem:[%s1 + $0xa0] sm:$0xf]
      %v1397 = vld [vmem:[%s1 + $0xa4] sm:$0xf]
      %v1398 = vld [vmem:[%s1 + $0xa8] sm:$0xf]
      %v1399 = vld [vmem:[%s1 + $0xac] sm:$0xf]
      %v1400 = vld [vmem:[%s1 + $0xb0] sm:$0xf]
      %v1401 = vld [vmem:[%s1 + $0xb4] sm:$0xf]
      %v1402 = vld [vmem:[%s1 + $0xb8] sm:$0xf]
      %v1403 = vld [vmem:[%s1 + $0xbc] sm:$0xf]
      %v1404 = vld [vmem:[%s1 + $0xc0] sm:$0xf]
      %v1405 = vld [vmem:[%s1 + $0xc4] sm:$0xf]
      %v1406 = vld [vmem:[%s1 + $0xc8] sm:$0xf]
      %v1407 = vld [vmem:[%s1 + $0xcc] sm:$0xf]
      %v1408 = vld [vmem:[%s1 + $0xd0] sm:$0xf]
      %v1409 = vld [vmem:[%s1 + $0xd4] sm:$0xf]
      %v1410 = vld [vmem:[%s1 + $0xd8] sm:$0xf]
      %v1411 = vld [vmem:[%s1 + $0xdc] sm:$0xf]
      %v1412 = vld [vmem:[%s1 + $0xe0] sm:$0xf]
      %v1413 = vld [vmem:[%s1 + $0xe4] sm:$0xf]
      %v1414 = vld [vmem:[%s1 + $0xe8] sm:$0xf]
      %v1415 = vld [vmem:[%s1 + $0xec] sm:$0xf]
      %v1416 = vld [vmem:[%s1 + $0xf0] sm:$0xf]
      %v1417 = vld [vmem:[%s1 + $0xf4] sm:$0xf]
      %v1418 = vld [vmem:[%s1 + $0xf8] sm:$0xf]
      %v1419 = vld [vmem:[%s1 + $0xfc] sm:$0xf]
      %v1420 = vld [vmem:[%s1 + $0x100] sm:$0xf]
      %v1421 = vld [vmem:[%s1 + $0x104] sm:$0xf]
      %v1422 = vld [vmem:[%s1 + $0x108] sm:$0xf]
      %v1423 = vld [vmem:[%s1 + $0x10c] sm:$0xf]
      %v1424 = vld [vmem:[%s1 + $0x110] sm:$0xf]
      %v1425 = vld [vmem:[%s1 + $0x114] sm:$0xf]
      %v1426 = vld [vmem:[%s1 + $0x118] sm:$0xf]
      %v1427 = vld [vmem:[%s1 + $0x11c] sm:$0xf]
      %v1500 = vunpack.c.l.b16 %v1356
      %v1501 = vunpack.c.l.b16 %v1357
      %v1502 = vunpack.c.l.b16 %v1358
      %v1503 = vunpack.c.l.b16 %v1359
      %v1504 = vunpack.c.l.b16 %v1360
      %v1505 = vunpack.c.l.b16 %v1361
      %v1506 = vunpack.c.l.b16 %v1362
      %v1507 = vunpack.c.l.b16 %v1363
      %v1508 = vunpack.c.l.b16 %v1364
      %v1509 = vunpack.c.l.b16 %v1365
      %v1510 = vunpack.c.l.b16 %v1366
      %v1511 = vunpack.c.l.b16 %v1367
      %v1512 = vunpack.c.l.b16 %v1368
      %v1513 = vunpack.c.l.b16 %v1369
      %v1514 = vunpack.c.l.b16 %v1370
      %v1515 = vunpack.c.l.b16 %v1371
      %v1516 = vunpack.c.l.b16 %v1372
      %v1517 = vunpack.c.l.b16 %v1373
      %v1518 = vunpack.c.l.b16 %v1374
      %v1519 = vunpack.c.l.b16 %v1375
      %v1520 = vunpack.c.l.b16 %v1376
      %v1521 = vunpack.c.l.b16 %v1377
      %v1522 = vunpack.c.l.b16 %v1378
      %v1523 = vunpack.c.l.b16 %v1379
      %v1524 = vunpack.c.l.b16 %v1380
      %v1525 = vunpack.c.l.b16 %v1381
      %v1526 = vunpack.c.l.b16 %v1382
      %v1527 = vunpack.c.l.b16 %v1383
      %v1528 = vunpack.c.l.b16 %v1384
      %v1529 = vunpack.c.l.b16 %v1385
      %v1530 = vunpack.c.l.b16 %v1386
      %v1531 = vunpack.c.l.b16 %v1387
      %v1532 = vunpack.c.l.b16 %v1388
      %v1533 = vunpack.c.l.b16 %v1389
      %v1534 = vunpack.c.l.b16 %v1390
      %v1535 = vunpack.c.l.b16 %v1391
      %v1536 = vunpack.c.l.b16 %v1392
      %v1537 = vunpack.c.l.b16 %v1393
      %v1538 = vunpack.c.l.b16 %v1394
      %v1539 = vunpack.c.l.b16 %v1395
      %v1540 = vunpack.c.l.b16 %v1396
      %v1541 = vunpack.c.l.b16 %v1397
      %v1542 = vunpack.c.l.b16 %v1398
      %v1543 = vunpack.c.l.b16 %v1399
      %v1544 = vunpack.c.l.b16 %v1400
      %v1545 = vunpack.c.l.b16 %v1401
      %v1546 = vunpack.c.l.b16 %v1402
      %v1547 = vunpack.c.l.b16 %v1403
      %v1548 = vunpack.c.l.b16 %v1404
      %v1549 = vunpack.c.l.b16 %v1405
      %v1550 = vunpack.c.l.b16 %v1406
      %v1551 = vunpack.c.l.b16 %v1407
      %v1552 = vunpack.c.l.b16 %v1408
      %v1553 = vunpack.c.l.b16 %v1409
      %v1554 = vunpack.c.l.b16 %v1410
      %v1555 = vunpack.c.l.b16 %v1411
      %v1556 = vunpack.c.l.b16 %v1412
      %v1557 = vunpack.c.l.b16 %v1413
      %v1558 = vunpack.c.l.b16 %v1414
      %v1559 = vunpack.c.l.b16 %v1415
      %v1560 = vunpack.c.l.b16 %v1416
      %v1561 = vunpack.c.l.b16 %v1417
      %v1562 = vunpack.c.l.b16 %v1418
      %v1563 = vunpack.c.l.b16 %v1419
      %v1564 = vunpack.c.l.b16 %v1420
      %v1565 = vunpack.c.l.b16 %v1421
      %v1566 = vunpack.c.l.b16 %v1422
      %v1567 = vunpack.c.l.b16 %v1423
      %v1568 = vunpack.c.l.b16 %v1424
      %v1569 = vunpack.c.l.b16 %v1425
      %v1570 = vunpack.c.l.b16 %v1426
      %v1571 = vunpack.c.l.b16 %v1427
      %v1572 = vpack.c.b16 %v1501, %v1500
      %v1573 = vpack.c.b16 %v1503, %v1502
      %v1574 = vpack.c.b16 %v1505, %v1504
      %v1575 = vpack.c.b16 %v1507, %v1506
      %v1576 = vpack.c.b16 %v1509, %v1508
      %v1577 = vpack.c.b16 %v1511, %v1510
      %v1578 = vpack.c.b16 %v1513, %v1512
      %v1579 = vpack.c.b16 %v1515, %v1514
      %v1580 = vpack.c.b16 %v1517, %v1516
      %v1581 = vpack.c.b16 %v1519, %v1518
      %v1582 = vpack.c.b16 %v1521, %v1520
      %v1583 = vpack.c.b16 %v1523, %v1522
      %v1584 = vpack.c.b16 %v1525, %v1524
      %v1585 = vpack.c.b16 %v1527, %v1526
      %v1586 = vpack.c.b16 %v1529, %v1528
      %v1587 = vpack.c.b16 %v1531, %v1530
      %v1588 = vpack.c.b16 %v1533, %v1532
      %v1589 = vpack.c.b16 %v1535, %v1534
      %v1590 = vpack.c.b16 %v1537, %v1536
      %v1591 = vpack.c.b16 %v1539, %v1538
      %v1592 = vpack.c.b16 %v1541, %v1540
      %v1593 = vpack.c.b16 %v1543, %v1542
      %v1594 = vpack.c.b16 %v1545, %v1544
      %v1595 = vpack.c.b16 %v1547, %v1546
      %v1596 = vpack.c.b16 %v1549, %v1548
      %v1597 = vpack.c.b16 %v1551, %v1550
      %v1598 = vpack.c.b16 %v1553, %v1552
      %v1599 = vpack.c.b16 %v1555, %v1554
      %v1600 = vpack.c.b16 %v1557, %v1556
      %v1601 = vpack.c.b16 %v1559, %v1558
      %v1602 = vpack.c.b16 %v1561, %v1560
      %v1603 = vpack.c.b16 %v1563, %v1562
      %v1604 = vpack.c.b16 %v1565, %v1564
      %v1605 = vpack.c.b16 %v1567, %v1566
      %v1606 = vpack.c.b16 %v1569, %v1568
      %v1607 = vpack.c.b16 %v1571, %v1570
      %v1645 = vsel %vm523, %v1340, 0
      %v1648 = vsel %vm523, %v1345, 0
      %v1651 = vsel %vm523, %v1350, 0
      %v1654 = vsel %vm523, %v1355, 0
      %1656 = vmatprep.subr.bf16.mxu0 0
      %1657 = vmatpush1.bf16.msra.mxu0 %v1572
      %1658 = vmatprep.subr.bf16.mxu0 0
      %1659 = vmatpush1.bf16.msra.mxu0 %v1573
      %1660 = vmatprep.subr.bf16.mxu0 0
      %1661 = vmatpush1.bf16.msra.mxu0 %v1574
      %1662 = vmatprep.subr.bf16.mxu0 0
      %1663 = vmatpush1.bf16.msra.mxu0 %v1575
      %1664 = vmatprep.subr.bf16.mxu0 0
      %1665 = vmatpush1.bf16.msra.mxu0 %v1576
      %1666 = vmatprep.subr.bf16.mxu0 0
      %1667 = vmatpush1.bf16.msra.mxu0 %v1577
      %1668 = vmatprep.subr.bf16.mxu0 0
      %1669 = vmatpush1.bf16.msra.mxu0 %v1578
      %1670 = vmatprep.subr.bf16.mxu0 0
      %1671 = vmatpush1.bf16.msra.mxu0 %v1579
      %1672 = vmatprep.subr.bf16.mxu0 0
      %1673 = vmatpush1.bf16.msra.mxu0 %v1580
      %1674 = vmatprep.subr.bf16.mxu0 0
      %1675 = vmatpush1.bf16.msra.mxu0 %v1581
      %1676 = vmatprep.subr.bf16.mxu0 0
      %1677 = vmatpush1.bf16.msra.mxu0 %v1582
      %1678 = vmatprep.subr.bf16.mxu0 0
      %1679 = vmatpush1.bf16.msra.mxu0 %v1583
      %1680 = vmatprep.subr.bf16.mxu0 0
      %1681 = vmatpush1.bf16.msra.mxu0 %v1584
      %1682 = vmatprep.subr.bf16.mxu0 0
      %1683 = vmatpush1.bf16.msra.mxu0 %v1585
      %1684 = vmatprep.subr.bf16.mxu0 0
      %1685 = vmatpush1.bf16.msra.mxu0 %v1586
      %1686 = vmatprep.subr.bf16.mxu0 0
      %1687 = vmatpush1.bf16.msra.mxu0 %v1587
      %1688 = vmatprep.mubr.bf16.mxu0 %v1337
      %1689 = vmatmul.mubr.bf16.gmra.mrb[0].mxu0 %v1336
      %v1690 = vpop.f32.mrb[0].mxu0
      %v1691 = vadd.f32 0.0, %v1690
      %v1692 = vpop.f32.mrb[0].mxu0
      %v1693 = vpop.f32.mrb[0].mxu0
      %v1694 = vadd.f32 0.0, %v1693
      %v1695 = vpop.f32.mrb[0].mxu0
      %1696 = vmatprep.mubr.bf16.mxu0 %v1342
      %1697 = vmatmul.mubr.bf16.gmra.mrb[0].mxu0 %v1341
      %v1698 = vpop.f32.mrb[0].mxu0
      %v1699 = vadd.f32 0.0, %v1698
      %v1700 = vpop.f32.mrb[0].mxu0
      %v1701 = vpop.f32.mrb[0].mxu0
      %v1702 = vadd.f32 0.0, %v1701
      %v1703 = vpop.f32.mrb[0].mxu0
      %1704 = vmatprep.mubr.bf16.mxu0 %v1347
      %1705 = vmatmul.mubr.bf16.gmra.mrb[0].mxu0 %v1346
      %v1706 = vpop.f32.mrb[0].mxu0
      %v1707 = vadd.f32 0.0, %v1706
      %v1708 = vpop.f32.mrb[0].mxu0
      %v1709 = vpop.f32.mrb[0].mxu0
      %v1710 = vadd.f32 0.0, %v1709
      %v1711 = vpop.f32.mrb[0].mxu0
      %1712 = vmatprep.mubr.bf16.mxu0 %v1352
      %1713 = vmatmul.mubr.bf16.gmra.mrb[0].mxu0 %v1351
      %v1714 = vpop.f32.mrb[0].mxu0
      %v1715 = vadd.f32 0.0, %v1714
      %v1716 = vpop.f32.mrb[0].mxu0
      %v1717 = vpop.f32.mrb[0].mxu0
      %v1718 = vadd.f32 0.0, %v1717
      %v1719 = vpop.f32.mrb[0].mxu0
      %1720 = vdwg.mxu0
      %1721 = vmatprep.subr.bf16.mxu0 0
      %1722 = vmatpush1.bf16.msra.mxu0 %v1588
      %1723 = vmatprep.subr.bf16.mxu0 0
      %1724 = vmatpush1.bf16.msra.mxu0 %v1589
      %1725 = vmatprep.subr.bf16.mxu0 0
      %1726 = vmatpush1.bf16.msra.mxu0 %v1590
      %1727 = vmatprep.subr.bf16.mxu0 0
      %1728 = vmatpush1.bf16.msra.mxu0 %v1591
      %1729 = vmatprep.subr.bf16.mxu0 0
      %1730 = vmatpush1.bf16.msra.mxu0 %v1592
      %1731 = vmatprep.subr.bf16.mxu0 0
      %1732 = vmatpush1.bf16.msra.mxu0 %v1593
      %1733 = vmatprep.subr.bf16.mxu0 0
      %1734 = vmatpush1.bf16.msra.mxu0 %v1594
      %1735 = vmatprep.subr.bf16.mxu0 0
      %1736 = vmatpush1.bf16.msra.mxu0 %v1595
      %1737 = vmatprep.subr.bf16.mxu0 0
      %1738 = vmatpush1.bf16.msra.mxu0 %v1596
      %1739 = vmatprep.subr.bf16.mxu0 0
      %1740 = vmatpush1.bf16.msra.mxu0 %v1597
      %1741 = vmatprep.subr.bf16.mxu0 0
      %1742 = vmatpush1.bf16.msra.mxu0 %v1598
      %1743 = vmatprep.subr.bf16.mxu0 0
      %1744 = vmatpush1.bf16.msra.mxu0 %v1599
      %1745 = vmatprep.subr.bf16.mxu0 0
      %1746 = vmatpush1.bf16.msra.mxu0 %v1600
      %1747 = vmatprep.subr.bf16.mxu0 0
      %1748 = vmatpush1.bf16.msra.mxu0 %v1601
      %1749 = vmatprep.subr.bf16.mxu0 0
      %1750 = vmatpush1.bf16.msra.mxu0 %v1602
      %1751 = vmatprep.subr.bf16.mxu0 0
      %1752 = vmatpush1.bf16.msra.mxu0 %v1603
      %1753 = vmatprep.mubr.bf16.mxu0 %v1339
      %1754 = vmatmul.mubr.bf16.gmra.mrb[0].mxu0 %v1338
      %v1755 = vpop.f32.mrb[0].mxu0
      %v1756 = vadd.f32 %v1691, %v1755
      %v1757 = vpop.f32.mrb[0].mxu0
      %v1758 = vpop.f32.mrb[0].mxu0
      %v1759 = vadd.f32 %v1694, %v1758
      %v1760 = vpop.f32.mrb[0].mxu0
      %1761 = vmatprep.mubr.bf16.mxu0 %v1344
      %1762 = vmatmul.mubr.bf16.gmra.mrb[0].mxu0 %v1343
      %v1763 = vpop.f32.mrb[0].mxu0
      %v1764 = vadd.f32 %v1699, %v1763
      %v1765 = vpop.f32.mrb[0].mxu0
      %v1766 = vpop.f32.mrb[0].mxu0
      %v1767 = vadd.f32 %v1702, %v1766
      %v1768 = vpop.f32.mrb[0].mxu0
      %1769 = vmatprep.mubr.bf16.mxu0 %v1349
      %1770 = vmatmul.mubr.bf16.gmra.mrb[0].mxu0 %v1348
      %v1771 = vpop.f32.mrb[0].mxu0
      %v1772 = vadd.f32 %v1707, %v1771
      %v1773 = vpop.f32.mrb[0].mxu0
      %v1774 = vpop.f32.mrb[0].mxu0
      %v1775 = vadd.f32 %v1710, %v1774
      %v1776 = vpop.f32.mrb[0].mxu0
      %1777 = vmatprep.mubr.bf16.mxu0 %v1354
      %1778 = vmatmul.mubr.bf16.gmra.mrb[0].mxu0 %v1353
      %v1779 = vpop.f32.mrb[0].mxu0
      %v1780 = vadd.f32 %v1715, %v1779
      %v1781 = vpop.f32.mrb[0].mxu0
      %v1782 = vpop.f32.mrb[0].mxu0
      %v1783 = vadd.f32 %v1718, %v1782
      %v1784 = vpop.f32.mrb[0].mxu0
      %1785 = vdwg.mxu0
      %1786 = vmatprep.subr.bf16.mxu0 0
      %1787 = vmatpush1.bf16.msra.mxu0 %v1604
      %1788 = vmatprep.subr.bf16.mxu0 0
      %1789 = vmatpush1.bf16.msra.mxu0 %v1605
      %1790 = vmatprep.subr.bf16.mxu0 0
      %1791 = vmatpush1.bf16.msra.mxu0 %v1606
      %1792 = vmatprep.subr.bf16.mxu0 0
      %1793 = vmatpush1.bf16.msra.mxu0 %v1607
      %1794 = vmatprep.subr.bf16.mxu0 0
      %1795 = vmatpush1.bf16.msra.mxu0 0
      %1796 = vmatprep.subr.bf16.mxu0 0
      %1797 = vmatpush1.bf16.msra.mxu0 0
      %1798 = vmatprep.subr.bf16.mxu0 0
      %1799 = vmatpush1.bf16.msra.mxu0 0
      %1800 = vmatprep.subr.bf16.mxu0 0
      %1801 = vmatpush1.bf16.msra.mxu0 0
      %1802 = vmatprep.subr.bf16.mxu0 0
      %1803 = vmatpush1.bf16.msra.mxu0 0
      %1804 = vmatprep.subr.bf16.mxu0 0
      %1805 = vmatpush1.bf16.msra.mxu0 0
      %1806 = vmatprep.subr.bf16.mxu0 0
      %1807 = vmatpush1.bf16.msra.mxu0 0
      %1808 = vmatprep.subr.bf16.mxu0 0
      %1809 = vmatpush1.bf16.msra.mxu0 0
      %1810 = vmatprep.subr.bf16.mxu0 0
      %1811 = vmatpush1.bf16.msra.mxu0 0
      %1812 = vmatprep.subr.bf16.mxu0 0
      %1813 = vmatpush1.bf16.msra.mxu0 0
      %1814 = vmatprep.subr.bf16.mxu0 0
      %1815 = vmatpush1.bf16.msra.mxu0 0
      %1816 = vmatprep.subr.bf16.mxu0 0
      %1817 = vmatpush1.bf16.msra.mxu0 0
      %1818 = vmatprep.mubr.bf16.mxu0 0
      %1819 = vmatmul.mubr.bf16.gmra.mrb[0].mxu0 %v1645
      %v1820 = vpop.f32.mrb[0].mxu0
      %v1821 = vadd.f32 %v1756, %v1820
      %v1822 = vpop.f32.mrb[0].mxu0
      %v1823 = vpop.f32.mrb[0].mxu0
      %v1824 = vadd.f32 %v1759, %v1823
      %v1825 = vpop.f32.mrb[0].mxu0
      %1826 = vmatprep.mubr.bf16.mxu0 0
      %1827 = vmatmul.mubr.bf16.gmra.mrb[0].mxu0 %v1648
      %v1828 = vpop.f32.mrb[0].mxu0
      %v1829 = vadd.f32 %v1764, %v1828
      %v1830 = vpop.f32.mrb[0].mxu0
      %v1831 = vpop.f32.mrb[0].mxu0
      %v1832 = vadd.f32 %v1767, %v1831
      %v1833 = vpop.f32.mrb[0].mxu0
      %1834 = vmatprep.mubr.bf16.mxu0 0
      %1835 = vmatmul.mubr.bf16.gmra.mrb[0].mxu0 %v1651
      %v1836 = vpop.f32.mrb[0].mxu0
      %v1837 = vadd.f32 %v1772, %v1836
      %v1838 = vpop.f32.mrb[0].mxu0
      %v1839 = vpop.f32.mrb[0].mxu0
      %v1840 = vadd.f32 %v1775, %v1839
      %v1841 = vpop.f32.mrb[0].mxu0
      %1842 = vmatprep.mubr.bf16.mxu0 0
      %1843 = vmatmul.mubr.bf16.gmra.mrb[0].mxu0 %v1654
      %v1844 = vpop.f32.mrb[0].mxu0
      %v1845 = vadd.f32 %v1780, %v1844
      %v1846 = vpop.f32.mrb[0].mxu0
      %v1847 = vpop.f32.mrb[0].mxu0
      %v1848 = vadd.f32 %v1783, %v1847
      %v1849 = vpop.f32.mrb[0].mxu0
      %1850 = vdwg.mxu0
      %v1851 = vld [vmem:[%s2] sm:$0x1]
      %v1853 = vlaneseq
      %v1854 = vshrl.u32 %v1853, 7
      %v1855 = vsub.s32 0, %v1854
      %v1856 = vrot.slane %v1851, %v1855
      %v1858 = vmul.f32 %v1821, %v1856
      %v1859 = vmul.f32 %v1824, %v1856
      %v1860 = vmul.f32 %v1829, %v1856
      %v1861 = vmul.f32 %v1832, %v1856
      %v1862 = vmul.f32 %v1837, %v1856
      %v1863 = vmul.f32 %v1840, %v1856
      %v1864 = vmul.f32 %v1845, %v1856
      %v1865 = vmul.f32 %v1848, %v1856
      %v1866 = vld [vmem:[%s3] sm:$0x1]
      %v1868 = vlaneseq
      %v1869 = vshrl.u32 %v1868, 7
      %v1870 = vsub.s32 0, %v1869
      %v1871 = vrot.slane %v1866, %v1870
      %v1873 = vadd.f32 %v1858, %v1871
      %v1874 = vadd.f32 %v1859, %v1871
      %v1875 = vadd.f32 %v1860, %v1871
      %v1876 = vadd.f32 %v1861, %v1871
      %v1877 = vadd.f32 %v1862, %v1871
      %v1878 = vadd.f32 %v1863, %v1871
      %v1879 = vadd.f32 %v1864, %v1871
      %v1880 = vadd.f32 %v1865, %v1871
      %v1881 = vmax.f32 %v1873, 0.0
      %v1882 = vmax.f32 %v1874, 0.0
      %v1883 = vmax.f32 %v1875, 0.0
      %v1884 = vmax.f32 %v1876, 0.0
      %v1885 = vmax.f32 %v1877, 0.0
      %v1886 = vmax.f32 %v1878, 0.0
      %v1887 = vmax.f32 %v1879, 0.0
      %v1888 = vmax.f32 %v1880, 0.0
      %v1889 = vld [vmem:[#allocation4 + $0x10] sm:$0xff]
      %v1890 = vld [vmem:[#allocation4 + $0x38] sm:$0xff]
      %v1891 = vld [vmem:[#allocation4 + $0x60] sm:$0xff]
      %v1892 = vld [vmem:[#allocation4 + $0x88] sm:$0xff]
      %v1893 = vunpack.c.l.bf16 %v1889
      %v1894 = vunpack.c.h.bf16 %v1889
      %v1895 = vunpack.c.l.bf16 %v1890
      %v1896 = vunpack.c.h.bf16 %v1890
      %v1897 = vunpack.c.l.bf16 %v1891
      %v1898 = vunpack.c.h.bf16 %v1891
      %v1899 = vunpack.c.l.bf16 %v1892
      %v1900 = vunpack.c.h.bf16 %v1892
      %1901 = vst.msk [vmem:[#allocation3] sm:$0xf] %vm280, 0
      %1902 = vst.msk [vmem:[#allocation3 + $0x4] sm:$0x1] %vm282, 0
      %s1903 = scalar_lea.vmem [#allocation3], 72
      %1904 = vst.msk [vmem:[%s1903] sm:$0xf] %vm280, 0
      %1905 = vst.msk [vmem:[%s1903 + $0x4] sm:$0x1] %vm282, 0
      %v1906 = vld [vmem:[#allocation3] sm:$0x1]
      %v1907 = vsel %vm289, 0, %v1906
      %1908 = vst [vmem:[#allocation3] sm:$0x1] %v1907
      %v1909 = vld [vmem:[#allocation3 + $0x8] sm:$0x1]
      %v1910 = vsel %vm289, 0, %v1909
      %1911 = vst [vmem:[#allocation3 + $0x8] sm:$0x1] %v1910
      %v1912 = vld [vmem:[#allocation3 + $0x10] sm:$0x1]
      %v1913 = vsel %vm289, 0, %v1912
      %1914 = vst [vmem:[#allocation3 + $0x10] sm:$0x1] %v1913
      %v1915 = vld [vmem:[#allocation3 + $0x18] sm:$0x1]
      %v1916 = vsel %vm289, 0, %v1915
      %1917 = vst [vmem:[#allocation3 + $0x18] sm:$0x1] %v1916
      %v1918 = vld [vmem:[#allocation3 + $0x20] sm:$0x1]
      %v1919 = vsel %vm289, 0, %v1918
      %1920 = vst [vmem:[#allocation3 + $0x20] sm:$0x1] %v1919
      %v1921 = vld [vmem:[#allocation3 + $0x28] sm:$0x1]
      %v1922 = vsel %vm289, 0, %v1921
      %1923 = vst [vmem:[#allocation3 + $0x28] sm:$0x1] %v1922
      %v1924 = vld [vmem:[#allocation3 + $0x30] sm:$0x1]
      %v1925 = vsel %vm289, 0, %v1924
      %1926 = vst [vmem:[#allocation3 + $0x30] sm:$0x1] %v1925
      %v1927 = vld [vmem:[#allocation3 + $0x38] sm:$0x1]
      %v1928 = vsel %vm289, 0, %v1927
      %1929 = vst [vmem:[#allocation3 + $0x38] sm:$0x1] %v1928
      %v1930 = vld [vmem:[#allocation3 + $0x40] sm:$0x1]
      %v1931 = vsel %vm289, 0, %v1930
      %1932 = vst [vmem:[#allocation3 + $0x40] sm:$0x1] %v1931
      %v1933 = vld [vmem:[#allocation3 + $0x48] sm:$0x1]
      %v1934 = vsel %vm289, 0, %v1933
      %1935 = vst [vmem:[#allocation3 + $0x48] sm:$0x1] %v1934
      %v1936 = vld [vmem:[#allocation3 + $0x4] sm:$0x1]
      %v1937 = vsel %vm321, 0, %v1936
      %1938 = vst [vmem:[#allocation3 + $0x4] sm:$0x1] %v1937
      %v1939 = vld [vmem:[#allocation3 + $0xc] sm:$0x1]
      %v1940 = vsel %vm321, 0, %v1939
      %1941 = vst [vmem:[#allocation3 + $0xc] sm:$0x1] %v1940
      %v1942 = vld [vmem:[#allocation3 + $0x14] sm:$0x1]
      %v1943 = vsel %vm321, 0, %v1942
      %1944 = vst [vmem:[#allocation3 + $0x14] sm:$0x1] %v1943
      %v1945 = vld [vmem:[#allocation3 + $0x1c] sm:$0x1]
      %v1946 = vsel %vm321, 0, %v1945
      %1947 = vst [vmem:[#allocation3 + $0x1c] sm:$0x1] %v1946
      %v1948 = vld [vmem:[#allocation3 + $0x24] sm:$0x1]
      %v1949 = vsel %vm321, 0, %v1948
      %1950 = vst [vmem:[#allocation3 + $0x24] sm:$0x1] %v1949
      %v1951 = vld [vmem:[#allocation3 + $0x2c] sm:$0x1]
      %v1952 = vsel %vm321, 0, %v1951
      %1953 = vst [vmem:[#allocation3 + $0x2c] sm:$0x1] %v1952
      %v1954 = vld [vmem:[#allocation3 + $0x34] sm:$0x1]
      %v1955 = vsel %vm321, 0, %v1954
      %1956 = vst [vmem:[#allocation3 + $0x34] sm:$0x1] %v1955
      %v1957 = vld [vmem:[#allocation3 + $0x3c] sm:$0x1]
      %v1958 = vsel %vm321, 0, %v1957
      %1959 = vst [vmem:[#allocation3 + $0x3c] sm:$0x1] %v1958
      %v1960 = vld [vmem:[#allocation3 + $0x44] sm:$0x1]
      %v1961 = vsel %vm321, 0, %v1960
      %1962 = vst [vmem:[#allocation3 + $0x44] sm:$0x1] %v1961
      %v1963 = vld [vmem:[#allocation3 + $0x4c] sm:$0x1]
      %v1964 = vsel %vm321, 0, %v1963
      %1965 = vst [vmem:[#allocation3 + $0x4c] sm:$0x1] %v1964
      %v1966 = vpack.c.bf16 %v1881, %v1881
      %v1967 = vpack.c.bf16 %v1882, %v1882
      %v1968 = vpack.c.bf16 %v1883, %v1883
      %v1969 = vpack.c.bf16 %v1884, %v1884
      %v1970 = vpack.c.bf16 %v1885, %v1885
      %v1971 = vpack.c.bf16 %v1886, %v1886
      %v1972 = vpack.c.bf16 %v1887, %v1887
      %v1973 = vpack.c.bf16 %v1888, %v1888
      %v1982 = vunpack.c.l.b16 %v1966
      %v1983 = vunpack.c.l.b16 %v1967
      %v1984 = vunpack.c.l.b16 %v1968
      %v1985 = vunpack.c.l.b16 %v1969
      %v1986 = vunpack.c.l.b16 %v1970
      %v1987 = vunpack.c.l.b16 %v1971
      %v1988 = vunpack.c.l.b16 %v1972
      %v1989 = vunpack.c.l.b16 %v1973
      %v1990 = vpack.c.b16 %v1982, %v1982
      %v1991 = vpack.c.b16 %v1983, %v1983
      %v1992 = vpack.c.b16 %v1984, %v1984
      %v1993 = vpack.c.b16 %v1985, %v1985
      %v1994 = vpack.c.b16 %v1986, %v1986
      %v1995 = vpack.c.b16 %v1987, %v1987
      %v1996 = vpack.c.b16 %v1988, %v1988
      %v1997 = vpack.c.b16 %v1989, %v1989
      %v1999 = vshrl.u32 %v1990, 16
      %v2001 = vrot.slane %v1999, 7
      %v2002 = vshll.u32 %v1990, 16
      %v2004 = vor.u32 %v2001, %v2002
      %v2005 = vrot.slane %v2001, 4
      %v2007 = vshrl.u32 %v1991, 16
      %v2009 = vrot.slane %v2007, 7
      %v2010 = vshll.u32 %v1991, 16
      %v2012 = vor.u32 %v2009, %v2010
      %v2013 = vrot.slane %v2009, 4
      %v2015 = vshrl.u32 %v1992, 16
      %v2017 = vrot.slane %v2015, 7
      %v2018 = vshll.u32 %v1992, 16
      %v2020 = vor.u32 %v2017, %v2018
      %v2021 = vrot.slane %v2017, 4
      %v2023 = vshrl.u32 %v1993, 16
      %v2025 = vrot.slane %v2023, 7
      %v2026 = vshll.u32 %v1993, 16
      %v2028 = vor.u32 %v2025, %v2026
      %v2029 = vrot.slane %v2025, 4
      %v2031 = vshrl.u32 %v1994, 16
      %v2033 = vrot.slane %v2031, 7
      %v2034 = vshll.u32 %v1994, 16
      %v2036 = vor.u32 %v2033, %v2034
      %v2037 = vrot.slane %v2033, 4
      %v2039 = vshrl.u32 %v1995, 16
      %v2041 = vrot.slane %v2039, 7
      %v2042 = vshll.u32 %v1995, 16
      %v2044 = vor.u32 %v2041, %v2042
      %v2045 = vrot.slane %v2041, 4
      %v2047 = vshrl.u32 %v1996, 16
      %v2049 = vrot.slane %v2047, 7
      %v2050 = vshll.u32 %v1996, 16
      %v2052 = vor.u32 %v2049, %v2050
      %v2053 = vrot.slane %v2049, 4
      %v2055 = vshrl.u32 %v1997, 16
      %v2057 = vrot.slane %v2055, 7
      %v2058 = vshll.u32 %v1997, 16
      %v2060 = vor.u32 %v2057, %v2058
      %v2061 = vrot.slane %v2057, 4
      %s2078 = scalar_lea.vmem [#allocation3], 8
      %v2079 = vld [vmem:[%s2078] sm:$0xf]
      %v2080 = vsel %vm442, %v2004, %v2079
      %2081 = vst [vmem:[%s2078] sm:$0xf] %v2080
      %v2082 = vld [vmem:[%s2078 + $0x4] sm:$0x1]
      %v2083 = vsel %vm289, %v2005, %v2082
      %2084 = vst [vmem:[%s2078 + $0x4] sm:$0x1] %v2083
      %v2085 = vld [vmem:[%s2078 + $0x8] sm:$0xf]
      %v2086 = vsel %vm442, %v2012, %v2085
      %2087 = vst [vmem:[%s2078 + $0x8] sm:$0xf] %v2086
      %v2088 = vld [vmem:[%s2078 + $0xc] sm:$0x1]
      %v2089 = vsel %vm289, %v2013, %v2088
      %2090 = vst [vmem:[%s2078 + $0xc] sm:$0x1] %v2089
      %v2091 = vld [vmem:[%s2078 + $0x10] sm:$0xf]
      %v2092 = vsel %vm442, %v2020, %v2091
      %2093 = vst [vmem:[%s2078 + $0x10] sm:$0xf] %v2092
      %v2094 = vld [vmem:[%s2078 + $0x14] sm:$0x1]
      %v2095 = vsel %vm289, %v2021, %v2094
      %2096 = vst [vmem:[%s2078 + $0x14] sm:$0x1] %v2095
      %v2097 = vld [vmem:[%s2078 + $0x18] sm:$0xf]
      %v2098 = vsel %vm442, %v2028, %v2097
      %2099 = vst [vmem:[%s2078 + $0x18] sm:$0xf] %v2098
      %v2100 = vld [vmem:[%s2078 + $0x1c] sm:$0x1]
      %v2101 = vsel %vm289, %v2029, %v2100
      %2102 = vst [vmem:[%s2078 + $0x1c] sm:$0x1] %v2101
      %v2103 = vld [vmem:[%s2078 + $0x20] sm:$0xf]
      %v2104 = vsel %vm442, %v2036, %v2103
      %2105 = vst [vmem:[%s2078 + $0x20] sm:$0xf] %v2104
      %v2106 = vld [vmem:[%s2078 + $0x24] sm:$0x1]
      %v2107 = vsel %vm289, %v2037, %v2106
      %2108 = vst [vmem:[%s2078 + $0x24] sm:$0x1] %v2107
      %v2109 = vld [vmem:[%s2078 + $0x28] sm:$0xf]
      %v2110 = vsel %vm442, %v2044, %v2109
      %2111 = vst [vmem:[%s2078 + $0x28] sm:$0xf] %v2110
      %v2112 = vld [vmem:[%s2078 + $0x2c] sm:$0x1]
      %v2113 = vsel %vm289, %v2045, %v2112
      %2114 = vst [vmem:[%s2078 + $0x2c] sm:$0x1] %v2113
      %v2115 = vld [vmem:[%s2078 + $0x30] sm:$0xf]
      %v2116 = vsel %vm442, %v2052, %v2115
      %2117 = vst [vmem:[%s2078 + $0x30] sm:$0xf] %v2116
      %v2118 = vld [vmem:[%s2078 + $0x34] sm:$0x1]
      %v2119 = vsel %vm289, %v2053, %v2118
      %2120 = vst [vmem:[%s2078 + $0x34] sm:$0x1] %v2119
      %v2121 = vld [vmem:[%s2078 + $0x38] sm:$0xf]
      %v2122 = vsel %vm442, %v2060, %v2121
      %2123 = vst [vmem:[%s2078 + $0x38] sm:$0xf] %v2122
      %v2124 = vld [vmem:[%s2078 + $0x3c] sm:$0x1]
      %v2125 = vsel %vm289, %v2061, %v2124
      %2126 = vst [vmem:[%s2078 + $0x3c] sm:$0x1] %v2125
      %v2127 = vld [vmem:[#allocation3] sm:$0xf]
      %v2128 = vld [vmem:[#allocation3 + $0x8] sm:$0xf]
      %v2129 = vld [vmem:[#allocation3 + $0x10] sm:$0xf]
      %v2130 = vld [vmem:[#allocation3 + $0x18] sm:$0xf]
      %v2131 = vld [vmem:[#allocation3 + $0x20] sm:$0xf]
      %v2132 = vld [vmem:[#allocation3 + $0x28] sm:$0xf]
      %v2133 = vld [vmem:[#allocation3 + $0x30] sm:$0xf]
      %v2134 = vld [vmem:[#allocation3 + $0x38] sm:$0xf]
      %v2143 = vunpack.c.l.b16 %v2127
      %v2144 = vunpack.c.l.b16 %v2128
      %v2145 = vunpack.c.l.b16 %v2129
      %v2146 = vunpack.c.l.b16 %v2130
      %v2147 = vunpack.c.l.b16 %v2131
      %v2148 = vunpack.c.l.b16 %v2132
      %v2149 = vunpack.c.l.b16 %v2133
      %v2150 = vunpack.c.l.b16 %v2134
      %v2151 = vpack.c.b16 %v2144, %v2143
      %v2152 = vpack.c.b16 %v2146, %v2145
      %v2153 = vpack.c.b16 %v2148, %v2147
      %v2154 = vpack.c.b16 %v2150, %v2149
      %2159 = vst.msk [vmem:[#allocation5] sm:$0xff] %vm523, %v2151
      %2160 = vst.msk [vmem:[#allocation5 + $0x28] sm:$0xff] %vm523, %v2152
      %2161 = vst.msk [vmem:[#allocation5 + $0x50] sm:$0xff] %vm523, %v2153
      %2162 = vst.msk [vmem:[#allocation5 + $0x78] sm:$0xff] %vm523, %v2154
      %v2163 = vld [vmem:[#allocation3] sm:$0xf]
      %v2164 = vld [vmem:[#allocation3 + $0x4] sm:$0x1]
      %v2165 = vld [vmem:[#allocation3 + $0x8] sm:$0xf]
      %v2166 = vld [vmem:[#allocation3 + $0xc] sm:$0x1]
      %v2167 = vld [vmem:[#allocation3 + $0x10] sm:$0xf]
      %v2168 = vld [vmem:[#allocation3 + $0x14] sm:$0x1]
      %v2169 = vld [vmem:[#allocation3 + $0x18] sm:$0xf]
      %v2170 = vld [vmem:[#allocation3 + $0x1c] sm:$0x1]
      %v2171 = vld [vmem:[#allocation3 + $0x20] sm:$0xf]
      %v2172 = vld [vmem:[#allocation3 + $0x24] sm:$0x1]
      %v2173 = vld [vmem:[#allocation3 + $0x28] sm:$0xf]
      %v2174 = vld [vmem:[#allocation3 + $0x2c] sm:$0x1]
      %v2175 = vld [vmem:[#allocation3 + $0x30] sm:$0xf]
      %v2176 = vld [vmem:[#allocation3 + $0x34] sm:$0x1]
      %v2177 = vld [vmem:[#allocation3 + $0x38] sm:$0xf]
      %v2178 = vld [vmem:[#allocation3 + $0x3c] sm:$0x1]
      %v2180 = vshrl.u32 %v2163, 16
      %v2182 = vrot.slane %v2180, 4
      %v2183 = vshll.u32 %v2163, 16
      %v2185 = vrot.slane %v2183, 5
      %v2186 = vor.u32 %v2182, %v2185
      %v2187 = vrot.slane %v2186, 4
      %v2189 = vshll.u32 %v2164, 16
      %v2191 = vrot.slane %v2189, 5
      %v2192 = vsel %vm546, %v2187, %v2191
      %v2194 = vshrl.u32 %v2165, 16
      %v2196 = vrot.slane %v2194, 4
      %v2197 = vshll.u32 %v2165, 16
      %v2199 = vrot.slane %v2197, 5
      %v2200 = vor.u32 %v2196, %v2199
      %v2201 = vrot.slane %v2200, 4
      %v2203 = vshll.u32 %v2166, 16
      %v2205 = vrot.slane %v2203, 5
      %v2206 = vsel %vm546, %v2201, %v2205
      %v2208 = vshrl.u32 %v2167, 16
      %v2210 = vrot.slane %v2208, 4
      %v2211 = vshll.u32 %v2167, 16
      %v2213 = vrot.slane %v2211, 5
      %v2214 = vor.u32 %v2210, %v2213
      %v2215 = vrot.slane %v2214, 4
      %v2217 = vshll.u32 %v2168, 16
      %v2219 = vrot.slane %v2217, 5
      %v2220 = vsel %vm546, %v2215, %v2219
      %v2222 = vshrl.u32 %v2169, 16
      %v2224 = vrot.slane %v2222, 4
      %v2225 = vshll.u32 %v2169, 16
      %v2227 = vrot.slane %v2225, 5
      %v2228 = vor.u32 %v2224, %v2227
      %v2229 = vrot.slane %v2228, 4
      %v2231 = vshll.u32 %v2170, 16
      %v2233 = vrot.slane %v2231, 5
      %v2234 = vsel %vm546, %v2229, %v2233
      %v2236 = vshrl.u32 %v2171, 16
      %v2238 = vrot.slane %v2236, 4
      %v2239 = vshll.u32 %v2171, 16
      %v2241 = vrot.slane %v2239, 5
      %v2242 = vor.u32 %v2238, %v2241
      %v2243 = vrot.slane %v2242, 4
      %v2245 = vshll.u32 %v2172, 16
      %v2247 = vrot.slane %v2245, 5
      %v2248 = vsel %vm546, %v2243, %v2247
      %v2250 = vshrl.u32 %v2173, 16
      %v2252 = vrot.slane %v2250, 4
      %v2253 = vshll.u32 %v2173, 16
      %v2255 = vrot.slane %v2253, 5
      %v2256 = vor.u32 %v2252, %v2255
      %v2257 = vrot.slane %v2256, 4
      %v2259 = vshll.u32 %v2174, 16
      %v2261 = vrot.slane %v2259, 5
      %v2262 = vsel %vm546, %v2257, %v2261
      %v2264 = vshrl.u32 %v2175, 16
      %v2266 = vrot.slane %v2264, 4
      %v2267 = vshll.u32 %v2175, 16
      %v2269 = vrot.slane %v2267, 5
      %v2270 = vor.u32 %v2266, %v2269
      %v2271 = vrot.slane %v2270, 4
      %v2273 = vshll.u32 %v2176, 16
      %v2275 = vrot.slane %v2273, 5
      %v2276 = vsel %vm546, %v2271, %v2275
      %v2278 = vshrl.u32 %v2177, 16
      %v2280 = vrot.slane %v2278, 4
      %v2281 = vshll.u32 %v2177, 16
      %v2283 = vrot.slane %v2281, 5
      %v2284 = vor.u32 %v2280, %v2283
      %v2285 = vrot.slane %v2284, 4
      %v2287 = vshll.u32 %v2178, 16
      %v2289 = vrot.slane %v2287, 5
      %v2290 = vsel %vm546, %v2285, %v2289
      %v2291 = vunpack.c.l.b16 %v2192
      %v2292 = vunpack.c.l.b16 %v2206
      %v2293 = vunpack.c.l.b16 %v2220
      %v2294 = vunpack.c.l.b16 %v2234
      %v2295 = vunpack.c.l.b16 %v2248
      %v2296 = vunpack.c.l.b16 %v2262
      %v2297 = vunpack.c.l.b16 %v2276
      %v2298 = vunpack.c.l.b16 %v2290
      %v2299 = vpack.c.b16 %v2292, %v2291
      %v2300 = vpack.c.b16 %v2294, %v2293
      %v2301 = vpack.c.b16 %v2296, %v2295
      %v2302 = vpack.c.b16 %v2298, %v2297
      %2303 = vrot.lane.b32.xlu0 %v2299, 64
      %v2304 = vpop.permute.xlu0 %2303
      %2305 = vrot.lane.b32.xlu0 %v2300, 64
      %v2306 = vpop.permute.xlu0 %2305
      %2307 = vrot.lane.b32.xlu0 %v2301, 64
      %v2308 = vpop.permute.xlu0 %2307
      %2309 = vrot.lane.b32.xlu0 %v2302, 64
      %v2310 = vpop.permute.xlu0 %2309
      %2315 = vst.msk [vmem:[#allocation5] sm:$0xff] %vm683, %v2304
      %2316 = vst.msk [vmem:[#allocation5 + $0x28] sm:$0xff] %vm683, %v2306
      %2317 = vst.msk [vmem:[#allocation5 + $0x50] sm:$0xff] %vm683, %v2308
      %2318 = vst.msk [vmem:[#allocation5 + $0x78] sm:$0xff] %vm683, %v2310
      %v2319 = vld [vmem:[#allocation3] sm:$0xe]
      %v2320 = vld [vmem:[#allocation3 + $0x4] sm:$0x1]
      %v2321 = vld [vmem:[#allocation3 + $0x8] sm:$0xe]
      %v2322 = vld [vmem:[#allocation3 + $0xc] sm:$0x1]
      %v2323 = vld [vmem:[#allocation3 + $0x10] sm:$0xe]
      %v2324 = vld [vmem:[#allocation3 + $0x14] sm:$0x1]
      %v2325 = vld [vmem:[#allocation3 + $0x18] sm:$0xe]
      %v2326 = vld [vmem:[#allocation3 + $0x1c] sm:$0x1]
      %v2327 = vld [vmem:[#allocation3 + $0x20] sm:$0xe]
      %v2328 = vld [vmem:[#allocation3 + $0x24] sm:$0x1]
      %v2329 = vld [vmem:[#allocation3 + $0x28] sm:$0xe]
      %v2330 = vld [vmem:[#allocation3 + $0x2c] sm:$0x1]
      %v2331 = vld [vmem:[#allocation3 + $0x30] sm:$0xe]
      %v2332 = vld [vmem:[#allocation3 + $0x34] sm:$0x1]
      %v2333 = vld [vmem:[#allocation3 + $0x38] sm:$0xe]
      %v2334 = vld [vmem:[#allocation3 + $0x3c] sm:$0x1]
      %v2351 = vrot.slane %v2319, 5
      %v2352 = vrot.slane %v2351, 4
      %v2353 = vrot.slane %v2320, 5
      %v2354 = vsel %vm722, %v2352, %v2353
      %v2355 = vrot.slane %v2321, 5
      %v2356 = vrot.slane %v2355, 4
      %v2357 = vrot.slane %v2322, 5
      %v2358 = vsel %vm722, %v2356, %v2357
      %v2359 = vrot.slane %v2323, 5
      %v2360 = vrot.slane %v2359, 4
      %v2361 = vrot.slane %v2324, 5
      %v2362 = vsel %vm722, %v2360, %v2361
      %v2363 = vrot.slane %v2325, 5
      %v2364 = vrot.slane %v2363, 4
      %v2365 = vrot.slane %v2326, 5
      %v2366 = vsel %vm722, %v2364, %v2365
      %v2367 = vrot.slane %v2327, 5
      %v2368 = vrot.slane %v2367, 4
      %v2369 = vrot.slane %v2328, 5
      %v2370 = vsel %vm722, %v2368, %v2369
      %v2371 = vrot.slane %v2329, 5
      %v2372 = vrot.slane %v2371, 4
      %v2373 = vrot.slane %v2330, 5
      %v2374 = vsel %vm722, %v2372, %v2373
      %v2375 = vrot.slane %v2331, 5
      %v2376 = vrot.slane %v2375, 4
      %v2377 = vrot.slane %v2332, 5
      %v2378 = vsel %vm722, %v2376, %v2377
      %v2379 = vrot.slane %v2333, 5
      %v2380 = vrot.slane %v2379, 4
      %v2381 = vrot.slane %v2334, 5
      %v2382 = vsel %vm722, %v2380, %v2381
      %v2383 = vunpack.c.l.b16 %v2354
      %v2384 = vunpack.c.l.b16 %v2358
      %v2385 = vunpack.c.l.b16 %v2362
      %v2386 = vunpack.c.l.b16 %v2366
      %v2387 = vunpack.c.l.b16 %v2370
      %v2388 = vunpack.c.l.b16 %v2374
      %v2389 = vunpack.c.l.b16 %v2378
      %v2390 = vunpack.c.l.b16 %v2382
      %v2391 = vpack.c.b16 %v2384, %v2383
      %v2392 = vpack.c.b16 %v2386, %v2385
      %v2393 = vpack.c.b16 %v2388, %v2387
      %v2394 = vpack.c.b16 %v2390, %v2389
      %2399 = vst.msk [vmem:[#allocation5 + $0x8] sm:$0xff] %vm523, %v2391
      %2400 = vst.msk [vmem:[#allocation5 + $0x30] sm:$0xff] %vm523, %v2392
      %2401 = vst.msk [vmem:[#allocation5 + $0x58] sm:$0xff] %vm523, %v2393
      %2402 = vst.msk [vmem:[#allocation5 + $0x80] sm:$0xff] %vm523, %v2394
      %v2403 = vld [vmem:[%s2078] sm:$0xf]
      %v2404 = vld [vmem:[%s2078 + $0x8] sm:$0xf]
      %v2405 = vld [vmem:[%s2078 + $0x10] sm:$0xf]
      %v2406 = vld [vmem:[%s2078 + $0x18] sm:$0xf]
      %v2407 = vld [vmem:[%s2078 + $0x20] sm:$0xf]
      %v2408 = vld [vmem:[%s2078 + $0x28] sm:$0xf]
      %v2409 = vld [vmem:[%s2078 + $0x30] sm:$0xf]
      %v2410 = vld [vmem:[%s2078 + $0x38] sm:$0xf]
      %v2419 = vunpack.c.l.b16 %v2403
      %v2420 = vunpack.c.l.b16 %v2404
      %v2421 = vunpack.c.l.b16 %v2405
      %v2422 = vunpack.c.l.b16 %v2406
      %v2423 = vunpack.c.l.b16 %v2407
      %v2424 = vunpack.c.l.b16 %v2408
      %v2425 = vunpack.c.l.b16 %v2409
      %v2426 = vunpack.c.l.b16 %v2410
      %v2427 = vpack.c.b16 %v2420, %v2419
      %v2428 = vpack.c.b16 %v2422, %v2421
      %v2429 = vpack.c.b16 %v2424, %v2423
      %v2430 = vpack.c.b16 %v2426, %v2425
      %2431 = vrot.lane.b32.xlu0 %v2427, 64
      %v2432 = vpop.permute.xlu0 %2431
      %2433 = vrot.lane.b32.xlu0 %v2428, 64
      %v2434 = vpop.permute.xlu0 %2433
      %2435 = vrot.lane.b32.xlu0 %v2429, 64
      %v2436 = vpop.permute.xlu0 %2435
      %2437 = vrot.lane.b32.xlu0 %v2430, 64
      %v2438 = vpop.permute.xlu0 %2437
      %2443 = vst.msk [vmem:[#allocation5 + $0x8] sm:$0xff] %vm683, %v2432
      %2444 = vst.msk [vmem:[#allocation5 + $0x30] sm:$0xff] %vm683, %v2434
      %2445 = vst.msk [vmem:[#allocation5 + $0x58] sm:$0xff] %vm683, %v2436
      %2446 = vst.msk [vmem:[#allocation5 + $0x80] sm:$0xff] %vm683, %v2438
      %v2447 = vld [vmem:[%s2078] sm:$0xf]
      %v2448 = vld [vmem:[%s2078 + $0x4] sm:$0x1]
      %v2449 = vld [vmem:[%s2078 + $0x8] sm:$0xf]
      %v2450 = vld [vmem:[%s2078 + $0xc] sm:$0x1]
      %v2451 = vld [vmem:[%s2078 + $0x10] sm:$0xf]
      %v2452 = vld [vmem:[%s2078 + $0x14] sm:$0x1]
      %v2453 = vld [vmem:[%s2078 + $0x18] sm:$0xf]
      %v2454 = vld [vmem:[%s2078 + $0x1c] sm:$0x1]
      %v2455 = vld [vmem:[%s2078 + $0x20] sm:$0xf]
      %v2456 = vld [vmem:[%s2078 + $0x24] sm:$0x1]
      %v2457 = vld [vmem:[%s2078 + $0x28] sm:$0xf]
      %v2458 = vld [vmem:[%s2078 + $0x2c] sm:$0x1]
      %v2459 = vld [vmem:[%s2078 + $0x30] sm:$0xf]
      %v2460 = vld [vmem:[%s2078 + $0x34] sm:$0x1]
      %v2461 = vld [vmem:[%s2078 + $0x38] sm:$0xf]
      %v2462 = vld [vmem:[%s2078 + $0x3c] sm:$0x1]
      %v2464 = vshrl.u32 %v2447, 16
      %v2466 = vrot.slane %v2464, 4
      %v2467 = vshll.u32 %v2447, 16
      %v2469 = vrot.slane %v2467, 5
      %v2470 = vor.u32 %v2466, %v2469
      %v2471 = vrot.slane %v2470, 4
      %v2473 = vshll.u32 %v2448, 16
      %v2475 = vrot.slane %v2473, 5
      %v2476 = vsel %vm546, %v2471, %v2475
      %v2478 = vshrl.u32 %v2449, 16
      %v2480 = vrot.slane %v2478, 4
      %v2481 = vshll.u32 %v2449, 16
      %v2483 = vrot.slane %v2481, 5
      %v2484 = vor.u32 %v2480, %v2483
      %v2485 = vrot.slane %v2484, 4
      %v2487 = vshll.u32 %v2450, 16
      %v2489 = vrot.slane %v2487, 5
      %v2490 = vsel %vm546, %v2485, %v2489
      %v2492 = vshrl.u32 %v2451, 16
      %v2494 = vrot.slane %v2492, 4
      %v2495 = vshll.u32 %v2451, 16
      %v2497 = vrot.slane %v2495, 5
      %v2498 = vor.u32 %v2494, %v2497
      %v2499 = vrot.slane %v2498, 4
      %v2501 = vshll.u32 %v2452, 16
      %v2503 = vrot.slane %v2501, 5
      %v2504 = vsel %vm546, %v2499, %v2503
      %v2506 = vshrl.u32 %v2453, 16
      %v2508 = vrot.slane %v2506, 4
      %v2509 = vshll.u32 %v2453, 16
      %v2511 = vrot.slane %v2509, 5
      %v2512 = vor.u32 %v2508, %v2511
      %v2513 = vrot.slane %v2512, 4
      %v2515 = vshll.u32 %v2454, 16
      %v2517 = vrot.slane %v2515, 5
      %v2518 = vsel %vm546, %v2513, %v2517
      %v2520 = vshrl.u32 %v2455, 16
      %v2522 = vrot.slane %v2520, 4
      %v2523 = vshll.u32 %v2455, 16
      %v2525 = vrot.slane %v2523, 5
      %v2526 = vor.u32 %v2522, %v2525
      %v2527 = vrot.slane %v2526, 4
      %v2529 = vshll.u32 %v2456, 16
      %v2531 = vrot.slane %v2529, 5
      %v2532 = vsel %vm546, %v2527, %v2531
      %v2534 = vshrl.u32 %v2457, 16
      %v2536 = vrot.slane %v2534, 4
      %v2537 = vshll.u32 %v2457, 16
      %v2539 = vrot.slane %v2537, 5
      %v2540 = vor.u32 %v2536, %v2539
      %v2541 = vrot.slane %v2540, 4
      %v2543 = vshll.u32 %v2458, 16
      %v2545 = vrot.slane %v2543, 5
      %v2546 = vsel %vm546, %v2541, %v2545
      %v2548 = vshrl.u32 %v2459, 16
      %v2550 = vrot.slane %v2548, 4
      %v2551 = vshll.u32 %v2459, 16
      %v2553 = vrot.slane %v2551, 5
      %v2554 = vor.u32 %v2550, %v2553
      %v2555 = vrot.slane %v2554, 4
      %v2557 = vshll.u32 %v2460, 16
      %v2559 = vrot.slane %v2557, 5
      %v2560 = vsel %vm546, %v2555, %v2559
      %v2562 = vshrl.u32 %v2461, 16
      %v2564 = vrot.slane %v2562, 4
      %v2565 = vshll.u32 %v2461, 16
      %v2567 = vrot.slane %v2565, 5
      %v2568 = vor.u32 %v2564, %v2567
      %v2569 = vrot.slane %v2568, 4
      %v2571 = vshll.u32 %v2462, 16
      %v2573 = vrot.slane %v2571, 5
      %v2574 = vsel %vm546, %v2569, %v2573
      %v2575 = vunpack.c.l.b16 %v2476
      %v2576 = vunpack.c.l.b16 %v2490
      %v2577 = vunpack.c.l.b16 %v2504
      %v2578 = vunpack.c.l.b16 %v2518
      %v2579 = vunpack.c.l.b16 %v2532
      %v2580 = vunpack.c.l.b16 %v2546
      %v2581 = vunpack.c.l.b16 %v2560
      %v2582 = vunpack.c.l.b16 %v2574
      %v2583 = vpack.c.b16 %v2576, %v2575
      %v2584 = vpack.c.b16 %v2578, %v2577
      %v2585 = vpack.c.b16 %v2580, %v2579
      %v2586 = vpack.c.b16 %v2582, %v2581
      %2591 = vst.msk [vmem:[#allocation5 + $0x10] sm:$0xff] %vm523, %v2583
      %2592 = vst.msk [vmem:[#allocation5 + $0x38] sm:$0xff] %vm523, %v2584
      %2593 = vst.msk [vmem:[#allocation5 + $0x60] sm:$0xff] %vm523, %v2585
      %2594 = vst.msk [vmem:[#allocation5 + $0x88] sm:$0xff] %vm523, %v2586
      %v2595 = vld [vmem:[%s2078] sm:$0xe]
      %v2596 = vld [vmem:[%s2078 + $0x4] sm:$0x1]
      %v2597 = vld [vmem:[%s2078 + $0x8] sm:$0xe]
      %v2598 = vld [vmem:[%s2078 + $0xc] sm:$0x1]
      %v2599 = vld [vmem:[%s2078 + $0x10] sm:$0xe]
      %v2600 = vld [vmem:[%s2078 + $0x14] sm:$0x1]
      %v2601 = vld [vmem:[%s2078 + $0x18] sm:$0xe]
      %v2602 = vld [vmem:[%s2078 + $0x1c] sm:$0x1]
      %v2603 = vld [vmem:[%s2078 + $0x20] sm:$0xe]
      %v2604 = vld [vmem:[%s2078 + $0x24] sm:$0x1]
      %v2605 = vld [vmem:[%s2078 + $0x28] sm:$0xe]
      %v2606 = vld [vmem:[%s2078 + $0x2c] sm:$0x1]
      %v2607 = vld [vmem:[%s2078 + $0x30] sm:$0xe]
      %v2608 = vld [vmem:[%s2078 + $0x34] sm:$0x1]
      %v2609 = vld [vmem:[%s2078 + $0x38] sm:$0xe]
      %v2610 = vld [vmem:[%s2078 + $0x3c] sm:$0x1]
      %v2627 = vrot.slane %v2595, 5
      %v2628 = vrot.slane %v2627, 4
      %v2629 = vrot.slane %v2596, 5
      %v2630 = vsel %vm722, %v2628, %v2629
      %v2631 = vrot.slane %v2597, 5
      %v2632 = vrot.slane %v2631, 4
      %v2633 = vrot.slane %v2598, 5
      %v2634 = vsel %vm722, %v2632, %v2633
      %v2635 = vrot.slane %v2599, 5
      %v2636 = vrot.slane %v2635, 4
      %v2637 = vrot.slane %v2600, 5
      %v2638 = vsel %vm722, %v2636, %v2637
      %v2639 = vrot.slane %v2601, 5
      %v2640 = vrot.slane %v2639, 4
      %v2641 = vrot.slane %v2602, 5
      %v2642 = vsel %vm722, %v2640, %v2641
      %v2643 = vrot.slane %v2603, 5
      %v2644 = vrot.slane %v2643, 4
      %v2645 = vrot.slane %v2604, 5
      %v2646 = vsel %vm722, %v2644, %v2645
      %v2647 = vrot.slane %v2605, 5
      %v2648 = vrot.slane %v2647, 4
      %v2649 = vrot.slane %v2606, 5
      %v2650 = vsel %vm722, %v2648, %v2649
      %v2651 = vrot.slane %v2607, 5
      %v2652 = vrot.slane %v2651, 4
      %v2653 = vrot.slane %v2608, 5
      %v2654 = vsel %vm722, %v2652, %v2653
      %v2655 = vrot.slane %v2609, 5
      %v2656 = vrot.slane %v2655, 4
      %v2657 = vrot.slane %v2610, 5
      %v2658 = vsel %vm722, %v2656, %v2657
      %v2659 = vunpack.c.l.b16 %v2630
      %v2660 = vunpack.c.l.b16 %v2634
      %v2661 = vunpack.c.l.b16 %v2638
      %v2662 = vunpack.c.l.b16 %v2642
      %v2663 = vunpack.c.l.b16 %v2646
      %v2664 = vunpack.c.l.b16 %v2650
      %v2665 = vunpack.c.l.b16 %v2654
      %v2666 = vunpack.c.l.b16 %v2658
      %v2667 = vpack.c.b16 %v2660, %v2659
      %v2668 = vpack.c.b16 %v2662, %v2661
      %v2669 = vpack.c.b16 %v2664, %v2663
      %v2670 = vpack.c.b16 %v2666, %v2665
      %2671 = vrot.lane.b32.xlu0 %v2667, 64
      %v2672 = vpop.permute.xlu0 %2671
      %2673 = vrot.lane.b32.xlu0 %v2668, 64
      %v2674 = vpop.permute.xlu0 %2673
      %2675 = vrot.lane.b32.xlu0 %v2669, 64
      %v2676 = vpop.permute.xlu0 %2675
      %2677 = vrot.lane.b32.xlu0 %v2670, 64
      %v2678 = vpop.permute.xlu0 %2677
      %2683 = vst.msk [vmem:[#allocation5 + $0x10] sm:$0xff] %vm683, %v2672
      %2684 = vst.msk [vmem:[#allocation5 + $0x38] sm:$0xff] %vm683, %v2674
      %2685 = vst.msk [vmem:[#allocation5 + $0x60] sm:$0xff] %vm683, %v2676
      %2686 = vst.msk [vmem:[#allocation5 + $0x88] sm:$0xff] %vm683, %v2678
      %s2687 = scalar_lea.vmem [#allocation3], 16
      %v2688 = vld [vmem:[%s2687] sm:$0xf]
      %v2689 = vld [vmem:[%s2687 + $0x8] sm:$0xf]
      %v2690 = vld [vmem:[%s2687 + $0x10] sm:$0xf]
      %v2691 = vld [vmem:[%s2687 + $0x18] sm:$0xf]
      %v2692 = vld [vmem:[%s2687 + $0x20] sm:$0xf]
      %v2693 = vld [vmem:[%s2687 + $0x28] sm:$0xf]
      %v2694 = vld [vmem:[%s2687 + $0x30] sm:$0xf]
      %v2695 = vld [vmem:[%s2687 + $0x38] sm:$0xf]
      %v2704 = vunpack.c.l.b16 %v2688
      %v2705 = vunpack.c.l.b16 %v2689
      %v2706 = vunpack.c.l.b16 %v2690
      %v2707 = vunpack.c.l.b16 %v2691
      %v2708 = vunpack.c.l.b16 %v2692
      %v2709 = vunpack.c.l.b16 %v2693
      %v2710 = vunpack.c.l.b16 %v2694
      %v2711 = vunpack.c.l.b16 %v2695
      %v2712 = vpack.c.b16 %v2705, %v2704
      %v2713 = vpack.c.b16 %v2707, %v2706
      %v2714 = vpack.c.b16 %v2709, %v2708
      %v2715 = vpack.c.b16 %v2711, %v2710
      %2720 = vst.msk [vmem:[#allocation5 + $0x18] sm:$0xff] %vm523, %v2712
      %2721 = vst.msk [vmem:[#allocation5 + $0x40] sm:$0xff] %vm523, %v2713
      %2722 = vst.msk [vmem:[#allocation5 + $0x68] sm:$0xff] %vm523, %v2714
      %2723 = vst.msk [vmem:[#allocation5 + $0x90] sm:$0xff] %vm523, %v2715
      %v2724 = vld [vmem:[%s2687] sm:$0xf]
      %v2725 = vld [vmem:[%s2687 + $0x4] sm:$0x1]
      %v2726 = vld [vmem:[%s2687 + $0x8] sm:$0xf]
      %v2727 = vld [vmem:[%s2687 + $0xc] sm:$0x1]
      %v2728 = vld [vmem:[%s2687 + $0x10] sm:$0xf]
      %v2729 = vld [vmem:[%s2687 + $0x14] sm:$0x1]
      %v2730 = vld [vmem:[%s2687 + $0x18] sm:$0xf]
      %v2731 = vld [vmem:[%s2687 + $0x1c] sm:$0x1]
      %v2732 = vld [vmem:[%s2687 + $0x20] sm:$0xf]
      %v2733 = vld [vmem:[%s2687 + $0x24] sm:$0x1]
      %v2734 = vld [vmem:[%s2687 + $0x28] sm:$0xf]
      %v2735 = vld [vmem:[%s2687 + $0x2c] sm:$0x1]
      %v2736 = vld [vmem:[%s2687 + $0x30] sm:$0xf]
      %v2737 = vld [vmem:[%s2687 + $0x34] sm:$0x1]
      %v2738 = vld [vmem:[%s2687 + $0x38] sm:$0xf]
      %v2739 = vld [vmem:[%s2687 + $0x3c] sm:$0x1]
      %v2741 = vshrl.u32 %v2724, 16
      %v2743 = vrot.slane %v2741, 4
      %v2744 = vshll.u32 %v2724, 16
      %v2746 = vrot.slane %v2744, 5
      %v2747 = vor.u32 %v2743, %v2746
      %v2748 = vrot.slane %v2747, 4
      %v2750 = vshll.u32 %v2725, 16
      %v2752 = vrot.slane %v2750, 5
      %v2753 = vsel %vm546, %v2748, %v2752
      %v2755 = vshrl.u32 %v2726, 16
      %v2757 = vrot.slane %v2755, 4
      %v2758 = vshll.u32 %v2726, 16
      %v2760 = vrot.slane %v2758, 5
      %v2761 = vor.u32 %v2757, %v2760
      %v2762 = vrot.slane %v2761, 4
      %v2764 = vshll.u32 %v2727, 16
      %v2766 = vrot.slane %v2764, 5
      %v2767 = vsel %vm546, %v2762, %v2766
      %v2769 = vshrl.u32 %v2728, 16
      %v2771 = vrot.slane %v2769, 4
      %v2772 = vshll.u32 %v2728, 16
      %v2774 = vrot.slane %v2772, 5
      %v2775 = vor.u32 %v2771, %v2774
      %v2776 = vrot.slane %v2775, 4
      %v2778 = vshll.u32 %v2729, 16
      %v2780 = vrot.slane %v2778, 5
      %v2781 = vsel %vm546, %v2776, %v2780
      %v2783 = vshrl.u32 %v2730, 16
      %v2785 = vrot.slane %v2783, 4
      %v2786 = vshll.u32 %v2730, 16
      %v2788 = vrot.slane %v2786, 5
      %v2789 = vor.u32 %v2785, %v2788
      %v2790 = vrot.slane %v2789, 4
      %v2792 = vshll.u32 %v2731, 16
      %v2794 = vrot.slane %v2792, 5
      %v2795 = vsel %vm546, %v2790, %v2794
      %v2797 = vshrl.u32 %v2732, 16
      %v2799 = vrot.slane %v2797, 4
      %v2800 = vshll.u32 %v2732, 16
      %v2802 = vrot.slane %v2800, 5
      %v2803 = vor.u32 %v2799, %v2802
      %v2804 = vrot.slane %v2803, 4
      %v2806 = vshll.u32 %v2733, 16
      %v2808 = vrot.slane %v2806, 5
      %v2809 = vsel %vm546, %v2804, %v2808
      %v2811 = vshrl.u32 %v2734, 16
      %v2813 = vrot.slane %v2811, 4
      %v2814 = vshll.u32 %v2734, 16
      %v2816 = vrot.slane %v2814, 5
      %v2817 = vor.u32 %v2813, %v2816
      %v2818 = vrot.slane %v2817, 4
      %v2820 = vshll.u32 %v2735, 16
      %v2822 = vrot.slane %v2820, 5
      %v2823 = vsel %vm546, %v2818, %v2822
      %v2825 = vshrl.u32 %v2736, 16
      %v2827 = vrot.slane %v2825, 4
      %v2828 = vshll.u32 %v2736, 16
      %v2830 = vrot.slane %v2828, 5
      %v2831 = vor.u32 %v2827, %v2830
      %v2832 = vrot.slane %v2831, 4
      %v2834 = vshll.u32 %v2737, 16
      %v2836 = vrot.slane %v2834, 5
      %v2837 = vsel %vm546, %v2832, %v2836
      %v2839 = vshrl.u32 %v2738, 16
      %v2841 = vrot.slane %v2839, 4
      %v2842 = vshll.u32 %v2738, 16
      %v2844 = vrot.slane %v2842, 5
      %v2845 = vor.u32 %v2841, %v2844
      %v2846 = vrot.slane %v2845, 4
      %v2848 = vshll.u32 %v2739, 16
      %v2850 = vrot.slane %v2848, 5
      %v2851 = vsel %vm546, %v2846, %v2850
      %v2852 = vunpack.c.l.b16 %v2753
      %v2853 = vunpack.c.l.b16 %v2767
      %v2854 = vunpack.c.l.b16 %v2781
      %v2855 = vunpack.c.l.b16 %v2795
      %v2856 = vunpack.c.l.b16 %v2809
      %v2857 = vunpack.c.l.b16 %v2823
      %v2858 = vunpack.c.l.b16 %v2837
      %v2859 = vunpack.c.l.b16 %v2851
      %v2860 = vpack.c.b16 %v2853, %v2852
      %v2861 = vpack.c.b16 %v2855, %v2854
      %v2862 = vpack.c.b16 %v2857, %v2856
      %v2863 = vpack.c.b16 %v2859, %v2858
      %2864 = vrot.lane.b32.xlu0 %v2860, 64
      %v2865 = vpop.permute.xlu0 %2864
      %2866 = vrot.lane.b32.xlu0 %v2861, 64
      %v2867 = vpop.permute.xlu0 %2866
      %2868 = vrot.lane.b32.xlu0 %v2862, 64
      %v2869 = vpop.permute.xlu0 %2868
      %2870 = vrot.lane.b32.xlu0 %v2863, 64
      %v2871 = vpop.permute.xlu0 %2870
      %2876 = vst.msk [vmem:[#allocation5 + $0x18] sm:$0xff] %vm683, %v2865
      %2877 = vst.msk [vmem:[#allocation5 + $0x40] sm:$0xff] %vm683, %v2867
      %2878 = vst.msk [vmem:[#allocation5 + $0x68] sm:$0xff] %vm683, %v2869
      %2879 = vst.msk [vmem:[#allocation5 + $0x90] sm:$0xff] %vm683, %v2871
      %v2880 = vld [vmem:[%s2687] sm:$0xe]
      %v2881 = vld [vmem:[%s2687 + $0x4] sm:$0x1]
      %v2882 = vld [vmem:[%s2687 + $0x8] sm:$0xe]
      %v2883 = vld [vmem:[%s2687 + $0xc] sm:$0x1]
      %v2884 = vld [vmem:[%s2687 + $0x10] sm:$0xe]
      %v2885 = vld [vmem:[%s2687 + $0x14] sm:$0x1]
      %v2886 = vld [vmem:[%s2687 + $0x18] sm:$0xe]
      %v2887 = vld [vmem:[%s2687 + $0x1c] sm:$0x1]
      %v2888 = vld [vmem:[%s2687 + $0x20] sm:$0xe]
      %v2889 = vld [vmem:[%s2687 + $0x24] sm:$0x1]
      %v2890 = vld [vmem:[%s2687 + $0x28] sm:$0xe]
      %v2891 = vld [vmem:[%s2687 + $0x2c] sm:$0x1]
      %v2892 = vld [vmem:[%s2687 + $0x30] sm:$0xe]
      %v2893 = vld [vmem:[%s2687 + $0x34] sm:$0x1]
      %v2894 = vld [vmem:[%s2687 + $0x38] sm:$0xe]
      %v2895 = vld [vmem:[%s2687 + $0x3c] sm:$0x1]
      %v2912 = vrot.slane %v2880, 5
      %v2913 = vrot.slane %v2912, 4
      %v2914 = vrot.slane %v2881, 5
      %v2915 = vsel %vm722, %v2913, %v2914
      %v2916 = vrot.slane %v2882, 5
      %v2917 = vrot.slane %v2916, 4
      %v2918 = vrot.slane %v2883, 5
      %v2919 = vsel %vm722, %v2917, %v2918
      %v2920 = vrot.slane %v2884, 5
      %v2921 = vrot.slane %v2920, 4
      %v2922 = vrot.slane %v2885, 5
      %v2923 = vsel %vm722, %v2921, %v2922
      %v2924 = vrot.slane %v2886, 5
      %v2925 = vrot.slane %v2924, 4
      %v2926 = vrot.slane %v2887, 5
      %v2927 = vsel %vm722, %v2925, %v2926
      %v2928 = vrot.slane %v2888, 5
      %v2929 = vrot.slane %v2928, 4
      %v2930 = vrot.slane %v2889, 5
      %v2931 = vsel %vm722, %v2929, %v2930
      %v2932 = vrot.slane %v2890, 5
      %v2933 = vrot.slane %v2932, 4
      %v2934 = vrot.slane %v2891, 5
      %v2935 = vsel %vm722, %v2933, %v2934
      %v2936 = vrot.slane %v2892, 5
      %v2937 = vrot.slane %v2936, 4
      %v2938 = vrot.slane %v2893, 5
      %v2939 = vsel %vm722, %v2937, %v2938
      %v2940 = vrot.slane %v2894, 5
      %v2941 = vrot.slane %v2940, 4
      %v2942 = vrot.slane %v2895, 5
      %v2943 = vsel %vm722, %v2941, %v2942
      %v2944 = vunpack.c.l.b16 %v2915
      %v2945 = vunpack.c.l.b16 %v2919
      %v2946 = vunpack.c.l.b16 %v2923
      %v2947 = vunpack.c.l.b16 %v2927
      %v2948 = vunpack.c.l.b16 %v2931
      %v2949 = vunpack.c.l.b16 %v2935
      %v2950 = vunpack.c.l.b16 %v2939
      %v2951 = vunpack.c.l.b16 %v2943
      %v2952 = vpack.c.b16 %v2945, %v2944
      %v2953 = vpack.c.b16 %v2947, %v2946
      %v2954 = vpack.c.b16 %v2949, %v2948
      %v2955 = vpack.c.b16 %v2951, %v2950
      %2960 = vst.msk [vmem:[#allocation5 + $0x20] sm:$0xff] %vm523, %v2952
      %2961 = vst.msk [vmem:[#allocation5 + $0x48] sm:$0xff] %vm523, %v2953
      %2962 = vst.msk [vmem:[#allocation5 + $0x70] sm:$0xff] %vm523, %v2954
      %2963 = vst.msk [vmem:[#allocation5 + $0x98] sm:$0xff] %vm523, %v2955
      %v2964 = vld [vmem:[#allocation5] sm:$0xff]
      %v2965 = vld [vmem:[#allocation5 + $0x8] sm:$0xff]
      %v2966 = vld [vmem:[#allocation5 + $0x10] sm:$0xff]
      %v2967 = vld [vmem:[#allocation5 + $0x18] sm:$0xff]
      %v2968 = vld [vmem:[#allocation5 + $0x20] sm:$0xff]
      %v2969 = vld [vmem:[#allocation5 + $0x28] sm:$0xff]
      %v2970 = vld [vmem:[#allocation5 + $0x30] sm:$0xff]
      %v2971 = vld [vmem:[#allocation5 + $0x38] sm:$0xff]
      %v2972 = vld [vmem:[#allocation5 + $0x40] sm:$0xff]
      %v2973 = vld [vmem:[#allocation5 + $0x48] sm:$0xff]
      %v2974 = vld [vmem:[#allocation5 + $0x50] sm:$0xff]
      %v2975 = vld [vmem:[#allocation5 + $0x58] sm:$0xff]
      %v2976 = vld [vmem:[#allocation5 + $0x60] sm:$0xff]
      %v2977 = vld [vmem:[#allocation5 + $0x68] sm:$0xff]
      %v2978 = vld [vmem:[#allocation5 + $0x70] sm:$0xff]
      %v2979 = vld [vmem:[#allocation5 + $0x78] sm:$0xff]
      %v2980 = vld [vmem:[#allocation5 + $0x80] sm:$0xff]
      %v2981 = vld [vmem:[#allocation5 + $0x88] sm:$0xff]
      %v2982 = vld [vmem:[#allocation5 + $0x90] sm:$0xff]
      %v2983 = vld [vmem:[#allocation5 + $0x98] sm:$0xff]
      %v2984 = vld [vmem:[%s4] sm:$0xf]
      %v2985 = vld [vmem:[%s4 + $0x4] sm:$0xf]
      %v2986 = vld [vmem:[%s4 + $0x8] sm:$0xf]
      %v2987 = vld [vmem:[%s4 + $0xc] sm:$0xf]
      %v2988 = vld [vmem:[%s4 + $0x10] sm:$0xf]
      %v2989 = vld [vmem:[%s4 + $0x14] sm:$0xf]
      %v2990 = vld [vmem:[%s4 + $0x18] sm:$0xf]
      %v2991 = vld [vmem:[%s4 + $0x1c] sm:$0xf]
      %v2992 = vld [vmem:[%s4 + $0x20] sm:$0xf]
      %v2993 = vld [vmem:[%s4 + $0x24] sm:$0xf]
      %v2994 = vld [vmem:[%s4 + $0x28] sm:$0xf]
      %v2995 = vld [vmem:[%s4 + $0x2c] sm:$0xf]
      %v2996 = vld [vmem:[%s4 + $0x30] sm:$0xf]
      %v2997 = vld [vmem:[%s4 + $0x34] sm:$0xf]
      %v2998 = vld [vmem:[%s4 + $0x38] sm:$0xf]
      %v2999 = vld [vmem:[%s4 + $0x3c] sm:$0xf]
      %v3000 = vld [vmem:[%s4 + $0x40] sm:$0xf]
      %v3001 = vld [vmem:[%s4 + $0x44] sm:$0xf]
      %v3002 = vld [vmem:[%s4 + $0x48] sm:$0xf]
      %v3003 = vld [vmem:[%s4 + $0x4c] sm:$0xf]
      %v3004 = vld [vmem:[%s4 + $0x50] sm:$0xf]
      %v3005 = vld [vmem:[%s4 + $0x54] sm:$0xf]
      %v3006 = vld [vmem:[%s4 + $0x58] sm:$0xf]
      %v3007 = vld [vmem:[%s4 + $0x5c] sm:$0xf]
      %v3008 = vld [vmem:[%s4 + $0x60] sm:$0xf]
      %v3009 = vld [vmem:[%s4 + $0x64] sm:$0xf]
      %v3010 = vld [vmem:[%s4 + $0x68] sm:$0xf]
      %v3011 = vld [vmem:[%s4 + $0x6c] sm:$0xf]
      %v3012 = vld [vmem:[%s4 + $0x70] sm:$0xf]
      %v3013 = vld [vmem:[%s4 + $0x74] sm:$0xf]
      %v3014 = vld [vmem:[%s4 + $0x78] sm:$0xf]
      %v3015 = vld [vmem:[%s4 + $0x7c] sm:$0xf]
      %v3016 = vld [vmem:[%s4 + $0x80] sm:$0xf]
      %v3017 = vld [vmem:[%s4 + $0x84] sm:$0xf]
      %v3018 = vld [vmem:[%s4 + $0x88] sm:$0xf]
      %v3019 = vld [vmem:[%s4 + $0x8c] sm:$0xf]
      %v3020 = vld [vmem:[%s4 + $0x90] sm:$0xf]
      %v3021 = vld [vmem:[%s4 + $0x94] sm:$0xf]
      %v3022 = vld [vmem:[%s4 + $0x98] sm:$0xf]
      %v3023 = vld [vmem:[%s4 + $0x9c] sm:$0xf]
      %v3024 = vld [vmem:[%s4 + $0xa0] sm:$0xf]
      %v3025 = vld [vmem:[%s4 + $0xa4] sm:$0xf]
      %v3026 = vld [vmem:[%s4 + $0xa8] sm:$0xf]
      %v3027 = vld [vmem:[%s4 + $0xac] sm:$0xf]
      %v3028 = vld [vmem:[%s4 + $0xb0] sm:$0xf]
      %v3029 = vld [vmem:[%s4 + $0xb4] sm:$0xf]
      %v3030 = vld [vmem:[%s4 + $0xb8] sm:$0xf]
      %v3031 = vld [vmem:[%s4 + $0xbc] sm:$0xf]
      %v3032 = vld [vmem:[%s4 + $0xc0] sm:$0xf]
      %v3033 = vld [vmem:[%s4 + $0xc4] sm:$0xf]
      %v3034 = vld [vmem:[%s4 + $0xc8] sm:$0xf]
      %v3035 = vld [vmem:[%s4 + $0xcc] sm:$0xf]
      %v3036 = vld [vmem:[%s4 + $0xd0] sm:$0xf]
      %v3037 = vld [vmem:[%s4 + $0xd4] sm:$0xf]
      %v3038 = vld [vmem:[%s4 + $0xd8] sm:$0xf]
      %v3039 = vld [vmem:[%s4 + $0xdc] sm:$0xf]
      %v3040 = vld [vmem:[%s4 + $0xe0] sm:$0xf]
      %v3041 = vld [vmem:[%s4 + $0xe4] sm:$0xf]
      %v3042 = vld [vmem:[%s4 + $0xe8] sm:$0xf]
      %v3043 = vld [vmem:[%s4 + $0xec] sm:$0xf]
      %v3044 = vld [vmem:[%s4 + $0xf0] sm:$0xf]
      %v3045 = vld [vmem:[%s4 + $0xf4] sm:$0xf]
      %v3046 = vld [vmem:[%s4 + $0xf8] sm:$0xf]
      %v3047 = vld [vmem:[%s4 + $0xfc] sm:$0xf]
      %v3048 = vld [vmem:[%s4 + $0x100] sm:$0xf]
      %v3049 = vld [vmem:[%s4 + $0x104] sm:$0xf]
      %v3050 = vld [vmem:[%s4 + $0x108] sm:$0xf]
      %v3051 = vld [vmem:[%s4 + $0x10c] sm:$0xf]
      %v3052 = vld [vmem:[%s4 + $0x110] sm:$0xf]
      %v3053 = vld [vmem:[%s4 + $0x114] sm:$0xf]
      %v3054 = vld [vmem:[%s4 + $0x118] sm:$0xf]
      %v3055 = vld [vmem:[%s4 + $0x11c] sm:$0xf]
      %v3128 = vunpack.c.l.b16 %v2984
      %v3129 = vunpack.c.l.b16 %v2985
      %v3130 = vunpack.c.l.b16 %v2986
      %v3131 = vunpack.c.l.b16 %v2987
      %v3132 = vunpack.c.l.b16 %v2988
      %v3133 = vunpack.c.l.b16 %v2989
      %v3134 = vunpack.c.l.b16 %v2990
      %v3135 = vunpack.c.l.b16 %v2991
      %v3136 = vunpack.c.l.b16 %v2992
      %v3137 = vunpack.c.l.b16 %v2993
      %v3138 = vunpack.c.l.b16 %v2994
      %v3139 = vunpack.c.l.b16 %v2995
      %v3140 = vunpack.c.l.b16 %v2996
      %v3141 = vunpack.c.l.b16 %v2997
      %v3142 = vunpack.c.l.b16 %v2998
      %v3143 = vunpack.c.l.b16 %v2999
      %v3144 = vunpack.c.l.b16 %v3000
      %v3145 = vunpack.c.l.b16 %v3001
      %v3146 = vunpack.c.l.b16 %v3002
      %v3147 = vunpack.c.l.b16 %v3003
      %v3148 = vunpack.c.l.b16 %v3004
      %v3149 = vunpack.c.l.b16 %v3005
      %v3150 = vunpack.c.l.b16 %v3006
      %v3151 = vunpack.c.l.b16 %v3007
      %v3152 = vunpack.c.l.b16 %v3008
      %v3153 = vunpack.c.l.b16 %v3009
      %v3154 = vunpack.c.l.b16 %v3010
      %v3155 = vunpack.c.l.b16 %v3011
      %v3156 = vunpack.c.l.b16 %v3012
      %v3157 = vunpack.c.l.b16 %v3013
      %v3158 = vunpack.c.l.b16 %v3014
      %v3159 = vunpack.c.l.b16 %v3015
      %v3160 = vunpack.c.l.b16 %v3016
      %v3161 = vunpack.c.l.b16 %v3017
      %v3162 = vunpack.c.l.b16 %v3018
      %v3163 = vunpack.c.l.b16 %v3019
      %v3164 = vunpack.c.l.b16 %v3020
      %v3165 = vunpack.c.l.b16 %v3021
      %v3166 = vunpack.c.l.b16 %v3022
      %v3167 = vunpack.c.l.b16 %v3023
      %v3168 = vunpack.c.l.b16 %v3024
      %v3169 = vunpack.c.l.b16 %v3025
      %v3170 = vunpack.c.l.b16 %v3026
      %v3171 = vunpack.c.l.b16 %v3027
      %v3172 = vunpack.c.l.b16 %v3028
      %v3173 = vunpack.c.l.b16 %v3029
      %v3174 = vunpack.c.l.b16 %v3030
      %v3175 = vunpack.c.l.b16 %v3031
      %v3176 = vunpack.c.l.b16 %v3032
      %v3177 = vunpack.c.l.b16 %v3033
      %v3178 = vunpack.c.l.b16 %v3034
      %v3179 = vunpack.c.l.b16 %v3035
      %v3180 = vunpack.c.l.b16 %v3036
      %v3181 = vunpack.c.l.b16 %v3037
      %v3182 = vunpack.c.l.b16 %v3038
      %v3183 = vunpack.c.l.b16 %v3039
      %v3184 = vunpack.c.l.b16 %v3040
      %v3185 = vunpack.c.l.b16 %v3041
      %v3186 = vunpack.c.l.b16 %v3042
      %v3187 = vunpack.c.l.b16 %v3043
      %v3188 = vunpack.c.l.b16 %v3044
      %v3189 = vunpack.c.l.b16 %v3045
      %v3190 = vunpack.c.l.b16 %v3046
      %v3191 = vunpack.c.l.b16 %v3047
      %v3192 = vunpack.c.l.b16 %v3048
      %v3193 = vunpack.c.l.b16 %v3049
      %v3194 = vunpack.c.l.b16 %v3050
      %v3195 = vunpack.c.l.b16 %v3051
      %v3196 = vunpack.c.l.b16 %v3052
      %v3197 = vunpack.c.l.b16 %v3053
      %v3198 = vunpack.c.l.b16 %v3054
      %v3199 = vunpack.c.l.b16 %v3055
      %v3200 = vpack.c.b16 %v3129, %v3128
      %v3201 = vpack.c.b16 %v3131, %v3130
      %v3202 = vpack.c.b16 %v3133, %v3132
      %v3203 = vpack.c.b16 %v3135, %v3134
      %v3204 = vpack.c.b16 %v3137, %v3136
      %v3205 = vpack.c.b16 %v3139, %v3138
      %v3206 = vpack.c.b16 %v3141, %v3140
      %v3207 = vpack.c.b16 %v3143, %v3142
      %v3208 = vpack.c.b16 %v3145, %v3144
      %v3209 = vpack.c.b16 %v3147, %v3146
      %v3210 = vpack.c.b16 %v3149, %v3148
      %v3211 = vpack.c.b16 %v3151, %v3150
      %v3212 = vpack.c.b16 %v3153, %v3152
      %v3213 = vpack.c.b16 %v3155, %v3154
      %v3214 = vpack.c.b16 %v3157, %v3156
      %v3215 = vpack.c.b16 %v3159, %v3158
      %v3216 = vpack.c.b16 %v3161, %v3160
      %v3217 = vpack.c.b16 %v3163, %v3162
      %v3218 = vpack.c.b16 %v3165, %v3164
      %v3219 = vpack.c.b16 %v3167, %v3166
      %v3220 = vpack.c.b16 %v3169, %v3168
      %v3221 = vpack.c.b16 %v3171, %v3170
      %v3222 = vpack.c.b16 %v3173, %v3172
      %v3223 = vpack.c.b16 %v3175, %v3174
      %v3224 = vpack.c.b16 %v3177, %v3176
      %v3225 = vpack.c.b16 %v3179, %v3178
      %v3226 = vpack.c.b16 %v3181, %v3180
      %v3227 = vpack.c.b16 %v3183, %v3182
      %v3228 = vpack.c.b16 %v3185, %v3184
      %v3229 = vpack.c.b16 %v3187, %v3186
      %v3230 = vpack.c.b16 %v3189, %v3188
      %v3231 = vpack.c.b16 %v3191, %v3190
      %v3232 = vpack.c.b16 %v3193, %v3192
      %v3233 = vpack.c.b16 %v3195, %v3194
      %v3234 = vpack.c.b16 %v3197, %v3196
      %v3235 = vpack.c.b16 %v3199, %v3198
      %v3273 = vsel %vm523, %v2968, 0
      %v3276 = vsel %vm523, %v2973, 0
      %v3279 = vsel %vm523, %v2978, 0
      %v3282 = vsel %vm523, %v2983, 0
      %3284 = vmatprep.subr.bf16.mxu0 0
      %3285 = vmatpush1.bf16.msra.mxu0 %v3200
      %3286 = vmatprep.subr.bf16.mxu0 0
      %3287 = vmatpush1.bf16.msra.mxu0 %v3201
      %3288 = vmatprep.subr.bf16.mxu0 0
      %3289 = vmatpush1.bf16.msra.mxu0 %v3202
      %3290 = vmatprep.subr.bf16.mxu0 0
      %3291 = vmatpush1.bf16.msra.mxu0 %v3203
      %3292 = vmatprep.subr.bf16.mxu0 0
      %3293 = vmatpush1.bf16.msra.mxu0 %v3204
      %3294 = vmatprep.subr.bf16.mxu0 0
      %3295 = vmatpush1.bf16.msra.mxu0 %v3205
      %3296 = vmatprep.subr.bf16.mxu0 0
      %3297 = vmatpush1.bf16.msra.mxu0 %v3206
      %3298 = vmatprep.subr.bf16.mxu0 0
      %3299 = vmatpush1.bf16.msra.mxu0 %v3207
      %3300 = vmatprep.subr.bf16.mxu0 0
      %3301 = vmatpush1.bf16.msra.mxu0 %v3208
      %3302 = vmatprep.subr.bf16.mxu0 0
      %3303 = vmatpush1.bf16.msra.mxu0 %v3209
      %3304 = vmatprep.subr.bf16.mxu0 0
      %3305 = vmatpush1.bf16.msra.mxu0 %v3210
      %3306 = vmatprep.subr.bf16.mxu0 0
      %3307 = vmatpush1.bf16.msra.mxu0 %v3211
      %3308 = vmatprep.subr.bf16.mxu0 0
      %3309 = vmatpush1.bf16.msra.mxu0 %v3212
      %3310 = vmatprep.subr.bf16.mxu0 0
      %3311 = vmatpush1.bf16.msra.mxu0 %v3213
      %3312 = vmatprep.subr.bf16.mxu0 0
      %3313 = vmatpush1.bf16.msra.mxu0 %v3214
      %3314 = vmatprep.subr.bf16.mxu0 0
      %3315 = vmatpush1.bf16.msra.mxu0 %v3215
      %3316 = vmatprep.mubr.bf16.mxu0 %v2965
      %3317 = vmatmul.mubr.bf16.gmra.mrb[0].mxu0 %v2964
      %v3318 = vpop.f32.mrb[0].mxu0
      %v3319 = vadd.f32 0.0, %v3318
      %v3320 = vpop.f32.mrb[0].mxu0
      %v3321 = vpop.f32.mrb[0].mxu0
      %v3322 = vadd.f32 0.0, %v3321
      %v3323 = vpop.f32.mrb[0].mxu0
      %3324 = vmatprep.mubr.bf16.mxu0 %v2970
      %3325 = vmatmul.mubr.bf16.gmra.mrb[0].mxu0 %v2969
      %v3326 = vpop.f32.mrb[0].mxu0
      %v3327 = vadd.f32 0.0, %v3326
      %v3328 = vpop.f32.mrb[0].mxu0
      %v3329 = vpop.f32.mrb[0].mxu0
      %v3330 = vadd.f32 0.0, %v3329
      %v3331 = vpop.f32.mrb[0].mxu0
      %3332 = vmatprep.mubr.bf16.mxu0 %v2975
      %3333 = vmatmul.mubr.bf16.gmra.mrb[0].mxu0 %v2974
      %v3334 = vpop.f32.mrb[0].mxu0
      %v3335 = vadd.f32 0.0, %v3334
      %v3336 = vpop.f32.mrb[0].mxu0
      %v3337 = vpop.f32.mrb[0].mxu0
      %v3338 = vadd.f32 0.0, %v3337
      %v3339 = vpop.f32.mrb[0].mxu0
      %3340 = vmatprep.mubr.bf16.mxu0 %v2980
      %3341 = vmatmul.mubr.bf16.gmra.mrb[0].mxu0 %v2979
      %v3342 = vpop.f32.mrb[0].mxu0
      %v3343 = vadd.f32 0.0, %v3342
      %v3344 = vpop.f32.mrb[0].mxu0
      %v3345 = vpop.f32.mrb[0].mxu0
      %v3346 = vadd.f32 0.0, %v3345
      %v3347 = vpop.f32.mrb[0].mxu0
      %3348 = vdwg.mxu0
      %3349 = vmatprep.subr.bf16.mxu0 0
      %3350 = vmatpush1.bf16.msra.mxu0 %v3216
      %3351 = vmatprep.subr.bf16.mxu0 0
      %3352 = vmatpush1.bf16.msra.mxu0 %v3217
      %3353 = vmatprep.subr.bf16.mxu0 0
      %3354 = vmatpush1.bf16.msra.mxu0 %v3218
      %3355 = vmatprep.subr.bf16.mxu0 0
      %3356 = vmatpush1.bf16.msra.mxu0 %v3219
      %3357 = vmatprep.subr.bf16.mxu0 0
      %3358 = vmatpush1.bf16.msra.mxu0 %v3220
      %3359 = vmatprep.subr.bf16.mxu0 0
      %3360 = vmatpush1.bf16.msra.mxu0 %v3221
      %3361 = vmatprep.subr.bf16.mxu0 0
      %3362 = vmatpush1.bf16.msra.mxu0 %v3222
      %3363 = vmatprep.subr.bf16.mxu0 0
      %3364 = vmatpush1.bf16.msra.mxu0 %v3223
      %3365 = vmatprep.subr.bf16.mxu0 0
      %3366 = vmatpush1.bf16.msra.mxu0 %v3224
      %3367 = vmatprep.subr.bf16.mxu0 0
      %3368 = vmatpush1.bf16.msra.mxu0 %v3225
      %3369 = vmatprep.subr.bf16.mxu0 0
      %3370 = vmatpush1.bf16.msra.mxu0 %v3226
      %3371 = vmatprep.subr.bf16.mxu0 0
      %3372 = vmatpush1.bf16.msra.mxu0 %v3227
      %3373 = vmatprep.subr.bf16.mxu0 0
      %3374 = vmatpush1.bf16.msra.mxu0 %v3228
      %3375 = vmatprep.subr.bf16.mxu0 0
      %3376 = vmatpush1.bf16.msra.mxu0 %v3229
      %3377 = vmatprep.subr.bf16.mxu0 0
      %3378 = vmatpush1.bf16.msra.mxu0 %v3230
      %3379 = vmatprep.subr.bf16.mxu0 0
      %3380 = vmatpush1.bf16.msra.mxu0 %v3231
      %3381 = vmatprep.mubr.bf16.mxu0 %v2967
      %3382 = vmatmul.mubr.bf16.gmra.mrb[0].mxu0 %v2966
      %v3383 = vpop.f32.mrb[0].mxu0
      %v3384 = vadd.f32 %v3319, %v3383
      %v3385 = vpop.f32.mrb[0].mxu0
      %v3386 = vpop.f32.mrb[0].mxu0
      %v3387 = vadd.f32 %v3322, %v3386
      %v3388 = vpop.f32.mrb[0].mxu0
      %3389 = vmatprep.mubr.bf16.mxu0 %v2972
      %3390 = vmatmul.mubr.bf16.gmra.mrb[0].mxu0 %v2971
      %v3391 = vpop.f32.mrb[0].mxu0
      %v3392 = vadd.f32 %v3327, %v3391
      %v3393 = vpop.f32.mrb[0].mxu0
      %v3394 = vpop.f32.mrb[0].mxu0
      %v3395 = vadd.f32 %v3330, %v3394
      %v3396 = vpop.f32.mrb[0].mxu0
      %3397 = vmatprep.mubr.bf16.mxu0 %v2977
      %3398 = vmatmul.mubr.bf16.gmra.mrb[0].mxu0 %v2976
      %v3399 = vpop.f32.mrb[0].mxu0
      %v3400 = vadd.f32 %v3335, %v3399
      %v3401 = vpop.f32.mrb[0].mxu0
      %v3402 = vpop.f32.mrb[0].mxu0
      %v3403 = vadd.f32 %v3338, %v3402
      %v3404 = vpop.f32.mrb[0].mxu0
      %3405 = vmatprep.mubr.bf16.mxu0 %v2982
      %3406 = vmatmul.mubr.bf16.gmra.mrb[0].mxu0 %v2981
      %v3407 = vpop.f32.mrb[0].mxu0
      %v3408 = vadd.f32 %v3343, %v3407
      %v3409 = vpop.f32.mrb[0].mxu0
      %v3410 = vpop.f32.mrb[0].mxu0
      %v3411 = vadd.f32 %v3346, %v3410
      %v3412 = vpop.f32.mrb[0].mxu0
      %3413 = vdwg.mxu0
      %3414 = vmatprep.subr.bf16.mxu0 0
      %3415 = vmatpush1.bf16.msra.mxu0 %v3232
      %3416 = vmatprep.subr.bf16.mxu0 0
      %3417 = vmatpush1.bf16.msra.mxu0 %v3233
      %3418 = vmatprep.subr.bf16.mxu0 0
      %3419 = vmatpush1.bf16.msra.mxu0 %v3234
      %3420 = vmatprep.subr.bf16.mxu0 0
      %3421 = vmatpush1.bf16.msra.mxu0 %v3235
      %3422 = vmatprep.subr.bf16.mxu0 0
      %3423 = vmatpush1.bf16.msra.mxu0 0
      %3424 = vmatprep.subr.bf16.mxu0 0
      %3425 = vmatpush1.bf16.msra.mxu0 0
      %3426 = vmatprep.subr.bf16.mxu0 0
      %3427 = vmatpush1.bf16.msra.mxu0 0
      %3428 = vmatprep.subr.bf16.mxu0 0
      %3429 = vmatpush1.bf16.msra.mxu0 0
      %3430 = vmatprep.subr.bf16.mxu0 0
      %3431 = vmatpush1.bf16.msra.mxu0 0
      %3432 = vmatprep.subr.bf16.mxu0 0
      %3433 = vmatpush1.bf16.msra.mxu0 0
      %3434 = vmatprep.subr.bf16.mxu0 0
      %3435 = vmatpush1.bf16.msra.mxu0 0
      %3436 = vmatprep.subr.bf16.mxu0 0
      %3437 = vmatpush1.bf16.msra.mxu0 0
      %3438 = vmatprep.subr.bf16.mxu0 0
      %3439 = vmatpush1.bf16.msra.mxu0 0
      %3440 = vmatprep.subr.bf16.mxu0 0
      %3441 = vmatpush1.bf16.msra.mxu0 0
      %3442 = vmatprep.subr.bf16.mxu0 0
      %3443 = vmatpush1.bf16.msra.mxu0 0
      %3444 = vmatprep.subr.bf16.mxu0 0
      %3445 = vmatpush1.bf16.msra.mxu0 0
      %3446 = vmatprep.mubr.bf16.mxu0 0
      %3447 = vmatmul.mubr.bf16.gmra.mrb[0].mxu0 %v3273
      %v3448 = vpop.f32.mrb[0].mxu0
      %v3449 = vadd.f32 %v3384, %v3448
      %v3450 = vpop.f32.mrb[0].mxu0
      %v3451 = vpop.f32.mrb[0].mxu0
      %v3452 = vadd.f32 %v3387, %v3451
      %v3453 = vpop.f32.mrb[0].mxu0
      %3454 = vmatprep.mubr.bf16.mxu0 0
      %3455 = vmatmul.mubr.bf16.gmra.mrb[0].mxu0 %v3276
      %v3456 = vpop.f32.mrb[0].mxu0
      %v3457 = vadd.f32 %v3392, %v3456
      %v3458 = vpop.f32.mrb[0].mxu0
      %v3459 = vpop.f32.mrb[0].mxu0
      %v3460 = vadd.f32 %v3395, %v3459
      %v3461 = vpop.f32.mrb[0].mxu0
      %3462 = vmatprep.mubr.bf16.mxu0 0
      %3463 = vmatmul.mubr.bf16.gmra.mrb[0].mxu0 %v3279
      %v3464 = vpop.f32.mrb[0].mxu0
      %v3465 = vadd.f32 %v3400, %v3464
      %v3466 = vpop.f32.mrb[0].mxu0
      %v3467 = vpop.f32.mrb[0].mxu0
      %v3468 = vadd.f32 %v3403, %v3467
      %v3469 = vpop.f32.mrb[0].mxu0
      %3470 = vmatprep.mubr.bf16.mxu0 0
      %3471 = vmatmul.mubr.bf16.gmra.mrb[0].mxu0 %v3282
      %v3472 = vpop.f32.mrb[0].mxu0
      %v3473 = vadd.f32 %v3408, %v3472
      %v3474 = vpop.f32.mrb[0].mxu0
      %v3475 = vpop.f32.mrb[0].mxu0
      %v3476 = vadd.f32 %v3411, %v3475
      %v3477 = vpop.f32.mrb[0].mxu0
      %3478 = vdwg.mxu0
      %v3479 = vld [vmem:[%s5] sm:$0x1]
      %v3481 = vlaneseq
      %v3482 = vshrl.u32 %v3481, 7
      %v3483 = vsub.s32 0, %v3482
      %v3484 = vrot.slane %v3479, %v3483
      %v3486 = vmul.f32 %v3449, %v3484
      %v3487 = vmul.f32 %v3452, %v3484
      %v3488 = vmul.f32 %v3457, %v3484
      %v3489 = vmul.f32 %v3460, %v3484
      %v3490 = vmul.f32 %v3465, %v3484
      %v3491 = vmul.f32 %v3468, %v3484
      %v3492 = vmul.f32 %v3473, %v3484
      %v3493 = vmul.f32 %v3476, %v3484
      %v3494 = vld [vmem:[%s6] sm:$0x1]
      %v3496 = vlaneseq
      %v3497 = vshrl.u32 %v3496, 7
      %v3498 = vsub.s32 0, %v3497
      %v3499 = vrot.slane %v3494, %v3498
      %v3501 = vadd.f32 %v3486, %v3499
      %v3502 = vadd.f32 %v3487, %v3499
      %v3503 = vadd.f32 %v3488, %v3499
      %v3504 = vadd.f32 %v3489, %v3499
      %v3505 = vadd.f32 %v3490, %v3499
      %v3506 = vadd.f32 %v3491, %v3499
      %v3507 = vadd.f32 %v3492, %v3499
      %v3508 = vadd.f32 %v3493, %v3499
      %v3509 = vadd.f32 %v3501, %v1893
      %v3510 = vadd.f32 %v3502, %v1894
      %v3511 = vadd.f32 %v3503, %v1895
      %v3512 = vadd.f32 %v3504, %v1896
      %v3513 = vadd.f32 %v3505, %v1897
      %v3514 = vadd.f32 %v3506, %v1898
      %v3515 = vadd.f32 %v3507, %v1899
      %v3516 = vadd.f32 %v3508, %v1900
      %v3517 = vmax.f32 %v3509, 0.0
      %v3518 = vmax.f32 %v3510, 0.0
      %v3519 = vmax.f32 %v3511, 0.0
      %v3520 = vmax.f32 %v3512, 0.0
      %v3521 = vmax.f32 %v3513, 0.0
      %v3522 = vmax.f32 %v3514, 0.0
      %v3523 = vmax.f32 %v3515, 0.0
      %v3524 = vmax.f32 %v3516, 0.0
      %v3525 = vpack.c.bf16 %v3517, %v3517
      %v3526 = vpack.c.bf16 %v3518, %v3518
      %v3527 = vpack.c.bf16 %v3519, %v3519
      %v3528 = vpack.c.bf16 %v3520, %v3520
      %v3529 = vpack.c.bf16 %v3521, %v3521
      %v3530 = vpack.c.bf16 %v3522, %v3522
      %v3531 = vpack.c.bf16 %v3523, %v3523
      %v3532 = vpack.c.bf16 %v3524, %v3524
      %3533 = vst.msk [vmem:[%s278] sm:$0xf] %vm280, %v3525
      %3534 = vst.msk [vmem:[%s278 + $0x4] sm:$0xf] %vm280, %v3526
      %3535 = vst.msk [vmem:[%s278 + $0x8] sm:$0xf] %vm280, %v3527
      %3536 = vst.msk [vmem:[%s278 + $0xc] sm:$0xf] %vm280, %v3528
      %3537 = vst.msk [vmem:[%s278 + $0x10] sm:$0xf] %vm280, %v3529
      %3538 = vst.msk [vmem:[%s278 + $0x14] sm:$0xf] %vm280, %v3530
      %3539 = vst.msk [vmem:[%s278 + $0x18] sm:$0xf] %vm280, %v3531
      %3540 = vst.msk [vmem:[%s278 + $0x1c] sm:$0xf] %vm280, %v3532
      %p3541 = scmp.lt.s32.totalorder %s18, 1
      %s3542 = scalar_select %p3541, %s18, 1
      %s3543 = smul.addr %s3542, 8
      %s3544 = smul.addr %s3543, 4
      %s3545 = scalar_lea.vmem %s7, %s3544
      // Predicated region
      $region49: #{_lambda_.3} parent=47 // pred_check
        %p3546 = pneg %p188
      $region50: #{_lambda_.3} parent=47 // pred_check_branch
        %3548 = sbr.rel (%p3546) target = $region52
      $region51: #{_lambda_.3} parent=47 // pred_region
        _
      $region52: #{_lambda_.3} parent=47 // pred_fallthru
        _
    $region48: #{_lambda_.3} parent=5 // pred_fallthru
      _
    %p3549 = scmp.le.s32.totalorder 2, %s13
    // Predicated region
    $region53: #{_lambda_.3} parent=5 // pred_check
      %p3550 = pneg %p3549
    $region54: #{_lambda_.3} parent=5 // pred_check_branch
      %3552 = sbr.rel (%p3550) target = $region56
    $region55: #{_lambda_.3} parent=5 // pred_region
      %s3553 = ssub.s32 %s13, 2
      // Predicated region
      $region57: #{_lambda_.3} parent=55 // pred_check
        %p3554 = pneg %p194
      $region58: #{_lambda_.3} parent=55 // pred_check_branch
        %3556 = sbr.rel (%p3554) target = $region60
      $region59: #{_lambda_.3} parent=55 // pred_region
        %p3557 = scmp.lt.s32.totalorder %s19, 1
        %s3558 = scalar_select %p3557, %s19, 1
        %s3559 = smul.addr %s3558, 8
        %s3560 = smul.addr %s3559, 4
        %s3561 = scalar_lea.vmem %s7, %s3560
      $region60: #{_lambda_.3} parent=55 // pred_fallthru
        _
    $region56: #{_lambda_.3} parent=5 // pred_fallthru
      _
  $region6: #{_lambda_.3} parent=0 // loop_footer
    %s17 = sadd.s32 1, %s13
  $region7: #{_lambda_.3} parent=0 // loop_footer_branch
    %12 = sbr.rel target = $region3
  $region8: #{_lambda_.3} parent=0 // loop_exit
    _

</llo_original>
